<compile_context>
chip_gen: v7x
topology: tpu7x:2x2x1
jax: 0.10.0
libtpu: 0.0.40
codegen_flags: <defaults>
</compile_context>

<pallas_src>
import functools

import jax
import jax.numpy as jnp
from jax import lax
from jax.experimental import pallas as pl
from jax.experimental.pallas import tpu as pltpu

EPS = 1e-5


# --------------------------------- fused Pallas kernel --------------------------------- #

def _fused_preact_block_kernel(
    x_ref,                    # stride 1: (N, H, W, Cin) f32
                              # stride 2: (4N, Ho, Wo, Cin) f32, parity-split (see wrapper)
    bn1_g_ref, bn1_b_ref,     # (1, 1, 1, Cin) f32
    w1_ref,                   # (9*Cin, Cout [+Cout]) bf16: conv1 taps packed along K; when a
                              #   conv shortcut exists its 1x1 weight occupies the extra Cout
                              #   output columns (rows of the centre tap) -> one shared matmul
    bn2_g_ref, bn2_b_ref,     # (1, Cout) f32
    w2_ref,                   # (9*Cout, Cout) bf16: conv2 taps packed along K
    fc1_w_ref, fc1_b_ref,     # (Cout, Chid) f32 / (1, Chid) f32
    fc2_w_ref, fc2_b_ref,     # (Chid, Cout) f32 / (1, Cout) f32
    o_ref,                    # (N, Ho*Wo, Cout) f32
    in_pad,                   # bf16 scratch: zero-halo padded relu(bn1(x))
    mid_pad,                  # bf16 scratch: zero-halo padded relu(bn2(conv1))
    patch1, patch2,           # bf16 scratch: tap-packed im2col patches
    *, n, h, w, ho, wo, cin, cout, stride, has_shortcut):
  m_out = n * ho * wo

  # ---- bn1 + relu (training-mode batch statistics, two-pass for accuracy) ----
  x = x_ref[...]
  m_in = x.shape[0] * x.shape[1] * x.shape[2]
  mu = jnp.sum(x, axis=(0, 1, 2), keepdims=True) * (1.0 / m_in)
  xc = x - mu
  var = jnp.sum(xc * xc, axis=(0, 1, 2), keepdims=True) * (1.0 / m_in)
  pre = jnp.maximum(xc * (lax.rsqrt(var + EPS) * bn1_g_ref[...]) + bn1_b_ref[...], 0.0)
  pre = pre.astype(jnp.bfloat16)                      # conv inputs only (MXU operands)

  # Identity residual: stash it in o_ref now (x is already loaded) so neither x nor the
  # shortcut stays live in vregs across the conv / SE math.
  if not has_shortcut:
    o_ref[...] = x.reshape(n, ho * wo, cout)

  # ---- scatter relu(bn1(x)) into a zero-halo padded VMEM scratch (bulk stores only) ----
  if stride == 1:
    in_pad[:, 0, :, :] = jnp.zeros((n, w + 2, cin), jnp.bfloat16)
    in_pad[:, h + 1, :, :] = jnp.zeros((n, w + 2, cin), jnp.bfloat16)
    in_pad[:, :, 0, :] = jnp.zeros((n, h + 2, cin), jnp.bfloat16)
    in_pad[:, :, w + 1, :] = jnp.zeros((n, h + 2, cin), jnp.bfloat16)
    in_pad[:, 1:h + 1, 1:w + 1, :] = pre
  else:
    # stride 2: x arrives parity-split as (4N, Ho, Wo, Cin); every tap of the strided conv
    # is then a CONTIGUOUS slice of this scratch (no strided ref loads at all).
    in_pad[:, 0, :, :] = jnp.zeros((4 * n, wo + 1, cin), jnp.bfloat16)
    in_pad[:, :, 0, :] = jnp.zeros((4 * n, ho + 1, cin), jnp.bfloat16)
    in_pad[:, 1:, 1:, :] = pre

  # ---- conv1 (3x3, stride) + fused 1x1 shortcut conv: tap-packed im2col, one matmul ----
  for kh in range(3):
    for kw in range(3):
      t = kh * 3 + kw
      if stride == 1:
        win = in_pad[:, kh:kh + ho, kw:kw + wo, :]
      else:
        a = 0 if kh == 1 else 1          # row parity of input row (2*io + kh - 1)
        b = 0 if kw == 1 else 1
        rs = 0 if kh == 0 else 1         # 0 -> window starts at the zero halo (row -1)
        cs = 0 if kw == 0 else 1
        base = (2 * a + b) * n
        win = in_pad[base:base + n, rs:rs + ho, cs:cs + wo, :]
      patch1[:, :, :, t * cin:(t + 1) * cin] = win

  big = jnp.dot(patch1[...].reshape(m_out, 9 * cin), w1_ref[...],
                preferred_element_type=jnp.float32)
  acc1 = big[:, :cout]                                # conv1 output (M_out, Cout) f32
  if has_shortcut:
    # The 1x1 shortcut conv came out of the same MXU matmul (extra output columns).
    o_ref[...] = big[:, cout:].reshape(n, ho * wo, cout)

  # ---- bn2 + relu (two-pass batch statistics) ----
  mu2 = jnp.sum(acc1, axis=0, keepdims=True) * (1.0 / m_out)
  c2 = acc1 - mu2
  var2 = jnp.sum(c2 * c2, axis=0, keepdims=True) * (1.0 / m_out)
  y2 = jnp.maximum(c2 * (lax.rsqrt(var2 + EPS) * bn2_g_ref[...]) + bn2_b_ref[...], 0.0)
  y2 = y2.astype(jnp.bfloat16).reshape(n, ho, wo, cout)

  # ---- conv2 (3x3, stride 1, pad 1): same zero-halo + tap-packed single matmul ----
  mid_pad[:, 0, :, :] = jnp.zeros((n, wo + 2, cout), jnp.bfloat16)
  mid_pad[:, ho + 1, :, :] = jnp.zeros((n, wo + 2, cout), jnp.bfloat16)
  mid_pad[:, :, 0, :] = jnp.zeros((n, ho + 2, cout), jnp.bfloat16)
  mid_pad[:, :, wo + 1, :] = jnp.zeros((n, ho + 2, cout), jnp.bfloat16)
  mid_pad[:, 1:ho + 1, 1:wo + 1, :] = y2

  for kh in range(3):
    for kw in range(3):
      t = kh * 3 + kw
      patch2[:, :, :, t * cout:(t + 1) * cout] = mid_pad[:, kh:kh + ho, kw:kw + wo, :]
  acc2 = jnp.dot(patch2[...].reshape(m_out, 9 * cout), w2_ref[...],
                 preferred_element_type=jnp.float32)   # (M_out, Cout) f32

  # ---- squeeze-excite gate + residual add (residual already sits in o_ref) ----
  out3 = acc2.reshape(n, ho * wo, cout)
  pooled = jnp.sum(out3, axis=1) * (1.0 / (ho * wo))   # (N, Cout) global average pool
  hdn = jnp.maximum(jnp.dot(pooled, fc1_w_ref[...],
                            preferred_element_type=jnp.float32) + fc1_b_ref[...], 0.0)
  z = jnp.dot(hdn, fc2_w_ref[...],
              preferred_element_type=jnp.float32) + fc2_b_ref[...]
  gate = 1.0 / (1.0 + jnp.exp(-z))                     # exact sigmoid (accuracy)
  o_ref[...] = out3 * gate[:, None, :] + o_ref[...]


# ------------------------------------ wrapper (glue) ------------------------------------ #

def _full_spec(shape):
  return pl.BlockSpec(shape, lambda i: (0,) * len(shape))


@functools.partial(jax.jit, static_argnames=("stride",))
def preact_block_forward(x_nchw, params, stride):
  x = jnp.transpose(x_nchw, (0, 2, 3, 1)).astype(jnp.float32)      # NCHW -> NHWC
  N, H, W, Cin = x.shape
  Cout = params["conv1_w"].shape[-1]
  Chid = params["fc1_w"].shape[-1]
  assert stride in (1, 2)
  if stride == 2:
    assert H % 2 == 0 and W % 2 == 0
  Ho = (H - 1) // stride + 1
  Wo = (W - 1) // stride + 1
  has_shortcut = (stride != 1) or (Cin != Cout)

  # ---- input layout (tiny XLA glue; NO channel padding -> no inflated HBM traffic) ----
  if stride == 1:
    x_in = x                                                       # (N, H, W, Cin)
    in_pad_shape = (N, H + 2, W + 2, Cin)
  else:
    # Parity split so the strided 3x3 taps become contiguous slices in the kernel:
    #   x_in[(2a+b)*N + n, p, q, :] = x[n, 2p + a, 2q + b, :]
    x_in = jnp.transpose(x.reshape(N, Ho, 2, Wo, 2, Cin),
                         (2, 4, 0, 1, 3, 5)).reshape(4 * N, Ho, Wo, Cin)
    in_pad_shape = (4 * N, Ho + 1, Wo + 1, Cin)

  # ---- weight packing: taps along K; shortcut 1x1 folded into conv1's matmul ----
  w1p = params["conv1_w"].reshape(9 * Cin, Cout)
  if has_shortcut:
    sc_cols = jnp.zeros((9 * Cin, Cout), jnp.float32)
    sc_cols = sc_cols.at[4 * Cin:5 * Cin, :].set(params["sc_w"])   # centre-tap rows
    w1p = jnp.concatenate([w1p, sc_cols], axis=1)
  w1p = w1p.astype(jnp.bfloat16)
  w2p = params["conv2_w"].reshape(9 * Cout, Cout).astype(jnp.bfloat16)

  bn1_g = params["bn1_g"].reshape(1, 1, 1, Cin)
  bn1_b = params["bn1_b"].reshape(1, 1, 1, Cin)
  bn2_g = params["bn2_g"].reshape(1, Cout)
  bn2_b = params["bn2_b"].reshape(1, Cout)
  fc1_b = params["fc1_b"].reshape(1, Chid)
  fc2_b = params["fc2_b"].reshape(1, Cout)

  args = (x_in, bn1_g, bn1_b, w1p, bn2_g, bn2_b, w2p,
          params["fc1_w"], fc1_b, params["fc2_w"], fc2_b)

  kernel = functools.partial(
      _fused_preact_block_kernel,
      n=N, h=H, w=W, ho=Ho, wo=Wo, cin=Cin, cout=Cout,
      stride=stride, has_shortcut=has_shortcut)

  out = pl.pallas_call(
      kernel,
      out_shape=jax.ShapeDtypeStruct((N, Ho * Wo, Cout), jnp.float32),
      grid=(1,),
      in_specs=[_full_spec(a.shape) for a in args],
      out_specs=_full_spec((N, Ho * Wo, Cout)),
      scratch_shapes=[
          pltpu.VMEM(in_pad_shape, jnp.bfloat16),                  # padded relu(bn1(x))
          pltpu.VMEM((N, Ho + 2, Wo + 2, Cout), jnp.bfloat16),     # padded relu(bn2(conv1))
          pltpu.VMEM((N, Ho, Wo, 9 * Cin), jnp.bfloat16),          # conv1 im2col patch
          pltpu.VMEM((N, Ho, Wo, 9 * Cout), jnp.bfloat16),         # conv2 im2col patch
      ],
      compiler_params=pltpu.CompilerParams(
          dimension_semantics=("arbitrary",),
          vmem_limit_bytes=32 * 1024 * 1024),
  )(*args)

  out = out.reshape(N, Ho, Wo, Cout)                               # only real channels written
  return jnp.transpose(out, (0, 3, 1, 2))                          # NHWC -> NCHW


# ------------------------------ pure-JAX reference (check) ------------------------------ #

@functools.partial(jax.jit, static_argnames=("stride",))
def reference_forward(x_nchw, params, stride):
  hp = jax.lax.Precision.HIGHEST
  x = jnp.transpose(x_nchw, (0, 2, 3, 1)).astype(jnp.float32)
  Cin = x.shape[-1]
  Cout = params["conv1_w"].shape[-1]

  def bn_relu_ref(t, g, b):
    m = jnp.mean(t, axis=(0, 1, 2))
    v = jnp.mean((t - m) ** 2, axis=(0, 1, 2))
    return jnp.maximum((t - m) * lax.rsqrt(v + EPS) * g + b, 0.0)

  def conv(t, w, s, pad):
    return lax.conv_general_dilated(t, w, (s, s), pad,
                                    dimension_numbers=("NHWC", "HWIO", "NHWC"),
                                    precision=hp)

  pre = bn_relu_ref(x, params["bn1_g"], params["bn1_b"])
  if stride != 1 or Cin != Cout:
    sc = conv(pre, params["sc_w"][None, None], stride, "VALID")
  else:
    sc = x
  out = conv(pre, params["conv1_w"], stride, ((1, 1), (1, 1)))
  out = bn_relu_ref(out, params["bn2_g"], params["bn2_b"])
  out = conv(out, params["conv2_w"], 1, ((1, 1), (1, 1)))
  w = jnp.mean(out, axis=(1, 2), keepdims=True)
  w = jnp.maximum(jnp.einsum("nhwc,cd->nhwd", w, params["fc1_w"], precision=hp)
                  + params["fc1_b"], 0.0)
  w = jax.nn.sigmoid(jnp.einsum("nhwc,cd->nhwd", w, params["fc2_w"], precision=hp)
                     + params["fc2_b"])
  out = out * w + sc
  return jnp.transpose(out, (0, 3, 1, 2))


# -------------------------------------------- main -------------------------------------------- #

def make_params(key, in_planes, planes):
  ks = jax.random.split(key, 11)
  return {
      "bn1_g":   1.0 + 0.1 * jax.random.normal(ks[0], (in_planes,), jnp.float32),
      "bn1_b":   0.1 * jax.random.normal(ks[1], (in_planes,), jnp.float32),
      "conv1_w": 0.1 * jax.random.normal(ks[2], (3, 3, in_planes, planes), jnp.float32),
      "bn2_g":   1.0 + 0.1 * jax.random.normal(ks[3], (planes,), jnp.float32),
      "bn2_b":   0.1 * jax.random.normal(ks[4], (planes,), jnp.float32),
      "conv2_w": 0.1 * jax.random.normal(ks[5], (3, 3, planes, planes), jnp.float32),
      "sc_w":    0.1 * jax.random.normal(ks[6], (in_planes, planes), jnp.float32),
      "fc1_w":   0.1 * jax.random.normal(ks[7], (planes, planes // 16), jnp.float32),
      "fc1_b":   0.1 * jax.random.normal(ks[8], (planes // 16,), jnp.float32),
      "fc2_w":   0.1 * jax.random.normal(ks[9], (planes // 16, planes), jnp.float32),
      "fc2_b":   0.1 * jax.random.normal(ks[10], (planes,), jnp.float32),
  }


if __name__ == "__main__":
  N, H, W = 2, 16, 16
  key = jax.random.PRNGKey(0)

  configs = [
      (16, 32, 2),   # conv shortcut branch (stride 2, channel change)
      (32, 32, 1),   # identity shortcut branch
  ]
  for in_planes, planes, stride in configs:
    params = make_params(key, in_planes, planes)
    x = jax.random.normal(jax.random.fold_in(key, stride),
                          (N, in_planes, H, W), jnp.float32)        # NCHW, like PyTorch

    out = jax.block_until_ready(preact_block_forward(x, params, stride))
    ref = jax.block_until_ready(reference_forward(x, params, stride))

    assert out.shape == (N, planes, H // stride, W // stride), out.shape
    assert bool(jnp.all(jnp.isfinite(out)))
    # bf16 MXU operands (f32 accumulation) through two chained 3x3 convs -> compare against
    # the f32 HIGHEST-precision reference with a bf16-appropriate tolerance.
    err = float(jnp.max(jnp.abs(out - ref)))
    assert bool(jnp.allclose(out, ref, atol=3e-2, rtol=3e-2)), (stride, err)

  print("KERNEL_OK")
</pallas_src>

<mosaic_0001>
module attributes {stable_mosaic.version = 11 : i64} {
  func.func @_fused_preact_block_kernel(%arg0: i32, %arg1: memref<8x8x8x16xf32, #tpu.memory_space<vmem>>, %arg2: memref<1x1x1x16xf32, #tpu.memory_space<vmem>>, %arg3: memref<1x1x1x16xf32, #tpu.memory_space<vmem>>, %arg4: memref<144x64xbf16, #tpu.memory_space<vmem>>, %arg5: memref<1x32xf32, #tpu.memory_space<vmem>>, %arg6: memref<1x32xf32, #tpu.memory_space<vmem>>, %arg7: memref<288x32xbf16, #tpu.memory_space<vmem>>, %arg8: memref<32x2xf32, #tpu.memory_space<vmem>>, %arg9: memref<1x2xf32, #tpu.memory_space<vmem>>, %arg10: memref<2x32xf32, #tpu.memory_space<vmem>>, %arg11: memref<1x32xf32, #tpu.memory_space<vmem>>, %arg12: memref<2x64x32xf32, #tpu.memory_space<vmem>>, %arg13: memref<8x9x9x16xbf16, #tpu.memory_space<vmem>>, %arg14: memref<2x10x10x32xbf16, #tpu.memory_space<vmem>>, %arg15: memref<2x8x8x144xbf16, #tpu.memory_space<vmem>>, %arg16: memref<2x8x8x288xbf16, #tpu.memory_space<vmem>>) attributes {dimension_semantics = [#tpu.dimension_semantics<arbitrary>], iteration_bounds = array<i64: 1>, scalar_prefetch = 0 : i64, scratch_operands = 4 : i64, tpu.core_type = #tpu.core_type<tc>, window_params = [{pipeline_mode = #tpu.pipeline_mode<synchronous>, transform_indices = @transform_0, window_bounds = array<i64: 8, 8, 8, 16>}, {pipeline_mode = #tpu.pipeline_mode<synchronous>, transform_indices = @transform_1, window_bounds = array<i64: 1, 1, 1, 16>}, {pipeline_mode = #tpu.pipeline_mode<synchronous>, transform_indices = @transform_2, window_bounds = array<i64: 1, 1, 1, 16>}, {pipeline_mode = #tpu.pipeline_mode<synchronous>, transform_indices = @transform_3, window_bounds = array<i64: 144, 64>}, {pipeline_mode = #tpu.pipeline_mode<synchronous>, transform_indices = @transform_4, window_bounds = array<i64: 1, 32>}, {pipeline_mode = #tpu.pipeline_mode<synchronous>, transform_indices = @transform_5, window_bounds = array<i64: 1, 32>}, {pipeline_mode = #tpu.pipeline_mode<synchronous>, transform_indices = @transform_6, window_bounds = array<i64: 288, 32>}, {pipeline_mode = #tpu.pipeline_mode<synchronous>, transform_indices = @transform_7, window_bounds = array<i64: 32, 2>}, {pipeline_mode = #tpu.pipeline_mode<synchronous>, transform_indices = @transform_8, window_bounds = array<i64: 1, 2>}, {pipeline_mode = #tpu.pipeline_mode<synchronous>, transform_indices = @transform_9, window_bounds = array<i64: 2, 32>}, {pipeline_mode = #tpu.pipeline_mode<synchronous>, transform_indices = @transform_10, window_bounds = array<i64: 1, 32>}, {pipeline_mode = #tpu.pipeline_mode<synchronous>, transform_indices = @transform_11, window_bounds = array<i64: 2, 64, 32>}]} {
    %c0 = arith.constant 0 : index
    %c0_0 = arith.constant 0 : index
    %c0_1 = arith.constant 0 : index
    %c0_2 = arith.constant 0 : index
    %0 = vector.load %arg1[%c0, %c0_0, %c0_1, %c0_2] : memref<8x8x8x16xf32, #tpu.memory_space<vmem>>, vector<8x8x8x16xf32>
    %cst = arith.constant dense<0.000000e+00> : vector<16xf32>
    %1 = vector.multi_reduction <add>, %0, %cst [0, 1, 2] : vector<8x8x8x16xf32> to vector<16xf32>
    %2 = vector.shape_cast %1 : vector<16xf32> to vector<1x1x1x16xf32>
    %cst_3 = arith.constant 0.001953125 : f32
    %3 = vector.broadcast %cst_3 : f32 to vector<1x1x1x16xf32>
    %4 = arith.mulf %2, %3 : vector<1x1x1x16xf32>
    %5 = vector.broadcast %4 : vector<1x1x1x16xf32> to vector<8x8x8x16xf32>
    %6 = arith.subf %0, %5 : vector<8x8x8x16xf32>
    %7 = arith.mulf %6, %6 : vector<8x8x8x16xf32>
    %cst_4 = arith.constant dense<0.000000e+00> : vector<16xf32>
    %8 = vector.multi_reduction <add>, %7, %cst_4 [0, 1, 2] : vector<8x8x8x16xf32> to vector<16xf32>
    %9 = vector.shape_cast %8 : vector<16xf32> to vector<1x1x1x16xf32>
    %cst_5 = arith.constant 0.001953125 : f32
    %10 = vector.broadcast %cst_5 : f32 to vector<1x1x1x16xf32>
    %11 = arith.mulf %9, %10 : vector<1x1x1x16xf32>
    %cst_6 = arith.constant 9.99999974E-6 : f32
    %12 = vector.broadcast %cst_6 : f32 to vector<1x1x1x16xf32>
    %13 = arith.addf %11, %12 : vector<1x1x1x16xf32>
    %14 = math.rsqrt %13 : vector<1x1x1x16xf32>
    %c0_7 = arith.constant 0 : index
    %c0_8 = arith.constant 0 : index
    %c0_9 = arith.constant 0 : index
    %c0_10 = arith.constant 0 : index
    %15 = vector.load %arg2[%c0_7, %c0_8, %c0_9, %c0_10] : memref<1x1x1x16xf32, #tpu.memory_space<vmem>>, vector<1x1x1x16xf32>
    %16 = arith.mulf %14, %15 : vector<1x1x1x16xf32>
    %17 = vector.broadcast %16 : vector<1x1x1x16xf32> to vector<8x8x8x16xf32>
    %18 = arith.mulf %6, %17 : vector<8x8x8x16xf32>
    %c0_11 = arith.constant 0 : index
    %c0_12 = arith.constant 0 : index
    %c0_13 = arith.constant 0 : index
    %c0_14 = arith.constant 0 : index
    %19 = vector.load %arg3[%c0_11, %c0_12, %c0_13, %c0_14] : memref<1x1x1x16xf32, #tpu.memory_space<vmem>>, vector<1x1x1x16xf32>
    %20 = vector.broadcast %19 : vector<1x1x1x16xf32> to vector<8x8x8x16xf32>
    %21 = arith.addf %18, %20 : vector<8x8x8x16xf32>
    %cst_15 = arith.constant 0.000000e+00 : f32
    %22 = vector.broadcast %cst_15 : f32 to vector<8x8x8x16xf32>
    %23 = arith.maximumf %21, %22 : vector<8x8x8x16xf32>
    %24 = arith.truncf %23 : vector<8x8x8x16xf32> to vector<8x8x8x16xbf16>
    %cst_16 = arith.constant 0.000000e+00 : bf16
    %25 = vector.broadcast %cst_16 : bf16 to vector<8x9x16xbf16>
    %c0_17 = arith.constant 0 : index
    %c0_18 = arith.constant 0 : index
    %c0_19 = arith.constant 0 : index
    %c0_20 = arith.constant 0 : index
    %26 = vector.load %arg13[%c0_17, %c0_18, %c0_19, %c0_20] : memref<8x9x9x16xbf16, #tpu.memory_space<vmem>>, vector<8x1x9x16xbf16>
    %27 = vector.shape_cast %26 : vector<8x1x9x16xbf16> to vector<8x9x16xbf16>
    %28 = vector.shape_cast %25 : vector<8x9x16xbf16> to vector<8x1x9x16xbf16>
    tpu.vector_store %arg13[%c0_17, %c0_18, %c0_19, %c0_20], %28 {strides = array<i32>} : memref<8x9x9x16xbf16, #tpu.memory_space<vmem>>, vector<8x1x9x16xbf16>,
    %cst_21 = arith.constant 0.000000e+00 : bf16
    %29 = vector.broadcast %cst_21 : bf16 to vector<8x9x16xbf16>
    %c0_22 = arith.constant 0 : index
    %c0_23 = arith.constant 0 : index
    %c0_24 = arith.constant 0 : index
    %c0_25 = arith.constant 0 : index
    %30 = vector.load %arg13[%c0_22, %c0_23, %c0_24, %c0_25] : memref<8x9x9x16xbf16, #tpu.memory_space<vmem>>, vector<8x9x1x16xbf16>
    %31 = vector.shape_cast %30 : vector<8x9x1x16xbf16> to vector<8x9x16xbf16>
    %32 = vector.shape_cast %29 : vector<8x9x16xbf16> to vector<8x9x1x16xbf16>
    tpu.vector_store %arg13[%c0_22, %c0_23, %c0_24, %c0_25], %32 {strides = array<i32>} : memref<8x9x9x16xbf16, #tpu.memory_space<vmem>>, vector<8x9x1x16xbf16>,
    %c0_26 = arith.constant 0 : index
    %c1 = arith.constant 1 : index
    %c1_27 = arith.constant 1 : index
    %c0_28 = arith.constant 0 : index
    %33 = vector.load %arg13[%c0_26, %c1, %c1_27, %c0_28] : memref<8x9x9x16xbf16, #tpu.memory_space<vmem>>, vector<8x8x8x16xbf16>
    tpu.vector_store %arg13[%c0_26, %c1, %c1_27, %c0_28], %24 {strides = array<i32>} : memref<8x9x9x16xbf16, #tpu.memory_space<vmem>>, vector<8x8x8x16xbf16>,
    %c6 = arith.constant 6 : index
    %c0_29 = arith.constant 0 : index
    %c0_30 = arith.constant 0 : index
    %c0_31 = arith.constant 0 : index
    %34 = vector.load %arg13[%c6, %c0_29, %c0_30, %c0_31] : memref<8x9x9x16xbf16, #tpu.memory_space<vmem>>, vector<2x8x8x16xbf16>
    %c0_32 = arith.constant 0 : index
    %c0_33 = arith.constant 0 : index
    %c0_34 = arith.constant 0 : index
    %c0_35 = arith.constant 0 : index
    %35 = vector.load %arg15[%c0_32, %c0_33, %c0_34, %c0_35] : memref<2x8x8x144xbf16, #tpu.memory_space<vmem>>, vector<2x8x8x16xbf16>
    tpu.vector_store %arg15[%c0_32, %c0_33, %c0_34, %c0_35], %34 {strides = array<i32>} : memref<2x8x8x144xbf16, #tpu.memory_space<vmem>>, vector<2x8x8x16xbf16>,
    %c4 = arith.constant 4 : index
    %c0_36 = arith.constant 0 : index
    %c1_37 = arith.constant 1 : index
    %c0_38 = arith.constant 0 : index
    %36 = vector.load %arg13[%c4, %c0_36, %c1_37, %c0_38] : memref<8x9x9x16xbf16, #tpu.memory_space<vmem>>, vector<2x8x8x16xbf16>
    %c0_39 = arith.constant 0 : index
    %c0_40 = arith.constant 0 : index
    %c0_41 = arith.constant 0 : index
    %c16 = arith.constant 16 : index
    %37 = vector.load %arg15[%c0_39, %c0_40, %c0_41, %c16] : memref<2x8x8x144xbf16, #tpu.memory_space<vmem>>, vector<2x8x8x16xbf16>
    tpu.vector_store %arg15[%c0_39, %c0_40, %c0_41, %c16], %36 {strides = array<i32>} : memref<2x8x8x144xbf16, #tpu.memory_space<vmem>>, vector<2x8x8x16xbf16>,
    %c6_42 = arith.constant 6 : index
    %c0_43 = arith.constant 0 : index
    %c1_44 = arith.constant 1 : index
    %c0_45 = arith.constant 0 : index
    %38 = vector.load %arg13[%c6_42, %c0_43, %c1_44, %c0_45] : memref<8x9x9x16xbf16, #tpu.memory_space<vmem>>, vector<2x8x8x16xbf16>
    %c0_46 = arith.constant 0 : index
    %c0_47 = arith.constant 0 : index
    %c0_48 = arith.constant 0 : index
    %c32 = arith.constant 32 : index
    %39 = vector.load %arg15[%c0_46, %c0_47, %c0_48, %c32] : memref<2x8x8x144xbf16, #tpu.memory_space<vmem>>, vector<2x8x8x16xbf16>
    tpu.vector_store %arg15[%c0_46, %c0_47, %c0_48, %c32], %38 {strides = array<i32>} : memref<2x8x8x144xbf16, #tpu.memory_space<vmem>>, vector<2x8x8x16xbf16>,
    %c2 = arith.constant 2 : index
    %c1_49 = arith.constant 1 : index
    %c0_50 = arith.constant 0 : index
    %c0_51 = arith.constant 0 : index
    %40 = vector.load %arg13[%c2, %c1_49, %c0_50, %c0_51] : memref<8x9x9x16xbf16, #tpu.memory_space<vmem>>, vector<2x8x8x16xbf16>
    %c0_52 = arith.constant 0 : index
    %c0_53 = arith.constant 0 : index
    %c0_54 = arith.constant 0 : index
    %c48 = arith.constant 48 : index
    %41 = vector.load %arg15[%c0_52, %c0_53, %c0_54, %c48] : memref<2x8x8x144xbf16, #tpu.memory_space<vmem>>, vector<2x8x8x16xbf16>
    tpu.vector_store %arg15[%c0_52, %c0_53, %c0_54, %c48], %40 {strides = array<i32>} : memref<2x8x8x144xbf16, #tpu.memory_space<vmem>>, vector<2x8x8x16xbf16>,
    %c0_55 = arith.constant 0 : index
    %c1_56 = arith.constant 1 : index
    %c1_57 = arith.constant 1 : index
    %c0_58 = arith.constant 0 : index
    %42 = vector.load %arg13[%c0_55, %c1_56, %c1_57, %c0_58] : memref<8x9x9x16xbf16, #tpu.memory_space<vmem>>, vector<2x8x8x16xbf16>
    %c0_59 = arith.constant 0 : index
    %c0_60 = arith.constant 0 : index
    %c0_61 = arith.constant 0 : index
    %c64 = arith.constant 64 : index
    %43 = vector.load %arg15[%c0_59, %c0_60, %c0_61, %c64] : memref<2x8x8x144xbf16, #tpu.memory_space<vmem>>, vector<2x8x8x16xbf16>
    tpu.vector_store %arg15[%c0_59, %c0_60, %c0_61, %c64], %42 {strides = array<i32>} : memref<2x8x8x144xbf16, #tpu.memory_space<vmem>>, vector<2x8x8x16xbf16>,
    %c2_62 = arith.constant 2 : index
    %c1_63 = arith.constant 1 : index
    %c1_64 = arith.constant 1 : index
    %c0_65 = arith.constant 0 : index
    %44 = vector.load %arg13[%c2_62, %c1_63, %c1_64, %c0_65] : memref<8x9x9x16xbf16, #tpu.memory_space<vmem>>, vector<2x8x8x16xbf16>
    %c0_66 = arith.constant 0 : index
    %c0_67 = arith.constant 0 : index
    %c0_68 = arith.constant 0 : index
    %c80 = arith.constant 80 : index
    %45 = vector.load %arg15[%c0_66, %c0_67, %c0_68, %c80] : memref<2x8x8x144xbf16, #tpu.memory_space<vmem>>, vector<2x8x8x16xbf16>
    tpu.vector_store %arg15[%c0_66, %c0_67, %c0_68, %c80], %44 {strides = array<i32>} : memref<2x8x8x144xbf16, #tpu.memory_space<vmem>>, vector<2x8x8x16xbf16>,
    %c6_69 = arith.constant 6 : index
    %c1_70 = arith.constant 1 : index
    %c0_71 = arith.constant 0 : index
    %c0_72 = arith.constant 0 : index
    %46 = vector.load %arg13[%c6_69, %c1_70, %c0_71, %c0_72] : memref<8x9x9x16xbf16, #tpu.memory_space<vmem>>, vector<2x8x8x16xbf16>
    %c0_73 = arith.constant 0 : index
    %c0_74 = arith.constant 0 : index
    %c0_75 = arith.constant 0 : index
    %c96 = arith.constant 96 : index
    %47 = vector.load %arg15[%c0_73, %c0_74, %c0_75, %c96] : memref<2x8x8x144xbf16, #tpu.memory_space<vmem>>, vector<2x8x8x16xbf16>
    tpu.vector_store %arg15[%c0_73, %c0_74, %c0_75, %c96], %46 {strides = array<i32>} : memref<2x8x8x144xbf16, #tpu.memory_space<vmem>>, vector<2x8x8x16xbf16>,
    %c4_76 = arith.constant 4 : index
    %c1_77 = arith.constant 1 : index
    %c1_78 = arith.constant 1 : index
    %c0_79 = arith.constant 0 : index
    %48 = vector.load %arg13[%c4_76, %c1_77, %c1_78, %c0_79] : memref<8x9x9x16xbf16, #tpu.memory_space<vmem>>, vector<2x8x8x16xbf16>
    %c0_80 = arith.constant 0 : index
    %c0_81 = arith.constant 0 : index
    %c0_82 = arith.constant 0 : index
    %c112 = arith.constant 112 : index
    %49 = vector.load %arg15[%c0_80, %c0_81, %c0_82, %c112] : memref<2x8x8x144xbf16, #tpu.memory_space<vmem>>, vector<2x8x8x16xbf16>
    tpu.vector_store %arg15[%c0_80, %c0_81, %c0_82, %c112], %48 {strides = array<i32>} : memref<2x8x8x144xbf16, #tpu.memory_space<vmem>>, vector<2x8x8x16xbf16>,
    %c6_83 = arith.constant 6 : index
    %c1_84 = arith.constant 1 : index
    %c1_85 = arith.constant 1 : index
    %c0_86 = arith.constant 0 : index
    %50 = vector.load %arg13[%c6_83, %c1_84, %c1_85, %c0_86] : memref<8x9x9x16xbf16, #tpu.memory_space<vmem>>, vector<2x8x8x16xbf16>
    %c0_87 = arith.constant 0 : index
    %c0_88 = arith.constant 0 : index
    %c0_89 = arith.constant 0 : index
    %c128 = arith.constant 128 : index
    %51 = vector.load %arg15[%c0_87, %c0_88, %c0_89, %c128] : memref<2x8x8x144xbf16, #tpu.memory_space<vmem>>, vector<2x8x8x16xbf16>
    tpu.vector_store %arg15[%c0_87, %c0_88, %c0_89, %c128], %50 {strides = array<i32>} : memref<2x8x8x144xbf16, #tpu.memory_space<vmem>>, vector<2x8x8x16xbf16>,
    %c0_90 = arith.constant 0 : index
    %c0_91 = arith.constant 0 : index
    %c0_92 = arith.constant 0 : index
    %c0_93 = arith.constant 0 : index
    %52 = vector.load %arg15[%c0_90, %c0_91, %c0_92, %c0_93] : memref<2x8x8x144xbf16, #tpu.memory_space<vmem>>, vector<2x8x8x144xbf16>
    %53 = vector.shape_cast %52 : vector<2x8x8x144xbf16> to vector<128x144xbf16>
    %c0_94 = arith.constant 0 : index
    %c0_95 = arith.constant 0 : index
    %54 = vector.load %arg4[%c0_94, %c0_95] : memref<144x64xbf16, #tpu.memory_space<vmem>>, vector<144x64xbf16>
    %cst_96 = arith.constant dense<0.000000e+00> : vector<128x64xf32>
    %55 = tpu.matmul %53, %54, %cst_96 {dimension_numbers = #tpu.dot_dimension_numbers<[1], [0], [0], [1], [0, 0, 1, 1], [], []>} : vector<128x144xbf16>, vector<144x64xbf16>, vector<128x64xf32> -> vector<128x64xf32>
    %56 = vector.extract_strided_slice %55 {offsets = [0, 0], sizes = [128, 32], strides = [1, 1]} : vector<128x64xf32> to vector<128x32xf32>
    %57 = vector.extract_strided_slice %55 {offsets = [0, 32], sizes = [128, 32], strides = [1, 1]} : vector<128x64xf32> to vector<128x32xf32>
    %58 = vector.shape_cast %57 : vector<128x32xf32> to vector<2x64x32xf32>
    %c0_97 = arith.constant 0 : index
    %c0_98 = arith.constant 0 : index
    %c0_99 = arith.constant 0 : index
    %59 = vector.load %arg12[%c0_97, %c0_98, %c0_99] : memref<2x64x32xf32, #tpu.memory_space<vmem>>, vector<2x64x32xf32>
    tpu.vector_store %arg12[%c0_97, %c0_98, %c0_99], %58 {strides = array<i32>} : memref<2x64x32xf32, #tpu.memory_space<vmem>>, vector<2x64x32xf32>,
    %cst_100 = arith.constant dense<0.000000e+00> : vector<32xf32>
    %60 = vector.multi_reduction <add>, %56, %cst_100 [0] : vector<128x32xf32> to vector<32xf32>
    %61 = vector.shape_cast %60 : vector<32xf32> to vector<1x32xf32>
    %cst_101 = arith.constant 7.812500e-03 : f32
    %62 = vector.broadcast %cst_101 : f32 to vector<1x32xf32>
    %63 = arith.mulf %61, %62 : vector<1x32xf32>
    %64 = vector.broadcast %63 : vector<1x32xf32> to vector<128x32xf32>
    %65 = arith.subf %56, %64 : vector<128x32xf32>
    %66 = arith.mulf %65, %65 : vector<128x32xf32>
    %cst_102 = arith.constant dense<0.000000e+00> : vector<32xf32>
    %67 = vector.multi_reduction <add>, %66, %cst_102 [0] : vector<128x32xf32> to vector<32xf32>
    %68 = vector.shape_cast %67 : vector<32xf32> to vector<1x32xf32>
    %cst_103 = arith.constant 7.812500e-03 : f32
    %69 = vector.broadcast %cst_103 : f32 to vector<1x32xf32>
    %70 = arith.mulf %68, %69 : vector<1x32xf32>
    %cst_104 = arith.constant 9.99999974E-6 : f32
    %71 = vector.broadcast %cst_104 : f32 to vector<1x32xf32>
    %72 = arith.addf %70, %71 : vector<1x32xf32>
    %73 = math.rsqrt %72 : vector<1x32xf32>
    %c0_105 = arith.constant 0 : index
    %c0_106 = arith.constant 0 : index
    %74 = vector.load %arg5[%c0_105, %c0_106] : memref<1x32xf32, #tpu.memory_space<vmem>>, vector<1x32xf32>
    %75 = arith.mulf %73, %74 : vector<1x32xf32>
    %76 = vector.broadcast %75 : vector<1x32xf32> to vector<128x32xf32>
    %77 = arith.mulf %65, %76 : vector<128x32xf32>
    %c0_107 = arith.constant 0 : index
    %c0_108 = arith.constant 0 : index
    %78 = vector.load %arg6[%c0_107, %c0_108] : memref<1x32xf32, #tpu.memory_space<vmem>>, vector<1x32xf32>
    %79 = vector.broadcast %78 : vector<1x32xf32> to vector<128x32xf32>
    %80 = arith.addf %77, %79 : vector<128x32xf32>
    %cst_109 = arith.constant 0.000000e+00 : f32
    %81 = vector.broadcast %cst_109 : f32 to vector<128x32xf32>
    %82 = arith.maximumf %80, %81 : vector<128x32xf32>
    %83 = arith.truncf %82 : vector<128x32xf32> to vector<128x32xbf16>
    %84 = vector.shape_cast %83 : vector<128x32xbf16> to vector<2x8x8x32xbf16>
    %cst_110 = arith.constant 0.000000e+00 : bf16
    %85 = vector.broadcast %cst_110 : bf16 to vector<2x10x32xbf16>
    %c0_111 = arith.constant 0 : index
    %c0_112 = arith.constant 0 : index
    %c0_113 = arith.constant 0 : index
    %c0_114 = arith.constant 0 : index
    %86 = vector.load %arg14[%c0_111, %c0_112, %c0_113, %c0_114] : memref<2x10x10x32xbf16, #tpu.memory_space<vmem>>, vector<2x1x10x32xbf16>
    %87 = vector.shape_cast %86 : vector<2x1x10x32xbf16> to vector<2x10x32xbf16>
    %88 = vector.shape_cast %85 : vector<2x10x32xbf16> to vector<2x1x10x32xbf16>
    tpu.vector_store %arg14[%c0_111, %c0_112, %c0_113, %c0_114], %88 {strides = array<i32>} : memref<2x10x10x32xbf16, #tpu.memory_space<vmem>>, vector<2x1x10x32xbf16>,
    %cst_115 = arith.constant 0.000000e+00 : bf16
    %89 = vector.broadcast %cst_115 : bf16 to vector<2x10x32xbf16>
    %c0_116 = arith.constant 0 : index
    %c9 = arith.constant 9 : index
    %c0_117 = arith.constant 0 : index
    %c0_118 = arith.constant 0 : index
    %90 = vector.load %arg14[%c0_116, %c9, %c0_117, %c0_118] : memref<2x10x10x32xbf16, #tpu.memory_space<vmem>>, vector<2x1x10x32xbf16>
    %91 = vector.shape_cast %90 : vector<2x1x10x32xbf16> to vector<2x10x32xbf16>
    %92 = vector.shape_cast %89 : vector<2x10x32xbf16> to vector<2x1x10x32xbf16>
    tpu.vector_store %arg14[%c0_116, %c9, %c0_117, %c0_118], %92 {strides = array<i32>} : memref<2x10x10x32xbf16, #tpu.memory_space<vmem>>, vector<2x1x10x32xbf16>,
    %cst_119 = arith.constant 0.000000e+00 : bf16
    %93 = vector.broadcast %cst_119 : bf16 to vector<2x10x32xbf16>
    %c0_120 = arith.constant 0 : index
    %c0_121 = arith.constant 0 : index
    %c0_122 = arith.constant 0 : index
    %c0_123 = arith.constant 0 : index
    %94 = vector.load %arg14[%c0_120, %c0_121, %c0_122, %c0_123] : memref<2x10x10x32xbf16, #tpu.memory_space<vmem>>, vector<2x10x1x32xbf16>
    %95 = vector.shape_cast %94 : vector<2x10x1x32xbf16> to vector<2x10x32xbf16>
    %96 = vector.shape_cast %93 : vector<2x10x32xbf16> to vector<2x10x1x32xbf16>
    tpu.vector_store %arg14[%c0_120, %c0_121, %c0_122, %c0_123], %96 {strides = array<i32>} : memref<2x10x10x32xbf16, #tpu.memory_space<vmem>>, vector<2x10x1x32xbf16>,
    %cst_124 = arith.constant 0.000000e+00 : bf16
    %97 = vector.broadcast %cst_124 : bf16 to vector<2x10x32xbf16>
    %c0_125 = arith.constant 0 : index
    %c0_126 = arith.constant 0 : index
    %c9_127 = arith.constant 9 : index
    %c0_128 = arith.constant 0 : index
    %98 = vector.load %arg14[%c0_125, %c0_126, %c9_127, %c0_128] : memref<2x10x10x32xbf16, #tpu.memory_space<vmem>>, vector<2x10x1x32xbf16>
    %99 = vector.shape_cast %98 : vector<2x10x1x32xbf16> to vector<2x10x32xbf16>
    %100 = vector.shape_cast %97 : vector<2x10x32xbf16> to vector<2x10x1x32xbf16>
    tpu.vector_store %arg14[%c0_125, %c0_126, %c9_127, %c0_128], %100 {strides = array<i32>} : memref<2x10x10x32xbf16, #tpu.memory_space<vmem>>, vector<2x10x1x32xbf16>,
    %c0_129 = arith.constant 0 : index
    %c1_130 = arith.constant 1 : index
    %c1_131 = arith.constant 1 : index
    %c0_132 = arith.constant 0 : index
    %101 = vector.load %arg14[%c0_129, %c1_130, %c1_131, %c0_132] : memref<2x10x10x32xbf16, #tpu.memory_space<vmem>>, vector<2x8x8x32xbf16>
    tpu.vector_store %arg14[%c0_129, %c1_130, %c1_131, %c0_132], %84 {strides = array<i32>} : memref<2x10x10x32xbf16, #tpu.memory_space<vmem>>, vector<2x8x8x32xbf16>,
    %c0_133 = arith.constant 0 : index
    %c0_134 = arith.constant 0 : index
    %c0_135 = arith.constant 0 : index
    %c0_136 = arith.constant 0 : index
    %102 = vector.load %arg14[%c0_133, %c0_134, %c0_135, %c0_136] : memref<2x10x10x32xbf16, #tpu.memory_space<vmem>>, vector<2x8x8x32xbf16>
    %c0_137 = arith.constant 0 : index
    %c0_138 = arith.constant 0 : index
    %c0_139 = arith.constant 0 : index
    %c0_140 = arith.constant 0 : index
    %103 = vector.load %arg16[%c0_137, %c0_138, %c0_139, %c0_140] : memref<2x8x8x288xbf16, #tpu.memory_space<vmem>>, vector<2x8x8x32xbf16>
    tpu.vector_store %arg16[%c0_137, %c0_138, %c0_139, %c0_140], %102 {strides = array<i32>} : memref<2x8x8x288xbf16, #tpu.memory_space<vmem>>, vector<2x8x8x32xbf16>,
    %c0_141 = arith.constant 0 : index
    %c0_142 = arith.constant 0 : index
    %c1_143 = arith.constant 1 : index
    %c0_144 = arith.constant 0 : index
    %104 = vector.load %arg14[%c0_141, %c0_142, %c1_143, %c0_144] : memref<2x10x10x32xbf16, #tpu.memory_space<vmem>>, vector<2x8x8x32xbf16>
    %c0_145 = arith.constant 0 : index
    %c0_146 = arith.constant 0 : index
    %c0_147 = arith.constant 0 : index
    %c32_148 = arith.constant 32 : index
    %105 = vector.load %arg16[%c0_145, %c0_146, %c0_147, %c32_148] : memref<2x8x8x288xbf16, #tpu.memory_space<vmem>>, vector<2x8x8x32xbf16>
    tpu.vector_store %arg16[%c0_145, %c0_146, %c0_147, %c32_148], %104 {strides = array<i32>} : memref<2x8x8x288xbf16, #tpu.memory_space<vmem>>, vector<2x8x8x32xbf16>,
    %c0_149 = arith.constant 0 : index
    %c0_150 = arith.constant 0 : index
    %c2_151 = arith.constant 2 : index
    %c0_152 = arith.constant 0 : index
    %106 = vector.load %arg14[%c0_149, %c0_150, %c2_151, %c0_152] : memref<2x10x10x32xbf16, #tpu.memory_space<vmem>>, vector<2x8x8x32xbf16>
    %c0_153 = arith.constant 0 : index
    %c0_154 = arith.constant 0 : index
    %c0_155 = arith.constant 0 : index
    %c64_156 = arith.constant 64 : index
    %107 = vector.load %arg16[%c0_153, %c0_154, %c0_155, %c64_156] : memref<2x8x8x288xbf16, #tpu.memory_space<vmem>>, vector<2x8x8x32xbf16>
    tpu.vector_store %arg16[%c0_153, %c0_154, %c0_155, %c64_156], %106 {strides = array<i32>} : memref<2x8x8x288xbf16, #tpu.memory_space<vmem>>, vector<2x8x8x32xbf16>,
    %c0_157 = arith.constant 0 : index
    %c1_158 = arith.constant 1 : index
    %c0_159 = arith.constant 0 : index
    %c0_160 = arith.constant 0 : index
    %108 = vector.load %arg14[%c0_157, %c1_158, %c0_159, %c0_160] : memref<2x10x10x32xbf16, #tpu.memory_space<vmem>>, vector<2x8x8x32xbf16>
    %c0_161 = arith.constant 0 : index
    %c0_162 = arith.constant 0 : index
    %c0_163 = arith.constant 0 : index
    %c96_164 = arith.constant 96 : index
    %109 = vector.load %arg16[%c0_161, %c0_162, %c0_163, %c96_164] : memref<2x8x8x288xbf16, #tpu.memory_space<vmem>>, vector<2x8x8x32xbf16>
    tpu.vector_store %arg16[%c0_161, %c0_162, %c0_163, %c96_164], %108 {strides = array<i32>} : memref<2x8x8x288xbf16, #tpu.memory_space<vmem>>, vector<2x8x8x32xbf16>,
    %c0_165 = arith.constant 0 : index
    %c1_166 = arith.constant 1 : index
    %c1_167 = arith.constant 1 : index
    %c0_168 = arith.constant 0 : index
    %110 = vector.load %arg14[%c0_165, %c1_166, %c1_167, %c0_168] : memref<2x10x10x32xbf16, #tpu.memory_space<vmem>>, vector<2x8x8x32xbf16>
    %c0_169 = arith.constant 0 : index
    %c0_170 = arith.constant 0 : index
    %c0_171 = arith.constant 0 : index
    %c128_172 = arith.constant 128 : index
    %111 = vector.load %arg16[%c0_169, %c0_170, %c0_171, %c128_172] : memref<2x8x8x288xbf16, #tpu.memory_space<vmem>>, vector<2x8x8x32xbf16>
    tpu.vector_store %arg16[%c0_169, %c0_170, %c0_171, %c128_172], %110 {strides = array<i32>} : memref<2x8x8x288xbf16, #tpu.memory_space<vmem>>, vector<2x8x8x32xbf16>,
    %c0_173 = arith.constant 0 : index
    %c1_174 = arith.constant 1 : index
    %c2_175 = arith.constant 2 : index
    %c0_176 = arith.constant 0 : index
    %112 = vector.load %arg14[%c0_173, %c1_174, %c2_175, %c0_176] : memref<2x10x10x32xbf16, #tpu.memory_space<vmem>>, vector<2x8x8x32xbf16>
    %c0_177 = arith.constant 0 : index
    %c0_178 = arith.constant 0 : index
    %c0_179 = arith.constant 0 : index
    %c160 = arith.constant 160 : index
    %113 = vector.load %arg16[%c0_177, %c0_178, %c0_179, %c160] : memref<2x8x8x288xbf16, #tpu.memory_space<vmem>>, vector<2x8x8x32xbf16>
    tpu.vector_store %arg16[%c0_177, %c0_178, %c0_179, %c160], %112 {strides = array<i32>} : memref<2x8x8x288xbf16, #tpu.memory_space<vmem>>, vector<2x8x8x32xbf16>,
    %c0_180 = arith.constant 0 : index
    %c2_181 = arith.constant 2 : index
    %c0_182 = arith.constant 0 : index
    %c0_183 = arith.constant 0 : index
    %114 = vector.load %arg14[%c0_180, %c2_181, %c0_182, %c0_183] : memref<2x10x10x32xbf16, #tpu.memory_space<vmem>>, vector<2x8x8x32xbf16>
    %c0_184 = arith.constant 0 : index
    %c0_185 = arith.constant 0 : index
    %c0_186 = arith.constant 0 : index
    %c192 = arith.constant 192 : index
    %115 = vector.load %arg16[%c0_184, %c0_185, %c0_186, %c192] : memref<2x8x8x288xbf16, #tpu.memory_space<vmem>>, vector<2x8x8x32xbf16>
    tpu.vector_store %arg16[%c0_184, %c0_185, %c0_186, %c192], %114 {strides = array<i32>} : memref<2x8x8x288xbf16, #tpu.memory_space<vmem>>, vector<2x8x8x32xbf16>,
    %c0_187 = arith.constant 0 : index
    %c2_188 = arith.constant 2 : index
    %c1_189 = arith.constant 1 : index
    %c0_190 = arith.constant 0 : index
    %116 = vector.load %arg14[%c0_187, %c2_188, %c1_189, %c0_190] : memref<2x10x10x32xbf16, #tpu.memory_space<vmem>>, vector<2x8x8x32xbf16>
    %c0_191 = arith.constant 0 : index
    %c0_192 = arith.constant 0 : index
    %c0_193 = arith.constant 0 : index
    %c224 = arith.constant 224 : index
    %117 = vector.load %arg16[%c0_191, %c0_192, %c0_193, %c224] : memref<2x8x8x288xbf16, #tpu.memory_space<vmem>>, vector<2x8x8x32xbf16>
    tpu.vector_store %arg16[%c0_191, %c0_192, %c0_193, %c224], %116 {strides = array<i32>} : memref<2x8x8x288xbf16, #tpu.memory_space<vmem>>, vector<2x8x8x32xbf16>,
    %c0_194 = arith.constant 0 : index
    %c2_195 = arith.constant 2 : index
    %c2_196 = arith.constant 2 : index
    %c0_197 = arith.constant 0 : index
    %118 = vector.load %arg14[%c0_194, %c2_195, %c2_196, %c0_197] : memref<2x10x10x32xbf16, #tpu.memory_space<vmem>>, vector<2x8x8x32xbf16>
    %c0_198 = arith.constant 0 : index
    %c0_199 = arith.constant 0 : index
    %c0_200 = arith.constant 0 : index
    %c256 = arith.constant 256 : index
    %119 = vector.load %arg16[%c0_198, %c0_199, %c0_200, %c256] : memref<2x8x8x288xbf16, #tpu.memory_space<vmem>>, vector<2x8x8x32xbf16>
    tpu.vector_store %arg16[%c0_198, %c0_199, %c0_200, %c256], %118 {strides = array<i32>} : memref<2x8x8x288xbf16, #tpu.memory_space<vmem>>, vector<2x8x8x32xbf16>,
    %c0_201 = arith.constant 0 : index
    %c0_202 = arith.constant 0 : index
    %c0_203 = arith.constant 0 : index
    %c0_204 = arith.constant 0 : index
    %120 = vector.load %arg16[%c0_201, %c0_202, %c0_203, %c0_204] : memref<2x8x8x288xbf16, #tpu.memory_space<vmem>>, vector<2x8x8x288xbf16>
    %121 = vector.shape_cast %120 : vector<2x8x8x288xbf16> to vector<128x288xbf16>
    %c0_205 = arith.constant 0 : index
    %c0_206 = arith.constant 0 : index
    %122 = vector.load %arg7[%c0_205, %c0_206] : memref<288x32xbf16, #tpu.memory_space<vmem>>, vector<288x32xbf16>
    %cst_207 = arith.constant dense<0.000000e+00> : vector<128x32xf32>
    %123 = tpu.matmul %121, %122, %cst_207 {dimension_numbers = #tpu.dot_dimension_numbers<[1], [0], [0], [1], [0, 0, 1, 1], [], []>} : vector<128x288xbf16>, vector<288x32xbf16>, vector<128x32xf32> -> vector<128x32xf32>
    %124 = vector.shape_cast %123 : vector<128x32xf32> to vector<2x64x32xf32>
    %cst_208 = arith.constant dense<0.000000e+00> : vector<2x32xf32>
    %125 = vector.multi_reduction <add>, %124, %cst_208 [1] : vector<2x64x32xf32> to vector<2x32xf32>
    %cst_209 = arith.constant 1.562500e-02 : f32
    %126 = vector.broadcast %cst_209 : f32 to vector<2x32xf32>
    %127 = arith.mulf %125, %126 : vector<2x32xf32>
    %c0_210 = arith.constant 0 : index
    %c0_211 = arith.constant 0 : index
    %128 = vector.load %arg8[%c0_210, %c0_211] : memref<32x2xf32, #tpu.memory_space<vmem>>, vector<32x2xf32>
    %cst_212 = arith.constant dense<0.000000e+00> : vector<2x2xf32>
    %129 = tpu.matmul %127, %128, %cst_212 {dimension_numbers = #tpu.dot_dimension_numbers<[1], [0], [0], [1], [0, 0, 1, 1], [], []>} : vector<2x32xf32>, vector<32x2xf32>, vector<2x2xf32> -> vector<2x2xf32>
    %c0_213 = arith.constant 0 : index
    %c0_214 = arith.constant 0 : index
    %130 = vector.load %arg9[%c0_213, %c0_214] : memref<1x2xf32, #tpu.memory_space<vmem>>, vector<1x2xf32>
    %131 = vector.broadcast %130 : vector<1x2xf32> to vector<2x2xf32>
    %132 = arith.addf %129, %131 : vector<2x2xf32>
    %cst_215 = arith.constant 0.000000e+00 : f32
    %133 = vector.broadcast %cst_215 : f32 to vector<2x2xf32>
    %134 = arith.maximumf %132, %133 : vector<2x2xf32>
    %c0_216 = arith.constant 0 : index
    %c0_217 = arith.constant 0 : index
    %135 = vector.load %arg10[%c0_216, %c0_217] : memref<2x32xf32, #tpu.memory_space<vmem>>, vector<2x32xf32>
    %cst_218 = arith.constant dense<0.000000e+00> : vector<2x32xf32>
    %136 = tpu.matmul %134, %135, %cst_218 {dimension_numbers = #tpu.dot_dimension_numbers<[1], [0], [0], [1], [0, 0, 1, 1], [], []>} : vector<2x2xf32>, vector<2x32xf32>, vector<2x32xf32> -> vector<2x32xf32>
    %c0_219 = arith.constant 0 : index
    %c0_220 = arith.constant 0 : index
    %137 = vector.load %arg11[%c0_219, %c0_220] : memref<1x32xf32, #tpu.memory_space<vmem>>, vector<1x32xf32>
    %138 = vector.broadcast %137 : vector<1x32xf32> to vector<2x32xf32>
    %139 = arith.addf %136, %138 : vector<2x32xf32>
    %cst_221 = arith.constant 0.000000e+00 : f32
    %140 = vector.broadcast %cst_221 : f32 to vector<2x32xf32>
    %141 = arith.subf %140, %139 : vector<2x32xf32>
    %142 = math.exp %141 : vector<2x32xf32>
    %cst_222 = arith.constant 1.000000e+00 : f32
    %143 = vector.broadcast %cst_222 : f32 to vector<2x32xf32>
    %144 = arith.addf %143, %142 : vector<2x32xf32>
    %cst_223 = arith.constant 1.000000e+00 : f32
    %145 = vector.broadcast %cst_223 : f32 to vector<2x32xf32>
    %146 = arith.divf %145, %144 : vector<2x32xf32>
    %147 = vector.shape_cast %146 : vector<2x32xf32> to vector<2x1x32xf32>
    %148 = vector.broadcast %147 : vector<2x1x32xf32> to vector<2x64x32xf32>
    %149 = arith.mulf %124, %148 : vector<2x64x32xf32>
    %c0_224 = arith.constant 0 : index
    %c0_225 = arith.constant 0 : index
    %c0_226 = arith.constant 0 : index
    %150 = vector.load %arg12[%c0_224, %c0_225, %c0_226] : memref<2x64x32xf32, #tpu.memory_space<vmem>>, vector<2x64x32xf32>
    %151 = arith.addf %149, %150 : vector<2x64x32xf32>
    %c0_227 = arith.constant 0 : index
    %c0_228 = arith.constant 0 : index
    %c0_229 = arith.constant 0 : index
    %152 = vector.load %arg12[%c0_227, %c0_228, %c0_229] : memref<2x64x32xf32, #tpu.memory_space<vmem>>, vector<2x64x32xf32>
    tpu.vector_store %arg12[%c0_227, %c0_228, %c0_229], %151 {strides = array<i32>} : memref<2x64x32xf32, #tpu.memory_space<vmem>>, vector<2x64x32xf32>,
    return
  }
  func.func @transform_0(%arg0: i32) -> (i32, i32, i32, i32) {
    %c0_i32 = arith.constant 0 : i32
    %c0_i32_0 = arith.constant 0 : i32
    %c0_i32_1 = arith.constant 0 : i32
    %c0_i32_2 = arith.constant 0 : i32
    %c0_i32_3 = arith.constant 0 : i32
    return %c0_i32, %c0_i32_0, %c0_i32_1, %c0_i32_2 : i32, i32, i32, i32
  }
  func.func @transform_1(%arg0: i32) -> (i32, i32, i32, i32) {
    %c0_i32 = arith.constant 0 : i32
    %c0_i32_0 = arith.constant 0 : i32
    %c0_i32_1 = arith.constant 0 : i32
    %c0_i32_2 = arith.constant 0 : i32
    %c0_i32_3 = arith.constant 0 : i32
    return %c0_i32, %c0_i32_0, %c0_i32_1, %c0_i32_2 : i32, i32, i32, i32
  }
  func.func @transform_2(%arg0: i32) -> (i32, i32, i32, i32) {
    %c0_i32 = arith.constant 0 : i32
    %c0_i32_0 = arith.constant 0 : i32
    %c0_i32_1 = arith.constant 0 : i32
    %c0_i32_2 = arith.constant 0 : i32
    %c0_i32_3 = arith.constant 0 : i32
    return %c0_i32, %c0_i32_0, %c0_i32_1, %c0_i32_2 : i32, i32, i32, i32
  }
  func.func @transform_3(%arg0: i32) -> (i32, i32) {
    %c0_i32 = arith.constant 0 : i32
    %c0_i32_0 = arith.constant 0 : i32
    %c0_i32_1 = arith.constant 0 : i32
    return %c0_i32, %c0_i32_0 : i32, i32
  }
  func.func @transform_4(%arg0: i32) -> (i32, i32) {
    %c0_i32 = arith.constant 0 : i32
    %c0_i32_0 = arith.constant 0 : i32
    %c0_i32_1 = arith.constant 0 : i32
    return %c0_i32, %c0_i32_0 : i32, i32
  }
  func.func @transform_5(%arg0: i32) -> (i32, i32) {
    %c0_i32 = arith.constant 0 : i32
    %c0_i32_0 = arith.constant 0 : i32
    %c0_i32_1 = arith.constant 0 : i32
    return %c0_i32, %c0_i32_0 : i32, i32
  }
  func.func @transform_6(%arg0: i32) -> (i32, i32) {
    %c0_i32 = arith.constant 0 : i32
    %c0_i32_0 = arith.constant 0 : i32
    %c0_i32_1 = arith.constant 0 : i32
    return %c0_i32, %c0_i32_0 : i32, i32
  }
  func.func @transform_7(%arg0: i32) -> (i32, i32) {
    %c0_i32 = arith.constant 0 : i32
    %c0_i32_0 = arith.constant 0 : i32
    %c0_i32_1 = arith.constant 0 : i32
    return %c0_i32, %c0_i32_0 : i32, i32
  }
  func.func @transform_8(%arg0: i32) -> (i32, i32) {
    %c0_i32 = arith.constant 0 : i32
    %c0_i32_0 = arith.constant 0 : i32
    %c0_i32_1 = arith.constant 0 : i32
    return %c0_i32, %c0_i32_0 : i32, i32
  }
  func.func @transform_9(%arg0: i32) -> (i32, i32) {
    %c0_i32 = arith.constant 0 : i32
    %c0_i32_0 = arith.constant 0 : i32
    %c0_i32_1 = arith.constant 0 : i32
    return %c0_i32, %c0_i32_0 : i32, i32
  }
  func.func @transform_10(%arg0: i32) -> (i32, i32) {
    %c0_i32 = arith.constant 0 : i32
    %c0_i32_0 = arith.constant 0 : i32
    %c0_i32_1 = arith.constant 0 : i32
    return %c0_i32, %c0_i32_0 : i32, i32
  }
  func.func @transform_11(%arg0: i32) -> (i32, i32, i32) {
    %c0_i32 = arith.constant 0 : i32
    %c0_i32_0 = arith.constant 0 : i32
    %c0_i32_1 = arith.constant 0 : i32
    %c0_i32_2 = arith.constant 0 : i32
    return %c0_i32, %c0_i32_0, %c0_i32_1 : i32, i32, i32
  }
}

</mosaic_0001>

<llo_original>
// kernel: preact_block_forward.1
$region0: #{preact_block_forward.1}
  #allocation0 [shape = 'u32[]', space=smem, size = 0x4, offset = 0x4, fixed_abs, tag = 'smem constant byte address 0x4 - core index']
  #allocation1 [shape = 'u32[144,128]{1,0:T(1,128)}', space=vmem, size = 0x12000, scoped, tag = 'internal scratch']
  #allocation2 [shape = 'bf16[8,9,9,16]{3,2,1,0:T(8,128)(2,1)}', space=vmem, size = 0x48000, scoped, tag = 'scratch operand']
  #allocation3 [shape = 'bf16[2,10,10,32]{3,2,1,0:T(8,128)(2,1)}', space=vmem, size = 0x14000, scoped, tag = 'scratch operand']
  #allocation4 [shape = 'bf16[2,8,8,144]{3,2,1,0:T(8,128)(2,1)}', space=vmem, size = 0x10000, scoped, tag = 'scratch operand']
  #allocation5 [shape = 'bf16[2,8,8,288]{3,2,1,0:T(8,128)(2,1)}', space=vmem, size = 0x18000, scoped, tag = 'scratch operand']
  %s0 = inlined_call_operand.vmem [shape: f32[8,8,8,16], index: 0, kind: input, shape index: {}]
  %s1 = inlined_call_operand.vmem [shape: f32[1,1,1,16], index: 1, kind: input, shape index: {}]
  %s2 = inlined_call_operand.vmem [shape: f32[1,1,1,16], index: 2, kind: input, shape index: {}]
  %s3 = inlined_call_operand.vmem [shape: bf16[144,64], index: 3, kind: input, shape index: {}]
  %s4 = inlined_call_operand.vmem [shape: f32[1,32], index: 4, kind: input, shape index: {}]
  %s5 = inlined_call_operand.vmem [shape: f32[1,32], index: 5, kind: input, shape index: {}]
  %s6 = inlined_call_operand.vmem [shape: bf16[288,32], index: 6, kind: input, shape index: {}]
  %s7 = inlined_call_operand.vmem [shape: f32[32,2], index: 7, kind: input, shape index: {}]
  %s8 = inlined_call_operand.vmem [shape: f32[1,2], index: 8, kind: input, shape index: {}]
  %s9 = inlined_call_operand.vmem [shape: f32[2,32], index: 9, kind: input, shape index: {}]
  %s10 = inlined_call_operand.vmem [shape: f32[1,32], index: 10, kind: input, shape index: {}]
  %s11 = inlined_call_operand.hbm [shape: f32[2,64,32], index: 11, kind: output, shape index: {}]
  %s12 = sld [smem:[#allocation0]]
  $region54: #{preact_block_forward.1} parent=0
    _
  %s14 = ssub.s32 1, %s12
  %s15 = scalar_select 0, %s14, %s12
  $region1: #{preact_block_forward.1} parent=0
    #allocation6 [shape = 'u8[65536]{0}', space=vmem, size = 0x10000, scoped, tag = 'output window, operand 0, single buffered']
    #allocation7 [shape = 's32[1]{0}', space=sflag, size = 0x4, scoped, tag = 'scoped memory for preact_block_forward.1']
    %16 = vsyncpa [#allocation7], 0
    // Predicated region
    $region2: #{preact_block_forward.1} parent=1 // pred_check
      _
    $region3: #{preact_block_forward.1} parent=1 // pred_check_branch
      %18 = sbr.rel (0) target = $region5
    $region4: #{preact_block_forward.1} parent=1 // pred_region
      _
    $region5: #{preact_block_forward.1} parent=1 // pred_fallthru
      _
    // Predicated region
    $region6: #{preact_block_forward.1} parent=1 // pred_check
      _
    $region7: #{preact_block_forward.1} parent=1 // pred_check_branch
      %20 = sbr.rel (0) target = $region9
    $region8: #{preact_block_forward.1} parent=1 // pred_region
      _
    $region9: #{preact_block_forward.1} parent=1 // pred_fallthru
      _
    // Predicated region
    $region10: #{preact_block_forward.1} parent=1 // pred_check
      _
    $region11: #{preact_block_forward.1} parent=1 // pred_check_branch
      %22 = sbr.rel (0) target = $region13
    $region12: #{preact_block_forward.1} parent=1 // pred_region
      _
    $region13: #{preact_block_forward.1} parent=1 // pred_fallthru
      _
    // Predicated region
    $region14: #{preact_block_forward.1} parent=1 // pred_check
      _
    $region15: #{preact_block_forward.1} parent=1 // pred_check_branch
      %24 = sbr.rel (0) target = $region17
    $region16: #{preact_block_forward.1} parent=1 // pred_region
      _
    $region17: #{preact_block_forward.1} parent=1 // pred_fallthru
      _
    // Predicated region
    $region18: #{preact_block_forward.1} parent=1 // pred_check
      _
    $region19: #{preact_block_forward.1} parent=1 // pred_check_branch
      %26 = sbr.rel (0) target = $region21
    $region20: #{preact_block_forward.1} parent=1 // pred_region
      _
    $region21: #{preact_block_forward.1} parent=1 // pred_fallthru
      _
    // Predicated region
    $region22: #{preact_block_forward.1} parent=1 // pred_check
      _
    $region23: #{preact_block_forward.1} parent=1 // pred_check_branch
      %28 = sbr.rel (0) target = $region25
    $region24: #{preact_block_forward.1} parent=1 // pred_region
      _
    $region25: #{preact_block_forward.1} parent=1 // pred_fallthru
      _
    // Predicated region
    $region26: #{preact_block_forward.1} parent=1 // pred_check
      _
    $region27: #{preact_block_forward.1} parent=1 // pred_check_branch
      %30 = sbr.rel (0) target = $region29
    $region28: #{preact_block_forward.1} parent=1 // pred_region
      _
    $region29: #{preact_block_forward.1} parent=1 // pred_fallthru
      _
    // Predicated region
    $region30: #{preact_block_forward.1} parent=1 // pred_check
      _
    $region31: #{preact_block_forward.1} parent=1 // pred_check_branch
      %32 = sbr.rel (0) target = $region33
    $region32: #{preact_block_forward.1} parent=1 // pred_region
      _
    $region33: #{preact_block_forward.1} parent=1 // pred_fallthru
      _
    // Predicated region
    $region34: #{preact_block_forward.1} parent=1 // pred_check
      _
    $region35: #{preact_block_forward.1} parent=1 // pred_check_branch
      %34 = sbr.rel (0) target = $region37
    $region36: #{preact_block_forward.1} parent=1 // pred_region
      _
    $region37: #{preact_block_forward.1} parent=1 // pred_fallthru
      _
    // Predicated region
    $region38: #{preact_block_forward.1} parent=1 // pred_check
      _
    $region39: #{preact_block_forward.1} parent=1 // pred_check_branch
      %36 = sbr.rel (0) target = $region41
    $region40: #{preact_block_forward.1} parent=1 // pred_region
      _
    $region41: #{preact_block_forward.1} parent=1 // pred_fallthru
      _
    // Predicated region
    $region42: #{preact_block_forward.1} parent=1 // pred_check
      _
    $region43: #{preact_block_forward.1} parent=1 // pred_check_branch
      %38 = sbr.rel (0) target = $region45
    $region44: #{preact_block_forward.1} parent=1 // pred_region
      _
    $region45: #{preact_block_forward.1} parent=1 // pred_fallthru
      _
    %v40 = vld [vmem:[%s0] sm:$0xff]
    %v41 = vld [vmem:[%s0 + $0x8] sm:$0xff]
    %v42 = vld [vmem:[%s0 + $0x10] sm:$0xff]
    %v43 = vld [vmem:[%s0 + $0x18] sm:$0xff]
    %v44 = vld [vmem:[%s0 + $0x20] sm:$0xff]
    %v45 = vld [vmem:[%s0 + $0x28] sm:$0xff]
    %v46 = vld [vmem:[%s0 + $0x30] sm:$0xff]
    %v47 = vld [vmem:[%s0 + $0x38] sm:$0xff]
    %v48 = vld [vmem:[%s0 + $0x40] sm:$0xff]
    %v49 = vld [vmem:[%s0 + $0x48] sm:$0xff]
    %v50 = vld [vmem:[%s0 + $0x50] sm:$0xff]
    %v51 = vld [vmem:[%s0 + $0x58] sm:$0xff]
    %v52 = vld [vmem:[%s0 + $0x60] sm:$0xff]
    %v53 = vld [vmem:[%s0 + $0x68] sm:$0xff]
    %v54 = vld [vmem:[%s0 + $0x70] sm:$0xff]
    %v55 = vld [vmem:[%s0 + $0x78] sm:$0xff]
    %v56 = vld [vmem:[%s0 + $0x80] sm:$0xff]
    %v57 = vld [vmem:[%s0 + $0x88] sm:$0xff]
    %v58 = vld [vmem:[%s0 + $0x90] sm:$0xff]
    %v59 = vld [vmem:[%s0 + $0x98] sm:$0xff]
    %v60 = vld [vmem:[%s0 + $0xa0] sm:$0xff]
    %v61 = vld [vmem:[%s0 + $0xa8] sm:$0xff]
    %v62 = vld [vmem:[%s0 + $0xb0] sm:$0xff]
    %v63 = vld [vmem:[%s0 + $0xb8] sm:$0xff]
    %v64 = vld [vmem:[%s0 + $0xc0] sm:$0xff]
    %v65 = vld [vmem:[%s0 + $0xc8] sm:$0xff]
    %v66 = vld [vmem:[%s0 + $0xd0] sm:$0xff]
    %v67 = vld [vmem:[%s0 + $0xd8] sm:$0xff]
    %v68 = vld [vmem:[%s0 + $0xe0] sm:$0xff]
    %v69 = vld [vmem:[%s0 + $0xe8] sm:$0xff]
    %v70 = vld [vmem:[%s0 + $0xf0] sm:$0xff]
    %v71 = vld [vmem:[%s0 + $0xf8] sm:$0xff]
    %v72 = vld [vmem:[%s0 + $0x100] sm:$0xff]
    %v73 = vld [vmem:[%s0 + $0x108] sm:$0xff]
    %v74 = vld [vmem:[%s0 + $0x110] sm:$0xff]
    %v75 = vld [vmem:[%s0 + $0x118] sm:$0xff]
    %v76 = vld [vmem:[%s0 + $0x120] sm:$0xff]
    %v77 = vld [vmem:[%s0 + $0x128] sm:$0xff]
    %v78 = vld [vmem:[%s0 + $0x130] sm:$0xff]
    %v79 = vld [vmem:[%s0 + $0x138] sm:$0xff]
    %v80 = vld [vmem:[%s0 + $0x140] sm:$0xff]
    %v81 = vld [vmem:[%s0 + $0x148] sm:$0xff]
    %v82 = vld [vmem:[%s0 + $0x150] sm:$0xff]
    %v83 = vld [vmem:[%s0 + $0x158] sm:$0xff]
    %v84 = vld [vmem:[%s0 + $0x160] sm:$0xff]
    %v85 = vld [vmem:[%s0 + $0x168] sm:$0xff]
    %v86 = vld [vmem:[%s0 + $0x170] sm:$0xff]
    %v87 = vld [vmem:[%s0 + $0x178] sm:$0xff]
    %v88 = vld [vmem:[%s0 + $0x180] sm:$0xff]
    %v89 = vld [vmem:[%s0 + $0x188] sm:$0xff]
    %v90 = vld [vmem:[%s0 + $0x190] sm:$0xff]
    %v91 = vld [vmem:[%s0 + $0x198] sm:$0xff]
    %v92 = vld [vmem:[%s0 + $0x1a0] sm:$0xff]
    %v93 = vld [vmem:[%s0 + $0x1a8] sm:$0xff]
    %v94 = vld [vmem:[%s0 + $0x1b0] sm:$0xff]
    %v95 = vld [vmem:[%s0 + $0x1b8] sm:$0xff]
    %v96 = vld [vmem:[%s0 + $0x1c0] sm:$0xff]
    %v97 = vld [vmem:[%s0 + $0x1c8] sm:$0xff]
    %v98 = vld [vmem:[%s0 + $0x1d0] sm:$0xff]
    %v99 = vld [vmem:[%s0 + $0x1d8] sm:$0xff]
    %v100 = vld [vmem:[%s0 + $0x1e0] sm:$0xff]
    %v101 = vld [vmem:[%s0 + $0x1e8] sm:$0xff]
    %v102 = vld [vmem:[%s0 + $0x1f0] sm:$0xff]
    %v103 = vld [vmem:[%s0 + $0x1f8] sm:$0xff]
    %vm104 = vcmask 130048
    %v105 = vsel %vm104, %v40, 0.0
    %v106 = vsel %vm104, %v41, 0.0
    %v107 = vadd.f32 %v105, %v106
    %v108 = vsel %vm104, %v42, 0.0
    %v109 = vadd.f32 %v107, %v108
    %v110 = vsel %vm104, %v43, 0.0
    %v111 = vadd.f32 %v109, %v110
    %v112 = vsel %vm104, %v44, 0.0
    %v113 = vadd.f32 %v111, %v112
    %v114 = vsel %vm104, %v45, 0.0
    %v115 = vadd.f32 %v113, %v114
    %v116 = vsel %vm104, %v46, 0.0
    %v117 = vadd.f32 %v115, %v116
    %v118 = vsel %vm104, %v47, 0.0
    %v119 = vadd.f32 %v117, %v118
    %v120 = vsel %vm104, %v48, 0.0
    %v121 = vadd.f32 %v119, %v120
    %v122 = vsel %vm104, %v49, 0.0
    %v123 = vadd.f32 %v121, %v122
    %v124 = vsel %vm104, %v50, 0.0
    %v125 = vadd.f32 %v123, %v124
    %v126 = vsel %vm104, %v51, 0.0
    %v127 = vadd.f32 %v125, %v126
    %v128 = vsel %vm104, %v52, 0.0
    %v129 = vadd.f32 %v127, %v128
    %v130 = vsel %vm104, %v53, 0.0
    %v131 = vadd.f32 %v129, %v130
    %v132 = vsel %vm104, %v54, 0.0
    %v133 = vadd.f32 %v131, %v132
    %v134 = vsel %vm104, %v55, 0.0
    %v135 = vadd.f32 %v133, %v134
    %v136 = vsel %vm104, %v56, 0.0
    %v137 = vadd.f32 %v135, %v136
    %v138 = vsel %vm104, %v57, 0.0
    %v139 = vadd.f32 %v137, %v138
    %v140 = vsel %vm104, %v58, 0.0
    %v141 = vadd.f32 %v139, %v140
    %v142 = vsel %vm104, %v59, 0.0
    %v143 = vadd.f32 %v141, %v142
    %v144 = vsel %vm104, %v60, 0.0
    %v145 = vadd.f32 %v143, %v144
    %v146 = vsel %vm104, %v61, 0.0
    %v147 = vadd.f32 %v145, %v146
    %v148 = vsel %vm104, %v62, 0.0
    %v149 = vadd.f32 %v147, %v148
    %v150 = vsel %vm104, %v63, 0.0
    %v151 = vadd.f32 %v149, %v150
    %v152 = vsel %vm104, %v64, 0.0
    %v153 = vadd.f32 %v151, %v152
    %v154 = vsel %vm104, %v65, 0.0
    %v155 = vadd.f32 %v153, %v154
    %v156 = vsel %vm104, %v66, 0.0
    %v157 = vadd.f32 %v155, %v156
    %v158 = vsel %vm104, %v67, 0.0
    %v159 = vadd.f32 %v157, %v158
    %v160 = vsel %vm104, %v68, 0.0
    %v161 = vadd.f32 %v159, %v160
    %v162 = vsel %vm104, %v69, 0.0
    %v163 = vadd.f32 %v161, %v162
    %v164 = vsel %vm104, %v70, 0.0
    %v165 = vadd.f32 %v163, %v164
    %v166 = vsel %vm104, %v71, 0.0
    %v167 = vadd.f32 %v165, %v166
    %v168 = vsel %vm104, %v72, 0.0
    %v169 = vadd.f32 %v167, %v168
    %v170 = vsel %vm104, %v73, 0.0
    %v171 = vadd.f32 %v169, %v170
    %v172 = vsel %vm104, %v74, 0.0
    %v173 = vadd.f32 %v171, %v172
    %v174 = vsel %vm104, %v75, 0.0
    %v175 = vadd.f32 %v173, %v174
    %v176 = vsel %vm104, %v76, 0.0
    %v177 = vadd.f32 %v175, %v176
    %v178 = vsel %vm104, %v77, 0.0
    %v179 = vadd.f32 %v177, %v178
    %v180 = vsel %vm104, %v78, 0.0
    %v181 = vadd.f32 %v179, %v180
    %v182 = vsel %vm104, %v79, 0.0
    %v183 = vadd.f32 %v181, %v182
    %v184 = vsel %vm104, %v80, 0.0
    %v185 = vadd.f32 %v183, %v184
    %v186 = vsel %vm104, %v81, 0.0
    %v187 = vadd.f32 %v185, %v186
    %v188 = vsel %vm104, %v82, 0.0
    %v189 = vadd.f32 %v187, %v188
    %v190 = vsel %vm104, %v83, 0.0
    %v191 = vadd.f32 %v189, %v190
    %v192 = vsel %vm104, %v84, 0.0
    %v193 = vadd.f32 %v191, %v192
    %v194 = vsel %vm104, %v85, 0.0
    %v195 = vadd.f32 %v193, %v194
    %v196 = vsel %vm104, %v86, 0.0
    %v197 = vadd.f32 %v195, %v196
    %v198 = vsel %vm104, %v87, 0.0
    %v199 = vadd.f32 %v197, %v198
    %v200 = vsel %vm104, %v88, 0.0
    %v201 = vadd.f32 %v199, %v200
    %v202 = vsel %vm104, %v89, 0.0
    %v203 = vadd.f32 %v201, %v202
    %v204 = vsel %vm104, %v90, 0.0
    %v205 = vadd.f32 %v203, %v204
    %v206 = vsel %vm104, %v91, 0.0
    %v207 = vadd.f32 %v205, %v206
    %v208 = vsel %vm104, %v92, 0.0
    %v209 = vadd.f32 %v207, %v208
    %v210 = vsel %vm104, %v93, 0.0
    %v211 = vadd.f32 %v209, %v210
    %v212 = vsel %vm104, %v94, 0.0
    %v213 = vadd.f32 %v211, %v212
    %v214 = vsel %vm104, %v95, 0.0
    %v215 = vadd.f32 %v213, %v214
    %v216 = vsel %vm104, %v96, 0.0
    %v217 = vadd.f32 %v215, %v216
    %v218 = vsel %vm104, %v97, 0.0
    %v219 = vadd.f32 %v217, %v218
    %v220 = vsel %vm104, %v98, 0.0
    %v221 = vadd.f32 %v219, %v220
    %v222 = vsel %vm104, %v99, 0.0
    %v223 = vadd.f32 %v221, %v222
    %v224 = vsel %vm104, %v100, 0.0
    %v225 = vadd.f32 %v223, %v224
    %v226 = vsel %vm104, %v101, 0.0
    %v227 = vadd.f32 %v225, %v226
    %v228 = vsel %vm104, %v102, 0.0
    %v229 = vadd.f32 %v227, %v228
    %v230 = vsel %vm104, %v103, 0.0
    %v231 = vadd.f32 %v229, %v230
    %v232 = vrot.slane %v231, 4
    %v233 = vadd.f32 %v231, %v232
    %v234 = vrot.slane %v233, 2
    %v235 = vadd.f32 %v233, %v234
    %v236 = vrot.slane %v235, 1
    %v237 = vadd.f32 %v235, %v236
    %v238 = vmul.f32 %v237, 0.001953125
    %v239 = vsub.f32 %v40, %v238
    %v240 = vsub.f32 %v41, %v238
    %v241 = vsub.f32 %v42, %v238
    %v242 = vsub.f32 %v43, %v238
    %v243 = vsub.f32 %v44, %v238
    %v244 = vsub.f32 %v45, %v238
    %v245 = vsub.f32 %v46, %v238
    %v246 = vsub.f32 %v47, %v238
    %v247 = vsub.f32 %v48, %v238
    %v248 = vsub.f32 %v49, %v238
    %v249 = vsub.f32 %v50, %v238
    %v250 = vsub.f32 %v51, %v238
    %v251 = vsub.f32 %v52, %v238
    %v252 = vsub.f32 %v53, %v238
    %v253 = vsub.f32 %v54, %v238
    %v254 = vsub.f32 %v55, %v238
    %v255 = vsub.f32 %v56, %v238
    %v256 = vsub.f32 %v57, %v238
    %v257 = vsub.f32 %v58, %v238
    %v258 = vsub.f32 %v59, %v238
    %v259 = vsub.f32 %v60, %v238
    %v260 = vsub.f32 %v61, %v238
    %v261 = vsub.f32 %v62, %v238
    %v262 = vsub.f32 %v63, %v238
    %v263 = vsub.f32 %v64, %v238
    %v264 = vsub.f32 %v65, %v238
    %v265 = vsub.f32 %v66, %v238
    %v266 = vsub.f32 %v67, %v238
    %v267 = vsub.f32 %v68, %v238
    %v268 = vsub.f32 %v69, %v238
    %v269 = vsub.f32 %v70, %v238
    %v270 = vsub.f32 %v71, %v238
    %v271 = vsub.f32 %v72, %v238
    %v272 = vsub.f32 %v73, %v238
    %v273 = vsub.f32 %v74, %v238
    %v274 = vsub.f32 %v75, %v238
    %v275 = vsub.f32 %v76, %v238
    %v276 = vsub.f32 %v77, %v238
    %v277 = vsub.f32 %v78, %v238
    %v278 = vsub.f32 %v79, %v238
    %v279 = vsub.f32 %v80, %v238
    %v280 = vsub.f32 %v81, %v238
    %v281 = vsub.f32 %v82, %v238
    %v282 = vsub.f32 %v83, %v238
    %v283 = vsub.f32 %v84, %v238
    %v284 = vsub.f32 %v85, %v238
    %v285 = vsub.f32 %v86, %v238
    %v286 = vsub.f32 %v87, %v238
    %v287 = vsub.f32 %v88, %v238
    %v288 = vsub.f32 %v89, %v238
    %v289 = vsub.f32 %v90, %v238
    %v290 = vsub.f32 %v91, %v238
    %v291 = vsub.f32 %v92, %v238
    %v292 = vsub.f32 %v93, %v238
    %v293 = vsub.f32 %v94, %v238
    %v294 = vsub.f32 %v95, %v238
    %v295 = vsub.f32 %v96, %v238
    %v296 = vsub.f32 %v97, %v238
    %v297 = vsub.f32 %v98, %v238
    %v298 = vsub.f32 %v99, %v238
    %v299 = vsub.f32 %v100, %v238
    %v300 = vsub.f32 %v101, %v238
    %v301 = vsub.f32 %v102, %v238
    %v302 = vsub.f32 %v103, %v238
    %v303 = vmul.f32 %v239, %v239
    %v304 = vmul.f32 %v240, %v240
    %v305 = vmul.f32 %v241, %v241
    %v306 = vmul.f32 %v242, %v242
    %v307 = vmul.f32 %v243, %v243
    %v308 = vmul.f32 %v244, %v244
    %v309 = vmul.f32 %v245, %v245
    %v310 = vmul.f32 %v246, %v246
    %v311 = vmul.f32 %v247, %v247
    %v312 = vmul.f32 %v248, %v248
    %v313 = vmul.f32 %v249, %v249
    %v314 = vmul.f32 %v250, %v250
    %v315 = vmul.f32 %v251, %v251
    %v316 = vmul.f32 %v252, %v252
    %v317 = vmul.f32 %v253, %v253
    %v318 = vmul.f32 %v254, %v254
    %v319 = vmul.f32 %v255, %v255
    %v320 = vmul.f32 %v256, %v256
    %v321 = vmul.f32 %v257, %v257
    %v322 = vmul.f32 %v258, %v258
    %v323 = vmul.f32 %v259, %v259
    %v324 = vmul.f32 %v260, %v260
    %v325 = vmul.f32 %v261, %v261
    %v326 = vmul.f32 %v262, %v262
    %v327 = vmul.f32 %v263, %v263
    %v328 = vmul.f32 %v264, %v264
    %v329 = vmul.f32 %v265, %v265
    %v330 = vmul.f32 %v266, %v266
    %v331 = vmul.f32 %v267, %v267
    %v332 = vmul.f32 %v268, %v268
    %v333 = vmul.f32 %v269, %v269
    %v334 = vmul.f32 %v270, %v270
    %v335 = vmul.f32 %v271, %v271
    %v336 = vmul.f32 %v272, %v272
    %v337 = vmul.f32 %v273, %v273
    %v338 = vmul.f32 %v274, %v274
    %v339 = vmul.f32 %v275, %v275
    %v340 = vmul.f32 %v276, %v276
    %v341 = vmul.f32 %v277, %v277
    %v342 = vmul.f32 %v278, %v278
    %v343 = vmul.f32 %v279, %v279
    %v344 = vmul.f32 %v280, %v280
    %v345 = vmul.f32 %v281, %v281
    %v346 = vmul.f32 %v282, %v282
    %v347 = vmul.f32 %v283, %v283
    %v348 = vmul.f32 %v284, %v284
    %v349 = vmul.f32 %v285, %v285
    %v350 = vmul.f32 %v286, %v286
    %v351 = vmul.f32 %v287, %v287
    %v352 = vmul.f32 %v288, %v288
    %v353 = vmul.f32 %v289, %v289
    %v354 = vmul.f32 %v290, %v290
    %v355 = vmul.f32 %v291, %v291
    %v356 = vmul.f32 %v292, %v292
    %v357 = vmul.f32 %v293, %v293
    %v358 = vmul.f32 %v294, %v294
    %v359 = vmul.f32 %v295, %v295
    %v360 = vmul.f32 %v296, %v296
    %v361 = vmul.f32 %v297, %v297
    %v362 = vmul.f32 %v298, %v298
    %v363 = vmul.f32 %v299, %v299
    %v364 = vmul.f32 %v300, %v300
    %v365 = vmul.f32 %v301, %v301
    %v366 = vmul.f32 %v302, %v302
    %v367 = vsel %vm104, %v303, 0.0
    %v368 = vsel %vm104, %v304, 0.0
    %v369 = vadd.f32 %v367, %v368
    %v370 = vsel %vm104, %v305, 0.0
    %v371 = vadd.f32 %v369, %v370
    %v372 = vsel %vm104, %v306, 0.0
    %v373 = vadd.f32 %v371, %v372
    %v374 = vsel %vm104, %v307, 0.0
    %v375 = vadd.f32 %v373, %v374
    %v376 = vsel %vm104, %v308, 0.0
    %v377 = vadd.f32 %v375, %v376
    %v378 = vsel %vm104, %v309, 0.0
    %v379 = vadd.f32 %v377, %v378
    %v380 = vsel %vm104, %v310, 0.0
    %v381 = vadd.f32 %v379, %v380
    %v382 = vsel %vm104, %v311, 0.0
    %v383 = vadd.f32 %v381, %v382
    %v384 = vsel %vm104, %v312, 0.0
    %v385 = vadd.f32 %v383, %v384
    %v386 = vsel %vm104, %v313, 0.0
    %v387 = vadd.f32 %v385, %v386
    %v388 = vsel %vm104, %v314, 0.0
    %v389 = vadd.f32 %v387, %v388
    %v390 = vsel %vm104, %v315, 0.0
    %v391 = vadd.f32 %v389, %v390
    %v392 = vsel %vm104, %v316, 0.0
    %v393 = vadd.f32 %v391, %v392
    %v394 = vsel %vm104, %v317, 0.0
    %v395 = vadd.f32 %v393, %v394
    %v396 = vsel %vm104, %v318, 0.0
    %v397 = vadd.f32 %v395, %v396
    %v398 = vsel %vm104, %v319, 0.0
    %v399 = vadd.f32 %v397, %v398
    %v400 = vsel %vm104, %v320, 0.0
    %v401 = vadd.f32 %v399, %v400
    %v402 = vsel %vm104, %v321, 0.0
    %v403 = vadd.f32 %v401, %v402
    %v404 = vsel %vm104, %v322, 0.0
    %v405 = vadd.f32 %v403, %v404
    %v406 = vsel %vm104, %v323, 0.0
    %v407 = vadd.f32 %v405, %v406
    %v408 = vsel %vm104, %v324, 0.0
    %v409 = vadd.f32 %v407, %v408
    %v410 = vsel %vm104, %v325, 0.0
    %v411 = vadd.f32 %v409, %v410
    %v412 = vsel %vm104, %v326, 0.0
    %v413 = vadd.f32 %v411, %v412
    %v414 = vsel %vm104, %v327, 0.0
    %v415 = vadd.f32 %v413, %v414
    %v416 = vsel %vm104, %v328, 0.0
    %v417 = vadd.f32 %v415, %v416
    %v418 = vsel %vm104, %v329, 0.0
    %v419 = vadd.f32 %v417, %v418
    %v420 = vsel %vm104, %v330, 0.0
    %v421 = vadd.f32 %v419, %v420
    %v422 = vsel %vm104, %v331, 0.0
    %v423 = vadd.f32 %v421, %v422
    %v424 = vsel %vm104, %v332, 0.0
    %v425 = vadd.f32 %v423, %v424
    %v426 = vsel %vm104, %v333, 0.0
    %v427 = vadd.f32 %v425, %v426
    %v428 = vsel %vm104, %v334, 0.0
    %v429 = vadd.f32 %v427, %v428
    %v430 = vsel %vm104, %v335, 0.0
    %v431 = vadd.f32 %v429, %v430
    %v432 = vsel %vm104, %v336, 0.0
    %v433 = vadd.f32 %v431, %v432
    %v434 = vsel %vm104, %v337, 0.0
    %v435 = vadd.f32 %v433, %v434
    %v436 = vsel %vm104, %v338, 0.0
    %v437 = vadd.f32 %v435, %v436
    %v438 = vsel %vm104, %v339, 0.0
    %v439 = vadd.f32 %v437, %v438
    %v440 = vsel %vm104, %v340, 0.0
    %v441 = vadd.f32 %v439, %v440
    %v442 = vsel %vm104, %v341, 0.0
    %v443 = vadd.f32 %v441, %v442
    %v444 = vsel %vm104, %v342, 0.0
    %v445 = vadd.f32 %v443, %v444
    %v446 = vsel %vm104, %v343, 0.0
    %v447 = vadd.f32 %v445, %v446
    %v448 = vsel %vm104, %v344, 0.0
    %v449 = vadd.f32 %v447, %v448
    %v450 = vsel %vm104, %v345, 0.0
    %v451 = vadd.f32 %v449, %v450
    %v452 = vsel %vm104, %v346, 0.0
    %v453 = vadd.f32 %v451, %v452
    %v454 = vsel %vm104, %v347, 0.0
    %v455 = vadd.f32 %v453, %v454
    %v456 = vsel %vm104, %v348, 0.0
    %v457 = vadd.f32 %v455, %v456
    %v458 = vsel %vm104, %v349, 0.0
    %v459 = vadd.f32 %v457, %v458
    %v460 = vsel %vm104, %v350, 0.0
    %v461 = vadd.f32 %v459, %v460
    %v462 = vsel %vm104, %v351, 0.0
    %v463 = vadd.f32 %v461, %v462
    %v464 = vsel %vm104, %v352, 0.0
    %v465 = vadd.f32 %v463, %v464
    %v466 = vsel %vm104, %v353, 0.0
    %v467 = vadd.f32 %v465, %v466
    %v468 = vsel %vm104, %v354, 0.0
    %v469 = vadd.f32 %v467, %v468
    %v470 = vsel %vm104, %v355, 0.0
    %v471 = vadd.f32 %v469, %v470
    %v472 = vsel %vm104, %v356, 0.0
    %v473 = vadd.f32 %v471, %v472
    %v474 = vsel %vm104, %v357, 0.0
    %v475 = vadd.f32 %v473, %v474
    %v476 = vsel %vm104, %v358, 0.0
    %v477 = vadd.f32 %v475, %v476
    %v478 = vsel %vm104, %v359, 0.0
    %v479 = vadd.f32 %v477, %v478
    %v480 = vsel %vm104, %v360, 0.0
    %v481 = vadd.f32 %v479, %v480
    %v482 = vsel %vm104, %v361, 0.0
    %v483 = vadd.f32 %v481, %v482
    %v484 = vsel %vm104, %v362, 0.0
    %v485 = vadd.f32 %v483, %v484
    %v486 = vsel %vm104, %v363, 0.0
    %v487 = vadd.f32 %v485, %v486
    %v488 = vsel %vm104, %v364, 0.0
    %v489 = vadd.f32 %v487, %v488
    %v490 = vsel %vm104, %v365, 0.0
    %v491 = vadd.f32 %v489, %v490
    %v492 = vsel %vm104, %v366, 0.0
    %v493 = vadd.f32 %v491, %v492
    %v494 = vrot.slane %v493, 4
    %v495 = vadd.f32 %v493, %v494
    %v496 = vrot.slane %v495, 2
    %v497 = vadd.f32 %v495, %v496
    %v498 = vrot.slane %v497, 1
    %v499 = vadd.f32 %v497, %v498
    %v500 = vmul.f32 %v499, 0.001953125
    %v501 = vadd.f32 %v500, 1e-05
    %v502 = vrsqrt.pop %v501
    %v503 = vld [vmem:[%s1] sm:$0x1]
    %v504 = vmul.f32 %v502, %v503
    %v505 = vlaneseq
    %v506 = vshrl.u32 %v505, 7
    %v507 = vsub.s32 0, %v506
    %v508 = vrot.slane %v504, %v507
    %v509 = vmul.f32 %v239, %v508
    %v510 = vmul.f32 %v240, %v508
    %v511 = vmul.f32 %v241, %v508
    %v512 = vmul.f32 %v242, %v508
    %v513 = vmul.f32 %v243, %v508
    %v514 = vmul.f32 %v244, %v508
    %v515 = vmul.f32 %v245, %v508
    %v516 = vmul.f32 %v246, %v508
    %v517 = vmul.f32 %v247, %v508
    %v518 = vmul.f32 %v248, %v508
    %v519 = vmul.f32 %v249, %v508
    %v520 = vmul.f32 %v250, %v508
    %v521 = vmul.f32 %v251, %v508
    %v522 = vmul.f32 %v252, %v508
    %v523 = vmul.f32 %v253, %v508
    %v524 = vmul.f32 %v254, %v508
    %v525 = vmul.f32 %v255, %v508
    %v526 = vmul.f32 %v256, %v508
    %v527 = vmul.f32 %v257, %v508
    %v528 = vmul.f32 %v258, %v508
    %v529 = vmul.f32 %v259, %v508
    %v530 = vmul.f32 %v260, %v508
    %v531 = vmul.f32 %v261, %v508
    %v532 = vmul.f32 %v262, %v508
    %v533 = vmul.f32 %v263, %v508
    %v534 = vmul.f32 %v264, %v508
    %v535 = vmul.f32 %v265, %v508
    %v536 = vmul.f32 %v266, %v508
    %v537 = vmul.f32 %v267, %v508
    %v538 = vmul.f32 %v268, %v508
    %v539 = vmul.f32 %v269, %v508
    %v540 = vmul.f32 %v270, %v508
    %v541 = vmul.f32 %v271, %v508
    %v542 = vmul.f32 %v272, %v508
    %v543 = vmul.f32 %v273, %v508
    %v544 = vmul.f32 %v274, %v508
    %v545 = vmul.f32 %v275, %v508
    %v546 = vmul.f32 %v276, %v508
    %v547 = vmul.f32 %v277, %v508
    %v548 = vmul.f32 %v278, %v508
    %v549 = vmul.f32 %v279, %v508
    %v550 = vmul.f32 %v280, %v508
    %v551 = vmul.f32 %v281, %v508
    %v552 = vmul.f32 %v282, %v508
    %v553 = vmul.f32 %v283, %v508
    %v554 = vmul.f32 %v284, %v508
    %v555 = vmul.f32 %v285, %v508
    %v556 = vmul.f32 %v286, %v508
    %v557 = vmul.f32 %v287, %v508
    %v558 = vmul.f32 %v288, %v508
    %v559 = vmul.f32 %v289, %v508
    %v560 = vmul.f32 %v290, %v508
    %v561 = vmul.f32 %v291, %v508
    %v562 = vmul.f32 %v292, %v508
    %v563 = vmul.f32 %v293, %v508
    %v564 = vmul.f32 %v294, %v508
    %v565 = vmul.f32 %v295, %v508
    %v566 = vmul.f32 %v296, %v508
    %v567 = vmul.f32 %v297, %v508
    %v568 = vmul.f32 %v298, %v508
    %v569 = vmul.f32 %v299, %v508
    %v570 = vmul.f32 %v300, %v508
    %v571 = vmul.f32 %v301, %v508
    %v572 = vmul.f32 %v302, %v508
    %v573 = vld [vmem:[%s2] sm:$0x1]
    %v575 = vlaneseq
    %v576 = vshrl.u32 %v575, 7
    %v577 = vsub.s32 0, %v576
    %v578 = vrot.slane %v573, %v577
    %v580 = vadd.f32 %v509, %v578
    %v581 = vadd.f32 %v510, %v578
    %v582 = vadd.f32 %v511, %v578
    %v583 = vadd.f32 %v512, %v578
    %v584 = vadd.f32 %v513, %v578
    %v585 = vadd.f32 %v514, %v578
    %v586 = vadd.f32 %v515, %v578
    %v587 = vadd.f32 %v516, %v578
    %v588 = vadd.f32 %v517, %v578
    %v589 = vadd.f32 %v518, %v578
    %v590 = vadd.f32 %v519, %v578
    %v591 = vadd.f32 %v520, %v578
    %v592 = vadd.f32 %v521, %v578
    %v593 = vadd.f32 %v522, %v578
    %v594 = vadd.f32 %v523, %v578
    %v595 = vadd.f32 %v524, %v578
    %v596 = vadd.f32 %v525, %v578
    %v597 = vadd.f32 %v526, %v578
    %v598 = vadd.f32 %v527, %v578
    %v599 = vadd.f32 %v528, %v578
    %v600 = vadd.f32 %v529, %v578
    %v601 = vadd.f32 %v530, %v578
    %v602 = vadd.f32 %v531, %v578
    %v603 = vadd.f32 %v532, %v578
    %v604 = vadd.f32 %v533, %v578
    %v605 = vadd.f32 %v534, %v578
    %v606 = vadd.f32 %v535, %v578
    %v607 = vadd.f32 %v536, %v578
    %v608 = vadd.f32 %v537, %v578
    %v609 = vadd.f32 %v538, %v578
    %v610 = vadd.f32 %v539, %v578
    %v611 = vadd.f32 %v540, %v578
    %v612 = vadd.f32 %v541, %v578
    %v613 = vadd.f32 %v542, %v578
    %v614 = vadd.f32 %v543, %v578
    %v615 = vadd.f32 %v544, %v578
    %v616 = vadd.f32 %v545, %v578
    %v617 = vadd.f32 %v546, %v578
    %v618 = vadd.f32 %v547, %v578
    %v619 = vadd.f32 %v548, %v578
    %v620 = vadd.f32 %v549, %v578
    %v621 = vadd.f32 %v550, %v578
    %v622 = vadd.f32 %v551, %v578
    %v623 = vadd.f32 %v552, %v578
    %v624 = vadd.f32 %v553, %v578
    %v625 = vadd.f32 %v554, %v578
    %v626 = vadd.f32 %v555, %v578
    %v627 = vadd.f32 %v556, %v578
    %v628 = vadd.f32 %v557, %v578
    %v629 = vadd.f32 %v558, %v578
    %v630 = vadd.f32 %v559, %v578
    %v631 = vadd.f32 %v560, %v578
    %v632 = vadd.f32 %v561, %v578
    %v633 = vadd.f32 %v562, %v578
    %v634 = vadd.f32 %v563, %v578
    %v635 = vadd.f32 %v564, %v578
    %v636 = vadd.f32 %v565, %v578
    %v637 = vadd.f32 %v566, %v578
    %v638 = vadd.f32 %v567, %v578
    %v639 = vadd.f32 %v568, %v578
    %v640 = vadd.f32 %v569, %v578
    %v641 = vadd.f32 %v570, %v578
    %v642 = vadd.f32 %v571, %v578
    %v643 = vadd.f32 %v572, %v578
    %v644 = vmax.f32 %v580, 0.0
    %v645 = vmax.f32 %v581, 0.0
    %v646 = vmax.f32 %v582, 0.0
    %v647 = vmax.f32 %v583, 0.0
    %v648 = vmax.f32 %v584, 0.0
    %v649 = vmax.f32 %v585, 0.0
    %v650 = vmax.f32 %v586, 0.0
    %v651 = vmax.f32 %v587, 0.0
    %v652 = vmax.f32 %v588, 0.0
    %v653 = vmax.f32 %v589, 0.0
    %v654 = vmax.f32 %v590, 0.0
    %v655 = vmax.f32 %v591, 0.0
    %v656 = vmax.f32 %v592, 0.0
    %v657 = vmax.f32 %v593, 0.0
    %v658 = vmax.f32 %v594, 0.0
    %v659 = vmax.f32 %v595, 0.0
    %v660 = vmax.f32 %v596, 0.0
    %v661 = vmax.f32 %v597, 0.0
    %v662 = vmax.f32 %v598, 0.0
    %v663 = vmax.f32 %v599, 0.0
    %v664 = vmax.f32 %v600, 0.0
    %v665 = vmax.f32 %v601, 0.0
    %v666 = vmax.f32 %v602, 0.0
    %v667 = vmax.f32 %v603, 0.0
    %v668 = vmax.f32 %v604, 0.0
    %v669 = vmax.f32 %v605, 0.0
    %v670 = vmax.f32 %v606, 0.0
    %v671 = vmax.f32 %v607, 0.0
    %v672 = vmax.f32 %v608, 0.0
    %v673 = vmax.f32 %v609, 0.0
    %v674 = vmax.f32 %v610, 0.0
    %v675 = vmax.f32 %v611, 0.0
    %v676 = vmax.f32 %v612, 0.0
    %v677 = vmax.f32 %v613, 0.0
    %v678 = vmax.f32 %v614, 0.0
    %v679 = vmax.f32 %v615, 0.0
    %v680 = vmax.f32 %v616, 0.0
    %v681 = vmax.f32 %v617, 0.0
    %v682 = vmax.f32 %v618, 0.0
    %v683 = vmax.f32 %v619, 0.0
    %v684 = vmax.f32 %v620, 0.0
    %v685 = vmax.f32 %v621, 0.0
    %v686 = vmax.f32 %v622, 0.0
    %v687 = vmax.f32 %v623, 0.0
    %v688 = vmax.f32 %v624, 0.0
    %v689 = vmax.f32 %v625, 0.0
    %v690 = vmax.f32 %v626, 0.0
    %v691 = vmax.f32 %v627, 0.0
    %v692 = vmax.f32 %v628, 0.0
    %v693 = vmax.f32 %v629, 0.0
    %v694 = vmax.f32 %v630, 0.0
    %v695 = vmax.f32 %v631, 0.0
    %v696 = vmax.f32 %v632, 0.0
    %v697 = vmax.f32 %v633, 0.0
    %v698 = vmax.f32 %v634, 0.0
    %v699 = vmax.f32 %v635, 0.0
    %v700 = vmax.f32 %v636, 0.0
    %v701 = vmax.f32 %v637, 0.0
    %v702 = vmax.f32 %v638, 0.0
    %v703 = vmax.f32 %v639, 0.0
    %v704 = vmax.f32 %v640, 0.0
    %v705 = vmax.f32 %v641, 0.0
    %v706 = vmax.f32 %v642, 0.0
    %v707 = vmax.f32 %v643, 0.0
    %v708 = vpack.c.bf16 %v644, %v644
    %v709 = vpack.c.bf16 %v645, %v645
    %v710 = vpack.c.bf16 %v646, %v646
    %v711 = vpack.c.bf16 %v647, %v647
    %v712 = vpack.c.bf16 %v648, %v648
    %v713 = vpack.c.bf16 %v649, %v649
    %v714 = vpack.c.bf16 %v650, %v650
    %v715 = vpack.c.bf16 %v651, %v651
    %v716 = vpack.c.bf16 %v652, %v652
    %v717 = vpack.c.bf16 %v653, %v653
    %v718 = vpack.c.bf16 %v654, %v654
    %v719 = vpack.c.bf16 %v655, %v655
    %v720 = vpack.c.bf16 %v656, %v656
    %v721 = vpack.c.bf16 %v657, %v657
    %v722 = vpack.c.bf16 %v658, %v658
    %v723 = vpack.c.bf16 %v659, %v659
    %v724 = vpack.c.bf16 %v660, %v660
    %v725 = vpack.c.bf16 %v661, %v661
    %v726 = vpack.c.bf16 %v662, %v662
    %v727 = vpack.c.bf16 %v663, %v663
    %v728 = vpack.c.bf16 %v664, %v664
    %v729 = vpack.c.bf16 %v665, %v665
    %v730 = vpack.c.bf16 %v666, %v666
    %v731 = vpack.c.bf16 %v667, %v667
    %v732 = vpack.c.bf16 %v668, %v668
    %v733 = vpack.c.bf16 %v669, %v669
    %v734 = vpack.c.bf16 %v670, %v670
    %v735 = vpack.c.bf16 %v671, %v671
    %v736 = vpack.c.bf16 %v672, %v672
    %v737 = vpack.c.bf16 %v673, %v673
    %v738 = vpack.c.bf16 %v674, %v674
    %v739 = vpack.c.bf16 %v675, %v675
    %v740 = vpack.c.bf16 %v676, %v676
    %v741 = vpack.c.bf16 %v677, %v677
    %v742 = vpack.c.bf16 %v678, %v678
    %v743 = vpack.c.bf16 %v679, %v679
    %v744 = vpack.c.bf16 %v680, %v680
    %v745 = vpack.c.bf16 %v681, %v681
    %v746 = vpack.c.bf16 %v682, %v682
    %v747 = vpack.c.bf16 %v683, %v683
    %v748 = vpack.c.bf16 %v684, %v684
    %v749 = vpack.c.bf16 %v685, %v685
    %v750 = vpack.c.bf16 %v686, %v686
    %v751 = vpack.c.bf16 %v687, %v687
    %v752 = vpack.c.bf16 %v688, %v688
    %v753 = vpack.c.bf16 %v689, %v689
    %v754 = vpack.c.bf16 %v690, %v690
    %v755 = vpack.c.bf16 %v691, %v691
    %v756 = vpack.c.bf16 %v692, %v692
    %v757 = vpack.c.bf16 %v693, %v693
    %v758 = vpack.c.bf16 %v694, %v694
    %v759 = vpack.c.bf16 %v695, %v695
    %v760 = vpack.c.bf16 %v696, %v696
    %v761 = vpack.c.bf16 %v697, %v697
    %v762 = vpack.c.bf16 %v698, %v698
    %v763 = vpack.c.bf16 %v699, %v699
    %v764 = vpack.c.bf16 %v700, %v700
    %v765 = vpack.c.bf16 %v701, %v701
    %v766 = vpack.c.bf16 %v702, %v702
    %v767 = vpack.c.bf16 %v703, %v703
    %v768 = vpack.c.bf16 %v704, %v704
    %v769 = vpack.c.bf16 %v705, %v705
    %v770 = vpack.c.bf16 %v706, %v706
    %v771 = vpack.c.bf16 %v707, %v707
    %vm772 = vcmask 125952
    %773 = vst.msk [vmem:[#allocation2] sm:$0xf] %vm772, 0
    %vm774 = vcmask 122880
    %vm775 = vsmask.f32 256
    %vm776 = vmand %vm774, %vm775
    %v777 = vld [vmem:[#allocation2 + $0x4] sm:$0x1]
    %v778 = vsel %vm776, 0, %v777
    %779 = vst [vmem:[#allocation2 + $0x4] sm:$0x1] %v778
    %780 = vst.msk [vmem:[#allocation2 + $0x48] sm:$0xf] %vm772, 0
    %v781 = vld [vmem:[#allocation2 + $0x4c] sm:$0x1]
    %v782 = vsel %vm776, 0, %v781
    %783 = vst [vmem:[#allocation2 + $0x4c] sm:$0x1] %v782
    %784 = vst.msk [vmem:[#allocation2 + $0x90] sm:$0xf] %vm772, 0
    %v785 = vld [vmem:[#allocation2 + $0x94] sm:$0x1]
    %v786 = vsel %vm776, 0, %v785
    %787 = vst [vmem:[#allocation2 + $0x94] sm:$0x1] %v786
    %788 = vst.msk [vmem:[#allocation2 + $0xd8] sm:$0xf] %vm772, 0
    %v789 = vld [vmem:[#allocation2 + $0xdc] sm:$0x1]
    %v790 = vsel %vm776, 0, %v789
    %791 = vst [vmem:[#allocation2 + $0xdc] sm:$0x1] %v790
    %792 = vst.msk [vmem:[#allocation2 + $0x120] sm:$0xf] %vm772, 0
    %v793 = vld [vmem:[#allocation2 + $0x124] sm:$0x1]
    %v794 = vsel %vm776, 0, %v793
    %795 = vst [vmem:[#allocation2 + $0x124] sm:$0x1] %v794
    %796 = vst.msk [vmem:[#allocation2 + $0x168] sm:$0xf] %vm772, 0
    %v797 = vld [vmem:[#allocation2 + $0x16c] sm:$0x1]
    %v798 = vsel %vm776, 0, %v797
    %799 = vst [vmem:[#allocation2 + $0x16c] sm:$0x1] %v798
    %800 = vst.msk [vmem:[#allocation2 + $0x1b0] sm:$0xf] %vm772, 0
    %v801 = vld [vmem:[#allocation2 + $0x1b4] sm:$0x1]
    %v802 = vsel %vm776, 0, %v801
    %803 = vst [vmem:[#allocation2 + $0x1b4] sm:$0x1] %v802
    %804 = vst.msk [vmem:[#allocation2 + $0x1f8] sm:$0xf] %vm772, 0
    %v805 = vld [vmem:[#allocation2 + $0x1fc] sm:$0x1]
    %v806 = vsel %vm776, 0, %v805
    %807 = vst [vmem:[#allocation2 + $0x1fc] sm:$0x1] %v806
    %v808 = vld [vmem:[#allocation2] sm:$0x1]
    %v809 = vsel %vm776, 0, %v808
    %810 = vst [vmem:[#allocation2] sm:$0x1] %v809
    %v811 = vld [vmem:[#allocation2 + $0x8] sm:$0x1]
    %v812 = vsel %vm776, 0, %v811
    %813 = vst [vmem:[#allocation2 + $0x8] sm:$0x1] %v812
    %v814 = vld [vmem:[#allocation2 + $0x10] sm:$0x1]
    %v815 = vsel %vm776, 0, %v814
    %816 = vst [vmem:[#allocation2 + $0x10] sm:$0x1] %v815
    %v817 = vld [vmem:[#allocation2 + $0x18] sm:$0x1]
    %v818 = vsel %vm776, 0, %v817
    %819 = vst [vmem:[#allocation2 + $0x18] sm:$0x1] %v818
    %v820 = vld [vmem:[#allocation2 + $0x20] sm:$0x1]
    %v821 = vsel %vm776, 0, %v820
    %822 = vst [vmem:[#allocation2 + $0x20] sm:$0x1] %v821
    %v823 = vld [vmem:[#allocation2 + $0x28] sm:$0x1]
    %v824 = vsel %vm776, 0, %v823
    %825 = vst [vmem:[#allocation2 + $0x28] sm:$0x1] %v824
    %v826 = vld [vmem:[#allocation2 + $0x30] sm:$0x1]
    %v827 = vsel %vm776, 0, %v826
    %828 = vst [vmem:[#allocation2 + $0x30] sm:$0x1] %v827
    %v829 = vld [vmem:[#allocation2 + $0x38] sm:$0x1]
    %v830 = vsel %vm776, 0, %v829
    %831 = vst [vmem:[#allocation2 + $0x38] sm:$0x1] %v830
    %v832 = vld [vmem:[#allocation2 + $0x40] sm:$0x1]
    %v833 = vsel %vm776, 0, %v832
    %834 = vst [vmem:[#allocation2 + $0x40] sm:$0x1] %v833
    %v835 = vld [vmem:[#allocation2 + $0x48] sm:$0x1]
    %v836 = vsel %vm776, 0, %v835
    %837 = vst [vmem:[#allocation2 + $0x48] sm:$0x1] %v836
    %v838 = vld [vmem:[#allocation2 + $0x50] sm:$0x1]
    %v839 = vsel %vm776, 0, %v838
    %840 = vst [vmem:[#allocation2 + $0x50] sm:$0x1] %v839
    %v841 = vld [vmem:[#allocation2 + $0x58] sm:$0x1]
    %v842 = vsel %vm776, 0, %v841
    %843 = vst [vmem:[#allocation2 + $0x58] sm:$0x1] %v842
    %v844 = vld [vmem:[#allocation2 + $0x60] sm:$0x1]
    %v845 = vsel %vm776, 0, %v844
    %846 = vst [vmem:[#allocation2 + $0x60] sm:$0x1] %v845
    %v847 = vld [vmem:[#allocation2 + $0x68] sm:$0x1]
    %v848 = vsel %vm776, 0, %v847
    %849 = vst [vmem:[#allocation2 + $0x68] sm:$0x1] %v848
    %v850 = vld [vmem:[#allocation2 + $0x70] sm:$0x1]
    %v851 = vsel %vm776, 0, %v850
    %852 = vst [vmem:[#allocation2 + $0x70] sm:$0x1] %v851
    %v853 = vld [vmem:[#allocation2 + $0x78] sm:$0x1]
    %v854 = vsel %vm776, 0, %v853
    %855 = vst [vmem:[#allocation2 + $0x78] sm:$0x1] %v854
    %v856 = vld [vmem:[#allocation2 + $0x80] sm:$0x1]
    %v857 = vsel %vm776, 0, %v856
    %858 = vst [vmem:[#allocation2 + $0x80] sm:$0x1] %v857
    %v859 = vld [vmem:[#allocation2 + $0x88] sm:$0x1]
    %v860 = vsel %vm776, 0, %v859
    %861 = vst [vmem:[#allocation2 + $0x88] sm:$0x1] %v860
    %v862 = vld [vmem:[#allocation2 + $0x90] sm:$0x1]
    %v863 = vsel %vm776, 0, %v862
    %864 = vst [vmem:[#allocation2 + $0x90] sm:$0x1] %v863
    %v865 = vld [vmem:[#allocation2 + $0x98] sm:$0x1]
    %v866 = vsel %vm776, 0, %v865
    %867 = vst [vmem:[#allocation2 + $0x98] sm:$0x1] %v866
    %v868 = vld [vmem:[#allocation2 + $0xa0] sm:$0x1]
    %v869 = vsel %vm776, 0, %v868
    %870 = vst [vmem:[#allocation2 + $0xa0] sm:$0x1] %v869
    %v871 = vld [vmem:[#allocation2 + $0xa8] sm:$0x1]
    %v872 = vsel %vm776, 0, %v871
    %873 = vst [vmem:[#allocation2 + $0xa8] sm:$0x1] %v872
    %v874 = vld [vmem:[#allocation2 + $0xb0] sm:$0x1]
    %v875 = vsel %vm776, 0, %v874
    %876 = vst [vmem:[#allocation2 + $0xb0] sm:$0x1] %v875
    %v877 = vld [vmem:[#allocation2 + $0xb8] sm:$0x1]
    %v878 = vsel %vm776, 0, %v877
    %879 = vst [vmem:[#allocation2 + $0xb8] sm:$0x1] %v878
    %v880 = vld [vmem:[#allocation2 + $0xc0] sm:$0x1]
    %v881 = vsel %vm776, 0, %v880
    %882 = vst [vmem:[#allocation2 + $0xc0] sm:$0x1] %v881
    %v883 = vld [vmem:[#allocation2 + $0xc8] sm:$0x1]
    %v884 = vsel %vm776, 0, %v883
    %885 = vst [vmem:[#allocation2 + $0xc8] sm:$0x1] %v884
    %v886 = vld [vmem:[#allocation2 + $0xd0] sm:$0x1]
    %v887 = vsel %vm776, 0, %v886
    %888 = vst [vmem:[#allocation2 + $0xd0] sm:$0x1] %v887
    %v889 = vld [vmem:[#allocation2 + $0xd8] sm:$0x1]
    %v890 = vsel %vm776, 0, %v889
    %891 = vst [vmem:[#allocation2 + $0xd8] sm:$0x1] %v890
    %v892 = vld [vmem:[#allocation2 + $0xe0] sm:$0x1]
    %v893 = vsel %vm776, 0, %v892
    %894 = vst [vmem:[#allocation2 + $0xe0] sm:$0x1] %v893
    %v895 = vld [vmem:[#allocation2 + $0xe8] sm:$0x1]
    %v896 = vsel %vm776, 0, %v895
    %897 = vst [vmem:[#allocation2 + $0xe8] sm:$0x1] %v896
    %v898 = vld [vmem:[#allocation2 + $0xf0] sm:$0x1]
    %v899 = vsel %vm776, 0, %v898
    %900 = vst [vmem:[#allocation2 + $0xf0] sm:$0x1] %v899
    %v901 = vld [vmem:[#allocation2 + $0xf8] sm:$0x1]
    %v902 = vsel %vm776, 0, %v901
    %903 = vst [vmem:[#allocation2 + $0xf8] sm:$0x1] %v902
    %v904 = vld [vmem:[#allocation2 + $0x100] sm:$0x1]
    %v905 = vsel %vm776, 0, %v904
    %906 = vst [vmem:[#allocation2 + $0x100] sm:$0x1] %v905
    %v907 = vld [vmem:[#allocation2 + $0x108] sm:$0x1]
    %v908 = vsel %vm776, 0, %v907
    %909 = vst [vmem:[#allocation2 + $0x108] sm:$0x1] %v908
    %v910 = vld [vmem:[#allocation2 + $0x110] sm:$0x1]
    %v911 = vsel %vm776, 0, %v910
    %912 = vst [vmem:[#allocation2 + $0x110] sm:$0x1] %v911
    %v913 = vld [vmem:[#allocation2 + $0x118] sm:$0x1]
    %v914 = vsel %vm776, 0, %v913
    %915 = vst [vmem:[#allocation2 + $0x118] sm:$0x1] %v914
    %v916 = vld [vmem:[#allocation2 + $0x120] sm:$0x1]
    %v917 = vsel %vm776, 0, %v916
    %918 = vst [vmem:[#allocation2 + $0x120] sm:$0x1] %v917
    %v919 = vld [vmem:[#allocation2 + $0x128] sm:$0x1]
    %v920 = vsel %vm776, 0, %v919
    %921 = vst [vmem:[#allocation2 + $0x128] sm:$0x1] %v920
    %v922 = vld [vmem:[#allocation2 + $0x130] sm:$0x1]
    %v923 = vsel %vm776, 0, %v922
    %924 = vst [vmem:[#allocation2 + $0x130] sm:$0x1] %v923
    %v925 = vld [vmem:[#allocation2 + $0x138] sm:$0x1]
    %v926 = vsel %vm776, 0, %v925
    %927 = vst [vmem:[#allocation2 + $0x138] sm:$0x1] %v926
    %v928 = vld [vmem:[#allocation2 + $0x140] sm:$0x1]
    %v929 = vsel %vm776, 0, %v928
    %930 = vst [vmem:[#allocation2 + $0x140] sm:$0x1] %v929
    %v931 = vld [vmem:[#allocation2 + $0x148] sm:$0x1]
    %v932 = vsel %vm776, 0, %v931
    %933 = vst [vmem:[#allocation2 + $0x148] sm:$0x1] %v932
    %v934 = vld [vmem:[#allocation2 + $0x150] sm:$0x1]
    %v935 = vsel %vm776, 0, %v934
    %936 = vst [vmem:[#allocation2 + $0x150] sm:$0x1] %v935
    %v937 = vld [vmem:[#allocation2 + $0x158] sm:$0x1]
    %v938 = vsel %vm776, 0, %v937
    %939 = vst [vmem:[#allocation2 + $0x158] sm:$0x1] %v938
    %v940 = vld [vmem:[#allocation2 + $0x160] sm:$0x1]
    %v941 = vsel %vm776, 0, %v940
    %942 = vst [vmem:[#allocation2 + $0x160] sm:$0x1] %v941
    %v943 = vld [vmem:[#allocation2 + $0x168] sm:$0x1]
    %v944 = vsel %vm776, 0, %v943
    %945 = vst [vmem:[#allocation2 + $0x168] sm:$0x1] %v944
    %v946 = vld [vmem:[#allocation2 + $0x170] sm:$0x1]
    %v947 = vsel %vm776, 0, %v946
    %948 = vst [vmem:[#allocation2 + $0x170] sm:$0x1] %v947
    %v949 = vld [vmem:[#allocation2 + $0x178] sm:$0x1]
    %v950 = vsel %vm776, 0, %v949
    %951 = vst [vmem:[#allocation2 + $0x178] sm:$0x1] %v950
    %v952 = vld [vmem:[#allocation2 + $0x180] sm:$0x1]
    %v953 = vsel %vm776, 0, %v952
    %954 = vst [vmem:[#allocation2 + $0x180] sm:$0x1] %v953
    %v955 = vld [vmem:[#allocation2 + $0x188] sm:$0x1]
    %v956 = vsel %vm776, 0, %v955
    %957 = vst [vmem:[#allocation2 + $0x188] sm:$0x1] %v956
    %v958 = vld [vmem:[#allocation2 + $0x190] sm:$0x1]
    %v959 = vsel %vm776, 0, %v958
    %960 = vst [vmem:[#allocation2 + $0x190] sm:$0x1] %v959
    %v961 = vld [vmem:[#allocation2 + $0x198] sm:$0x1]
    %v962 = vsel %vm776, 0, %v961
    %963 = vst [vmem:[#allocation2 + $0x198] sm:$0x1] %v962
    %v964 = vld [vmem:[#allocation2 + $0x1a0] sm:$0x1]
    %v965 = vsel %vm776, 0, %v964
    %966 = vst [vmem:[#allocation2 + $0x1a0] sm:$0x1] %v965
    %v967 = vld [vmem:[#allocation2 + $0x1a8] sm:$0x1]
    %v968 = vsel %vm776, 0, %v967
    %969 = vst [vmem:[#allocation2 + $0x1a8] sm:$0x1] %v968
    %v970 = vld [vmem:[#allocation2 + $0x1b0] sm:$0x1]
    %v971 = vsel %vm776, 0, %v970
    %972 = vst [vmem:[#allocation2 + $0x1b0] sm:$0x1] %v971
    %v973 = vld [vmem:[#allocation2 + $0x1b8] sm:$0x1]
    %v974 = vsel %vm776, 0, %v973
    %975 = vst [vmem:[#allocation2 + $0x1b8] sm:$0x1] %v974
    %v976 = vld [vmem:[#allocation2 + $0x1c0] sm:$0x1]
    %v977 = vsel %vm776, 0, %v976
    %978 = vst [vmem:[#allocation2 + $0x1c0] sm:$0x1] %v977
    %v979 = vld [vmem:[#allocation2 + $0x1c8] sm:$0x1]
    %v980 = vsel %vm776, 0, %v979
    %981 = vst [vmem:[#allocation2 + $0x1c8] sm:$0x1] %v980
    %v982 = vld [vmem:[#allocation2 + $0x1d0] sm:$0x1]
    %v983 = vsel %vm776, 0, %v982
    %984 = vst [vmem:[#allocation2 + $0x1d0] sm:$0x1] %v983
    %v985 = vld [vmem:[#allocation2 + $0x1d8] sm:$0x1]
    %v986 = vsel %vm776, 0, %v985
    %987 = vst [vmem:[#allocation2 + $0x1d8] sm:$0x1] %v986
    %v988 = vld [vmem:[#allocation2 + $0x1e0] sm:$0x1]
    %v989 = vsel %vm776, 0, %v988
    %990 = vst [vmem:[#allocation2 + $0x1e0] sm:$0x1] %v989
    %v991 = vld [vmem:[#allocation2 + $0x1e8] sm:$0x1]
    %v992 = vsel %vm776, 0, %v991
    %993 = vst [vmem:[#allocation2 + $0x1e8] sm:$0x1] %v992
    %v994 = vld [vmem:[#allocation2 + $0x1f0] sm:$0x1]
    %v995 = vsel %vm776, 0, %v994
    %996 = vst [vmem:[#allocation2 + $0x1f0] sm:$0x1] %v995
    %v997 = vld [vmem:[#allocation2 + $0x1f8] sm:$0x1]
    %v998 = vsel %vm776, 0, %v997
    %999 = vst [vmem:[#allocation2 + $0x1f8] sm:$0x1] %v998
    %v1000 = vld [vmem:[#allocation2 + $0x200] sm:$0x1]
    %v1001 = vsel %vm776, 0, %v1000
    %1002 = vst [vmem:[#allocation2 + $0x200] sm:$0x1] %v1001
    %v1003 = vld [vmem:[#allocation2 + $0x208] sm:$0x1]
    %v1004 = vsel %vm776, 0, %v1003
    %1005 = vst [vmem:[#allocation2 + $0x208] sm:$0x1] %v1004
    %v1006 = vld [vmem:[#allocation2 + $0x210] sm:$0x1]
    %v1007 = vsel %vm776, 0, %v1006
    %1008 = vst [vmem:[#allocation2 + $0x210] sm:$0x1] %v1007
    %v1009 = vld [vmem:[#allocation2 + $0x218] sm:$0x1]
    %v1010 = vsel %vm776, 0, %v1009
    %1011 = vst [vmem:[#allocation2 + $0x218] sm:$0x1] %v1010
    %v1012 = vld [vmem:[#allocation2 + $0x220] sm:$0x1]
    %v1013 = vsel %vm776, 0, %v1012
    %1014 = vst [vmem:[#allocation2 + $0x220] sm:$0x1] %v1013
    %v1015 = vld [vmem:[#allocation2 + $0x228] sm:$0x1]
    %v1016 = vsel %vm776, 0, %v1015
    %1017 = vst [vmem:[#allocation2 + $0x228] sm:$0x1] %v1016
    %v1018 = vld [vmem:[#allocation2 + $0x230] sm:$0x1]
    %v1019 = vsel %vm776, 0, %v1018
    %1020 = vst [vmem:[#allocation2 + $0x230] sm:$0x1] %v1019
    %v1021 = vld [vmem:[#allocation2 + $0x238] sm:$0x1]
    %v1022 = vsel %vm776, 0, %v1021
    %1023 = vst [vmem:[#allocation2 + $0x238] sm:$0x1] %v1022
    %v1088 = vunpack.c.l.b16 %v708
    %v1089 = vunpack.c.l.b16 %v709
    %v1090 = vunpack.c.l.b16 %v710
    %v1091 = vunpack.c.l.b16 %v711
    %v1092 = vunpack.c.l.b16 %v712
    %v1093 = vunpack.c.l.b16 %v713
    %v1094 = vunpack.c.l.b16 %v714
    %v1095 = vunpack.c.l.b16 %v715
    %v1096 = vunpack.c.l.b16 %v716
    %v1097 = vunpack.c.l.b16 %v717
    %v1098 = vunpack.c.l.b16 %v718
    %v1099 = vunpack.c.l.b16 %v719
    %v1100 = vunpack.c.l.b16 %v720
    %v1101 = vunpack.c.l.b16 %v721
    %v1102 = vunpack.c.l.b16 %v722
    %v1103 = vunpack.c.l.b16 %v723
    %v1104 = vunpack.c.l.b16 %v724
    %v1105 = vunpack.c.l.b16 %v725
    %v1106 = vunpack.c.l.b16 %v726
    %v1107 = vunpack.c.l.b16 %v727
    %v1108 = vunpack.c.l.b16 %v728
    %v1109 = vunpack.c.l.b16 %v729
    %v1110 = vunpack.c.l.b16 %v730
    %v1111 = vunpack.c.l.b16 %v731
    %v1112 = vunpack.c.l.b16 %v732
    %v1113 = vunpack.c.l.b16 %v733
    %v1114 = vunpack.c.l.b16 %v734
    %v1115 = vunpack.c.l.b16 %v735
    %v1116 = vunpack.c.l.b16 %v736
    %v1117 = vunpack.c.l.b16 %v737
    %v1118 = vunpack.c.l.b16 %v738
    %v1119 = vunpack.c.l.b16 %v739
    %v1120 = vunpack.c.l.b16 %v740
    %v1121 = vunpack.c.l.b16 %v741
    %v1122 = vunpack.c.l.b16 %v742
    %v1123 = vunpack.c.l.b16 %v743
    %v1124 = vunpack.c.l.b16 %v744
    %v1125 = vunpack.c.l.b16 %v745
    %v1126 = vunpack.c.l.b16 %v746
    %v1127 = vunpack.c.l.b16 %v747
    %v1128 = vunpack.c.l.b16 %v748
    %v1129 = vunpack.c.l.b16 %v749
    %v1130 = vunpack.c.l.b16 %v750
    %v1131 = vunpack.c.l.b16 %v751
    %v1132 = vunpack.c.l.b16 %v752
    %v1133 = vunpack.c.l.b16 %v753
    %v1134 = vunpack.c.l.b16 %v754
    %v1135 = vunpack.c.l.b16 %v755
    %v1136 = vunpack.c.l.b16 %v756
    %v1137 = vunpack.c.l.b16 %v757
    %v1138 = vunpack.c.l.b16 %v758
    %v1139 = vunpack.c.l.b16 %v759
    %v1140 = vunpack.c.l.b16 %v760
    %v1141 = vunpack.c.l.b16 %v761
    %v1142 = vunpack.c.l.b16 %v762
    %v1143 = vunpack.c.l.b16 %v763
    %v1144 = vunpack.c.l.b16 %v764
    %v1145 = vunpack.c.l.b16 %v765
    %v1146 = vunpack.c.l.b16 %v766
    %v1147 = vunpack.c.l.b16 %v767
    %v1148 = vunpack.c.l.b16 %v768
    %v1149 = vunpack.c.l.b16 %v769
    %v1150 = vunpack.c.l.b16 %v770
    %v1151 = vunpack.c.l.b16 %v771
    %v1152 = vpack.c.b16 %v1088, %v1088
    %v1153 = vpack.c.b16 %v1089, %v1089
    %v1154 = vpack.c.b16 %v1090, %v1090
    %v1155 = vpack.c.b16 %v1091, %v1091
    %v1156 = vpack.c.b16 %v1092, %v1092
    %v1157 = vpack.c.b16 %v1093, %v1093
    %v1158 = vpack.c.b16 %v1094, %v1094
    %v1159 = vpack.c.b16 %v1095, %v1095
    %v1160 = vpack.c.b16 %v1096, %v1096
    %v1161 = vpack.c.b16 %v1097, %v1097
    %v1162 = vpack.c.b16 %v1098, %v1098
    %v1163 = vpack.c.b16 %v1099, %v1099
    %v1164 = vpack.c.b16 %v1100, %v1100
    %v1165 = vpack.c.b16 %v1101, %v1101
    %v1166 = vpack.c.b16 %v1102, %v1102
    %v1167 = vpack.c.b16 %v1103, %v1103
    %v1168 = vpack.c.b16 %v1104, %v1104
    %v1169 = vpack.c.b16 %v1105, %v1105
    %v1170 = vpack.c.b16 %v1106, %v1106
    %v1171 = vpack.c.b16 %v1107, %v1107
    %v1172 = vpack.c.b16 %v1108, %v1108
    %v1173 = vpack.c.b16 %v1109, %v1109
    %v1174 = vpack.c.b16 %v1110, %v1110
    %v1175 = vpack.c.b16 %v1111, %v1111
    %v1176 = vpack.c.b16 %v1112, %v1112
    %v1177 = vpack.c.b16 %v1113, %v1113
    %v1178 = vpack.c.b16 %v1114, %v1114
    %v1179 = vpack.c.b16 %v1115, %v1115
    %v1180 = vpack.c.b16 %v1116, %v1116
    %v1181 = vpack.c.b16 %v1117, %v1117
    %v1182 = vpack.c.b16 %v1118, %v1118
    %v1183 = vpack.c.b16 %v1119, %v1119
    %v1184 = vpack.c.b16 %v1120, %v1120
    %v1185 = vpack.c.b16 %v1121, %v1121
    %v1186 = vpack.c.b16 %v1122, %v1122
    %v1187 = vpack.c.b16 %v1123, %v1123
    %v1188 = vpack.c.b16 %v1124, %v1124
    %v1189 = vpack.c.b16 %v1125, %v1125
    %v1190 = vpack.c.b16 %v1126, %v1126
    %v1191 = vpack.c.b16 %v1127, %v1127
    %v1192 = vpack.c.b16 %v1128, %v1128
    %v1193 = vpack.c.b16 %v1129, %v1129
    %v1194 = vpack.c.b16 %v1130, %v1130
    %v1195 = vpack.c.b16 %v1131, %v1131
    %v1196 = vpack.c.b16 %v1132, %v1132
    %v1197 = vpack.c.b16 %v1133, %v1133
    %v1198 = vpack.c.b16 %v1134, %v1134
    %v1199 = vpack.c.b16 %v1135, %v1135
    %v1200 = vpack.c.b16 %v1136, %v1136
    %v1201 = vpack.c.b16 %v1137, %v1137
    %v1202 = vpack.c.b16 %v1138, %v1138
    %v1203 = vpack.c.b16 %v1139, %v1139
    %v1204 = vpack.c.b16 %v1140, %v1140
    %v1205 = vpack.c.b16 %v1141, %v1141
    %v1206 = vpack.c.b16 %v1142, %v1142
    %v1207 = vpack.c.b16 %v1143, %v1143
    %v1208 = vpack.c.b16 %v1144, %v1144
    %v1209 = vpack.c.b16 %v1145, %v1145
    %v1210 = vpack.c.b16 %v1146, %v1146
    %v1211 = vpack.c.b16 %v1147, %v1147
    %v1212 = vpack.c.b16 %v1148, %v1148
    %v1213 = vpack.c.b16 %v1149, %v1149
    %v1214 = vpack.c.b16 %v1150, %v1150
    %v1215 = vpack.c.b16 %v1151, %v1151
    %v1217 = vshrl.u32 %v1152, 16
    %v1219 = vrot.slane %v1217, 7
    %v1220 = vshll.u32 %v1152, 16
    %v1222 = vor.u32 %v1219, %v1220
    %v1223 = vrot.slane %v1219, 4
    %v1225 = vshrl.u32 %v1153, 16
    %v1227 = vrot.slane %v1225, 7
    %v1228 = vshll.u32 %v1153, 16
    %v1230 = vor.u32 %v1227, %v1228
    %v1231 = vrot.slane %v1227, 4
    %v1233 = vshrl.u32 %v1154, 16
    %v1235 = vrot.slane %v1233, 7
    %v1236 = vshll.u32 %v1154, 16
    %v1238 = vor.u32 %v1235, %v1236
    %v1239 = vrot.slane %v1235, 4
    %v1241 = vshrl.u32 %v1155, 16
    %v1243 = vrot.slane %v1241, 7
    %v1244 = vshll.u32 %v1155, 16
    %v1246 = vor.u32 %v1243, %v1244
    %v1247 = vrot.slane %v1243, 4
    %v1249 = vshrl.u32 %v1156, 16
    %v1251 = vrot.slane %v1249, 7
    %v1252 = vshll.u32 %v1156, 16
    %v1254 = vor.u32 %v1251, %v1252
    %v1255 = vrot.slane %v1251, 4
    %v1257 = vshrl.u32 %v1157, 16
    %v1259 = vrot.slane %v1257, 7
    %v1260 = vshll.u32 %v1157, 16
    %v1262 = vor.u32 %v1259, %v1260
    %v1263 = vrot.slane %v1259, 4
    %v1265 = vshrl.u32 %v1158, 16
    %v1267 = vrot.slane %v1265, 7
    %v1268 = vshll.u32 %v1158, 16
    %v1270 = vor.u32 %v1267, %v1268
    %v1271 = vrot.slane %v1267, 4
    %v1273 = vshrl.u32 %v1159, 16
    %v1275 = vrot.slane %v1273, 7
    %v1276 = vshll.u32 %v1159, 16
    %v1278 = vor.u32 %v1275, %v1276
    %v1279 = vrot.slane %v1275, 4
    %v1281 = vshrl.u32 %v1160, 16
    %v1283 = vrot.slane %v1281, 7
    %v1284 = vshll.u32 %v1160, 16
    %v1286 = vor.u32 %v1283, %v1284
    %v1287 = vrot.slane %v1283, 4
    %v1289 = vshrl.u32 %v1161, 16
    %v1291 = vrot.slane %v1289, 7
    %v1292 = vshll.u32 %v1161, 16
    %v1294 = vor.u32 %v1291, %v1292
    %v1295 = vrot.slane %v1291, 4
    %v1297 = vshrl.u32 %v1162, 16
    %v1299 = vrot.slane %v1297, 7
    %v1300 = vshll.u32 %v1162, 16
    %v1302 = vor.u32 %v1299, %v1300
    %v1303 = vrot.slane %v1299, 4
    %v1305 = vshrl.u32 %v1163, 16
    %v1307 = vrot.slane %v1305, 7
    %v1308 = vshll.u32 %v1163, 16
    %v1310 = vor.u32 %v1307, %v1308
    %v1311 = vrot.slane %v1307, 4
    %v1313 = vshrl.u32 %v1164, 16
    %v1315 = vrot.slane %v1313, 7
    %v1316 = vshll.u32 %v1164, 16
    %v1318 = vor.u32 %v1315, %v1316
    %v1319 = vrot.slane %v1315, 4
    %v1321 = vshrl.u32 %v1165, 16
    %v1323 = vrot.slane %v1321, 7
    %v1324 = vshll.u32 %v1165, 16
    %v1326 = vor.u32 %v1323, %v1324
    %v1327 = vrot.slane %v1323, 4
    %v1329 = vshrl.u32 %v1166, 16
    %v1331 = vrot.slane %v1329, 7
    %v1332 = vshll.u32 %v1166, 16
    %v1334 = vor.u32 %v1331, %v1332
    %v1335 = vrot.slane %v1331, 4
    %v1337 = vshrl.u32 %v1167, 16
    %v1339 = vrot.slane %v1337, 7
    %v1340 = vshll.u32 %v1167, 16
    %v1342 = vor.u32 %v1339, %v1340
    %v1343 = vrot.slane %v1339, 4
    %v1345 = vshrl.u32 %v1168, 16
    %v1347 = vrot.slane %v1345, 7
    %v1348 = vshll.u32 %v1168, 16
    %v1350 = vor.u32 %v1347, %v1348
    %v1351 = vrot.slane %v1347, 4
    %v1353 = vshrl.u32 %v1169, 16
    %v1355 = vrot.slane %v1353, 7
    %v1356 = vshll.u32 %v1169, 16
    %v1358 = vor.u32 %v1355, %v1356
    %v1359 = vrot.slane %v1355, 4
    %v1361 = vshrl.u32 %v1170, 16
    %v1363 = vrot.slane %v1361, 7
    %v1364 = vshll.u32 %v1170, 16
    %v1366 = vor.u32 %v1363, %v1364
    %v1367 = vrot.slane %v1363, 4
    %v1369 = vshrl.u32 %v1171, 16
    %v1371 = vrot.slane %v1369, 7
    %v1372 = vshll.u32 %v1171, 16
    %v1374 = vor.u32 %v1371, %v1372
    %v1375 = vrot.slane %v1371, 4
    %v1377 = vshrl.u32 %v1172, 16
    %v1379 = vrot.slane %v1377, 7
    %v1380 = vshll.u32 %v1172, 16
    %v1382 = vor.u32 %v1379, %v1380
    %v1383 = vrot.slane %v1379, 4
    %v1385 = vshrl.u32 %v1173, 16
    %v1387 = vrot.slane %v1385, 7
    %v1388 = vshll.u32 %v1173, 16
    %v1390 = vor.u32 %v1387, %v1388
    %v1391 = vrot.slane %v1387, 4
    %v1393 = vshrl.u32 %v1174, 16
    %v1395 = vrot.slane %v1393, 7
    %v1396 = vshll.u32 %v1174, 16
    %v1398 = vor.u32 %v1395, %v1396
    %v1399 = vrot.slane %v1395, 4
    %v1401 = vshrl.u32 %v1175, 16
    %v1403 = vrot.slane %v1401, 7
    %v1404 = vshll.u32 %v1175, 16
    %v1406 = vor.u32 %v1403, %v1404
    %v1407 = vrot.slane %v1403, 4
    %v1409 = vshrl.u32 %v1176, 16
    %v1411 = vrot.slane %v1409, 7
    %v1412 = vshll.u32 %v1176, 16
    %v1414 = vor.u32 %v1411, %v1412
    %v1415 = vrot.slane %v1411, 4
    %v1417 = vshrl.u32 %v1177, 16
    %v1419 = vrot.slane %v1417, 7
    %v1420 = vshll.u32 %v1177, 16
    %v1422 = vor.u32 %v1419, %v1420
    %v1423 = vrot.slane %v1419, 4
    %v1425 = vshrl.u32 %v1178, 16
    %v1427 = vrot.slane %v1425, 7
    %v1428 = vshll.u32 %v1178, 16
    %v1430 = vor.u32 %v1427, %v1428
    %v1431 = vrot.slane %v1427, 4
    %v1433 = vshrl.u32 %v1179, 16
    %v1435 = vrot.slane %v1433, 7
    %v1436 = vshll.u32 %v1179, 16
    %v1438 = vor.u32 %v1435, %v1436
    %v1439 = vrot.slane %v1435, 4
    %v1441 = vshrl.u32 %v1180, 16
    %v1443 = vrot.slane %v1441, 7
    %v1444 = vshll.u32 %v1180, 16
    %v1446 = vor.u32 %v1443, %v1444
    %v1447 = vrot.slane %v1443, 4
    %v1449 = vshrl.u32 %v1181, 16
    %v1451 = vrot.slane %v1449, 7
    %v1452 = vshll.u32 %v1181, 16
    %v1454 = vor.u32 %v1451, %v1452
    %v1455 = vrot.slane %v1451, 4
    %v1457 = vshrl.u32 %v1182, 16
    %v1459 = vrot.slane %v1457, 7
    %v1460 = vshll.u32 %v1182, 16
    %v1462 = vor.u32 %v1459, %v1460
    %v1463 = vrot.slane %v1459, 4
    %v1465 = vshrl.u32 %v1183, 16
    %v1467 = vrot.slane %v1465, 7
    %v1468 = vshll.u32 %v1183, 16
    %v1470 = vor.u32 %v1467, %v1468
    %v1471 = vrot.slane %v1467, 4
    %v1473 = vshrl.u32 %v1184, 16
    %v1475 = vrot.slane %v1473, 7
    %v1476 = vshll.u32 %v1184, 16
    %v1478 = vor.u32 %v1475, %v1476
    %v1479 = vrot.slane %v1475, 4
    %v1481 = vshrl.u32 %v1185, 16
    %v1483 = vrot.slane %v1481, 7
    %v1484 = vshll.u32 %v1185, 16
    %v1486 = vor.u32 %v1483, %v1484
    %v1487 = vrot.slane %v1483, 4
    %v1489 = vshrl.u32 %v1186, 16
    %v1491 = vrot.slane %v1489, 7
    %v1492 = vshll.u32 %v1186, 16
    %v1494 = vor.u32 %v1491, %v1492
    %v1495 = vrot.slane %v1491, 4
    %v1497 = vshrl.u32 %v1187, 16
    %v1499 = vrot.slane %v1497, 7
    %v1500 = vshll.u32 %v1187, 16
    %v1502 = vor.u32 %v1499, %v1500
    %v1503 = vrot.slane %v1499, 4
    %v1505 = vshrl.u32 %v1188, 16
    %v1507 = vrot.slane %v1505, 7
    %v1508 = vshll.u32 %v1188, 16
    %v1510 = vor.u32 %v1507, %v1508
    %v1511 = vrot.slane %v1507, 4
    %v1513 = vshrl.u32 %v1189, 16
    %v1515 = vrot.slane %v1513, 7
    %v1516 = vshll.u32 %v1189, 16
    %v1518 = vor.u32 %v1515, %v1516
    %v1519 = vrot.slane %v1515, 4
    %v1521 = vshrl.u32 %v1190, 16
    %v1523 = vrot.slane %v1521, 7
    %v1524 = vshll.u32 %v1190, 16
    %v1526 = vor.u32 %v1523, %v1524
    %v1527 = vrot.slane %v1523, 4
    %v1529 = vshrl.u32 %v1191, 16
    %v1531 = vrot.slane %v1529, 7
    %v1532 = vshll.u32 %v1191, 16
    %v1534 = vor.u32 %v1531, %v1532
    %v1535 = vrot.slane %v1531, 4
    %v1537 = vshrl.u32 %v1192, 16
    %v1539 = vrot.slane %v1537, 7
    %v1540 = vshll.u32 %v1192, 16
    %v1542 = vor.u32 %v1539, %v1540
    %v1543 = vrot.slane %v1539, 4
    %v1545 = vshrl.u32 %v1193, 16
    %v1547 = vrot.slane %v1545, 7
    %v1548 = vshll.u32 %v1193, 16
    %v1550 = vor.u32 %v1547, %v1548
    %v1551 = vrot.slane %v1547, 4
    %v1553 = vshrl.u32 %v1194, 16
    %v1555 = vrot.slane %v1553, 7
    %v1556 = vshll.u32 %v1194, 16
    %v1558 = vor.u32 %v1555, %v1556
    %v1559 = vrot.slane %v1555, 4
    %v1561 = vshrl.u32 %v1195, 16
    %v1563 = vrot.slane %v1561, 7
    %v1564 = vshll.u32 %v1195, 16
    %v1566 = vor.u32 %v1563, %v1564
    %v1567 = vrot.slane %v1563, 4
    %v1569 = vshrl.u32 %v1196, 16
    %v1571 = vrot.slane %v1569, 7
    %v1572 = vshll.u32 %v1196, 16
    %v1574 = vor.u32 %v1571, %v1572
    %v1575 = vrot.slane %v1571, 4
    %v1577 = vshrl.u32 %v1197, 16
    %v1579 = vrot.slane %v1577, 7
    %v1580 = vshll.u32 %v1197, 16
    %v1582 = vor.u32 %v1579, %v1580
    %v1583 = vrot.slane %v1579, 4
    %v1585 = vshrl.u32 %v1198, 16
    %v1587 = vrot.slane %v1585, 7
    %v1588 = vshll.u32 %v1198, 16
    %v1590 = vor.u32 %v1587, %v1588
    %v1591 = vrot.slane %v1587, 4
    %v1593 = vshrl.u32 %v1199, 16
    %v1595 = vrot.slane %v1593, 7
    %v1596 = vshll.u32 %v1199, 16
    %v1598 = vor.u32 %v1595, %v1596
    %v1599 = vrot.slane %v1595, 4
    %v1601 = vshrl.u32 %v1200, 16
    %v1603 = vrot.slane %v1601, 7
    %v1604 = vshll.u32 %v1200, 16
    %v1606 = vor.u32 %v1603, %v1604
    %v1607 = vrot.slane %v1603, 4
    %v1609 = vshrl.u32 %v1201, 16
    %v1611 = vrot.slane %v1609, 7
    %v1612 = vshll.u32 %v1201, 16
    %v1614 = vor.u32 %v1611, %v1612
    %v1615 = vrot.slane %v1611, 4
    %v1617 = vshrl.u32 %v1202, 16
    %v1619 = vrot.slane %v1617, 7
    %v1620 = vshll.u32 %v1202, 16
    %v1622 = vor.u32 %v1619, %v1620
    %v1623 = vrot.slane %v1619, 4
    %v1625 = vshrl.u32 %v1203, 16
    %v1627 = vrot.slane %v1625, 7
    %v1628 = vshll.u32 %v1203, 16
    %v1630 = vor.u32 %v1627, %v1628
    %v1631 = vrot.slane %v1627, 4
    %v1633 = vshrl.u32 %v1204, 16
    %v1635 = vrot.slane %v1633, 7
    %v1636 = vshll.u32 %v1204, 16
    %v1638 = vor.u32 %v1635, %v1636
    %v1639 = vrot.slane %v1635, 4
    %v1641 = vshrl.u32 %v1205, 16
    %v1643 = vrot.slane %v1641, 7
    %v1644 = vshll.u32 %v1205, 16
    %v1646 = vor.u32 %v1643, %v1644
    %v1647 = vrot.slane %v1643, 4
    %v1649 = vshrl.u32 %v1206, 16
    %v1651 = vrot.slane %v1649, 7
    %v1652 = vshll.u32 %v1206, 16
    %v1654 = vor.u32 %v1651, %v1652
    %v1655 = vrot.slane %v1651, 4
    %v1657 = vshrl.u32 %v1207, 16
    %v1659 = vrot.slane %v1657, 7
    %v1660 = vshll.u32 %v1207, 16
    %v1662 = vor.u32 %v1659, %v1660
    %v1663 = vrot.slane %v1659, 4
    %v1665 = vshrl.u32 %v1208, 16
    %v1667 = vrot.slane %v1665, 7
    %v1668 = vshll.u32 %v1208, 16
    %v1670 = vor.u32 %v1667, %v1668
    %v1671 = vrot.slane %v1667, 4
    %v1673 = vshrl.u32 %v1209, 16
    %v1675 = vrot.slane %v1673, 7
    %v1676 = vshll.u32 %v1209, 16
    %v1678 = vor.u32 %v1675, %v1676
    %v1679 = vrot.slane %v1675, 4
    %v1681 = vshrl.u32 %v1210, 16
    %v1683 = vrot.slane %v1681, 7
    %v1684 = vshll.u32 %v1210, 16
    %v1686 = vor.u32 %v1683, %v1684
    %v1687 = vrot.slane %v1683, 4
    %v1689 = vshrl.u32 %v1211, 16
    %v1691 = vrot.slane %v1689, 7
    %v1692 = vshll.u32 %v1211, 16
    %v1694 = vor.u32 %v1691, %v1692
    %v1695 = vrot.slane %v1691, 4
    %v1697 = vshrl.u32 %v1212, 16
    %v1699 = vrot.slane %v1697, 7
    %v1700 = vshll.u32 %v1212, 16
    %v1702 = vor.u32 %v1699, %v1700
    %v1703 = vrot.slane %v1699, 4
    %v1705 = vshrl.u32 %v1213, 16
    %v1707 = vrot.slane %v1705, 7
    %v1708 = vshll.u32 %v1213, 16
    %v1710 = vor.u32 %v1707, %v1708
    %v1711 = vrot.slane %v1707, 4
    %v1713 = vshrl.u32 %v1214, 16
    %v1715 = vrot.slane %v1713, 7
    %v1716 = vshll.u32 %v1214, 16
    %v1718 = vor.u32 %v1715, %v1716
    %v1719 = vrot.slane %v1715, 4
    %v1721 = vshrl.u32 %v1215, 16
    %v1723 = vrot.slane %v1721, 7
    %v1724 = vshll.u32 %v1215, 16
    %v1726 = vor.u32 %v1723, %v1724
    %v1727 = vrot.slane %v1723, 4
    %s1856 = scalar_lea.vmem [#allocation2], 8
    %vm1857 = vcmask 125952
    %vm1858 = vsmask.f32 7938
    %vm1859 = vmand %vm1857, %vm1858
    %v1860 = vld [vmem:[%s1856] sm:$0xf]
    %v1861 = vsel %vm1859, %v1222, %v1860
    %1862 = vst [vmem:[%s1856] sm:$0xf] %v1861
    %v1863 = vld [vmem:[%s1856 + $0x4] sm:$0x1]
    %v1864 = vsel %vm776, %v1223, %v1863
    %1865 = vst [vmem:[%s1856 + $0x4] sm:$0x1] %v1864
    %v1866 = vld [vmem:[%s1856 + $0x8] sm:$0xf]
    %v1867 = vsel %vm1859, %v1230, %v1866
    %1868 = vst [vmem:[%s1856 + $0x8] sm:$0xf] %v1867
    %v1869 = vld [vmem:[%s1856 + $0xc] sm:$0x1]
    %v1870 = vsel %vm776, %v1231, %v1869
    %1871 = vst [vmem:[%s1856 + $0xc] sm:$0x1] %v1870
    %v1872 = vld [vmem:[%s1856 + $0x10] sm:$0xf]
    %v1873 = vsel %vm1859, %v1238, %v1872
    %1874 = vst [vmem:[%s1856 + $0x10] sm:$0xf] %v1873
    %v1875 = vld [vmem:[%s1856 + $0x14] sm:$0x1]
    %v1876 = vsel %vm776, %v1239, %v1875
    %1877 = vst [vmem:[%s1856 + $0x14] sm:$0x1] %v1876
    %v1878 = vld [vmem:[%s1856 + $0x18] sm:$0xf]
    %v1879 = vsel %vm1859, %v1246, %v1878
    %1880 = vst [vmem:[%s1856 + $0x18] sm:$0xf] %v1879
    %v1881 = vld [vmem:[%s1856 + $0x1c] sm:$0x1]
    %v1882 = vsel %vm776, %v1247, %v1881
    %1883 = vst [vmem:[%s1856 + $0x1c] sm:$0x1] %v1882
    %v1884 = vld [vmem:[%s1856 + $0x20] sm:$0xf]
    %v1885 = vsel %vm1859, %v1254, %v1884
    %1886 = vst [vmem:[%s1856 + $0x20] sm:$0xf] %v1885
    %v1887 = vld [vmem:[%s1856 + $0x24] sm:$0x1]
    %v1888 = vsel %vm776, %v1255, %v1887
    %1889 = vst [vmem:[%s1856 + $0x24] sm:$0x1] %v1888
    %v1890 = vld [vmem:[%s1856 + $0x28] sm:$0xf]
    %v1891 = vsel %vm1859, %v1262, %v1890
    %1892 = vst [vmem:[%s1856 + $0x28] sm:$0xf] %v1891
    %v1893 = vld [vmem:[%s1856 + $0x2c] sm:$0x1]
    %v1894 = vsel %vm776, %v1263, %v1893
    %1895 = vst [vmem:[%s1856 + $0x2c] sm:$0x1] %v1894
    %v1896 = vld [vmem:[%s1856 + $0x30] sm:$0xf]
    %v1897 = vsel %vm1859, %v1270, %v1896
    %1898 = vst [vmem:[%s1856 + $0x30] sm:$0xf] %v1897
    %v1899 = vld [vmem:[%s1856 + $0x34] sm:$0x1]
    %v1900 = vsel %vm776, %v1271, %v1899
    %1901 = vst [vmem:[%s1856 + $0x34] sm:$0x1] %v1900
    %v1902 = vld [vmem:[%s1856 + $0x38] sm:$0xf]
    %v1903 = vsel %vm1859, %v1278, %v1902
    %1904 = vst [vmem:[%s1856 + $0x38] sm:$0xf] %v1903
    %v1905 = vld [vmem:[%s1856 + $0x3c] sm:$0x1]
    %v1906 = vsel %vm776, %v1279, %v1905
    %1907 = vst [vmem:[%s1856 + $0x3c] sm:$0x1] %v1906
    %v1908 = vld [vmem:[%s1856 + $0x48] sm:$0xf]
    %v1909 = vsel %vm1859, %v1286, %v1908
    %1910 = vst [vmem:[%s1856 + $0x48] sm:$0xf] %v1909
    %v1911 = vld [vmem:[%s1856 + $0x4c] sm:$0x1]
    %v1912 = vsel %vm776, %v1287, %v1911
    %1913 = vst [vmem:[%s1856 + $0x4c] sm:$0x1] %v1912
    %v1914 = vld [vmem:[%s1856 + $0x50] sm:$0xf]
    %v1915 = vsel %vm1859, %v1294, %v1914
    %1916 = vst [vmem:[%s1856 + $0x50] sm:$0xf] %v1915
    %v1917 = vld [vmem:[%s1856 + $0x54] sm:$0x1]
    %v1918 = vsel %vm776, %v1295, %v1917
    %1919 = vst [vmem:[%s1856 + $0x54] sm:$0x1] %v1918
    %v1920 = vld [vmem:[%s1856 + $0x58] sm:$0xf]
    %v1921 = vsel %vm1859, %v1302, %v1920
    %1922 = vst [vmem:[%s1856 + $0x58] sm:$0xf] %v1921
    %v1923 = vld [vmem:[%s1856 + $0x5c] sm:$0x1]
    %v1924 = vsel %vm776, %v1303, %v1923
    %1925 = vst [vmem:[%s1856 + $0x5c] sm:$0x1] %v1924
    %v1926 = vld [vmem:[%s1856 + $0x60] sm:$0xf]
    %v1927 = vsel %vm1859, %v1310, %v1926
    %1928 = vst [vmem:[%s1856 + $0x60] sm:$0xf] %v1927
    %v1929 = vld [vmem:[%s1856 + $0x64] sm:$0x1]
    %v1930 = vsel %vm776, %v1311, %v1929
    %1931 = vst [vmem:[%s1856 + $0x64] sm:$0x1] %v1930
    %v1932 = vld [vmem:[%s1856 + $0x68] sm:$0xf]
    %v1933 = vsel %vm1859, %v1318, %v1932
    %1934 = vst [vmem:[%s1856 + $0x68] sm:$0xf] %v1933
    %v1935 = vld [vmem:[%s1856 + $0x6c] sm:$0x1]
    %v1936 = vsel %vm776, %v1319, %v1935
    %1937 = vst [vmem:[%s1856 + $0x6c] sm:$0x1] %v1936
    %v1938 = vld [vmem:[%s1856 + $0x70] sm:$0xf]
    %v1939 = vsel %vm1859, %v1326, %v1938
    %1940 = vst [vmem:[%s1856 + $0x70] sm:$0xf] %v1939
    %v1941 = vld [vmem:[%s1856 + $0x74] sm:$0x1]
    %v1942 = vsel %vm776, %v1327, %v1941
    %1943 = vst [vmem:[%s1856 + $0x74] sm:$0x1] %v1942
    %v1944 = vld [vmem:[%s1856 + $0x78] sm:$0xf]
    %v1945 = vsel %vm1859, %v1334, %v1944
    %1946 = vst [vmem:[%s1856 + $0x78] sm:$0xf] %v1945
    %v1947 = vld [vmem:[%s1856 + $0x7c] sm:$0x1]
    %v1948 = vsel %vm776, %v1335, %v1947
    %1949 = vst [vmem:[%s1856 + $0x7c] sm:$0x1] %v1948
    %v1950 = vld [vmem:[%s1856 + $0x80] sm:$0xf]
    %v1951 = vsel %vm1859, %v1342, %v1950
    %1952 = vst [vmem:[%s1856 + $0x80] sm:$0xf] %v1951
    %v1953 = vld [vmem:[%s1856 + $0x84] sm:$0x1]
    %v1954 = vsel %vm776, %v1343, %v1953
    %1955 = vst [vmem:[%s1856 + $0x84] sm:$0x1] %v1954
    %v1956 = vld [vmem:[%s1856 + $0x90] sm:$0xf]
    %v1957 = vsel %vm1859, %v1350, %v1956
    %1958 = vst [vmem:[%s1856 + $0x90] sm:$0xf] %v1957
    %v1959 = vld [vmem:[%s1856 + $0x94] sm:$0x1]
    %v1960 = vsel %vm776, %v1351, %v1959
    %1961 = vst [vmem:[%s1856 + $0x94] sm:$0x1] %v1960
    %v1962 = vld [vmem:[%s1856 + $0x98] sm:$0xf]
    %v1963 = vsel %vm1859, %v1358, %v1962
    %1964 = vst [vmem:[%s1856 + $0x98] sm:$0xf] %v1963
    %v1965 = vld [vmem:[%s1856 + $0x9c] sm:$0x1]
    %v1966 = vsel %vm776, %v1359, %v1965
    %1967 = vst [vmem:[%s1856 + $0x9c] sm:$0x1] %v1966
    %v1968 = vld [vmem:[%s1856 + $0xa0] sm:$0xf]
    %v1969 = vsel %vm1859, %v1366, %v1968
    %1970 = vst [vmem:[%s1856 + $0xa0] sm:$0xf] %v1969
    %v1971 = vld [vmem:[%s1856 + $0xa4] sm:$0x1]
    %v1972 = vsel %vm776, %v1367, %v1971
    %1973 = vst [vmem:[%s1856 + $0xa4] sm:$0x1] %v1972
    %v1974 = vld [vmem:[%s1856 + $0xa8] sm:$0xf]
    %v1975 = vsel %vm1859, %v1374, %v1974
    %1976 = vst [vmem:[%s1856 + $0xa8] sm:$0xf] %v1975
    %v1977 = vld [vmem:[%s1856 + $0xac] sm:$0x1]
    %v1978 = vsel %vm776, %v1375, %v1977
    %1979 = vst [vmem:[%s1856 + $0xac] sm:$0x1] %v1978
    %v1980 = vld [vmem:[%s1856 + $0xb0] sm:$0xf]
    %v1981 = vsel %vm1859, %v1382, %v1980
    %1982 = vst [vmem:[%s1856 + $0xb0] sm:$0xf] %v1981
    %v1983 = vld [vmem:[%s1856 + $0xb4] sm:$0x1]
    %v1984 = vsel %vm776, %v1383, %v1983
    %1985 = vst [vmem:[%s1856 + $0xb4] sm:$0x1] %v1984
    %v1986 = vld [vmem:[%s1856 + $0xb8] sm:$0xf]
    %v1987 = vsel %vm1859, %v1390, %v1986
    %1988 = vst [vmem:[%s1856 + $0xb8] sm:$0xf] %v1987
    %v1989 = vld [vmem:[%s1856 + $0xbc] sm:$0x1]
    %v1990 = vsel %vm776, %v1391, %v1989
    %1991 = vst [vmem:[%s1856 + $0xbc] sm:$0x1] %v1990
    %v1992 = vld [vmem:[%s1856 + $0xc0] sm:$0xf]
    %v1993 = vsel %vm1859, %v1398, %v1992
    %1994 = vst [vmem:[%s1856 + $0xc0] sm:$0xf] %v1993
    %v1995 = vld [vmem:[%s1856 + $0xc4] sm:$0x1]
    %v1996 = vsel %vm776, %v1399, %v1995
    %1997 = vst [vmem:[%s1856 + $0xc4] sm:$0x1] %v1996
    %v1998 = vld [vmem:[%s1856 + $0xc8] sm:$0xf]
    %v1999 = vsel %vm1859, %v1406, %v1998
    %2000 = vst [vmem:[%s1856 + $0xc8] sm:$0xf] %v1999
    %v2001 = vld [vmem:[%s1856 + $0xcc] sm:$0x1]
    %v2002 = vsel %vm776, %v1407, %v2001
    %2003 = vst [vmem:[%s1856 + $0xcc] sm:$0x1] %v2002
    %v2004 = vld [vmem:[%s1856 + $0xd8] sm:$0xf]
    %v2005 = vsel %vm1859, %v1414, %v2004
    %2006 = vst [vmem:[%s1856 + $0xd8] sm:$0xf] %v2005
    %v2007 = vld [vmem:[%s1856 + $0xdc] sm:$0x1]
    %v2008 = vsel %vm776, %v1415, %v2007
    %2009 = vst [vmem:[%s1856 + $0xdc] sm:$0x1] %v2008
    %v2010 = vld [vmem:[%s1856 + $0xe0] sm:$0xf]
    %v2011 = vsel %vm1859, %v1422, %v2010
    %2012 = vst [vmem:[%s1856 + $0xe0] sm:$0xf] %v2011
    %v2013 = vld [vmem:[%s1856 + $0xe4] sm:$0x1]
    %v2014 = vsel %vm776, %v1423, %v2013
    %2015 = vst [vmem:[%s1856 + $0xe4] sm:$0x1] %v2014
    %v2016 = vld [vmem:[%s1856 + $0xe8] sm:$0xf]
    %v2017 = vsel %vm1859, %v1430, %v2016
    %2018 = vst [vmem:[%s1856 + $0xe8] sm:$0xf] %v2017
    %v2019 = vld [vmem:[%s1856 + $0xec] sm:$0x1]
    %v2020 = vsel %vm776, %v1431, %v2019
    %2021 = vst [vmem:[%s1856 + $0xec] sm:$0x1] %v2020
    %v2022 = vld [vmem:[%s1856 + $0xf0] sm:$0xf]
    %v2023 = vsel %vm1859, %v1438, %v2022
    %2024 = vst [vmem:[%s1856 + $0xf0] sm:$0xf] %v2023
    %v2025 = vld [vmem:[%s1856 + $0xf4] sm:$0x1]
    %v2026 = vsel %vm776, %v1439, %v2025
    %2027 = vst [vmem:[%s1856 + $0xf4] sm:$0x1] %v2026
    %v2028 = vld [vmem:[%s1856 + $0xf8] sm:$0xf]
    %v2029 = vsel %vm1859, %v1446, %v2028
    %2030 = vst [vmem:[%s1856 + $0xf8] sm:$0xf] %v2029
    %v2031 = vld [vmem:[%s1856 + $0xfc] sm:$0x1]
    %v2032 = vsel %vm776, %v1447, %v2031
    %2033 = vst [vmem:[%s1856 + $0xfc] sm:$0x1] %v2032
    %v2034 = vld [vmem:[%s1856 + $0x100] sm:$0xf]
    %v2035 = vsel %vm1859, %v1454, %v2034
    %2036 = vst [vmem:[%s1856 + $0x100] sm:$0xf] %v2035
    %v2037 = vld [vmem:[%s1856 + $0x104] sm:$0x1]
    %v2038 = vsel %vm776, %v1455, %v2037
    %2039 = vst [vmem:[%s1856 + $0x104] sm:$0x1] %v2038
    %v2040 = vld [vmem:[%s1856 + $0x108] sm:$0xf]
    %v2041 = vsel %vm1859, %v1462, %v2040
    %2042 = vst [vmem:[%s1856 + $0x108] sm:$0xf] %v2041
    %v2043 = vld [vmem:[%s1856 + $0x10c] sm:$0x1]
    %v2044 = vsel %vm776, %v1463, %v2043
    %2045 = vst [vmem:[%s1856 + $0x10c] sm:$0x1] %v2044
    %v2046 = vld [vmem:[%s1856 + $0x110] sm:$0xf]
    %v2047 = vsel %vm1859, %v1470, %v2046
    %2048 = vst [vmem:[%s1856 + $0x110] sm:$0xf] %v2047
    %v2049 = vld [vmem:[%s1856 + $0x114] sm:$0x1]
    %v2050 = vsel %vm776, %v1471, %v2049
    %2051 = vst [vmem:[%s1856 + $0x114] sm:$0x1] %v2050
    %v2052 = vld [vmem:[%s1856 + $0x120] sm:$0xf]
    %v2053 = vsel %vm1859, %v1478, %v2052
    %2054 = vst [vmem:[%s1856 + $0x120] sm:$0xf] %v2053
    %v2055 = vld [vmem:[%s1856 + $0x124] sm:$0x1]
    %v2056 = vsel %vm776, %v1479, %v2055
    %2057 = vst [vmem:[%s1856 + $0x124] sm:$0x1] %v2056
    %v2058 = vld [vmem:[%s1856 + $0x128] sm:$0xf]
    %v2059 = vsel %vm1859, %v1486, %v2058
    %2060 = vst [vmem:[%s1856 + $0x128] sm:$0xf] %v2059
    %v2061 = vld [vmem:[%s1856 + $0x12c] sm:$0x1]
    %v2062 = vsel %vm776, %v1487, %v2061
    %2063 = vst [vmem:[%s1856 + $0x12c] sm:$0x1] %v2062
    %v2064 = vld [vmem:[%s1856 + $0x130] sm:$0xf]
    %v2065 = vsel %vm1859, %v1494, %v2064
    %2066 = vst [vmem:[%s1856 + $0x130] sm:$0xf] %v2065
    %v2067 = vld [vmem:[%s1856 + $0x134] sm:$0x1]
    %v2068 = vsel %vm776, %v1495, %v2067
    %2069 = vst [vmem:[%s1856 + $0x134] sm:$0x1] %v2068
    %v2070 = vld [vmem:[%s1856 + $0x138] sm:$0xf]
    %v2071 = vsel %vm1859, %v1502, %v2070
    %2072 = vst [vmem:[%s1856 + $0x138] sm:$0xf] %v2071
    %v2073 = vld [vmem:[%s1856 + $0x13c] sm:$0x1]
    %v2074 = vsel %vm776, %v1503, %v2073
    %2075 = vst [vmem:[%s1856 + $0x13c] sm:$0x1] %v2074
    %v2076 = vld [vmem:[%s1856 + $0x140] sm:$0xf]
    %v2077 = vsel %vm1859, %v1510, %v2076
    %2078 = vst [vmem:[%s1856 + $0x140] sm:$0xf] %v2077
    %v2079 = vld [vmem:[%s1856 + $0x144] sm:$0x1]
    %v2080 = vsel %vm776, %v1511, %v2079
    %2081 = vst [vmem:[%s1856 + $0x144] sm:$0x1] %v2080
    %v2082 = vld [vmem:[%s1856 + $0x148] sm:$0xf]
    %v2083 = vsel %vm1859, %v1518, %v2082
    %2084 = vst [vmem:[%s1856 + $0x148] sm:$0xf] %v2083
    %v2085 = vld [vmem:[%s1856 + $0x14c] sm:$0x1]
    %v2086 = vsel %vm776, %v1519, %v2085
    %2087 = vst [vmem:[%s1856 + $0x14c] sm:$0x1] %v2086
    %v2088 = vld [vmem:[%s1856 + $0x150] sm:$0xf]
    %v2089 = vsel %vm1859, %v1526, %v2088
    %2090 = vst [vmem:[%s1856 + $0x150] sm:$0xf] %v2089
    %v2091 = vld [vmem:[%s1856 + $0x154] sm:$0x1]
    %v2092 = vsel %vm776, %v1527, %v2091
    %2093 = vst [vmem:[%s1856 + $0x154] sm:$0x1] %v2092
    %v2094 = vld [vmem:[%s1856 + $0x158] sm:$0xf]
    %v2095 = vsel %vm1859, %v1534, %v2094
    %2096 = vst [vmem:[%s1856 + $0x158] sm:$0xf] %v2095
    %v2097 = vld [vmem:[%s1856 + $0x15c] sm:$0x1]
    %v2098 = vsel %vm776, %v1535, %v2097
    %2099 = vst [vmem:[%s1856 + $0x15c] sm:$0x1] %v2098
    %v2100 = vld [vmem:[%s1856 + $0x168] sm:$0xf]
    %v2101 = vsel %vm1859, %v1542, %v2100
    %2102 = vst [vmem:[%s1856 + $0x168] sm:$0xf] %v2101
    %v2103 = vld [vmem:[%s1856 + $0x16c] sm:$0x1]
    %v2104 = vsel %vm776, %v1543, %v2103
    %2105 = vst [vmem:[%s1856 + $0x16c] sm:$0x1] %v2104
    %v2106 = vld [vmem:[%s1856 + $0x170] sm:$0xf]
    %v2107 = vsel %vm1859, %v1550, %v2106
    %2108 = vst [vmem:[%s1856 + $0x170] sm:$0xf] %v2107
    %v2109 = vld [vmem:[%s1856 + $0x174] sm:$0x1]
    %v2110 = vsel %vm776, %v1551, %v2109
    %2111 = vst [vmem:[%s1856 + $0x174] sm:$0x1] %v2110
    %v2112 = vld [vmem:[%s1856 + $0x178] sm:$0xf]
    %v2113 = vsel %vm1859, %v1558, %v2112
    %2114 = vst [vmem:[%s1856 + $0x178] sm:$0xf] %v2113
    %v2115 = vld [vmem:[%s1856 + $0x17c] sm:$0x1]
    %v2116 = vsel %vm776, %v1559, %v2115
    %2117 = vst [vmem:[%s1856 + $0x17c] sm:$0x1] %v2116
    %v2118 = vld [vmem:[%s1856 + $0x180] sm:$0xf]
    %v2119 = vsel %vm1859, %v1566, %v2118
    %2120 = vst [vmem:[%s1856 + $0x180] sm:$0xf] %v2119
    %v2121 = vld [vmem:[%s1856 + $0x184] sm:$0x1]
    %v2122 = vsel %vm776, %v1567, %v2121
    %2123 = vst [vmem:[%s1856 + $0x184] sm:$0x1] %v2122
    %v2124 = vld [vmem:[%s1856 + $0x188] sm:$0xf]
    %v2125 = vsel %vm1859, %v1574, %v2124
    %2126 = vst [vmem:[%s1856 + $0x188] sm:$0xf] %v2125
    %v2127 = vld [vmem:[%s1856 + $0x18c] sm:$0x1]
    %v2128 = vsel %vm776, %v1575, %v2127
    %2129 = vst [vmem:[%s1856 + $0x18c] sm:$0x1] %v2128
    %v2130 = vld [vmem:[%s1856 + $0x190] sm:$0xf]
    %v2131 = vsel %vm1859, %v1582, %v2130
    %2132 = vst [vmem:[%s1856 + $0x190] sm:$0xf] %v2131
    %v2133 = vld [vmem:[%s1856 + $0x194] sm:$0x1]
    %v2134 = vsel %vm776, %v1583, %v2133
    %2135 = vst [vmem:[%s1856 + $0x194] sm:$0x1] %v2134
    %v2136 = vld [vmem:[%s1856 + $0x198] sm:$0xf]
    %v2137 = vsel %vm1859, %v1590, %v2136
    %2138 = vst [vmem:[%s1856 + $0x198] sm:$0xf] %v2137
    %v2139 = vld [vmem:[%s1856 + $0x19c] sm:$0x1]
    %v2140 = vsel %vm776, %v1591, %v2139
    %2141 = vst [vmem:[%s1856 + $0x19c] sm:$0x1] %v2140
    %v2142 = vld [vmem:[%s1856 + $0x1a0] sm:$0xf]
    %v2143 = vsel %vm1859, %v1598, %v2142
    %2144 = vst [vmem:[%s1856 + $0x1a0] sm:$0xf] %v2143
    %v2145 = vld [vmem:[%s1856 + $0x1a4] sm:$0x1]
    %v2146 = vsel %vm776, %v1599, %v2145
    %2147 = vst [vmem:[%s1856 + $0x1a4] sm:$0x1] %v2146
    %v2148 = vld [vmem:[%s1856 + $0x1b0] sm:$0xf]
    %v2149 = vsel %vm1859, %v1606, %v2148
    %2150 = vst [vmem:[%s1856 + $0x1b0] sm:$0xf] %v2149
    %v2151 = vld [vmem:[%s1856 + $0x1b4] sm:$0x1]
    %v2152 = vsel %vm776, %v1607, %v2151
    %2153 = vst [vmem:[%s1856 + $0x1b4] sm:$0x1] %v2152
    %v2154 = vld [vmem:[%s1856 + $0x1b8] sm:$0xf]
    %v2155 = vsel %vm1859, %v1614, %v2154
    %2156 = vst [vmem:[%s1856 + $0x1b8] sm:$0xf] %v2155
    %v2157 = vld [vmem:[%s1856 + $0x1bc] sm:$0x1]
    %v2158 = vsel %vm776, %v1615, %v2157
    %2159 = vst [vmem:[%s1856 + $0x1bc] sm:$0x1] %v2158
    %v2160 = vld [vmem:[%s1856 + $0x1c0] sm:$0xf]
    %v2161 = vsel %vm1859, %v1622, %v2160
    %2162 = vst [vmem:[%s1856 + $0x1c0] sm:$0xf] %v2161
    %v2163 = vld [vmem:[%s1856 + $0x1c4] sm:$0x1]
    %v2164 = vsel %vm776, %v1623, %v2163
    %2165 = vst [vmem:[%s1856 + $0x1c4] sm:$0x1] %v2164
    %v2166 = vld [vmem:[%s1856 + $0x1c8] sm:$0xf]
    %v2167 = vsel %vm1859, %v1630, %v2166
    %2168 = vst [vmem:[%s1856 + $0x1c8] sm:$0xf] %v2167
    %v2169 = vld [vmem:[%s1856 + $0x1cc] sm:$0x1]
    %v2170 = vsel %vm776, %v1631, %v2169
    %2171 = vst [vmem:[%s1856 + $0x1cc] sm:$0x1] %v2170
    %v2172 = vld [vmem:[%s1856 + $0x1d0] sm:$0xf]
    %v2173 = vsel %vm1859, %v1638, %v2172
    %2174 = vst [vmem:[%s1856 + $0x1d0] sm:$0xf] %v2173
    %v2175 = vld [vmem:[%s1856 + $0x1d4] sm:$0x1]
    %v2176 = vsel %vm776, %v1639, %v2175
    %2177 = vst [vmem:[%s1856 + $0x1d4] sm:$0x1] %v2176
    %v2178 = vld [vmem:[%s1856 + $0x1d8] sm:$0xf]
    %v2179 = vsel %vm1859, %v1646, %v2178
    %2180 = vst [vmem:[%s1856 + $0x1d8] sm:$0xf] %v2179
    %v2181 = vld [vmem:[%s1856 + $0x1dc] sm:$0x1]
    %v2182 = vsel %vm776, %v1647, %v2181
    %2183 = vst [vmem:[%s1856 + $0x1dc] sm:$0x1] %v2182
    %v2184 = vld [vmem:[%s1856 + $0x1e0] sm:$0xf]
    %v2185 = vsel %vm1859, %v1654, %v2184
    %2186 = vst [vmem:[%s1856 + $0x1e0] sm:$0xf] %v2185
    %v2187 = vld [vmem:[%s1856 + $0x1e4] sm:$0x1]
    %v2188 = vsel %vm776, %v1655, %v2187
    %2189 = vst [vmem:[%s1856 + $0x1e4] sm:$0x1] %v2188
    %v2190 = vld [vmem:[%s1856 + $0x1e8] sm:$0xf]
    %v2191 = vsel %vm1859, %v1662, %v2190
    %2192 = vst [vmem:[%s1856 + $0x1e8] sm:$0xf] %v2191
    %v2193 = vld [vmem:[%s1856 + $0x1ec] sm:$0x1]
    %v2194 = vsel %vm776, %v1663, %v2193
    %2195 = vst [vmem:[%s1856 + $0x1ec] sm:$0x1] %v2194
    %v2196 = vld [vmem:[%s1856 + $0x1f8] sm:$0xf]
    %v2197 = vsel %vm1859, %v1670, %v2196
    %2198 = vst [vmem:[%s1856 + $0x1f8] sm:$0xf] %v2197
    %v2199 = vld [vmem:[%s1856 + $0x1fc] sm:$0x1]
    %v2200 = vsel %vm776, %v1671, %v2199
    %2201 = vst [vmem:[%s1856 + $0x1fc] sm:$0x1] %v2200
    %v2202 = vld [vmem:[%s1856 + $0x200] sm:$0xf]
    %v2203 = vsel %vm1859, %v1678, %v2202
    %2204 = vst [vmem:[%s1856 + $0x200] sm:$0xf] %v2203
    %v2205 = vld [vmem:[%s1856 + $0x204] sm:$0x1]
    %v2206 = vsel %vm776, %v1679, %v2205
    %2207 = vst [vmem:[%s1856 + $0x204] sm:$0x1] %v2206
    %v2208 = vld [vmem:[%s1856 + $0x208] sm:$0xf]
    %v2209 = vsel %vm1859, %v1686, %v2208
    %2210 = vst [vmem:[%s1856 + $0x208] sm:$0xf] %v2209
    %v2211 = vld [vmem:[%s1856 + $0x20c] sm:$0x1]
    %v2212 = vsel %vm776, %v1687, %v2211
    %2213 = vst [vmem:[%s1856 + $0x20c] sm:$0x1] %v2212
    %v2214 = vld [vmem:[%s1856 + $0x210] sm:$0xf]
    %v2215 = vsel %vm1859, %v1694, %v2214
    %2216 = vst [vmem:[%s1856 + $0x210] sm:$0xf] %v2215
    %v2217 = vld [vmem:[%s1856 + $0x214] sm:$0x1]
    %v2218 = vsel %vm776, %v1695, %v2217
    %2219 = vst [vmem:[%s1856 + $0x214] sm:$0x1] %v2218
    %v2220 = vld [vmem:[%s1856 + $0x218] sm:$0xf]
    %v2221 = vsel %vm1859, %v1702, %v2220
    %2222 = vst [vmem:[%s1856 + $0x218] sm:$0xf] %v2221
    %v2223 = vld [vmem:[%s1856 + $0x21c] sm:$0x1]
    %v2224 = vsel %vm776, %v1703, %v2223
    %2225 = vst [vmem:[%s1856 + $0x21c] sm:$0x1] %v2224
    %v2226 = vld [vmem:[%s1856 + $0x220] sm:$0xf]
    %v2227 = vsel %vm1859, %v1710, %v2226
    %2228 = vst [vmem:[%s1856 + $0x220] sm:$0xf] %v2227
    %v2229 = vld [vmem:[%s1856 + $0x224] sm:$0x1]
    %v2230 = vsel %vm776, %v1711, %v2229
    %2231 = vst [vmem:[%s1856 + $0x224] sm:$0x1] %v2230
    %v2232 = vld [vmem:[%s1856 + $0x228] sm:$0xf]
    %v2233 = vsel %vm1859, %v1718, %v2232
    %2234 = vst [vmem:[%s1856 + $0x228] sm:$0xf] %v2233
    %v2235 = vld [vmem:[%s1856 + $0x22c] sm:$0x1]
    %v2236 = vsel %vm776, %v1719, %v2235
    %2237 = vst [vmem:[%s1856 + $0x22c] sm:$0x1] %v2236
    %v2238 = vld [vmem:[%s1856 + $0x230] sm:$0xf]
    %v2239 = vsel %vm1859, %v1726, %v2238
    %2240 = vst [vmem:[%s1856 + $0x230] sm:$0xf] %v2239
    %v2241 = vld [vmem:[%s1856 + $0x234] sm:$0x1]
    %v2242 = vsel %vm776, %v1727, %v2241
    %2243 = vst [vmem:[%s1856 + $0x234] sm:$0x1] %v2242
    %s2244 = scalar_lea.vmem [#allocation2], 432
    %v2245 = vld [vmem:[%s2244] sm:$0xf]
    %v2246 = vld [vmem:[%s2244 + $0x8] sm:$0xf]
    %v2247 = vld [vmem:[%s2244 + $0x10] sm:$0xf]
    %v2248 = vld [vmem:[%s2244 + $0x18] sm:$0xf]
    %v2249 = vld [vmem:[%s2244 + $0x20] sm:$0xf]
    %v2250 = vld [vmem:[%s2244 + $0x28] sm:$0xf]
    %v2251 = vld [vmem:[%s2244 + $0x30] sm:$0xf]
    %v2252 = vld [vmem:[%s2244 + $0x38] sm:$0xf]
    %v2253 = vld [vmem:[%s2244 + $0x48] sm:$0xf]
    %v2254 = vld [vmem:[%s2244 + $0x50] sm:$0xf]
    %v2255 = vld [vmem:[%s2244 + $0x58] sm:$0xf]
    %v2256 = vld [vmem:[%s2244 + $0x60] sm:$0xf]
    %v2257 = vld [vmem:[%s2244 + $0x68] sm:$0xf]
    %v2258 = vld [vmem:[%s2244 + $0x70] sm:$0xf]
    %v2259 = vld [vmem:[%s2244 + $0x78] sm:$0xf]
    %v2260 = vld [vmem:[%s2244 + $0x80] sm:$0xf]
    %2261 = vst.msk [vmem:[#allocation4] sm:$0xf] %vm772, %v2245
    %2262 = vst.msk [vmem:[#allocation4 + $0x8] sm:$0xf] %vm772, %v2246
    %2263 = vst.msk [vmem:[#allocation4 + $0x10] sm:$0xf] %vm772, %v2247
    %2264 = vst.msk [vmem:[#allocation4 + $0x18] sm:$0xf] %vm772, %v2248
    %2265 = vst.msk [vmem:[#allocation4 + $0x20] sm:$0xf] %vm772, %v2249
    %2266 = vst.msk [vmem:[#allocation4 + $0x28] sm:$0xf] %vm772, %v2250
    %2267 = vst.msk [vmem:[#allocation4 + $0x30] sm:$0xf] %vm772, %v2251
    %2268 = vst.msk [vmem:[#allocation4 + $0x38] sm:$0xf] %vm772, %v2252
    %2269 = vst.msk [vmem:[#allocation4 + $0x40] sm:$0xf] %vm772, %v2253
    %2270 = vst.msk [vmem:[#allocation4 + $0x48] sm:$0xf] %vm772, %v2254
    %2271 = vst.msk [vmem:[#allocation4 + $0x50] sm:$0xf] %vm772, %v2255
    %2272 = vst.msk [vmem:[#allocation4 + $0x58] sm:$0xf] %vm772, %v2256
    %2273 = vst.msk [vmem:[#allocation4 + $0x60] sm:$0xf] %vm772, %v2257
    %2274 = vst.msk [vmem:[#allocation4 + $0x68] sm:$0xf] %vm772, %v2258
    %2275 = vst.msk [vmem:[#allocation4 + $0x70] sm:$0xf] %vm772, %v2259
    %2276 = vst.msk [vmem:[#allocation4 + $0x78] sm:$0xf] %vm772, %v2260
    %s2277 = scalar_lea.vmem [#allocation2], 288
    %v2278 = vld [vmem:[%s2277] sm:$0xf]
    %v2279 = vld [vmem:[%s2277 + $0x4] sm:$0x1]
    %v2280 = vld [vmem:[%s2277 + $0x8] sm:$0xf]
    %v2281 = vld [vmem:[%s2277 + $0xc] sm:$0x1]
    %v2282 = vld [vmem:[%s2277 + $0x10] sm:$0xf]
    %v2283 = vld [vmem:[%s2277 + $0x14] sm:$0x1]
    %v2284 = vld [vmem:[%s2277 + $0x18] sm:$0xf]
    %v2285 = vld [vmem:[%s2277 + $0x1c] sm:$0x1]
    %v2286 = vld [vmem:[%s2277 + $0x20] sm:$0xf]
    %v2287 = vld [vmem:[%s2277 + $0x24] sm:$0x1]
    %v2288 = vld [vmem:[%s2277 + $0x28] sm:$0xf]
    %v2289 = vld [vmem:[%s2277 + $0x2c] sm:$0x1]
    %v2290 = vld [vmem:[%s2277 + $0x30] sm:$0xf]
    %v2291 = vld [vmem:[%s2277 + $0x34] sm:$0x1]
    %v2292 = vld [vmem:[%s2277 + $0x38] sm:$0xf]
    %v2293 = vld [vmem:[%s2277 + $0x3c] sm:$0x1]
    %v2294 = vld [vmem:[%s2277 + $0x48] sm:$0xf]
    %v2295 = vld [vmem:[%s2277 + $0x4c] sm:$0x1]
    %v2296 = vld [vmem:[%s2277 + $0x50] sm:$0xf]
    %v2297 = vld [vmem:[%s2277 + $0x54] sm:$0x1]
    %v2298 = vld [vmem:[%s2277 + $0x58] sm:$0xf]
    %v2299 = vld [vmem:[%s2277 + $0x5c] sm:$0x1]
    %v2300 = vld [vmem:[%s2277 + $0x60] sm:$0xf]
    %v2301 = vld [vmem:[%s2277 + $0x64] sm:$0x1]
    %v2302 = vld [vmem:[%s2277 + $0x68] sm:$0xf]
    %v2303 = vld [vmem:[%s2277 + $0x6c] sm:$0x1]
    %v2304 = vld [vmem:[%s2277 + $0x70] sm:$0xf]
    %v2305 = vld [vmem:[%s2277 + $0x74] sm:$0x1]
    %v2306 = vld [vmem:[%s2277 + $0x78] sm:$0xf]
    %v2307 = vld [vmem:[%s2277 + $0x7c] sm:$0x1]
    %v2308 = vld [vmem:[%s2277 + $0x80] sm:$0xf]
    %v2309 = vld [vmem:[%s2277 + $0x84] sm:$0x1]
    %vm2310 = vsmask.f32 3328
    %vm2311 = vsmask.f32 7440
    %vm2312 = vmor %vm2310, %vm2311
    %v2314 = vshrl.u32 %v2278, 16
    %v2316 = vrot.slane %v2314, 4
    %v2317 = vshll.u32 %v2278, 16
    %v2319 = vrot.slane %v2317, 5
    %v2320 = vor.u32 %v2316, %v2319
    %v2321 = vrot.slane %v2320, 4
    %v2323 = vshll.u32 %v2279, 16
    %v2325 = vrot.slane %v2323, 5
    %v2326 = vsel %vm2312, %v2321, %v2325
    %v2328 = vshrl.u32 %v2280, 16
    %v2330 = vrot.slane %v2328, 4
    %v2331 = vshll.u32 %v2280, 16
    %v2333 = vrot.slane %v2331, 5
    %v2334 = vor.u32 %v2330, %v2333
    %v2335 = vrot.slane %v2334, 4
    %v2337 = vshll.u32 %v2281, 16
    %v2339 = vrot.slane %v2337, 5
    %v2340 = vsel %vm2312, %v2335, %v2339
    %v2342 = vshrl.u32 %v2282, 16
    %v2344 = vrot.slane %v2342, 4
    %v2345 = vshll.u32 %v2282, 16
    %v2347 = vrot.slane %v2345, 5
    %v2348 = vor.u32 %v2344, %v2347
    %v2349 = vrot.slane %v2348, 4
    %v2351 = vshll.u32 %v2283, 16
    %v2353 = vrot.slane %v2351, 5
    %v2354 = vsel %vm2312, %v2349, %v2353
    %v2356 = vshrl.u32 %v2284, 16
    %v2358 = vrot.slane %v2356, 4
    %v2359 = vshll.u32 %v2284, 16
    %v2361 = vrot.slane %v2359, 5
    %v2362 = vor.u32 %v2358, %v2361
    %v2363 = vrot.slane %v2362, 4
    %v2365 = vshll.u32 %v2285, 16
    %v2367 = vrot.slane %v2365, 5
    %v2368 = vsel %vm2312, %v2363, %v2367
    %v2370 = vshrl.u32 %v2286, 16
    %v2372 = vrot.slane %v2370, 4
    %v2373 = vshll.u32 %v2286, 16
    %v2375 = vrot.slane %v2373, 5
    %v2376 = vor.u32 %v2372, %v2375
    %v2377 = vrot.slane %v2376, 4
    %v2379 = vshll.u32 %v2287, 16
    %v2381 = vrot.slane %v2379, 5
    %v2382 = vsel %vm2312, %v2377, %v2381
    %v2384 = vshrl.u32 %v2288, 16
    %v2386 = vrot.slane %v2384, 4
    %v2387 = vshll.u32 %v2288, 16
    %v2389 = vrot.slane %v2387, 5
    %v2390 = vor.u32 %v2386, %v2389
    %v2391 = vrot.slane %v2390, 4
    %v2393 = vshll.u32 %v2289, 16
    %v2395 = vrot.slane %v2393, 5
    %v2396 = vsel %vm2312, %v2391, %v2395
    %v2398 = vshrl.u32 %v2290, 16
    %v2400 = vrot.slane %v2398, 4
    %v2401 = vshll.u32 %v2290, 16
    %v2403 = vrot.slane %v2401, 5
    %v2404 = vor.u32 %v2400, %v2403
    %v2405 = vrot.slane %v2404, 4
    %v2407 = vshll.u32 %v2291, 16
    %v2409 = vrot.slane %v2407, 5
    %v2410 = vsel %vm2312, %v2405, %v2409
    %v2412 = vshrl.u32 %v2292, 16
    %v2414 = vrot.slane %v2412, 4
    %v2415 = vshll.u32 %v2292, 16
    %v2417 = vrot.slane %v2415, 5
    %v2418 = vor.u32 %v2414, %v2417
    %v2419 = vrot.slane %v2418, 4
    %v2421 = vshll.u32 %v2293, 16
    %v2423 = vrot.slane %v2421, 5
    %v2424 = vsel %vm2312, %v2419, %v2423
    %v2426 = vshrl.u32 %v2294, 16
    %v2428 = vrot.slane %v2426, 4
    %v2429 = vshll.u32 %v2294, 16
    %v2431 = vrot.slane %v2429, 5
    %v2432 = vor.u32 %v2428, %v2431
    %v2433 = vrot.slane %v2432, 4
    %v2435 = vshll.u32 %v2295, 16
    %v2437 = vrot.slane %v2435, 5
    %v2438 = vsel %vm2312, %v2433, %v2437
    %v2440 = vshrl.u32 %v2296, 16
    %v2442 = vrot.slane %v2440, 4
    %v2443 = vshll.u32 %v2296, 16
    %v2445 = vrot.slane %v2443, 5
    %v2446 = vor.u32 %v2442, %v2445
    %v2447 = vrot.slane %v2446, 4
    %v2449 = vshll.u32 %v2297, 16
    %v2451 = vrot.slane %v2449, 5
    %v2452 = vsel %vm2312, %v2447, %v2451
    %v2454 = vshrl.u32 %v2298, 16
    %v2456 = vrot.slane %v2454, 4
    %v2457 = vshll.u32 %v2298, 16
    %v2459 = vrot.slane %v2457, 5
    %v2460 = vor.u32 %v2456, %v2459
    %v2461 = vrot.slane %v2460, 4
    %v2463 = vshll.u32 %v2299, 16
    %v2465 = vrot.slane %v2463, 5
    %v2466 = vsel %vm2312, %v2461, %v2465
    %v2468 = vshrl.u32 %v2300, 16
    %v2470 = vrot.slane %v2468, 4
    %v2471 = vshll.u32 %v2300, 16
    %v2473 = vrot.slane %v2471, 5
    %v2474 = vor.u32 %v2470, %v2473
    %v2475 = vrot.slane %v2474, 4
    %v2477 = vshll.u32 %v2301, 16
    %v2479 = vrot.slane %v2477, 5
    %v2480 = vsel %vm2312, %v2475, %v2479
    %v2482 = vshrl.u32 %v2302, 16
    %v2484 = vrot.slane %v2482, 4
    %v2485 = vshll.u32 %v2302, 16
    %v2487 = vrot.slane %v2485, 5
    %v2488 = vor.u32 %v2484, %v2487
    %v2489 = vrot.slane %v2488, 4
    %v2491 = vshll.u32 %v2303, 16
    %v2493 = vrot.slane %v2491, 5
    %v2494 = vsel %vm2312, %v2489, %v2493
    %v2496 = vshrl.u32 %v2304, 16
    %v2498 = vrot.slane %v2496, 4
    %v2499 = vshll.u32 %v2304, 16
    %v2501 = vrot.slane %v2499, 5
    %v2502 = vor.u32 %v2498, %v2501
    %v2503 = vrot.slane %v2502, 4
    %v2505 = vshll.u32 %v2305, 16
    %v2507 = vrot.slane %v2505, 5
    %v2508 = vsel %vm2312, %v2503, %v2507
    %v2510 = vshrl.u32 %v2306, 16
    %v2512 = vrot.slane %v2510, 4
    %v2513 = vshll.u32 %v2306, 16
    %v2515 = vrot.slane %v2513, 5
    %v2516 = vor.u32 %v2512, %v2515
    %v2517 = vrot.slane %v2516, 4
    %v2519 = vshll.u32 %v2307, 16
    %v2521 = vrot.slane %v2519, 5
    %v2522 = vsel %vm2312, %v2517, %v2521
    %v2524 = vshrl.u32 %v2308, 16
    %v2526 = vrot.slane %v2524, 4
    %v2527 = vshll.u32 %v2308, 16
    %v2529 = vrot.slane %v2527, 5
    %v2530 = vor.u32 %v2526, %v2529
    %v2531 = vrot.slane %v2530, 4
    %v2533 = vshll.u32 %v2309, 16
    %v2535 = vrot.slane %v2533, 5
    %v2536 = vsel %vm2312, %v2531, %v2535
    %2537 = vrot.lane.b32.xlu0 %v2326, 16
    %v2538 = vpop.permute.xlu0 %2537
    %2539 = vrot.lane.b32.xlu0 %v2340, 16
    %v2540 = vpop.permute.xlu0 %2539
    %2541 = vrot.lane.b32.xlu0 %v2354, 16
    %v2542 = vpop.permute.xlu0 %2541
    %2543 = vrot.lane.b32.xlu0 %v2368, 16
    %v2544 = vpop.permute.xlu0 %2543
    %2545 = vrot.lane.b32.xlu0 %v2382, 16
    %v2546 = vpop.permute.xlu0 %2545
    %2547 = vrot.lane.b32.xlu0 %v2396, 16
    %v2548 = vpop.permute.xlu0 %2547
    %2549 = vrot.lane.b32.xlu0 %v2410, 16
    %v2550 = vpop.permute.xlu0 %2549
    %2551 = vrot.lane.b32.xlu0 %v2424, 16
    %v2552 = vpop.permute.xlu0 %2551
    %2553 = vrot.lane.b32.xlu0 %v2438, 16
    %v2554 = vpop.permute.xlu0 %2553
    %2555 = vrot.lane.b32.xlu0 %v2452, 16
    %v2556 = vpop.permute.xlu0 %2555
    %2557 = vrot.lane.b32.xlu0 %v2466, 16
    %v2558 = vpop.permute.xlu0 %2557
    %2559 = vrot.lane.b32.xlu0 %v2480, 16
    %v2560 = vpop.permute.xlu0 %2559
    %2561 = vrot.lane.b32.xlu0 %v2494, 16
    %v2562 = vpop.permute.xlu0 %2561
    %2563 = vrot.lane.b32.xlu0 %v2508, 16
    %v2564 = vpop.permute.xlu0 %2563
    %2565 = vrot.lane.b32.xlu0 %v2522, 16
    %v2566 = vpop.permute.xlu0 %2565
    %2567 = vrot.lane.b32.xlu0 %v2536, 16
    %v2568 = vpop.permute.xlu0 %2567
    %vm2585 = vcmask 257152
    %2586 = vst.msk [vmem:[#allocation4] sm:$0xf] %vm2585, %v2538
    %2587 = vst.msk [vmem:[#allocation4 + $0x8] sm:$0xf] %vm2585, %v2540
    %2588 = vst.msk [vmem:[#allocation4 + $0x10] sm:$0xf] %vm2585, %v2542
    %2589 = vst.msk [vmem:[#allocation4 + $0x18] sm:$0xf] %vm2585, %v2544
    %2590 = vst.msk [vmem:[#allocation4 + $0x20] sm:$0xf] %vm2585, %v2546
    %2591 = vst.msk [vmem:[#allocation4 + $0x28] sm:$0xf] %vm2585, %v2548
    %2592 = vst.msk [vmem:[#allocation4 + $0x30] sm:$0xf] %vm2585, %v2550
    %2593 = vst.msk [vmem:[#allocation4 + $0x38] sm:$0xf] %vm2585, %v2552
    %2594 = vst.msk [vmem:[#allocation4 + $0x40] sm:$0xf] %vm2585, %v2554
    %2595 = vst.msk [vmem:[#allocation4 + $0x48] sm:$0xf] %vm2585, %v2556
    %2596 = vst.msk [vmem:[#allocation4 + $0x50] sm:$0xf] %vm2585, %v2558
    %2597 = vst.msk [vmem:[#allocation4 + $0x58] sm:$0xf] %vm2585, %v2560
    %2598 = vst.msk [vmem:[#allocation4 + $0x60] sm:$0xf] %vm2585, %v2562
    %2599 = vst.msk [vmem:[#allocation4 + $0x68] sm:$0xf] %vm2585, %v2564
    %2600 = vst.msk [vmem:[#allocation4 + $0x70] sm:$0xf] %vm2585, %v2566
    %2601 = vst.msk [vmem:[#allocation4 + $0x78] sm:$0xf] %vm2585, %v2568
    %v2602 = vld [vmem:[%s2244] sm:$0xf]
    %v2603 = vld [vmem:[%s2244 + $0x4] sm:$0x1]
    %v2604 = vld [vmem:[%s2244 + $0x8] sm:$0xf]
    %v2605 = vld [vmem:[%s2244 + $0xc] sm:$0x1]
    %v2606 = vld [vmem:[%s2244 + $0x10] sm:$0xf]
    %v2607 = vld [vmem:[%s2244 + $0x14] sm:$0x1]
    %v2608 = vld [vmem:[%s2244 + $0x18] sm:$0xf]
    %v2609 = vld [vmem:[%s2244 + $0x1c] sm:$0x1]
    %v2610 = vld [vmem:[%s2244 + $0x20] sm:$0xf]
    %v2611 = vld [vmem:[%s2244 + $0x24] sm:$0x1]
    %v2612 = vld [vmem:[%s2244 + $0x28] sm:$0xf]
    %v2613 = vld [vmem:[%s2244 + $0x2c] sm:$0x1]
    %v2614 = vld [vmem:[%s2244 + $0x30] sm:$0xf]
    %v2615 = vld [vmem:[%s2244 + $0x34] sm:$0x1]
    %v2616 = vld [vmem:[%s2244 + $0x38] sm:$0xf]
    %v2617 = vld [vmem:[%s2244 + $0x3c] sm:$0x1]
    %v2618 = vld [vmem:[%s2244 + $0x48] sm:$0xf]
    %v2619 = vld [vmem:[%s2244 + $0x4c] sm:$0x1]
    %v2620 = vld [vmem:[%s2244 + $0x50] sm:$0xf]
    %v2621 = vld [vmem:[%s2244 + $0x54] sm:$0x1]
    %v2622 = vld [vmem:[%s2244 + $0x58] sm:$0xf]
    %v2623 = vld [vmem:[%s2244 + $0x5c] sm:$0x1]
    %v2624 = vld [vmem:[%s2244 + $0x60] sm:$0xf]
    %v2625 = vld [vmem:[%s2244 + $0x64] sm:$0x1]
    %v2626 = vld [vmem:[%s2244 + $0x68] sm:$0xf]
    %v2627 = vld [vmem:[%s2244 + $0x6c] sm:$0x1]
    %v2628 = vld [vmem:[%s2244 + $0x70] sm:$0xf]
    %v2629 = vld [vmem:[%s2244 + $0x74] sm:$0x1]
    %v2630 = vld [vmem:[%s2244 + $0x78] sm:$0xf]
    %v2631 = vld [vmem:[%s2244 + $0x7c] sm:$0x1]
    %v2632 = vld [vmem:[%s2244 + $0x80] sm:$0xf]
    %v2633 = vld [vmem:[%s2244 + $0x84] sm:$0x1]
    %v2635 = vshrl.u32 %v2602, 16
    %v2637 = vrot.slane %v2635, 4
    %v2638 = vshll.u32 %v2602, 16
    %v2640 = vrot.slane %v2638, 5
    %v2641 = vor.u32 %v2637, %v2640
    %v2642 = vrot.slane %v2641, 4
    %v2644 = vshll.u32 %v2603, 16
    %v2646 = vrot.slane %v2644, 5
    %v2647 = vsel %vm2312, %v2642, %v2646
    %v2649 = vshrl.u32 %v2604, 16
    %v2651 = vrot.slane %v2649, 4
    %v2652 = vshll.u32 %v2604, 16
    %v2654 = vrot.slane %v2652, 5
    %v2655 = vor.u32 %v2651, %v2654
    %v2656 = vrot.slane %v2655, 4
    %v2658 = vshll.u32 %v2605, 16
    %v2660 = vrot.slane %v2658, 5
    %v2661 = vsel %vm2312, %v2656, %v2660
    %v2663 = vshrl.u32 %v2606, 16
    %v2665 = vrot.slane %v2663, 4
    %v2666 = vshll.u32 %v2606, 16
    %v2668 = vrot.slane %v2666, 5
    %v2669 = vor.u32 %v2665, %v2668
    %v2670 = vrot.slane %v2669, 4
    %v2672 = vshll.u32 %v2607, 16
    %v2674 = vrot.slane %v2672, 5
    %v2675 = vsel %vm2312, %v2670, %v2674
    %v2677 = vshrl.u32 %v2608, 16
    %v2679 = vrot.slane %v2677, 4
    %v2680 = vshll.u32 %v2608, 16
    %v2682 = vrot.slane %v2680, 5
    %v2683 = vor.u32 %v2679, %v2682
    %v2684 = vrot.slane %v2683, 4
    %v2686 = vshll.u32 %v2609, 16
    %v2688 = vrot.slane %v2686, 5
    %v2689 = vsel %vm2312, %v2684, %v2688
    %v2691 = vshrl.u32 %v2610, 16
    %v2693 = vrot.slane %v2691, 4
    %v2694 = vshll.u32 %v2610, 16
    %v2696 = vrot.slane %v2694, 5
    %v2697 = vor.u32 %v2693, %v2696
    %v2698 = vrot.slane %v2697, 4
    %v2700 = vshll.u32 %v2611, 16
    %v2702 = vrot.slane %v2700, 5
    %v2703 = vsel %vm2312, %v2698, %v2702
    %v2705 = vshrl.u32 %v2612, 16
    %v2707 = vrot.slane %v2705, 4
    %v2708 = vshll.u32 %v2612, 16
    %v2710 = vrot.slane %v2708, 5
    %v2711 = vor.u32 %v2707, %v2710
    %v2712 = vrot.slane %v2711, 4
    %v2714 = vshll.u32 %v2613, 16
    %v2716 = vrot.slane %v2714, 5
    %v2717 = vsel %vm2312, %v2712, %v2716
    %v2719 = vshrl.u32 %v2614, 16
    %v2721 = vrot.slane %v2719, 4
    %v2722 = vshll.u32 %v2614, 16
    %v2724 = vrot.slane %v2722, 5
    %v2725 = vor.u32 %v2721, %v2724
    %v2726 = vrot.slane %v2725, 4
    %v2728 = vshll.u32 %v2615, 16
    %v2730 = vrot.slane %v2728, 5
    %v2731 = vsel %vm2312, %v2726, %v2730
    %v2733 = vshrl.u32 %v2616, 16
    %v2735 = vrot.slane %v2733, 4
    %v2736 = vshll.u32 %v2616, 16
    %v2738 = vrot.slane %v2736, 5
    %v2739 = vor.u32 %v2735, %v2738
    %v2740 = vrot.slane %v2739, 4
    %v2742 = vshll.u32 %v2617, 16
    %v2744 = vrot.slane %v2742, 5
    %v2745 = vsel %vm2312, %v2740, %v2744
    %v2747 = vshrl.u32 %v2618, 16
    %v2749 = vrot.slane %v2747, 4
    %v2750 = vshll.u32 %v2618, 16
    %v2752 = vrot.slane %v2750, 5
    %v2753 = vor.u32 %v2749, %v2752
    %v2754 = vrot.slane %v2753, 4
    %v2756 = vshll.u32 %v2619, 16
    %v2758 = vrot.slane %v2756, 5
    %v2759 = vsel %vm2312, %v2754, %v2758
    %v2761 = vshrl.u32 %v2620, 16
    %v2763 = vrot.slane %v2761, 4
    %v2764 = vshll.u32 %v2620, 16
    %v2766 = vrot.slane %v2764, 5
    %v2767 = vor.u32 %v2763, %v2766
    %v2768 = vrot.slane %v2767, 4
    %v2770 = vshll.u32 %v2621, 16
    %v2772 = vrot.slane %v2770, 5
    %v2773 = vsel %vm2312, %v2768, %v2772
    %v2775 = vshrl.u32 %v2622, 16
    %v2777 = vrot.slane %v2775, 4
    %v2778 = vshll.u32 %v2622, 16
    %v2780 = vrot.slane %v2778, 5
    %v2781 = vor.u32 %v2777, %v2780
    %v2782 = vrot.slane %v2781, 4
    %v2784 = vshll.u32 %v2623, 16
    %v2786 = vrot.slane %v2784, 5
    %v2787 = vsel %vm2312, %v2782, %v2786
    %v2789 = vshrl.u32 %v2624, 16
    %v2791 = vrot.slane %v2789, 4
    %v2792 = vshll.u32 %v2624, 16
    %v2794 = vrot.slane %v2792, 5
    %v2795 = vor.u32 %v2791, %v2794
    %v2796 = vrot.slane %v2795, 4
    %v2798 = vshll.u32 %v2625, 16
    %v2800 = vrot.slane %v2798, 5
    %v2801 = vsel %vm2312, %v2796, %v2800
    %v2803 = vshrl.u32 %v2626, 16
    %v2805 = vrot.slane %v2803, 4
    %v2806 = vshll.u32 %v2626, 16
    %v2808 = vrot.slane %v2806, 5
    %v2809 = vor.u32 %v2805, %v2808
    %v2810 = vrot.slane %v2809, 4
    %v2812 = vshll.u32 %v2627, 16
    %v2814 = vrot.slane %v2812, 5
    %v2815 = vsel %vm2312, %v2810, %v2814
    %v2817 = vshrl.u32 %v2628, 16
    %v2819 = vrot.slane %v2817, 4
    %v2820 = vshll.u32 %v2628, 16
    %v2822 = vrot.slane %v2820, 5
    %v2823 = vor.u32 %v2819, %v2822
    %v2824 = vrot.slane %v2823, 4
    %v2826 = vshll.u32 %v2629, 16
    %v2828 = vrot.slane %v2826, 5
    %v2829 = vsel %vm2312, %v2824, %v2828
    %v2831 = vshrl.u32 %v2630, 16
    %v2833 = vrot.slane %v2831, 4
    %v2834 = vshll.u32 %v2630, 16
    %v2836 = vrot.slane %v2834, 5
    %v2837 = vor.u32 %v2833, %v2836
    %v2838 = vrot.slane %v2837, 4
    %v2840 = vshll.u32 %v2631, 16
    %v2842 = vrot.slane %v2840, 5
    %v2843 = vsel %vm2312, %v2838, %v2842
    %v2845 = vshrl.u32 %v2632, 16
    %v2847 = vrot.slane %v2845, 4
    %v2848 = vshll.u32 %v2632, 16
    %v2850 = vrot.slane %v2848, 5
    %v2851 = vor.u32 %v2847, %v2850
    %v2852 = vrot.slane %v2851, 4
    %v2854 = vshll.u32 %v2633, 16
    %v2856 = vrot.slane %v2854, 5
    %v2857 = vsel %vm2312, %v2852, %v2856
    %2858 = vrot.lane.b32.xlu0 %v2647, 32
    %v2859 = vpop.permute.xlu0 %2858
    %2860 = vrot.lane.b32.xlu0 %v2661, 32
    %v2861 = vpop.permute.xlu0 %2860
    %2862 = vrot.lane.b32.xlu0 %v2675, 32
    %v2863 = vpop.permute.xlu0 %2862
    %2864 = vrot.lane.b32.xlu0 %v2689, 32
    %v2865 = vpop.permute.xlu0 %2864
    %2866 = vrot.lane.b32.xlu0 %v2703, 32
    %v2867 = vpop.permute.xlu0 %2866
    %2868 = vrot.lane.b32.xlu0 %v2717, 32
    %v2869 = vpop.permute.xlu0 %2868
    %2870 = vrot.lane.b32.xlu0 %v2731, 32
    %v2871 = vpop.permute.xlu0 %2870
    %2872 = vrot.lane.b32.xlu0 %v2745, 32
    %v2873 = vpop.permute.xlu0 %2872
    %2874 = vrot.lane.b32.xlu0 %v2759, 32
    %v2875 = vpop.permute.xlu0 %2874
    %2876 = vrot.lane.b32.xlu0 %v2773, 32
    %v2877 = vpop.permute.xlu0 %2876
    %2878 = vrot.lane.b32.xlu0 %v2787, 32
    %v2879 = vpop.permute.xlu0 %2878
    %2880 = vrot.lane.b32.xlu0 %v2801, 32
    %v2881 = vpop.permute.xlu0 %2880
    %2882 = vrot.lane.b32.xlu0 %v2815, 32
    %v2883 = vpop.permute.xlu0 %2882
    %2884 = vrot.lane.b32.xlu0 %v2829, 32
    %v2885 = vpop.permute.xlu0 %2884
    %2886 = vrot.lane.b32.xlu0 %v2843, 32
    %v2887 = vpop.permute.xlu0 %2886
    %2888 = vrot.lane.b32.xlu0 %v2857, 32
    %v2889 = vpop.permute.xlu0 %2888
    %vm2906 = vcmask 388352
    %2907 = vst.msk [vmem:[#allocation4] sm:$0xf] %vm2906, %v2859
    %2908 = vst.msk [vmem:[#allocation4 + $0x8] sm:$0xf] %vm2906, %v2861
    %2909 = vst.msk [vmem:[#allocation4 + $0x10] sm:$0xf] %vm2906, %v2863
    %2910 = vst.msk [vmem:[#allocation4 + $0x18] sm:$0xf] %vm2906, %v2865
    %2911 = vst.msk [vmem:[#allocation4 + $0x20] sm:$0xf] %vm2906, %v2867
    %2912 = vst.msk [vmem:[#allocation4 + $0x28] sm:$0xf] %vm2906, %v2869
    %2913 = vst.msk [vmem:[#allocation4 + $0x30] sm:$0xf] %vm2906, %v2871
    %2914 = vst.msk [vmem:[#allocation4 + $0x38] sm:$0xf] %vm2906, %v2873
    %2915 = vst.msk [vmem:[#allocation4 + $0x40] sm:$0xf] %vm2906, %v2875
    %2916 = vst.msk [vmem:[#allocation4 + $0x48] sm:$0xf] %vm2906, %v2877
    %2917 = vst.msk [vmem:[#allocation4 + $0x50] sm:$0xf] %vm2906, %v2879
    %2918 = vst.msk [vmem:[#allocation4 + $0x58] sm:$0xf] %vm2906, %v2881
    %2919 = vst.msk [vmem:[#allocation4 + $0x60] sm:$0xf] %vm2906, %v2883
    %2920 = vst.msk [vmem:[#allocation4 + $0x68] sm:$0xf] %vm2906, %v2885
    %2921 = vst.msk [vmem:[#allocation4 + $0x70] sm:$0xf] %vm2906, %v2887
    %2922 = vst.msk [vmem:[#allocation4 + $0x78] sm:$0xf] %vm2906, %v2889
    %s2923 = scalar_lea.vmem [#allocation2], 152
    %v2924 = vld [vmem:[%s2923] sm:$0xf]
    %v2925 = vld [vmem:[%s2923 + $0x8] sm:$0xf]
    %v2926 = vld [vmem:[%s2923 + $0x10] sm:$0xf]
    %v2927 = vld [vmem:[%s2923 + $0x18] sm:$0xf]
    %v2928 = vld [vmem:[%s2923 + $0x20] sm:$0xf]
    %v2929 = vld [vmem:[%s2923 + $0x28] sm:$0xf]
    %v2930 = vld [vmem:[%s2923 + $0x30] sm:$0xf]
    %v2931 = vld [vmem:[%s2923 + $0x38] sm:$0xf]
    %v2932 = vld [vmem:[%s2923 + $0x48] sm:$0xf]
    %v2933 = vld [vmem:[%s2923 + $0x50] sm:$0xf]
    %v2934 = vld [vmem:[%s2923 + $0x58] sm:$0xf]
    %v2935 = vld [vmem:[%s2923 + $0x60] sm:$0xf]
    %v2936 = vld [vmem:[%s2923 + $0x68] sm:$0xf]
    %v2937 = vld [vmem:[%s2923 + $0x70] sm:$0xf]
    %v2938 = vld [vmem:[%s2923 + $0x78] sm:$0xf]
    %v2939 = vld [vmem:[%s2923 + $0x80] sm:$0xf]
    %2956 = vrot.lane.b32.xlu0 %v2924, 48
    %v2957 = vpop.permute.xlu0 %2956
    %2958 = vrot.lane.b32.xlu0 %v2925, 48
    %v2959 = vpop.permute.xlu0 %2958
    %2960 = vrot.lane.b32.xlu0 %v2926, 48
    %v2961 = vpop.permute.xlu0 %2960
    %2962 = vrot.lane.b32.xlu0 %v2927, 48
    %v2963 = vpop.permute.xlu0 %2962
    %2964 = vrot.lane.b32.xlu0 %v2928, 48
    %v2965 = vpop.permute.xlu0 %2964
    %2966 = vrot.lane.b32.xlu0 %v2929, 48
    %v2967 = vpop.permute.xlu0 %2966
    %2968 = vrot.lane.b32.xlu0 %v2930, 48
    %v2969 = vpop.permute.xlu0 %2968
    %2970 = vrot.lane.b32.xlu0 %v2931, 48
    %v2971 = vpop.permute.xlu0 %2970
    %2972 = vrot.lane.b32.xlu0 %v2932, 48
    %v2973 = vpop.permute.xlu0 %2972
    %2974 = vrot.lane.b32.xlu0 %v2933, 48
    %v2975 = vpop.permute.xlu0 %2974
    %2976 = vrot.lane.b32.xlu0 %v2934, 48
    %v2977 = vpop.permute.xlu0 %2976
    %2978 = vrot.lane.b32.xlu0 %v2935, 48
    %v2979 = vpop.permute.xlu0 %2978
    %2980 = vrot.lane.b32.xlu0 %v2936, 48
    %v2981 = vpop.permute.xlu0 %2980
    %2982 = vrot.lane.b32.xlu0 %v2937, 48
    %v2983 = vpop.permute.xlu0 %2982
    %2984 = vrot.lane.b32.xlu0 %v2938, 48
    %v2985 = vpop.permute.xlu0 %2984
    %2986 = vrot.lane.b32.xlu0 %v2939, 48
    %v2987 = vpop.permute.xlu0 %2986
    %vm3004 = vcmask 519552
    %3005 = vst.msk [vmem:[#allocation4] sm:$0xf] %vm3004, %v2957
    %3006 = vst.msk [vmem:[#allocation4 + $0x8] sm:$0xf] %vm3004, %v2959
    %3007 = vst.msk [vmem:[#allocation4 + $0x10] sm:$0xf] %vm3004, %v2961
    %3008 = vst.msk [vmem:[#allocation4 + $0x18] sm:$0xf] %vm3004, %v2963
    %3009 = vst.msk [vmem:[#allocation4 + $0x20] sm:$0xf] %vm3004, %v2965
    %3010 = vst.msk [vmem:[#allocation4 + $0x28] sm:$0xf] %vm3004, %v2967
    %3011 = vst.msk [vmem:[#allocation4 + $0x30] sm:$0xf] %vm3004, %v2969
    %3012 = vst.msk [vmem:[#allocation4 + $0x38] sm:$0xf] %vm3004, %v2971
    %3013 = vst.msk [vmem:[#allocation4 + $0x40] sm:$0xf] %vm3004, %v2973
    %3014 = vst.msk [vmem:[#allocation4 + $0x48] sm:$0xf] %vm3004, %v2975
    %3015 = vst.msk [vmem:[#allocation4 + $0x50] sm:$0xf] %vm3004, %v2977
    %3016 = vst.msk [vmem:[#allocation4 + $0x58] sm:$0xf] %vm3004, %v2979
    %3017 = vst.msk [vmem:[#allocation4 + $0x60] sm:$0xf] %vm3004, %v2981
    %3018 = vst.msk [vmem:[#allocation4 + $0x68] sm:$0xf] %vm3004, %v2983
    %3019 = vst.msk [vmem:[#allocation4 + $0x70] sm:$0xf] %vm3004, %v2985
    %3020 = vst.msk [vmem:[#allocation4 + $0x78] sm:$0xf] %vm3004, %v2987
    %v3021 = vld [vmem:[%s1856] sm:$0xf]
    %v3022 = vld [vmem:[%s1856 + $0x4] sm:$0x1]
    %v3023 = vld [vmem:[%s1856 + $0x8] sm:$0xf]
    %v3024 = vld [vmem:[%s1856 + $0xc] sm:$0x1]
    %v3025 = vld [vmem:[%s1856 + $0x10] sm:$0xf]
    %v3026 = vld [vmem:[%s1856 + $0x14] sm:$0x1]
    %v3027 = vld [vmem:[%s1856 + $0x18] sm:$0xf]
    %v3028 = vld [vmem:[%s1856 + $0x1c] sm:$0x1]
    %v3029 = vld [vmem:[%s1856 + $0x20] sm:$0xf]
    %v3030 = vld [vmem:[%s1856 + $0x24] sm:$0x1]
    %v3031 = vld [vmem:[%s1856 + $0x28] sm:$0xf]
    %v3032 = vld [vmem:[%s1856 + $0x2c] sm:$0x1]
    %v3033 = vld [vmem:[%s1856 + $0x30] sm:$0xf]
    %v3034 = vld [vmem:[%s1856 + $0x34] sm:$0x1]
    %v3035 = vld [vmem:[%s1856 + $0x38] sm:$0xf]
    %v3036 = vld [vmem:[%s1856 + $0x3c] sm:$0x1]
    %v3037 = vld [vmem:[%s1856 + $0x48] sm:$0xf]
    %v3038 = vld [vmem:[%s1856 + $0x4c] sm:$0x1]
    %v3039 = vld [vmem:[%s1856 + $0x50] sm:$0xf]
    %v3040 = vld [vmem:[%s1856 + $0x54] sm:$0x1]
    %v3041 = vld [vmem:[%s1856 + $0x58] sm:$0xf]
    %v3042 = vld [vmem:[%s1856 + $0x5c] sm:$0x1]
    %v3043 = vld [vmem:[%s1856 + $0x60] sm:$0xf]
    %v3044 = vld [vmem:[%s1856 + $0x64] sm:$0x1]
    %v3045 = vld [vmem:[%s1856 + $0x68] sm:$0xf]
    %v3046 = vld [vmem:[%s1856 + $0x6c] sm:$0x1]
    %v3047 = vld [vmem:[%s1856 + $0x70] sm:$0xf]
    %v3048 = vld [vmem:[%s1856 + $0x74] sm:$0x1]
    %v3049 = vld [vmem:[%s1856 + $0x78] sm:$0xf]
    %v3050 = vld [vmem:[%s1856 + $0x7c] sm:$0x1]
    %v3051 = vld [vmem:[%s1856 + $0x80] sm:$0xf]
    %v3052 = vld [vmem:[%s1856 + $0x84] sm:$0x1]
    %v3054 = vshrl.u32 %v3021, 16
    %v3056 = vrot.slane %v3054, 4
    %v3057 = vshll.u32 %v3021, 16
    %v3059 = vrot.slane %v3057, 5
    %v3060 = vor.u32 %v3056, %v3059
    %v3061 = vrot.slane %v3060, 4
    %v3063 = vshll.u32 %v3022, 16
    %v3065 = vrot.slane %v3063, 5
    %v3066 = vsel %vm2312, %v3061, %v3065
    %v3068 = vshrl.u32 %v3023, 16
    %v3070 = vrot.slane %v3068, 4
    %v3071 = vshll.u32 %v3023, 16
    %v3073 = vrot.slane %v3071, 5
    %v3074 = vor.u32 %v3070, %v3073
    %v3075 = vrot.slane %v3074, 4
    %v3077 = vshll.u32 %v3024, 16
    %v3079 = vrot.slane %v3077, 5
    %v3080 = vsel %vm2312, %v3075, %v3079
    %v3082 = vshrl.u32 %v3025, 16
    %v3084 = vrot.slane %v3082, 4
    %v3085 = vshll.u32 %v3025, 16
    %v3087 = vrot.slane %v3085, 5
    %v3088 = vor.u32 %v3084, %v3087
    %v3089 = vrot.slane %v3088, 4
    %v3091 = vshll.u32 %v3026, 16
    %v3093 = vrot.slane %v3091, 5
    %v3094 = vsel %vm2312, %v3089, %v3093
    %v3096 = vshrl.u32 %v3027, 16
    %v3098 = vrot.slane %v3096, 4
    %v3099 = vshll.u32 %v3027, 16
    %v3101 = vrot.slane %v3099, 5
    %v3102 = vor.u32 %v3098, %v3101
    %v3103 = vrot.slane %v3102, 4
    %v3105 = vshll.u32 %v3028, 16
    %v3107 = vrot.slane %v3105, 5
    %v3108 = vsel %vm2312, %v3103, %v3107
    %v3110 = vshrl.u32 %v3029, 16
    %v3112 = vrot.slane %v3110, 4
    %v3113 = vshll.u32 %v3029, 16
    %v3115 = vrot.slane %v3113, 5
    %v3116 = vor.u32 %v3112, %v3115
    %v3117 = vrot.slane %v3116, 4
    %v3119 = vshll.u32 %v3030, 16
    %v3121 = vrot.slane %v3119, 5
    %v3122 = vsel %vm2312, %v3117, %v3121
    %v3124 = vshrl.u32 %v3031, 16
    %v3126 = vrot.slane %v3124, 4
    %v3127 = vshll.u32 %v3031, 16
    %v3129 = vrot.slane %v3127, 5
    %v3130 = vor.u32 %v3126, %v3129
    %v3131 = vrot.slane %v3130, 4
    %v3133 = vshll.u32 %v3032, 16
    %v3135 = vrot.slane %v3133, 5
    %v3136 = vsel %vm2312, %v3131, %v3135
    %v3138 = vshrl.u32 %v3033, 16
    %v3140 = vrot.slane %v3138, 4
    %v3141 = vshll.u32 %v3033, 16
    %v3143 = vrot.slane %v3141, 5
    %v3144 = vor.u32 %v3140, %v3143
    %v3145 = vrot.slane %v3144, 4
    %v3147 = vshll.u32 %v3034, 16
    %v3149 = vrot.slane %v3147, 5
    %v3150 = vsel %vm2312, %v3145, %v3149
    %v3152 = vshrl.u32 %v3035, 16
    %v3154 = vrot.slane %v3152, 4
    %v3155 = vshll.u32 %v3035, 16
    %v3157 = vrot.slane %v3155, 5
    %v3158 = vor.u32 %v3154, %v3157
    %v3159 = vrot.slane %v3158, 4
    %v3161 = vshll.u32 %v3036, 16
    %v3163 = vrot.slane %v3161, 5
    %v3164 = vsel %vm2312, %v3159, %v3163
    %v3166 = vshrl.u32 %v3037, 16
    %v3168 = vrot.slane %v3166, 4
    %v3169 = vshll.u32 %v3037, 16
    %v3171 = vrot.slane %v3169, 5
    %v3172 = vor.u32 %v3168, %v3171
    %v3173 = vrot.slane %v3172, 4
    %v3175 = vshll.u32 %v3038, 16
    %v3177 = vrot.slane %v3175, 5
    %v3178 = vsel %vm2312, %v3173, %v3177
    %v3180 = vshrl.u32 %v3039, 16
    %v3182 = vrot.slane %v3180, 4
    %v3183 = vshll.u32 %v3039, 16
    %v3185 = vrot.slane %v3183, 5
    %v3186 = vor.u32 %v3182, %v3185
    %v3187 = vrot.slane %v3186, 4
    %v3189 = vshll.u32 %v3040, 16
    %v3191 = vrot.slane %v3189, 5
    %v3192 = vsel %vm2312, %v3187, %v3191
    %v3194 = vshrl.u32 %v3041, 16
    %v3196 = vrot.slane %v3194, 4
    %v3197 = vshll.u32 %v3041, 16
    %v3199 = vrot.slane %v3197, 5
    %v3200 = vor.u32 %v3196, %v3199
    %v3201 = vrot.slane %v3200, 4
    %v3203 = vshll.u32 %v3042, 16
    %v3205 = vrot.slane %v3203, 5
    %v3206 = vsel %vm2312, %v3201, %v3205
    %v3208 = vshrl.u32 %v3043, 16
    %v3210 = vrot.slane %v3208, 4
    %v3211 = vshll.u32 %v3043, 16
    %v3213 = vrot.slane %v3211, 5
    %v3214 = vor.u32 %v3210, %v3213
    %v3215 = vrot.slane %v3214, 4
    %v3217 = vshll.u32 %v3044, 16
    %v3219 = vrot.slane %v3217, 5
    %v3220 = vsel %vm2312, %v3215, %v3219
    %v3222 = vshrl.u32 %v3045, 16
    %v3224 = vrot.slane %v3222, 4
    %v3225 = vshll.u32 %v3045, 16
    %v3227 = vrot.slane %v3225, 5
    %v3228 = vor.u32 %v3224, %v3227
    %v3229 = vrot.slane %v3228, 4
    %v3231 = vshll.u32 %v3046, 16
    %v3233 = vrot.slane %v3231, 5
    %v3234 = vsel %vm2312, %v3229, %v3233
    %v3236 = vshrl.u32 %v3047, 16
    %v3238 = vrot.slane %v3236, 4
    %v3239 = vshll.u32 %v3047, 16
    %v3241 = vrot.slane %v3239, 5
    %v3242 = vor.u32 %v3238, %v3241
    %v3243 = vrot.slane %v3242, 4
    %v3245 = vshll.u32 %v3048, 16
    %v3247 = vrot.slane %v3245, 5
    %v3248 = vsel %vm2312, %v3243, %v3247
    %v3250 = vshrl.u32 %v3049, 16
    %v3252 = vrot.slane %v3250, 4
    %v3253 = vshll.u32 %v3049, 16
    %v3255 = vrot.slane %v3253, 5
    %v3256 = vor.u32 %v3252, %v3255
    %v3257 = vrot.slane %v3256, 4
    %v3259 = vshll.u32 %v3050, 16
    %v3261 = vrot.slane %v3259, 5
    %v3262 = vsel %vm2312, %v3257, %v3261
    %v3264 = vshrl.u32 %v3051, 16
    %v3266 = vrot.slane %v3264, 4
    %v3267 = vshll.u32 %v3051, 16
    %v3269 = vrot.slane %v3267, 5
    %v3270 = vor.u32 %v3266, %v3269
    %v3271 = vrot.slane %v3270, 4
    %v3273 = vshll.u32 %v3052, 16
    %v3275 = vrot.slane %v3273, 5
    %v3276 = vsel %vm2312, %v3271, %v3275
    %3277 = vrot.lane.b32.xlu0 %v3066, 64
    %v3278 = vpop.permute.xlu0 %3277
    %3279 = vrot.lane.b32.xlu0 %v3080, 64
    %v3280 = vpop.permute.xlu0 %3279
    %3281 = vrot.lane.b32.xlu0 %v3094, 64
    %v3282 = vpop.permute.xlu0 %3281
    %3283 = vrot.lane.b32.xlu0 %v3108, 64
    %v3284 = vpop.permute.xlu0 %3283
    %3285 = vrot.lane.b32.xlu0 %v3122, 64
    %v3286 = vpop.permute.xlu0 %3285
    %3287 = vrot.lane.b32.xlu0 %v3136, 64
    %v3288 = vpop.permute.xlu0 %3287
    %3289 = vrot.lane.b32.xlu0 %v3150, 64
    %v3290 = vpop.permute.xlu0 %3289
    %3291 = vrot.lane.b32.xlu0 %v3164, 64
    %v3292 = vpop.permute.xlu0 %3291
    %3293 = vrot.lane.b32.xlu0 %v3178, 64
    %v3294 = vpop.permute.xlu0 %3293
    %3295 = vrot.lane.b32.xlu0 %v3192, 64
    %v3296 = vpop.permute.xlu0 %3295
    %3297 = vrot.lane.b32.xlu0 %v3206, 64
    %v3298 = vpop.permute.xlu0 %3297
    %3299 = vrot.lane.b32.xlu0 %v3220, 64
    %v3300 = vpop.permute.xlu0 %3299
    %3301 = vrot.lane.b32.xlu0 %v3234, 64
    %v3302 = vpop.permute.xlu0 %3301
    %3303 = vrot.lane.b32.xlu0 %v3248, 64
    %v3304 = vpop.permute.xlu0 %3303
    %3305 = vrot.lane.b32.xlu0 %v3262, 64
    %v3306 = vpop.permute.xlu0 %3305
    %3307 = vrot.lane.b32.xlu0 %v3276, 64
    %v3308 = vpop.permute.xlu0 %3307
    %vm3325 = vcmask 650752
    %3326 = vst.msk [vmem:[#allocation4] sm:$0xf] %vm3325, %v3278
    %3327 = vst.msk [vmem:[#allocation4 + $0x8] sm:$0xf] %vm3325, %v3280
    %3328 = vst.msk [vmem:[#allocation4 + $0x10] sm:$0xf] %vm3325, %v3282
    %3329 = vst.msk [vmem:[#allocation4 + $0x18] sm:$0xf] %vm3325, %v3284
    %3330 = vst.msk [vmem:[#allocation4 + $0x20] sm:$0xf] %vm3325, %v3286
    %3331 = vst.msk [vmem:[#allocation4 + $0x28] sm:$0xf] %vm3325, %v3288
    %3332 = vst.msk [vmem:[#allocation4 + $0x30] sm:$0xf] %vm3325, %v3290
    %3333 = vst.msk [vmem:[#allocation4 + $0x38] sm:$0xf] %vm3325, %v3292
    %3334 = vst.msk [vmem:[#allocation4 + $0x40] sm:$0xf] %vm3325, %v3294
    %3335 = vst.msk [vmem:[#allocation4 + $0x48] sm:$0xf] %vm3325, %v3296
    %3336 = vst.msk [vmem:[#allocation4 + $0x50] sm:$0xf] %vm3325, %v3298
    %3337 = vst.msk [vmem:[#allocation4 + $0x58] sm:$0xf] %vm3325, %v3300
    %3338 = vst.msk [vmem:[#allocation4 + $0x60] sm:$0xf] %vm3325, %v3302
    %3339 = vst.msk [vmem:[#allocation4 + $0x68] sm:$0xf] %vm3325, %v3304
    %3340 = vst.msk [vmem:[#allocation4 + $0x70] sm:$0xf] %vm3325, %v3306
    %3341 = vst.msk [vmem:[#allocation4 + $0x78] sm:$0xf] %vm3325, %v3308
    %v3342 = vld [vmem:[%s2923] sm:$0xf]
    %v3343 = vld [vmem:[%s2923 + $0x4] sm:$0x1]
    %v3344 = vld [vmem:[%s2923 + $0x8] sm:$0xf]
    %v3345 = vld [vmem:[%s2923 + $0xc] sm:$0x1]
    %v3346 = vld [vmem:[%s2923 + $0x10] sm:$0xf]
    %v3347 = vld [vmem:[%s2923 + $0x14] sm:$0x1]
    %v3348 = vld [vmem:[%s2923 + $0x18] sm:$0xf]
    %v3349 = vld [vmem:[%s2923 + $0x1c] sm:$0x1]
    %v3350 = vld [vmem:[%s2923 + $0x20] sm:$0xf]
    %v3351 = vld [vmem:[%s2923 + $0x24] sm:$0x1]
    %v3352 = vld [vmem:[%s2923 + $0x28] sm:$0xf]
    %v3353 = vld [vmem:[%s2923 + $0x2c] sm:$0x1]
    %v3354 = vld [vmem:[%s2923 + $0x30] sm:$0xf]
    %v3355 = vld [vmem:[%s2923 + $0x34] sm:$0x1]
    %v3356 = vld [vmem:[%s2923 + $0x38] sm:$0xf]
    %v3357 = vld [vmem:[%s2923 + $0x3c] sm:$0x1]
    %v3358 = vld [vmem:[%s2923 + $0x48] sm:$0xf]
    %v3359 = vld [vmem:[%s2923 + $0x4c] sm:$0x1]
    %v3360 = vld [vmem:[%s2923 + $0x50] sm:$0xf]
    %v3361 = vld [vmem:[%s2923 + $0x54] sm:$0x1]
    %v3362 = vld [vmem:[%s2923 + $0x58] sm:$0xf]
    %v3363 = vld [vmem:[%s2923 + $0x5c] sm:$0x1]
    %v3364 = vld [vmem:[%s2923 + $0x60] sm:$0xf]
    %v3365 = vld [vmem:[%s2923 + $0x64] sm:$0x1]
    %v3366 = vld [vmem:[%s2923 + $0x68] sm:$0xf]
    %v3367 = vld [vmem:[%s2923 + $0x6c] sm:$0x1]
    %v3368 = vld [vmem:[%s2923 + $0x70] sm:$0xf]
    %v3369 = vld [vmem:[%s2923 + $0x74] sm:$0x1]
    %v3370 = vld [vmem:[%s2923 + $0x78] sm:$0xf]
    %v3371 = vld [vmem:[%s2923 + $0x7c] sm:$0x1]
    %v3372 = vld [vmem:[%s2923 + $0x80] sm:$0xf]
    %v3373 = vld [vmem:[%s2923 + $0x84] sm:$0x1]
    %v3375 = vshrl.u32 %v3342, 16
    %v3377 = vrot.slane %v3375, 4
    %v3378 = vshll.u32 %v3342, 16
    %v3380 = vrot.slane %v3378, 5
    %v3381 = vor.u32 %v3377, %v3380
    %v3382 = vrot.slane %v3381, 4
    %v3384 = vshll.u32 %v3343, 16
    %v3386 = vrot.slane %v3384, 5
    %v3387 = vsel %vm2312, %v3382, %v3386
    %v3389 = vshrl.u32 %v3344, 16
    %v3391 = vrot.slane %v3389, 4
    %v3392 = vshll.u32 %v3344, 16
    %v3394 = vrot.slane %v3392, 5
    %v3395 = vor.u32 %v3391, %v3394
    %v3396 = vrot.slane %v3395, 4
    %v3398 = vshll.u32 %v3345, 16
    %v3400 = vrot.slane %v3398, 5
    %v3401 = vsel %vm2312, %v3396, %v3400
    %v3403 = vshrl.u32 %v3346, 16
    %v3405 = vrot.slane %v3403, 4
    %v3406 = vshll.u32 %v3346, 16
    %v3408 = vrot.slane %v3406, 5
    %v3409 = vor.u32 %v3405, %v3408
    %v3410 = vrot.slane %v3409, 4
    %v3412 = vshll.u32 %v3347, 16
    %v3414 = vrot.slane %v3412, 5
    %v3415 = vsel %vm2312, %v3410, %v3414
    %v3417 = vshrl.u32 %v3348, 16
    %v3419 = vrot.slane %v3417, 4
    %v3420 = vshll.u32 %v3348, 16
    %v3422 = vrot.slane %v3420, 5
    %v3423 = vor.u32 %v3419, %v3422
    %v3424 = vrot.slane %v3423, 4
    %v3426 = vshll.u32 %v3349, 16
    %v3428 = vrot.slane %v3426, 5
    %v3429 = vsel %vm2312, %v3424, %v3428
    %v3431 = vshrl.u32 %v3350, 16
    %v3433 = vrot.slane %v3431, 4
    %v3434 = vshll.u32 %v3350, 16
    %v3436 = vrot.slane %v3434, 5
    %v3437 = vor.u32 %v3433, %v3436
    %v3438 = vrot.slane %v3437, 4
    %v3440 = vshll.u32 %v3351, 16
    %v3442 = vrot.slane %v3440, 5
    %v3443 = vsel %vm2312, %v3438, %v3442
    %v3445 = vshrl.u32 %v3352, 16
    %v3447 = vrot.slane %v3445, 4
    %v3448 = vshll.u32 %v3352, 16
    %v3450 = vrot.slane %v3448, 5
    %v3451 = vor.u32 %v3447, %v3450
    %v3452 = vrot.slane %v3451, 4
    %v3454 = vshll.u32 %v3353, 16
    %v3456 = vrot.slane %v3454, 5
    %v3457 = vsel %vm2312, %v3452, %v3456
    %v3459 = vshrl.u32 %v3354, 16
    %v3461 = vrot.slane %v3459, 4
    %v3462 = vshll.u32 %v3354, 16
    %v3464 = vrot.slane %v3462, 5
    %v3465 = vor.u32 %v3461, %v3464
    %v3466 = vrot.slane %v3465, 4
    %v3468 = vshll.u32 %v3355, 16
    %v3470 = vrot.slane %v3468, 5
    %v3471 = vsel %vm2312, %v3466, %v3470
    %v3473 = vshrl.u32 %v3356, 16
    %v3475 = vrot.slane %v3473, 4
    %v3476 = vshll.u32 %v3356, 16
    %v3478 = vrot.slane %v3476, 5
    %v3479 = vor.u32 %v3475, %v3478
    %v3480 = vrot.slane %v3479, 4
    %v3482 = vshll.u32 %v3357, 16
    %v3484 = vrot.slane %v3482, 5
    %v3485 = vsel %vm2312, %v3480, %v3484
    %v3487 = vshrl.u32 %v3358, 16
    %v3489 = vrot.slane %v3487, 4
    %v3490 = vshll.u32 %v3358, 16
    %v3492 = vrot.slane %v3490, 5
    %v3493 = vor.u32 %v3489, %v3492
    %v3494 = vrot.slane %v3493, 4
    %v3496 = vshll.u32 %v3359, 16
    %v3498 = vrot.slane %v3496, 5
    %v3499 = vsel %vm2312, %v3494, %v3498
    %v3501 = vshrl.u32 %v3360, 16
    %v3503 = vrot.slane %v3501, 4
    %v3504 = vshll.u32 %v3360, 16
    %v3506 = vrot.slane %v3504, 5
    %v3507 = vor.u32 %v3503, %v3506
    %v3508 = vrot.slane %v3507, 4
    %v3510 = vshll.u32 %v3361, 16
    %v3512 = vrot.slane %v3510, 5
    %v3513 = vsel %vm2312, %v3508, %v3512
    %v3515 = vshrl.u32 %v3362, 16
    %v3517 = vrot.slane %v3515, 4
    %v3518 = vshll.u32 %v3362, 16
    %v3520 = vrot.slane %v3518, 5
    %v3521 = vor.u32 %v3517, %v3520
    %v3522 = vrot.slane %v3521, 4
    %v3524 = vshll.u32 %v3363, 16
    %v3526 = vrot.slane %v3524, 5
    %v3527 = vsel %vm2312, %v3522, %v3526
    %v3529 = vshrl.u32 %v3364, 16
    %v3531 = vrot.slane %v3529, 4
    %v3532 = vshll.u32 %v3364, 16
    %v3534 = vrot.slane %v3532, 5
    %v3535 = vor.u32 %v3531, %v3534
    %v3536 = vrot.slane %v3535, 4
    %v3538 = vshll.u32 %v3365, 16
    %v3540 = vrot.slane %v3538, 5
    %v3541 = vsel %vm2312, %v3536, %v3540
    %v3543 = vshrl.u32 %v3366, 16
    %v3545 = vrot.slane %v3543, 4
    %v3546 = vshll.u32 %v3366, 16
    %v3548 = vrot.slane %v3546, 5
    %v3549 = vor.u32 %v3545, %v3548
    %v3550 = vrot.slane %v3549, 4
    %v3552 = vshll.u32 %v3367, 16
    %v3554 = vrot.slane %v3552, 5
    %v3555 = vsel %vm2312, %v3550, %v3554
    %v3557 = vshrl.u32 %v3368, 16
    %v3559 = vrot.slane %v3557, 4
    %v3560 = vshll.u32 %v3368, 16
    %v3562 = vrot.slane %v3560, 5
    %v3563 = vor.u32 %v3559, %v3562
    %v3564 = vrot.slane %v3563, 4
    %v3566 = vshll.u32 %v3369, 16
    %v3568 = vrot.slane %v3566, 5
    %v3569 = vsel %vm2312, %v3564, %v3568
    %v3571 = vshrl.u32 %v3370, 16
    %v3573 = vrot.slane %v3571, 4
    %v3574 = vshll.u32 %v3370, 16
    %v3576 = vrot.slane %v3574, 5
    %v3577 = vor.u32 %v3573, %v3576
    %v3578 = vrot.slane %v3577, 4
    %v3580 = vshll.u32 %v3371, 16
    %v3582 = vrot.slane %v3580, 5
    %v3583 = vsel %vm2312, %v3578, %v3582
    %v3585 = vshrl.u32 %v3372, 16
    %v3587 = vrot.slane %v3585, 4
    %v3588 = vshll.u32 %v3372, 16
    %v3590 = vrot.slane %v3588, 5
    %v3591 = vor.u32 %v3587, %v3590
    %v3592 = vrot.slane %v3591, 4
    %v3594 = vshll.u32 %v3373, 16
    %v3596 = vrot.slane %v3594, 5
    %v3597 = vsel %vm2312, %v3592, %v3596
    %3598 = vrot.lane.b32.xlu0 %v3387, 80
    %v3599 = vpop.permute.xlu0 %3598
    %3600 = vrot.lane.b32.xlu0 %v3401, 80
    %v3601 = vpop.permute.xlu0 %3600
    %3602 = vrot.lane.b32.xlu0 %v3415, 80
    %v3603 = vpop.permute.xlu0 %3602
    %3604 = vrot.lane.b32.xlu0 %v3429, 80
    %v3605 = vpop.permute.xlu0 %3604
    %3606 = vrot.lane.b32.xlu0 %v3443, 80
    %v3607 = vpop.permute.xlu0 %3606
    %3608 = vrot.lane.b32.xlu0 %v3457, 80
    %v3609 = vpop.permute.xlu0 %3608
    %3610 = vrot.lane.b32.xlu0 %v3471, 80
    %v3611 = vpop.permute.xlu0 %3610
    %3612 = vrot.lane.b32.xlu0 %v3485, 80
    %v3613 = vpop.permute.xlu0 %3612
    %3614 = vrot.lane.b32.xlu0 %v3499, 80
    %v3615 = vpop.permute.xlu0 %3614
    %3616 = vrot.lane.b32.xlu0 %v3513, 80
    %v3617 = vpop.permute.xlu0 %3616
    %3618 = vrot.lane.b32.xlu0 %v3527, 80
    %v3619 = vpop.permute.xlu0 %3618
    %3620 = vrot.lane.b32.xlu0 %v3541, 80
    %v3621 = vpop.permute.xlu0 %3620
    %3622 = vrot.lane.b32.xlu0 %v3555, 80
    %v3623 = vpop.permute.xlu0 %3622
    %3624 = vrot.lane.b32.xlu0 %v3569, 80
    %v3625 = vpop.permute.xlu0 %3624
    %3626 = vrot.lane.b32.xlu0 %v3583, 80
    %v3627 = vpop.permute.xlu0 %3626
    %3628 = vrot.lane.b32.xlu0 %v3597, 80
    %v3629 = vpop.permute.xlu0 %3628
    %vm3646 = vcmask 781952
    %3647 = vst.msk [vmem:[#allocation4] sm:$0xf] %vm3646, %v3599
    %3648 = vst.msk [vmem:[#allocation4 + $0x8] sm:$0xf] %vm3646, %v3601
    %3649 = vst.msk [vmem:[#allocation4 + $0x10] sm:$0xf] %vm3646, %v3603
    %3650 = vst.msk [vmem:[#allocation4 + $0x18] sm:$0xf] %vm3646, %v3605
    %3651 = vst.msk [vmem:[#allocation4 + $0x20] sm:$0xf] %vm3646, %v3607
    %3652 = vst.msk [vmem:[#allocation4 + $0x28] sm:$0xf] %vm3646, %v3609
    %3653 = vst.msk [vmem:[#allocation4 + $0x30] sm:$0xf] %vm3646, %v3611
    %3654 = vst.msk [vmem:[#allocation4 + $0x38] sm:$0xf] %vm3646, %v3613
    %3655 = vst.msk [vmem:[#allocation4 + $0x40] sm:$0xf] %vm3646, %v3615
    %3656 = vst.msk [vmem:[#allocation4 + $0x48] sm:$0xf] %vm3646, %v3617
    %3657 = vst.msk [vmem:[#allocation4 + $0x50] sm:$0xf] %vm3646, %v3619
    %3658 = vst.msk [vmem:[#allocation4 + $0x58] sm:$0xf] %vm3646, %v3621
    %3659 = vst.msk [vmem:[#allocation4 + $0x60] sm:$0xf] %vm3646, %v3623
    %3660 = vst.msk [vmem:[#allocation4 + $0x68] sm:$0xf] %vm3646, %v3625
    %3661 = vst.msk [vmem:[#allocation4 + $0x70] sm:$0xf] %vm3646, %v3627
    %3662 = vst.msk [vmem:[#allocation4 + $0x78] sm:$0xf] %vm3646, %v3629
    %s3663 = scalar_lea.vmem [#allocation2], 440
    %v3664 = vld [vmem:[%s3663] sm:$0xf]
    %v3665 = vld [vmem:[%s3663 + $0x8] sm:$0xf]
    %v3666 = vld [vmem:[%s3663 + $0x10] sm:$0xf]
    %v3667 = vld [vmem:[%s3663 + $0x18] sm:$0xf]
    %v3668 = vld [vmem:[%s3663 + $0x20] sm:$0xf]
    %v3669 = vld [vmem:[%s3663 + $0x28] sm:$0xf]
    %v3670 = vld [vmem:[%s3663 + $0x30] sm:$0xf]
    %v3671 = vld [vmem:[%s3663 + $0x38] sm:$0xf]
    %v3672 = vld [vmem:[%s3663 + $0x48] sm:$0xf]
    %v3673 = vld [vmem:[%s3663 + $0x50] sm:$0xf]
    %v3674 = vld [vmem:[%s3663 + $0x58] sm:$0xf]
    %v3675 = vld [vmem:[%s3663 + $0x60] sm:$0xf]
    %v3676 = vld [vmem:[%s3663 + $0x68] sm:$0xf]
    %v3677 = vld [vmem:[%s3663 + $0x70] sm:$0xf]
    %v3678 = vld [vmem:[%s3663 + $0x78] sm:$0xf]
    %v3679 = vld [vmem:[%s3663 + $0x80] sm:$0xf]
    %3696 = vrot.lane.b32.xlu0 %v3664, 96
    %v3697 = vpop.permute.xlu0 %3696
    %3698 = vrot.lane.b32.xlu0 %v3665, 96
    %v3699 = vpop.permute.xlu0 %3698
    %3700 = vrot.lane.b32.xlu0 %v3666, 96
    %v3701 = vpop.permute.xlu0 %3700
    %3702 = vrot.lane.b32.xlu0 %v3667, 96
    %v3703 = vpop.permute.xlu0 %3702
    %3704 = vrot.lane.b32.xlu0 %v3668, 96
    %v3705 = vpop.permute.xlu0 %3704
    %3706 = vrot.lane.b32.xlu0 %v3669, 96
    %v3707 = vpop.permute.xlu0 %3706
    %3708 = vrot.lane.b32.xlu0 %v3670, 96
    %v3709 = vpop.permute.xlu0 %3708
    %3710 = vrot.lane.b32.xlu0 %v3671, 96
    %v3711 = vpop.permute.xlu0 %3710
    %3712 = vrot.lane.b32.xlu0 %v3672, 96
    %v3713 = vpop.permute.xlu0 %3712
    %3714 = vrot.lane.b32.xlu0 %v3673, 96
    %v3715 = vpop.permute.xlu0 %3714
    %3716 = vrot.lane.b32.xlu0 %v3674, 96
    %v3717 = vpop.permute.xlu0 %3716
    %3718 = vrot.lane.b32.xlu0 %v3675, 96
    %v3719 = vpop.permute.xlu0 %3718
    %3720 = vrot.lane.b32.xlu0 %v3676, 96
    %v3721 = vpop.permute.xlu0 %3720
    %3722 = vrot.lane.b32.xlu0 %v3677, 96
    %v3723 = vpop.permute.xlu0 %3722
    %3724 = vrot.lane.b32.xlu0 %v3678, 96
    %v3725 = vpop.permute.xlu0 %3724
    %3726 = vrot.lane.b32.xlu0 %v3679, 96
    %v3727 = vpop.permute.xlu0 %3726
    %vm3744 = vcmask 913152
    %3745 = vst.msk [vmem:[#allocation4] sm:$0xf] %vm3744, %v3697
    %3746 = vst.msk [vmem:[#allocation4 + $0x8] sm:$0xf] %vm3744, %v3699
    %3747 = vst.msk [vmem:[#allocation4 + $0x10] sm:$0xf] %vm3744, %v3701
    %3748 = vst.msk [vmem:[#allocation4 + $0x18] sm:$0xf] %vm3744, %v3703
    %3749 = vst.msk [vmem:[#allocation4 + $0x20] sm:$0xf] %vm3744, %v3705
    %3750 = vst.msk [vmem:[#allocation4 + $0x28] sm:$0xf] %vm3744, %v3707
    %3751 = vst.msk [vmem:[#allocation4 + $0x30] sm:$0xf] %vm3744, %v3709
    %3752 = vst.msk [vmem:[#allocation4 + $0x38] sm:$0xf] %vm3744, %v3711
    %3753 = vst.msk [vmem:[#allocation4 + $0x40] sm:$0xf] %vm3744, %v3713
    %3754 = vst.msk [vmem:[#allocation4 + $0x48] sm:$0xf] %vm3744, %v3715
    %3755 = vst.msk [vmem:[#allocation4 + $0x50] sm:$0xf] %vm3744, %v3717
    %3756 = vst.msk [vmem:[#allocation4 + $0x58] sm:$0xf] %vm3744, %v3719
    %3757 = vst.msk [vmem:[#allocation4 + $0x60] sm:$0xf] %vm3744, %v3721
    %3758 = vst.msk [vmem:[#allocation4 + $0x68] sm:$0xf] %vm3744, %v3723
    %3759 = vst.msk [vmem:[#allocation4 + $0x70] sm:$0xf] %vm3744, %v3725
    %3760 = vst.msk [vmem:[#allocation4 + $0x78] sm:$0xf] %vm3744, %v3727
    %s3761 = scalar_lea.vmem [#allocation2], 296
    %v3762 = vld [vmem:[%s3761] sm:$0xf]
    %v3763 = vld [vmem:[%s3761 + $0x4] sm:$0x1]
    %v3764 = vld [vmem:[%s3761 + $0x8] sm:$0xf]
    %v3765 = vld [vmem:[%s3761 + $0xc] sm:$0x1]
    %v3766 = vld [vmem:[%s3761 + $0x10] sm:$0xf]
    %v3767 = vld [vmem:[%s3761 + $0x14] sm:$0x1]
    %v3768 = vld [vmem:[%s3761 + $0x18] sm:$0xf]
    %v3769 = vld [vmem:[%s3761 + $0x1c] sm:$0x1]
    %v3770 = vld [vmem:[%s3761 + $0x20] sm:$0xf]
    %v3771 = vld [vmem:[%s3761 + $0x24] sm:$0x1]
    %v3772 = vld [vmem:[%s3761 + $0x28] sm:$0xf]
    %v3773 = vld [vmem:[%s3761 + $0x2c] sm:$0x1]
    %v3774 = vld [vmem:[%s3761 + $0x30] sm:$0xf]
    %v3775 = vld [vmem:[%s3761 + $0x34] sm:$0x1]
    %v3776 = vld [vmem:[%s3761 + $0x38] sm:$0xf]
    %v3777 = vld [vmem:[%s3761 + $0x3c] sm:$0x1]
    %v3778 = vld [vmem:[%s3761 + $0x48] sm:$0xf]
    %v3779 = vld [vmem:[%s3761 + $0x4c] sm:$0x1]
    %v3780 = vld [vmem:[%s3761 + $0x50] sm:$0xf]
    %v3781 = vld [vmem:[%s3761 + $0x54] sm:$0x1]
    %v3782 = vld [vmem:[%s3761 + $0x58] sm:$0xf]
    %v3783 = vld [vmem:[%s3761 + $0x5c] sm:$0x1]
    %v3784 = vld [vmem:[%s3761 + $0x60] sm:$0xf]
    %v3785 = vld [vmem:[%s3761 + $0x64] sm:$0x1]
    %v3786 = vld [vmem:[%s3761 + $0x68] sm:$0xf]
    %v3787 = vld [vmem:[%s3761 + $0x6c] sm:$0x1]
    %v3788 = vld [vmem:[%s3761 + $0x70] sm:$0xf]
    %v3789 = vld [vmem:[%s3761 + $0x74] sm:$0x1]
    %v3790 = vld [vmem:[%s3761 + $0x78] sm:$0xf]
    %v3791 = vld [vmem:[%s3761 + $0x7c] sm:$0x1]
    %v3792 = vld [vmem:[%s3761 + $0x80] sm:$0xf]
    %v3793 = vld [vmem:[%s3761 + $0x84] sm:$0x1]
    %v3795 = vshrl.u32 %v3762, 16
    %v3797 = vrot.slane %v3795, 4
    %v3798 = vshll.u32 %v3762, 16
    %v3800 = vrot.slane %v3798, 5
    %v3801 = vor.u32 %v3797, %v3800
    %v3802 = vrot.slane %v3801, 4
    %v3804 = vshll.u32 %v3763, 16
    %v3806 = vrot.slane %v3804, 5
    %v3807 = vsel %vm2312, %v3802, %v3806
    %v3809 = vshrl.u32 %v3764, 16
    %v3811 = vrot.slane %v3809, 4
    %v3812 = vshll.u32 %v3764, 16
    %v3814 = vrot.slane %v3812, 5
    %v3815 = vor.u32 %v3811, %v3814
    %v3816 = vrot.slane %v3815, 4
    %v3818 = vshll.u32 %v3765, 16
    %v3820 = vrot.slane %v3818, 5
    %v3821 = vsel %vm2312, %v3816, %v3820
    %v3823 = vshrl.u32 %v3766, 16
    %v3825 = vrot.slane %v3823, 4
    %v3826 = vshll.u32 %v3766, 16
    %v3828 = vrot.slane %v3826, 5
    %v3829 = vor.u32 %v3825, %v3828
    %v3830 = vrot.slane %v3829, 4
    %v3832 = vshll.u32 %v3767, 16
    %v3834 = vrot.slane %v3832, 5
    %v3835 = vsel %vm2312, %v3830, %v3834
    %v3837 = vshrl.u32 %v3768, 16
    %v3839 = vrot.slane %v3837, 4
    %v3840 = vshll.u32 %v3768, 16
    %v3842 = vrot.slane %v3840, 5
    %v3843 = vor.u32 %v3839, %v3842
    %v3844 = vrot.slane %v3843, 4
    %v3846 = vshll.u32 %v3769, 16
    %v3848 = vrot.slane %v3846, 5
    %v3849 = vsel %vm2312, %v3844, %v3848
    %v3851 = vshrl.u32 %v3770, 16
    %v3853 = vrot.slane %v3851, 4
    %v3854 = vshll.u32 %v3770, 16
    %v3856 = vrot.slane %v3854, 5
    %v3857 = vor.u32 %v3853, %v3856
    %v3858 = vrot.slane %v3857, 4
    %v3860 = vshll.u32 %v3771, 16
    %v3862 = vrot.slane %v3860, 5
    %v3863 = vsel %vm2312, %v3858, %v3862
    %v3865 = vshrl.u32 %v3772, 16
    %v3867 = vrot.slane %v3865, 4
    %v3868 = vshll.u32 %v3772, 16
    %v3870 = vrot.slane %v3868, 5
    %v3871 = vor.u32 %v3867, %v3870
    %v3872 = vrot.slane %v3871, 4
    %v3874 = vshll.u32 %v3773, 16
    %v3876 = vrot.slane %v3874, 5
    %v3877 = vsel %vm2312, %v3872, %v3876
    %v3879 = vshrl.u32 %v3774, 16
    %v3881 = vrot.slane %v3879, 4
    %v3882 = vshll.u32 %v3774, 16
    %v3884 = vrot.slane %v3882, 5
    %v3885 = vor.u32 %v3881, %v3884
    %v3886 = vrot.slane %v3885, 4
    %v3888 = vshll.u32 %v3775, 16
    %v3890 = vrot.slane %v3888, 5
    %v3891 = vsel %vm2312, %v3886, %v3890
    %v3893 = vshrl.u32 %v3776, 16
    %v3895 = vrot.slane %v3893, 4
    %v3896 = vshll.u32 %v3776, 16
    %v3898 = vrot.slane %v3896, 5
    %v3899 = vor.u32 %v3895, %v3898
    %v3900 = vrot.slane %v3899, 4
    %v3902 = vshll.u32 %v3777, 16
    %v3904 = vrot.slane %v3902, 5
    %v3905 = vsel %vm2312, %v3900, %v3904
    %v3907 = vshrl.u32 %v3778, 16
    %v3909 = vrot.slane %v3907, 4
    %v3910 = vshll.u32 %v3778, 16
    %v3912 = vrot.slane %v3910, 5
    %v3913 = vor.u32 %v3909, %v3912
    %v3914 = vrot.slane %v3913, 4
    %v3916 = vshll.u32 %v3779, 16
    %v3918 = vrot.slane %v3916, 5
    %v3919 = vsel %vm2312, %v3914, %v3918
    %v3921 = vshrl.u32 %v3780, 16
    %v3923 = vrot.slane %v3921, 4
    %v3924 = vshll.u32 %v3780, 16
    %v3926 = vrot.slane %v3924, 5
    %v3927 = vor.u32 %v3923, %v3926
    %v3928 = vrot.slane %v3927, 4
    %v3930 = vshll.u32 %v3781, 16
    %v3932 = vrot.slane %v3930, 5
    %v3933 = vsel %vm2312, %v3928, %v3932
    %v3935 = vshrl.u32 %v3782, 16
    %v3937 = vrot.slane %v3935, 4
    %v3938 = vshll.u32 %v3782, 16
    %v3940 = vrot.slane %v3938, 5
    %v3941 = vor.u32 %v3937, %v3940
    %v3942 = vrot.slane %v3941, 4
    %v3944 = vshll.u32 %v3783, 16
    %v3946 = vrot.slane %v3944, 5
    %v3947 = vsel %vm2312, %v3942, %v3946
    %v3949 = vshrl.u32 %v3784, 16
    %v3951 = vrot.slane %v3949, 4
    %v3952 = vshll.u32 %v3784, 16
    %v3954 = vrot.slane %v3952, 5
    %v3955 = vor.u32 %v3951, %v3954
    %v3956 = vrot.slane %v3955, 4
    %v3958 = vshll.u32 %v3785, 16
    %v3960 = vrot.slane %v3958, 5
    %v3961 = vsel %vm2312, %v3956, %v3960
    %v3963 = vshrl.u32 %v3786, 16
    %v3965 = vrot.slane %v3963, 4
    %v3966 = vshll.u32 %v3786, 16
    %v3968 = vrot.slane %v3966, 5
    %v3969 = vor.u32 %v3965, %v3968
    %v3970 = vrot.slane %v3969, 4
    %v3972 = vshll.u32 %v3787, 16
    %v3974 = vrot.slane %v3972, 5
    %v3975 = vsel %vm2312, %v3970, %v3974
    %v3977 = vshrl.u32 %v3788, 16
    %v3979 = vrot.slane %v3977, 4
    %v3980 = vshll.u32 %v3788, 16
    %v3982 = vrot.slane %v3980, 5
    %v3983 = vor.u32 %v3979, %v3982
    %v3984 = vrot.slane %v3983, 4
    %v3986 = vshll.u32 %v3789, 16
    %v3988 = vrot.slane %v3986, 5
    %v3989 = vsel %vm2312, %v3984, %v3988
    %v3991 = vshrl.u32 %v3790, 16
    %v3993 = vrot.slane %v3991, 4
    %v3994 = vshll.u32 %v3790, 16
    %v3996 = vrot.slane %v3994, 5
    %v3997 = vor.u32 %v3993, %v3996
    %v3998 = vrot.slane %v3997, 4
    %v4000 = vshll.u32 %v3791, 16
    %v4002 = vrot.slane %v4000, 5
    %v4003 = vsel %vm2312, %v3998, %v4002
    %v4005 = vshrl.u32 %v3792, 16
    %v4007 = vrot.slane %v4005, 4
    %v4008 = vshll.u32 %v3792, 16
    %v4010 = vrot.slane %v4008, 5
    %v4011 = vor.u32 %v4007, %v4010
    %v4012 = vrot.slane %v4011, 4
    %v4014 = vshll.u32 %v3793, 16
    %v4016 = vrot.slane %v4014, 5
    %v4017 = vsel %vm2312, %v4012, %v4016
    %4018 = vrot.lane.b32.xlu0 %v3807, 112
    %v4019 = vpop.permute.xlu0 %4018
    %4020 = vrot.lane.b32.xlu0 %v3821, 112
    %v4021 = vpop.permute.xlu0 %4020
    %4022 = vrot.lane.b32.xlu0 %v3835, 112
    %v4023 = vpop.permute.xlu0 %4022
    %4024 = vrot.lane.b32.xlu0 %v3849, 112
    %v4025 = vpop.permute.xlu0 %4024
    %4026 = vrot.lane.b32.xlu0 %v3863, 112
    %v4027 = vpop.permute.xlu0 %4026
    %4028 = vrot.lane.b32.xlu0 %v3877, 112
    %v4029 = vpop.permute.xlu0 %4028
    %4030 = vrot.lane.b32.xlu0 %v3891, 112
    %v4031 = vpop.permute.xlu0 %4030
    %4032 = vrot.lane.b32.xlu0 %v3905, 112
    %v4033 = vpop.permute.xlu0 %4032
    %4034 = vrot.lane.b32.xlu0 %v3919, 112
    %v4035 = vpop.permute.xlu0 %4034
    %4036 = vrot.lane.b32.xlu0 %v3933, 112
    %v4037 = vpop.permute.xlu0 %4036
    %4038 = vrot.lane.b32.xlu0 %v3947, 112
    %v4039 = vpop.permute.xlu0 %4038
    %4040 = vrot.lane.b32.xlu0 %v3961, 112
    %v4041 = vpop.permute.xlu0 %4040
    %4042 = vrot.lane.b32.xlu0 %v3975, 112
    %v4043 = vpop.permute.xlu0 %4042
    %4044 = vrot.lane.b32.xlu0 %v3989, 112
    %v4045 = vpop.permute.xlu0 %4044
    %4046 = vrot.lane.b32.xlu0 %v4003, 112
    %v4047 = vpop.permute.xlu0 %4046
    %4048 = vrot.lane.b32.xlu0 %v4017, 112
    %v4049 = vpop.permute.xlu0 %4048
    %vm4066 = vcmask 1044352
    %4067 = vst.msk [vmem:[#allocation4] sm:$0xf] %vm4066, %v4019
    %4068 = vst.msk [vmem:[#allocation4 + $0x8] sm:$0xf] %vm4066, %v4021
    %4069 = vst.msk [vmem:[#allocation4 + $0x10] sm:$0xf] %vm4066, %v4023
    %4070 = vst.msk [vmem:[#allocation4 + $0x18] sm:$0xf] %vm4066, %v4025
    %4071 = vst.msk [vmem:[#allocation4 + $0x20] sm:$0xf] %vm4066, %v4027
    %4072 = vst.msk [vmem:[#allocation4 + $0x28] sm:$0xf] %vm4066, %v4029
    %4073 = vst.msk [vmem:[#allocation4 + $0x30] sm:$0xf] %vm4066, %v4031
    %4074 = vst.msk [vmem:[#allocation4 + $0x38] sm:$0xf] %vm4066, %v4033
    %4075 = vst.msk [vmem:[#allocation4 + $0x40] sm:$0xf] %vm4066, %v4035
    %4076 = vst.msk [vmem:[#allocation4 + $0x48] sm:$0xf] %vm4066, %v4037
    %4077 = vst.msk [vmem:[#allocation4 + $0x50] sm:$0xf] %vm4066, %v4039
    %4078 = vst.msk [vmem:[#allocation4 + $0x58] sm:$0xf] %vm4066, %v4041
    %4079 = vst.msk [vmem:[#allocation4 + $0x60] sm:$0xf] %vm4066, %v4043
    %4080 = vst.msk [vmem:[#allocation4 + $0x68] sm:$0xf] %vm4066, %v4045
    %4081 = vst.msk [vmem:[#allocation4 + $0x70] sm:$0xf] %vm4066, %v4047
    %4082 = vst.msk [vmem:[#allocation4 + $0x78] sm:$0xf] %vm4066, %v4049
    %v4083 = vld [vmem:[%s3663] sm:$0xf]
    %v4084 = vld [vmem:[%s3663 + $0x4] sm:$0x1]
    %v4085 = vld [vmem:[%s3663 + $0x8] sm:$0xf]
    %v4086 = vld [vmem:[%s3663 + $0xc] sm:$0x1]
    %v4087 = vld [vmem:[%s3663 + $0x10] sm:$0xf]
    %v4088 = vld [vmem:[%s3663 + $0x14] sm:$0x1]
    %v4089 = vld [vmem:[%s3663 + $0x18] sm:$0xf]
    %v4090 = vld [vmem:[%s3663 + $0x1c] sm:$0x1]
    %v4091 = vld [vmem:[%s3663 + $0x20] sm:$0xf]
    %v4092 = vld [vmem:[%s3663 + $0x24] sm:$0x1]
    %v4093 = vld [vmem:[%s3663 + $0x28] sm:$0xf]
    %v4094 = vld [vmem:[%s3663 + $0x2c] sm:$0x1]
    %v4095 = vld [vmem:[%s3663 + $0x30] sm:$0xf]
    %v4096 = vld [vmem:[%s3663 + $0x34] sm:$0x1]
    %v4097 = vld [vmem:[%s3663 + $0x38] sm:$0xf]
    %v4098 = vld [vmem:[%s3663 + $0x3c] sm:$0x1]
    %v4099 = vld [vmem:[%s3663 + $0x48] sm:$0xf]
    %v4100 = vld [vmem:[%s3663 + $0x4c] sm:$0x1]
    %v4101 = vld [vmem:[%s3663 + $0x50] sm:$0xf]
    %v4102 = vld [vmem:[%s3663 + $0x54] sm:$0x1]
    %v4103 = vld [vmem:[%s3663 + $0x58] sm:$0xf]
    %v4104 = vld [vmem:[%s3663 + $0x5c] sm:$0x1]
    %v4105 = vld [vmem:[%s3663 + $0x60] sm:$0xf]
    %v4106 = vld [vmem:[%s3663 + $0x64] sm:$0x1]
    %v4107 = vld [vmem:[%s3663 + $0x68] sm:$0xf]
    %v4108 = vld [vmem:[%s3663 + $0x6c] sm:$0x1]
    %v4109 = vld [vmem:[%s3663 + $0x70] sm:$0xf]
    %v4110 = vld [vmem:[%s3663 + $0x74] sm:$0x1]
    %v4111 = vld [vmem:[%s3663 + $0x78] sm:$0xf]
    %v4112 = vld [vmem:[%s3663 + $0x7c] sm:$0x1]
    %v4113 = vld [vmem:[%s3663 + $0x80] sm:$0xf]
    %v4114 = vld [vmem:[%s3663 + $0x84] sm:$0x1]
    %v4116 = vshrl.u32 %v4083, 16
    %v4118 = vrot.slane %v4116, 4
    %v4119 = vshll.u32 %v4083, 16
    %v4121 = vrot.slane %v4119, 5
    %v4122 = vor.u32 %v4118, %v4121
    %v4123 = vrot.slane %v4122, 4
    %v4125 = vshll.u32 %v4084, 16
    %v4127 = vrot.slane %v4125, 5
    %v4128 = vsel %vm2312, %v4123, %v4127
    %v4130 = vshrl.u32 %v4085, 16
    %v4132 = vrot.slane %v4130, 4
    %v4133 = vshll.u32 %v4085, 16
    %v4135 = vrot.slane %v4133, 5
    %v4136 = vor.u32 %v4132, %v4135
    %v4137 = vrot.slane %v4136, 4
    %v4139 = vshll.u32 %v4086, 16
    %v4141 = vrot.slane %v4139, 5
    %v4142 = vsel %vm2312, %v4137, %v4141
    %v4144 = vshrl.u32 %v4087, 16
    %v4146 = vrot.slane %v4144, 4
    %v4147 = vshll.u32 %v4087, 16
    %v4149 = vrot.slane %v4147, 5
    %v4150 = vor.u32 %v4146, %v4149
    %v4151 = vrot.slane %v4150, 4
    %v4153 = vshll.u32 %v4088, 16
    %v4155 = vrot.slane %v4153, 5
    %v4156 = vsel %vm2312, %v4151, %v4155
    %v4158 = vshrl.u32 %v4089, 16
    %v4160 = vrot.slane %v4158, 4
    %v4161 = vshll.u32 %v4089, 16
    %v4163 = vrot.slane %v4161, 5
    %v4164 = vor.u32 %v4160, %v4163
    %v4165 = vrot.slane %v4164, 4
    %v4167 = vshll.u32 %v4090, 16
    %v4169 = vrot.slane %v4167, 5
    %v4170 = vsel %vm2312, %v4165, %v4169
    %v4172 = vshrl.u32 %v4091, 16
    %v4174 = vrot.slane %v4172, 4
    %v4175 = vshll.u32 %v4091, 16
    %v4177 = vrot.slane %v4175, 5
    %v4178 = vor.u32 %v4174, %v4177
    %v4179 = vrot.slane %v4178, 4
    %v4181 = vshll.u32 %v4092, 16
    %v4183 = vrot.slane %v4181, 5
    %v4184 = vsel %vm2312, %v4179, %v4183
    %v4186 = vshrl.u32 %v4093, 16
    %v4188 = vrot.slane %v4186, 4
    %v4189 = vshll.u32 %v4093, 16
    %v4191 = vrot.slane %v4189, 5
    %v4192 = vor.u32 %v4188, %v4191
    %v4193 = vrot.slane %v4192, 4
    %v4195 = vshll.u32 %v4094, 16
    %v4197 = vrot.slane %v4195, 5
    %v4198 = vsel %vm2312, %v4193, %v4197
    %v4200 = vshrl.u32 %v4095, 16
    %v4202 = vrot.slane %v4200, 4
    %v4203 = vshll.u32 %v4095, 16
    %v4205 = vrot.slane %v4203, 5
    %v4206 = vor.u32 %v4202, %v4205
    %v4207 = vrot.slane %v4206, 4
    %v4209 = vshll.u32 %v4096, 16
    %v4211 = vrot.slane %v4209, 5
    %v4212 = vsel %vm2312, %v4207, %v4211
    %v4214 = vshrl.u32 %v4097, 16
    %v4216 = vrot.slane %v4214, 4
    %v4217 = vshll.u32 %v4097, 16
    %v4219 = vrot.slane %v4217, 5
    %v4220 = vor.u32 %v4216, %v4219
    %v4221 = vrot.slane %v4220, 4
    %v4223 = vshll.u32 %v4098, 16
    %v4225 = vrot.slane %v4223, 5
    %v4226 = vsel %vm2312, %v4221, %v4225
    %v4228 = vshrl.u32 %v4099, 16
    %v4230 = vrot.slane %v4228, 4
    %v4231 = vshll.u32 %v4099, 16
    %v4233 = vrot.slane %v4231, 5
    %v4234 = vor.u32 %v4230, %v4233
    %v4235 = vrot.slane %v4234, 4
    %v4237 = vshll.u32 %v4100, 16
    %v4239 = vrot.slane %v4237, 5
    %v4240 = vsel %vm2312, %v4235, %v4239
    %v4242 = vshrl.u32 %v4101, 16
    %v4244 = vrot.slane %v4242, 4
    %v4245 = vshll.u32 %v4101, 16
    %v4247 = vrot.slane %v4245, 5
    %v4248 = vor.u32 %v4244, %v4247
    %v4249 = vrot.slane %v4248, 4
    %v4251 = vshll.u32 %v4102, 16
    %v4253 = vrot.slane %v4251, 5
    %v4254 = vsel %vm2312, %v4249, %v4253
    %v4256 = vshrl.u32 %v4103, 16
    %v4258 = vrot.slane %v4256, 4
    %v4259 = vshll.u32 %v4103, 16
    %v4261 = vrot.slane %v4259, 5
    %v4262 = vor.u32 %v4258, %v4261
    %v4263 = vrot.slane %v4262, 4
    %v4265 = vshll.u32 %v4104, 16
    %v4267 = vrot.slane %v4265, 5
    %v4268 = vsel %vm2312, %v4263, %v4267
    %v4270 = vshrl.u32 %v4105, 16
    %v4272 = vrot.slane %v4270, 4
    %v4273 = vshll.u32 %v4105, 16
    %v4275 = vrot.slane %v4273, 5
    %v4276 = vor.u32 %v4272, %v4275
    %v4277 = vrot.slane %v4276, 4
    %v4279 = vshll.u32 %v4106, 16
    %v4281 = vrot.slane %v4279, 5
    %v4282 = vsel %vm2312, %v4277, %v4281
    %v4284 = vshrl.u32 %v4107, 16
    %v4286 = vrot.slane %v4284, 4
    %v4287 = vshll.u32 %v4107, 16
    %v4289 = vrot.slane %v4287, 5
    %v4290 = vor.u32 %v4286, %v4289
    %v4291 = vrot.slane %v4290, 4
    %v4293 = vshll.u32 %v4108, 16
    %v4295 = vrot.slane %v4293, 5
    %v4296 = vsel %vm2312, %v4291, %v4295
    %v4298 = vshrl.u32 %v4109, 16
    %v4300 = vrot.slane %v4298, 4
    %v4301 = vshll.u32 %v4109, 16
    %v4303 = vrot.slane %v4301, 5
    %v4304 = vor.u32 %v4300, %v4303
    %v4305 = vrot.slane %v4304, 4
    %v4307 = vshll.u32 %v4110, 16
    %v4309 = vrot.slane %v4307, 5
    %v4310 = vsel %vm2312, %v4305, %v4309
    %v4312 = vshrl.u32 %v4111, 16
    %v4314 = vrot.slane %v4312, 4
    %v4315 = vshll.u32 %v4111, 16
    %v4317 = vrot.slane %v4315, 5
    %v4318 = vor.u32 %v4314, %v4317
    %v4319 = vrot.slane %v4318, 4
    %v4321 = vshll.u32 %v4112, 16
    %v4323 = vrot.slane %v4321, 5
    %v4324 = vsel %vm2312, %v4319, %v4323
    %v4326 = vshrl.u32 %v4113, 16
    %v4328 = vrot.slane %v4326, 4
    %v4329 = vshll.u32 %v4113, 16
    %v4331 = vrot.slane %v4329, 5
    %v4332 = vor.u32 %v4328, %v4331
    %v4333 = vrot.slane %v4332, 4
    %v4335 = vshll.u32 %v4114, 16
    %v4337 = vrot.slane %v4335, 5
    %v4338 = vsel %vm2312, %v4333, %v4337
    %4355 = vst.msk [vmem:[#allocation4 + $0x4] sm:$0xf] %vm772, %v4128
    %4356 = vst.msk [vmem:[#allocation4 + $0xc] sm:$0xf] %vm772, %v4142
    %4357 = vst.msk [vmem:[#allocation4 + $0x14] sm:$0xf] %vm772, %v4156
    %4358 = vst.msk [vmem:[#allocation4 + $0x1c] sm:$0xf] %vm772, %v4170
    %4359 = vst.msk [vmem:[#allocation4 + $0x24] sm:$0xf] %vm772, %v4184
    %4360 = vst.msk [vmem:[#allocation4 + $0x2c] sm:$0xf] %vm772, %v4198
    %4361 = vst.msk [vmem:[#allocation4 + $0x34] sm:$0xf] %vm772, %v4212
    %4362 = vst.msk [vmem:[#allocation4 + $0x3c] sm:$0xf] %vm772, %v4226
    %4363 = vst.msk [vmem:[#allocation4 + $0x44] sm:$0xf] %vm772, %v4240
    %4364 = vst.msk [vmem:[#allocation4 + $0x4c] sm:$0xf] %vm772, %v4254
    %4365 = vst.msk [vmem:[#allocation4 + $0x54] sm:$0xf] %vm772, %v4268
    %4366 = vst.msk [vmem:[#allocation4 + $0x5c] sm:$0xf] %vm772, %v4282
    %4367 = vst.msk [vmem:[#allocation4 + $0x64] sm:$0xf] %vm772, %v4296
    %4368 = vst.msk [vmem:[#allocation4 + $0x6c] sm:$0xf] %vm772, %v4310
    %4369 = vst.msk [vmem:[#allocation4 + $0x74] sm:$0xf] %vm772, %v4324
    %4370 = vst.msk [vmem:[#allocation4 + $0x7c] sm:$0xf] %vm772, %v4338
    %v4371 = vld [vmem:[#allocation4] sm:$0xff]
    %v4372 = vld [vmem:[#allocation4 + $0x8] sm:$0xff]
    %v4373 = vld [vmem:[#allocation4 + $0x10] sm:$0xff]
    %v4374 = vld [vmem:[#allocation4 + $0x18] sm:$0xff]
    %v4375 = vld [vmem:[#allocation4 + $0x20] sm:$0xff]
    %v4376 = vld [vmem:[#allocation4 + $0x28] sm:$0xff]
    %v4377 = vld [vmem:[#allocation4 + $0x30] sm:$0xff]
    %v4378 = vld [vmem:[#allocation4 + $0x38] sm:$0xff]
    %v4379 = vld [vmem:[#allocation4 + $0x40] sm:$0xff]
    %v4380 = vld [vmem:[#allocation4 + $0x48] sm:$0xff]
    %v4381 = vld [vmem:[#allocation4 + $0x50] sm:$0xff]
    %v4382 = vld [vmem:[#allocation4 + $0x58] sm:$0xff]
    %v4383 = vld [vmem:[#allocation4 + $0x60] sm:$0xff]
    %v4384 = vld [vmem:[#allocation4 + $0x68] sm:$0xff]
    %v4385 = vld [vmem:[#allocation4 + $0x70] sm:$0xff]
    %v4386 = vld [vmem:[#allocation4 + $0x78] sm:$0xff]
    %v4387 = vld [vmem:[%s3] sm:$0xf]
    %v4388 = vld [vmem:[%s3 + $0x4] sm:$0xf]
    %v4389 = vld [vmem:[%s3 + $0x8] sm:$0xf]
    %v4390 = vld [vmem:[%s3 + $0xc] sm:$0xf]
    %v4391 = vld [vmem:[%s3 + $0x10] sm:$0xf]
    %v4392 = vld [vmem:[%s3 + $0x14] sm:$0xf]
    %v4393 = vld [vmem:[%s3 + $0x18] sm:$0xf]
    %v4394 = vld [vmem:[%s3 + $0x1c] sm:$0xf]
    %v4395 = vld [vmem:[%s3 + $0x20] sm:$0xf]
    %v4396 = vld [vmem:[%s3 + $0x24] sm:$0xf]
    %v4397 = vld [vmem:[%s3 + $0x28] sm:$0xf]
    %v4398 = vld [vmem:[%s3 + $0x2c] sm:$0xf]
    %v4399 = vld [vmem:[%s3 + $0x30] sm:$0xf]
    %v4400 = vld [vmem:[%s3 + $0x34] sm:$0xf]
    %v4401 = vld [vmem:[%s3 + $0x38] sm:$0xf]
    %v4402 = vld [vmem:[%s3 + $0x3c] sm:$0xf]
    %v4403 = vld [vmem:[%s3 + $0x40] sm:$0xf]
    %v4404 = vld [vmem:[%s3 + $0x44] sm:$0xf]
    %v4421 = vunpack.c.l.b16 %v4371
    %v4422 = vunpack.c.h.b16 %v4371
    %v4423 = vunpack.c.l.b16 %v4372
    %v4424 = vunpack.c.h.b16 %v4372
    %v4425 = vunpack.c.l.b16 %v4373
    %v4426 = vunpack.c.h.b16 %v4373
    %v4427 = vunpack.c.l.b16 %v4374
    %v4428 = vunpack.c.h.b16 %v4374
    %v4429 = vunpack.c.l.b16 %v4375
    %v4430 = vunpack.c.h.b16 %v4375
    %v4431 = vunpack.c.l.b16 %v4376
    %v4432 = vunpack.c.h.b16 %v4376
    %v4433 = vunpack.c.l.b16 %v4377
    %v4434 = vunpack.c.h.b16 %v4377
    %v4435 = vunpack.c.l.b16 %v4378
    %v4436 = vunpack.c.h.b16 %v4378
    %v4437 = vunpack.c.l.b16 %v4379
    %v4438 = vunpack.c.h.b16 %v4379
    %v4439 = vunpack.c.l.b16 %v4380
    %v4440 = vunpack.c.h.b16 %v4380
    %v4441 = vunpack.c.l.b16 %v4381
    %v4442 = vunpack.c.h.b16 %v4381
    %v4443 = vunpack.c.l.b16 %v4382
    %v4444 = vunpack.c.h.b16 %v4382
    %v4445 = vunpack.c.l.b16 %v4383
    %v4446 = vunpack.c.h.b16 %v4383
    %v4447 = vunpack.c.l.b16 %v4384
    %v4448 = vunpack.c.h.b16 %v4384
    %v4449 = vunpack.c.l.b16 %v4385
    %v4450 = vunpack.c.h.b16 %v4385
    %v4451 = vunpack.c.l.b16 %v4386
    %v4452 = vunpack.c.h.b16 %v4386
    %v4453 = vpack.c.b16 %v4423, %v4421
    %v4454 = vpack.c.b16 %v4424, %v4422
    %v4455 = vpack.c.b16 %v4427, %v4425
    %v4456 = vpack.c.b16 %v4428, %v4426
    %v4457 = vpack.c.b16 %v4431, %v4429
    %v4458 = vpack.c.b16 %v4432, %v4430
    %v4459 = vpack.c.b16 %v4435, %v4433
    %v4460 = vpack.c.b16 %v4436, %v4434
    %v4461 = vpack.c.b16 %v4439, %v4437
    %v4462 = vpack.c.b16 %v4440, %v4438
    %v4463 = vpack.c.b16 %v4443, %v4441
    %v4464 = vpack.c.b16 %v4444, %v4442
    %v4465 = vpack.c.b16 %v4447, %v4445
    %v4466 = vpack.c.b16 %v4448, %v4446
    %v4467 = vpack.c.b16 %v4451, %v4449
    %v4468 = vpack.c.b16 %v4452, %v4450
    %v4495 = vunpack.c.l.b16 %v4387
    %v4496 = vunpack.c.l.b16 %v4388
    %v4497 = vunpack.c.l.b16 %v4389
    %v4498 = vunpack.c.l.b16 %v4390
    %v4499 = vunpack.c.l.b16 %v4391
    %v4500 = vunpack.c.l.b16 %v4392
    %v4501 = vunpack.c.l.b16 %v4393
    %v4502 = vunpack.c.l.b16 %v4394
    %v4503 = vunpack.c.l.b16 %v4395
    %v4504 = vunpack.c.l.b16 %v4396
    %v4505 = vunpack.c.l.b16 %v4397
    %v4506 = vunpack.c.l.b16 %v4398
    %v4507 = vunpack.c.l.b16 %v4399
    %v4508 = vunpack.c.l.b16 %v4400
    %v4509 = vunpack.c.l.b16 %v4401
    %v4510 = vunpack.c.l.b16 %v4402
    %v4511 = vunpack.c.l.b16 %v4403
    %v4512 = vunpack.c.l.b16 %v4404
    %v4513 = vpack.c.b16 %v4496, %v4495
    %v4514 = vpack.c.b16 %v4498, %v4497
    %v4515 = vpack.c.b16 %v4500, %v4499
    %v4516 = vpack.c.b16 %v4502, %v4501
    %v4517 = vpack.c.b16 %v4504, %v4503
    %v4518 = vpack.c.b16 %v4506, %v4505
    %v4519 = vpack.c.b16 %v4508, %v4507
    %v4520 = vpack.c.b16 %v4510, %v4509
    %v4521 = vpack.c.b16 %v4512, %v4511
    %v4532 = vsel %vm104, %v4454, 0
    %v4535 = vsel %vm104, %v4456, 0
    %v4538 = vsel %vm104, %v4458, 0
    %v4541 = vsel %vm104, %v4460, 0
    %v4544 = vsel %vm104, %v4462, 0
    %v4547 = vsel %vm104, %v4464, 0
    %v4550 = vsel %vm104, %v4466, 0
    %v4553 = vsel %vm104, %v4468, 0
    %4555 = vmatprep.subr.bf16.mxu0 0
    %4556 = vmatpush1.bf16.msra.mxu0 %v4513
    %4557 = vmatprep.subr.bf16.mxu0 0
    %4558 = vmatpush1.bf16.msra.mxu0 %v4514
    %4559 = vmatprep.subr.bf16.mxu0 0
    %4560 = vmatpush1.bf16.msra.mxu0 %v4515
    %4561 = vmatprep.subr.bf16.mxu0 0
    %4562 = vmatpush1.bf16.msra.mxu0 %v4516
    %4563 = vmatprep.subr.bf16.mxu0 0
    %4564 = vmatpush1.bf16.msra.mxu0 %v4517
    %4565 = vmatprep.subr.bf16.mxu0 0
    %4566 = vmatpush1.bf16.msra.mxu0 %v4518
    %4567 = vmatprep.subr.bf16.mxu0 0
    %4568 = vmatpush1.bf16.msra.mxu0 %v4519
    %4569 = vmatprep.subr.bf16.mxu0 0
    %4570 = vmatpush1.bf16.msra.mxu0 %v4520
    %4571 = vmatprep.subr.bf16.mxu0 0
    %4572 = vmatpush1.bf16.msra.mxu0 %v4521
    %4573 = vmatprep.subr.bf16.mxu0 0
    %4574 = vmatpush1.bf16.msra.mxu0 0
    %4575 = vmatprep.subr.bf16.mxu0 0
    %4576 = vmatpush1.bf16.msra.mxu0 0
    %4577 = vmatprep.subr.bf16.mxu0 0
    %4578 = vmatpush1.bf16.msra.mxu0 0
    %4579 = vmatprep.subr.bf16.mxu0 0
    %4580 = vmatpush1.bf16.msra.mxu0 0
    %4581 = vmatprep.subr.bf16.mxu0 0
    %4582 = vmatpush1.bf16.msra.mxu0 0
    %4583 = vmatprep.subr.bf16.mxu0 0
    %4584 = vmatpush1.bf16.msra.mxu0 0
    %4585 = vmatprep.subr.bf16.mxu0 0
    %4586 = vmatpush1.bf16.msra.mxu0 0
    %4587 = vmatprep.mubr.bf16.mxu0 %v4532
    %4588 = vmatmul.mubr.bf16.gmra.mrb[0].mxu0 %v4453
    %v4589 = vpop.f32.mrb[0].mxu0
    %v4590 = vadd.f32 0.0, %v4589
    %v4591 = vpop.f32.mrb[0].mxu0
    %v4592 = vpop.f32.mrb[0].mxu0
    %v4593 = vadd.f32 0.0, %v4592
    %v4594 = vpop.f32.mrb[0].mxu0
    %4595 = vmatprep.mubr.bf16.mxu0 %v4535
    %4596 = vmatmul.mubr.bf16.gmra.mrb[0].mxu0 %v4455
    %v4597 = vpop.f32.mrb[0].mxu0
    %v4598 = vadd.f32 0.0, %v4597
    %v4599 = vpop.f32.mrb[0].mxu0
    %v4600 = vpop.f32.mrb[0].mxu0
    %v4601 = vadd.f32 0.0, %v4600
    %v4602 = vpop.f32.mrb[0].mxu0
    %4603 = vmatprep.mubr.bf16.mxu0 %v4538
    %4604 = vmatmul.mubr.bf16.gmra.mrb[0].mxu0 %v4457
    %v4605 = vpop.f32.mrb[0].mxu0
    %v4606 = vadd.f32 0.0, %v4605
    %v4607 = vpop.f32.mrb[0].mxu0
    %v4608 = vpop.f32.mrb[0].mxu0
    %v4609 = vadd.f32 0.0, %v4608
    %v4610 = vpop.f32.mrb[0].mxu0
    %4611 = vmatprep.mubr.bf16.mxu0 %v4541
    %4612 = vmatmul.mubr.bf16.gmra.mrb[0].mxu0 %v4459
    %v4613 = vpop.f32.mrb[0].mxu0
    %v4614 = vadd.f32 0.0, %v4613
    %v4615 = vpop.f32.mrb[0].mxu0
    %v4616 = vpop.f32.mrb[0].mxu0
    %v4617 = vadd.f32 0.0, %v4616
    %v4618 = vpop.f32.mrb[0].mxu0
    %4619 = vmatprep.mubr.bf16.mxu0 %v4544
    %4620 = vmatmul.mubr.bf16.gmra.mrb[0].mxu0 %v4461
    %v4621 = vpop.f32.mrb[0].mxu0
    %v4622 = vadd.f32 0.0, %v4621
    %v4623 = vpop.f32.mrb[0].mxu0
    %v4624 = vpop.f32.mrb[0].mxu0
    %v4625 = vadd.f32 0.0, %v4624
    %v4626 = vpop.f32.mrb[0].mxu0
    %4627 = vmatprep.mubr.bf16.mxu0 %v4547
    %4628 = vmatmul.mubr.bf16.gmra.mrb[0].mxu0 %v4463
    %v4629 = vpop.f32.mrb[0].mxu0
    %v4630 = vadd.f32 0.0, %v4629
    %v4631 = vpop.f32.mrb[0].mxu0
    %v4632 = vpop.f32.mrb[0].mxu0
    %v4633 = vadd.f32 0.0, %v4632
    %v4634 = vpop.f32.mrb[0].mxu0
    %4635 = vmatprep.mubr.bf16.mxu0 %v4550
    %4636 = vmatmul.mubr.bf16.gmra.mrb[0].mxu0 %v4465
    %v4637 = vpop.f32.mrb[0].mxu0
    %v4638 = vadd.f32 0.0, %v4637
    %v4639 = vpop.f32.mrb[0].mxu0
    %v4640 = vpop.f32.mrb[0].mxu0
    %v4641 = vadd.f32 0.0, %v4640
    %v4642 = vpop.f32.mrb[0].mxu0
    %4643 = vmatprep.mubr.bf16.mxu0 %v4553
    %4644 = vmatmul.mubr.bf16.gmra.mrb[0].mxu0 %v4467
    %v4645 = vpop.f32.mrb[0].mxu0
    %v4646 = vadd.f32 0.0, %v4645
    %v4647 = vpop.f32.mrb[0].mxu0
    %v4648 = vpop.f32.mrb[0].mxu0
    %v4649 = vadd.f32 0.0, %v4648
    %v4650 = vpop.f32.mrb[0].mxu0
    %4651 = vdwg.mxu0
    %4668 = vrot.lane.b32.xlu0 %v4590, 96
    %v4669 = vpop.permute.xlu0 %4668
    %4670 = vrot.lane.b32.xlu0 %v4593, 96
    %v4671 = vpop.permute.xlu0 %4670
    %4672 = vrot.lane.b32.xlu0 %v4598, 96
    %v4673 = vpop.permute.xlu0 %4672
    %4674 = vrot.lane.b32.xlu0 %v4601, 96
    %v4675 = vpop.permute.xlu0 %4674
    %4676 = vrot.lane.b32.xlu0 %v4606, 96
    %v4677 = vpop.permute.xlu0 %4676
    %4678 = vrot.lane.b32.xlu0 %v4609, 96
    %v4679 = vpop.permute.xlu0 %4678
    %4680 = vrot.lane.b32.xlu0 %v4614, 96
    %v4681 = vpop.permute.xlu0 %4680
    %4682 = vrot.lane.b32.xlu0 %v4617, 96
    %v4683 = vpop.permute.xlu0 %4682
    %4684 = vrot.lane.b32.xlu0 %v4622, 96
    %v4685 = vpop.permute.xlu0 %4684
    %4686 = vrot.lane.b32.xlu0 %v4625, 96
    %v4687 = vpop.permute.xlu0 %4686
    %4688 = vrot.lane.b32.xlu0 %v4630, 96
    %v4689 = vpop.permute.xlu0 %4688
    %4690 = vrot.lane.b32.xlu0 %v4633, 96
    %v4691 = vpop.permute.xlu0 %4690
    %4692 = vrot.lane.b32.xlu0 %v4638, 96
    %v4693 = vpop.permute.xlu0 %4692
    %4694 = vrot.lane.b32.xlu0 %v4641, 96
    %v4695 = vpop.permute.xlu0 %4694
    %4696 = vrot.lane.b32.xlu0 %v4646, 96
    %v4697 = vpop.permute.xlu0 %4696
    %4698 = vrot.lane.b32.xlu0 %v4649, 96
    %v4699 = vpop.permute.xlu0 %4698
    %vm4716 = vcmask 261120
    %4717 = vst.msk [vmem:[#allocation6] sm:$0xff] %vm4716, %v4669
    %4718 = vst.msk [vmem:[#allocation6 + $0x8] sm:$0xff] %vm4716, %v4671
    %4719 = vst.msk [vmem:[#allocation6 + $0x10] sm:$0xff] %vm4716, %v4673
    %4720 = vst.msk [vmem:[#allocation6 + $0x18] sm:$0xff] %vm4716, %v4675
    %4721 = vst.msk [vmem:[#allocation6 + $0x20] sm:$0xff] %vm4716, %v4677
    %4722 = vst.msk [vmem:[#allocation6 + $0x28] sm:$0xff] %vm4716, %v4679
    %4723 = vst.msk [vmem:[#allocation6 + $0x30] sm:$0xff] %vm4716, %v4681
    %4724 = vst.msk [vmem:[#allocation6 + $0x38] sm:$0xff] %vm4716, %v4683
    %4725 = vst.msk [vmem:[#allocation6 + $0x40] sm:$0xff] %vm4716, %v4685
    %4726 = vst.msk [vmem:[#allocation6 + $0x48] sm:$0xff] %vm4716, %v4687
    %4727 = vst.msk [vmem:[#allocation6 + $0x50] sm:$0xff] %vm4716, %v4689
    %4728 = vst.msk [vmem:[#allocation6 + $0x58] sm:$0xff] %vm4716, %v4691
    %4729 = vst.msk [vmem:[#allocation6 + $0x60] sm:$0xff] %vm4716, %v4693
    %4730 = vst.msk [vmem:[#allocation6 + $0x68] sm:$0xff] %vm4716, %v4695
    %4731 = vst.msk [vmem:[#allocation6 + $0x70] sm:$0xff] %vm4716, %v4697
    %4732 = vst.msk [vmem:[#allocation6 + $0x78] sm:$0xff] %vm4716, %v4699
    %v4733 = vsel %vm4716, %v4590, 0.0
    %v4734 = vsel %vm4716, %v4593, 0.0
    %v4735 = vadd.f32 %v4733, %v4734
    %v4736 = vsel %vm4716, %v4598, 0.0
    %v4737 = vadd.f32 %v4735, %v4736
    %v4738 = vsel %vm4716, %v4601, 0.0
    %v4739 = vadd.f32 %v4737, %v4738
    %v4740 = vsel %vm4716, %v4606, 0.0
    %v4741 = vadd.f32 %v4739, %v4740
    %v4742 = vsel %vm4716, %v4609, 0.0
    %v4743 = vadd.f32 %v4741, %v4742
    %v4744 = vsel %vm4716, %v4614, 0.0
    %v4745 = vadd.f32 %v4743, %v4744
    %v4746 = vsel %vm4716, %v4617, 0.0
    %v4747 = vadd.f32 %v4745, %v4746
    %v4748 = vsel %vm4716, %v4622, 0.0
    %v4749 = vadd.f32 %v4747, %v4748
    %v4750 = vsel %vm4716, %v4625, 0.0
    %v4751 = vadd.f32 %v4749, %v4750
    %v4752 = vsel %vm4716, %v4630, 0.0
    %v4753 = vadd.f32 %v4751, %v4752
    %v4754 = vsel %vm4716, %v4633, 0.0
    %v4755 = vadd.f32 %v4753, %v4754
    %v4756 = vsel %vm4716, %v4638, 0.0
    %v4757 = vadd.f32 %v4755, %v4756
    %v4758 = vsel %vm4716, %v4641, 0.0
    %v4759 = vadd.f32 %v4757, %v4758
    %v4760 = vsel %vm4716, %v4646, 0.0
    %v4761 = vadd.f32 %v4759, %v4760
    %v4762 = vsel %vm4716, %v4649, 0.0
    %v4763 = vadd.f32 %v4761, %v4762
    %v4764 = vrot.slane %v4763, 4
    %v4765 = vadd.f32 %v4763, %v4764
    %v4766 = vrot.slane %v4765, 2
    %v4767 = vadd.f32 %v4765, %v4766
    %v4768 = vrot.slane %v4767, 1
    %v4769 = vadd.f32 %v4767, %v4768
    %v4770 = vmul.f32 %v4769, 0.0078125
    %v4771 = vsub.f32 %v4590, %v4770
    %v4772 = vsub.f32 %v4593, %v4770
    %v4773 = vsub.f32 %v4598, %v4770
    %v4774 = vsub.f32 %v4601, %v4770
    %v4775 = vsub.f32 %v4606, %v4770
    %v4776 = vsub.f32 %v4609, %v4770
    %v4777 = vsub.f32 %v4614, %v4770
    %v4778 = vsub.f32 %v4617, %v4770
    %v4779 = vsub.f32 %v4622, %v4770
    %v4780 = vsub.f32 %v4625, %v4770
    %v4781 = vsub.f32 %v4630, %v4770
    %v4782 = vsub.f32 %v4633, %v4770
    %v4783 = vsub.f32 %v4638, %v4770
    %v4784 = vsub.f32 %v4641, %v4770
    %v4785 = vsub.f32 %v4646, %v4770
    %v4786 = vsub.f32 %v4649, %v4770
    %v4787 = vmul.f32 %v4771, %v4771
    %v4788 = vmul.f32 %v4772, %v4772
    %v4789 = vmul.f32 %v4773, %v4773
    %v4790 = vmul.f32 %v4774, %v4774
    %v4791 = vmul.f32 %v4775, %v4775
    %v4792 = vmul.f32 %v4776, %v4776
    %v4793 = vmul.f32 %v4777, %v4777
    %v4794 = vmul.f32 %v4778, %v4778
    %v4795 = vmul.f32 %v4779, %v4779
    %v4796 = vmul.f32 %v4780, %v4780
    %v4797 = vmul.f32 %v4781, %v4781
    %v4798 = vmul.f32 %v4782, %v4782
    %v4799 = vmul.f32 %v4783, %v4783
    %v4800 = vmul.f32 %v4784, %v4784
    %v4801 = vmul.f32 %v4785, %v4785
    %v4802 = vmul.f32 %v4786, %v4786
    %v4803 = vsel %vm4716, %v4787, 0.0
    %v4804 = vsel %vm4716, %v4788, 0.0
    %v4805 = vadd.f32 %v4803, %v4804
    %v4806 = vsel %vm4716, %v4789, 0.0
    %v4807 = vadd.f32 %v4805, %v4806
    %v4808 = vsel %vm4716, %v4790, 0.0
    %v4809 = vadd.f32 %v4807, %v4808
    %v4810 = vsel %vm4716, %v4791, 0.0
    %v4811 = vadd.f32 %v4809, %v4810
    %v4812 = vsel %vm4716, %v4792, 0.0
    %v4813 = vadd.f32 %v4811, %v4812
    %v4814 = vsel %vm4716, %v4793, 0.0
    %v4815 = vadd.f32 %v4813, %v4814
    %v4816 = vsel %vm4716, %v4794, 0.0
    %v4817 = vadd.f32 %v4815, %v4816
    %v4818 = vsel %vm4716, %v4795, 0.0
    %v4819 = vadd.f32 %v4817, %v4818
    %v4820 = vsel %vm4716, %v4796, 0.0
    %v4821 = vadd.f32 %v4819, %v4820
    %v4822 = vsel %vm4716, %v4797, 0.0
    %v4823 = vadd.f32 %v4821, %v4822
    %v4824 = vsel %vm4716, %v4798, 0.0
    %v4825 = vadd.f32 %v4823, %v4824
    %v4826 = vsel %vm4716, %v4799, 0.0
    %v4827 = vadd.f32 %v4825, %v4826
    %v4828 = vsel %vm4716, %v4800, 0.0
    %v4829 = vadd.f32 %v4827, %v4828
    %v4830 = vsel %vm4716, %v4801, 0.0
    %v4831 = vadd.f32 %v4829, %v4830
    %v4832 = vsel %vm4716, %v4802, 0.0
    %v4833 = vadd.f32 %v4831, %v4832
    %v4834 = vrot.slane %v4833, 4
    %v4835 = vadd.f32 %v4833, %v4834
    %v4836 = vrot.slane %v4835, 2
    %v4837 = vadd.f32 %v4835, %v4836
    %v4838 = vrot.slane %v4837, 1
    %v4839 = vadd.f32 %v4837, %v4838
    %v4840 = vmul.f32 %v4839, 0.0078125
    %v4841 = vadd.f32 %v4840, 1e-05
    %v4842 = vrsqrt.pop %v4841
    %v4843 = vld [vmem:[%s4] sm:$0x1]
    %v4844 = vmul.f32 %v4842, %v4843
    %v4845 = vlaneseq
    %v4846 = vshrl.u32 %v4845, 7
    %v4847 = vsub.s32 0, %v4846
    %v4848 = vrot.slane %v4844, %v4847
    %v4849 = vmul.f32 %v4771, %v4848
    %v4850 = vmul.f32 %v4772, %v4848
    %v4851 = vmul.f32 %v4773, %v4848
    %v4852 = vmul.f32 %v4774, %v4848
    %v4853 = vmul.f32 %v4775, %v4848
    %v4854 = vmul.f32 %v4776, %v4848
    %v4855 = vmul.f32 %v4777, %v4848
    %v4856 = vmul.f32 %v4778, %v4848
    %v4857 = vmul.f32 %v4779, %v4848
    %v4858 = vmul.f32 %v4780, %v4848
    %v4859 = vmul.f32 %v4781, %v4848
    %v4860 = vmul.f32 %v4782, %v4848
    %v4861 = vmul.f32 %v4783, %v4848
    %v4862 = vmul.f32 %v4784, %v4848
    %v4863 = vmul.f32 %v4785, %v4848
    %v4864 = vmul.f32 %v4786, %v4848
    %v4865 = vld [vmem:[%s5] sm:$0x1]
    %v4867 = vlaneseq
    %v4868 = vshrl.u32 %v4867, 7
    %v4869 = vsub.s32 0, %v4868
    %v4870 = vrot.slane %v4865, %v4869
    %v4872 = vadd.f32 %v4849, %v4870
    %v4873 = vadd.f32 %v4850, %v4870
    %v4874 = vadd.f32 %v4851, %v4870
    %v4875 = vadd.f32 %v4852, %v4870
    %v4876 = vadd.f32 %v4853, %v4870
    %v4877 = vadd.f32 %v4854, %v4870
    %v4878 = vadd.f32 %v4855, %v4870
    %v4879 = vadd.f32 %v4856, %v4870
    %v4880 = vadd.f32 %v4857, %v4870
    %v4881 = vadd.f32 %v4858, %v4870
    %v4882 = vadd.f32 %v4859, %v4870
    %v4883 = vadd.f32 %v4860, %v4870
    %v4884 = vadd.f32 %v4861, %v4870
    %v4885 = vadd.f32 %v4862, %v4870
    %v4886 = vadd.f32 %v4863, %v4870
    %v4887 = vadd.f32 %v4864, %v4870
    %v4888 = vmax.f32 %v4872, 0.0
    %v4889 = vmax.f32 %v4873, 0.0
    %v4890 = vmax.f32 %v4874, 0.0
    %v4891 = vmax.f32 %v4875, 0.0
    %v4892 = vmax.f32 %v4876, 0.0
    %v4893 = vmax.f32 %v4877, 0.0
    %v4894 = vmax.f32 %v4878, 0.0
    %v4895 = vmax.f32 %v4879, 0.0
    %v4896 = vmax.f32 %v4880, 0.0
    %v4897 = vmax.f32 %v4881, 0.0
    %v4898 = vmax.f32 %v4882, 0.0
    %v4899 = vmax.f32 %v4883, 0.0
    %v4900 = vmax.f32 %v4884, 0.0
    %v4901 = vmax.f32 %v4885, 0.0
    %v4902 = vmax.f32 %v4886, 0.0
    %v4903 = vmax.f32 %v4887, 0.0
    %v4904 = vpack.c.bf16 %v4889, %v4888
    %v4905 = vpack.c.bf16 %v4891, %v4890
    %v4906 = vpack.c.bf16 %v4893, %v4892
    %v4907 = vpack.c.bf16 %v4895, %v4894
    %v4908 = vpack.c.bf16 %v4897, %v4896
    %v4909 = vpack.c.bf16 %v4899, %v4898
    %v4910 = vpack.c.bf16 %v4901, %v4900
    %v4911 = vpack.c.bf16 %v4903, %v4902
    %v4920 = vunpack.c.l.b16 %v4904
    %v4921 = vunpack.c.h.b16 %v4904
    %v4922 = vunpack.c.l.b16 %v4905
    %v4923 = vunpack.c.h.b16 %v4905
    %v4924 = vunpack.c.l.b16 %v4906
    %v4925 = vunpack.c.h.b16 %v4906
    %v4926 = vunpack.c.l.b16 %v4907
    %v4927 = vunpack.c.h.b16 %v4907
    %v4928 = vunpack.c.l.b16 %v4908
    %v4929 = vunpack.c.h.b16 %v4908
    %v4930 = vunpack.c.l.b16 %v4909
    %v4931 = vunpack.c.h.b16 %v4909
    %v4932 = vunpack.c.l.b16 %v4910
    %v4933 = vunpack.c.h.b16 %v4910
    %v4934 = vunpack.c.l.b16 %v4911
    %v4935 = vunpack.c.h.b16 %v4911
    %v4936 = vpack.c.b16 %v4920, %v4920
    %v4937 = vpack.c.b16 %v4921, %v4921
    %v4938 = vpack.c.b16 %v4922, %v4922
    %v4939 = vpack.c.b16 %v4923, %v4923
    %v4940 = vpack.c.b16 %v4924, %v4924
    %v4941 = vpack.c.b16 %v4925, %v4925
    %v4942 = vpack.c.b16 %v4926, %v4926
    %v4943 = vpack.c.b16 %v4927, %v4927
    %v4944 = vpack.c.b16 %v4928, %v4928
    %v4945 = vpack.c.b16 %v4929, %v4929
    %v4946 = vpack.c.b16 %v4930, %v4930
    %v4947 = vpack.c.b16 %v4931, %v4931
    %v4948 = vpack.c.b16 %v4932, %v4932
    %v4949 = vpack.c.b16 %v4933, %v4933
    %v4950 = vpack.c.b16 %v4934, %v4934
    %v4951 = vpack.c.b16 %v4935, %v4935
    %vm4952 = vcmask 257024
    %4953 = vst.msk [vmem:[#allocation3] sm:$0xf] %vm4952, 0
    %vm4954 = vcmask 253952
    %4955 = vst.msk [vmem:[#allocation3 + $0x4] sm:$0x1] %vm4954, 0
    %4956 = vst.msk [vmem:[#allocation3 + $0x50] sm:$0xf] %vm4952, 0
    %4957 = vst.msk [vmem:[#allocation3 + $0x54] sm:$0x1] %vm4954, 0
    %s4958 = scalar_lea.vmem [#allocation3], 72
    %4959 = vst.msk [vmem:[%s4958] sm:$0xf] %vm4952, 0
    %4960 = vst.msk [vmem:[%s4958 + $0x4] sm:$0x1] %vm4954, 0
    %4961 = vst.msk [vmem:[%s4958 + $0x50] sm:$0xf] %vm4952, 0
    %4962 = vst.msk [vmem:[%s4958 + $0x54] sm:$0x1] %vm4954, 0
    %vm4963 = vcmask 253952
    %vm4964 = vmand %vm4963, %vm775
    %v4965 = vld [vmem:[#allocation3] sm:$0x1]
    %v4966 = vsel %vm4964, 0, %v4965
    %4967 = vst [vmem:[#allocation3] sm:$0x1] %v4966
    %v4968 = vld [vmem:[#allocation3 + $0x8] sm:$0x1]
    %v4969 = vsel %vm4964, 0, %v4968
    %4970 = vst [vmem:[#allocation3 + $0x8] sm:$0x1] %v4969
    %v4971 = vld [vmem:[#allocation3 + $0x10] sm:$0x1]
    %v4972 = vsel %vm4964, 0, %v4971
    %4973 = vst [vmem:[#allocation3 + $0x10] sm:$0x1] %v4972
    %v4974 = vld [vmem:[#allocation3 + $0x18] sm:$0x1]
    %v4975 = vsel %vm4964, 0, %v4974
    %4976 = vst [vmem:[#allocation3 + $0x18] sm:$0x1] %v4975
    %v4977 = vld [vmem:[#allocation3 + $0x20] sm:$0x1]
    %v4978 = vsel %vm4964, 0, %v4977
    %4979 = vst [vmem:[#allocation3 + $0x20] sm:$0x1] %v4978
    %v4980 = vld [vmem:[#allocation3 + $0x28] sm:$0x1]
    %v4981 = vsel %vm4964, 0, %v4980
    %4982 = vst [vmem:[#allocation3 + $0x28] sm:$0x1] %v4981
    %v4983 = vld [vmem:[#allocation3 + $0x30] sm:$0x1]
    %v4984 = vsel %vm4964, 0, %v4983
    %4985 = vst [vmem:[#allocation3 + $0x30] sm:$0x1] %v4984
    %v4986 = vld [vmem:[#allocation3 + $0x38] sm:$0x1]
    %v4987 = vsel %vm4964, 0, %v4986
    %4988 = vst [vmem:[#allocation3 + $0x38] sm:$0x1] %v4987
    %v4989 = vld [vmem:[#allocation3 + $0x40] sm:$0x1]
    %v4990 = vsel %vm4964, 0, %v4989
    %4991 = vst [vmem:[#allocation3 + $0x40] sm:$0x1] %v4990
    %v4992 = vld [vmem:[#allocation3 + $0x48] sm:$0x1]
    %v4993 = vsel %vm4964, 0, %v4992
    %4994 = vst [vmem:[#allocation3 + $0x48] sm:$0x1] %v4993
    %v4995 = vld [vmem:[#allocation3 + $0x50] sm:$0x1]
    %v4996 = vsel %vm4964, 0, %v4995
    %4997 = vst [vmem:[#allocation3 + $0x50] sm:$0x1] %v4996
    %v4998 = vld [vmem:[#allocation3 + $0x58] sm:$0x1]
    %v4999 = vsel %vm4964, 0, %v4998
    %5000 = vst [vmem:[#allocation3 + $0x58] sm:$0x1] %v4999
    %v5001 = vld [vmem:[#allocation3 + $0x60] sm:$0x1]
    %v5002 = vsel %vm4964, 0, %v5001
    %5003 = vst [vmem:[#allocation3 + $0x60] sm:$0x1] %v5002
    %v5004 = vld [vmem:[#allocation3 + $0x68] sm:$0x1]
    %v5005 = vsel %vm4964, 0, %v5004
    %5006 = vst [vmem:[#allocation3 + $0x68] sm:$0x1] %v5005
    %v5007 = vld [vmem:[#allocation3 + $0x70] sm:$0x1]
    %v5008 = vsel %vm4964, 0, %v5007
    %5009 = vst [vmem:[#allocation3 + $0x70] sm:$0x1] %v5008
    %v5010 = vld [vmem:[#allocation3 + $0x78] sm:$0x1]
    %v5011 = vsel %vm4964, 0, %v5010
    %5012 = vst [vmem:[#allocation3 + $0x78] sm:$0x1] %v5011
    %v5013 = vld [vmem:[#allocation3 + $0x80] sm:$0x1]
    %v5014 = vsel %vm4964, 0, %v5013
    %5015 = vst [vmem:[#allocation3 + $0x80] sm:$0x1] %v5014
    %v5016 = vld [vmem:[#allocation3 + $0x88] sm:$0x1]
    %v5017 = vsel %vm4964, 0, %v5016
    %5018 = vst [vmem:[#allocation3 + $0x88] sm:$0x1] %v5017
    %v5019 = vld [vmem:[#allocation3 + $0x90] sm:$0x1]
    %v5020 = vsel %vm4964, 0, %v5019
    %5021 = vst [vmem:[#allocation3 + $0x90] sm:$0x1] %v5020
    %v5022 = vld [vmem:[#allocation3 + $0x98] sm:$0x1]
    %v5023 = vsel %vm4964, 0, %v5022
    %5024 = vst [vmem:[#allocation3 + $0x98] sm:$0x1] %v5023
    %vm5025 = vmand %vm4963, %vm1858
    %v5026 = vld [vmem:[#allocation3 + $0x4] sm:$0x1]
    %v5027 = vsel %vm5025, 0, %v5026
    %5028 = vst [vmem:[#allocation3 + $0x4] sm:$0x1] %v5027
    %v5029 = vld [vmem:[#allocation3 + $0xc] sm:$0x1]
    %v5030 = vsel %vm5025, 0, %v5029
    %5031 = vst [vmem:[#allocation3 + $0xc] sm:$0x1] %v5030
    %v5032 = vld [vmem:[#allocation3 + $0x14] sm:$0x1]
    %v5033 = vsel %vm5025, 0, %v5032
    %5034 = vst [vmem:[#allocation3 + $0x14] sm:$0x1] %v5033
    %v5035 = vld [vmem:[#allocation3 + $0x1c] sm:$0x1]
    %v5036 = vsel %vm5025, 0, %v5035
    %5037 = vst [vmem:[#allocation3 + $0x1c] sm:$0x1] %v5036
    %v5038 = vld [vmem:[#allocation3 + $0x24] sm:$0x1]
    %v5039 = vsel %vm5025, 0, %v5038
    %5040 = vst [vmem:[#allocation3 + $0x24] sm:$0x1] %v5039
    %v5041 = vld [vmem:[#allocation3 + $0x2c] sm:$0x1]
    %v5042 = vsel %vm5025, 0, %v5041
    %5043 = vst [vmem:[#allocation3 + $0x2c] sm:$0x1] %v5042
    %v5044 = vld [vmem:[#allocation3 + $0x34] sm:$0x1]
    %v5045 = vsel %vm5025, 0, %v5044
    %5046 = vst [vmem:[#allocation3 + $0x34] sm:$0x1] %v5045
    %v5047 = vld [vmem:[#allocation3 + $0x3c] sm:$0x1]
    %v5048 = vsel %vm5025, 0, %v5047
    %5049 = vst [vmem:[#allocation3 + $0x3c] sm:$0x1] %v5048
    %v5050 = vld [vmem:[#allocation3 + $0x44] sm:$0x1]
    %v5051 = vsel %vm5025, 0, %v5050
    %5052 = vst [vmem:[#allocation3 + $0x44] sm:$0x1] %v5051
    %v5053 = vld [vmem:[#allocation3 + $0x4c] sm:$0x1]
    %v5054 = vsel %vm5025, 0, %v5053
    %5055 = vst [vmem:[#allocation3 + $0x4c] sm:$0x1] %v5054
    %v5056 = vld [vmem:[#allocation3 + $0x54] sm:$0x1]
    %v5057 = vsel %vm5025, 0, %v5056
    %5058 = vst [vmem:[#allocation3 + $0x54] sm:$0x1] %v5057
    %v5059 = vld [vmem:[#allocation3 + $0x5c] sm:$0x1]
    %v5060 = vsel %vm5025, 0, %v5059
    %5061 = vst [vmem:[#allocation3 + $0x5c] sm:$0x1] %v5060
    %v5062 = vld [vmem:[#allocation3 + $0x64] sm:$0x1]
    %v5063 = vsel %vm5025, 0, %v5062
    %5064 = vst [vmem:[#allocation3 + $0x64] sm:$0x1] %v5063
    %v5065 = vld [vmem:[#allocation3 + $0x6c] sm:$0x1]
    %v5066 = vsel %vm5025, 0, %v5065
    %5067 = vst [vmem:[#allocation3 + $0x6c] sm:$0x1] %v5066
    %v5068 = vld [vmem:[#allocation3 + $0x74] sm:$0x1]
    %v5069 = vsel %vm5025, 0, %v5068
    %5070 = vst [vmem:[#allocation3 + $0x74] sm:$0x1] %v5069
    %v5071 = vld [vmem:[#allocation3 + $0x7c] sm:$0x1]
    %v5072 = vsel %vm5025, 0, %v5071
    %5073 = vst [vmem:[#allocation3 + $0x7c] sm:$0x1] %v5072
    %v5074 = vld [vmem:[#allocation3 + $0x84] sm:$0x1]
    %v5075 = vsel %vm5025, 0, %v5074
    %5076 = vst [vmem:[#allocation3 + $0x84] sm:$0x1] %v5075
    %v5077 = vld [vmem:[#allocation3 + $0x8c] sm:$0x1]
    %v5078 = vsel %vm5025, 0, %v5077
    %5079 = vst [vmem:[#allocation3 + $0x8c] sm:$0x1] %v5078
    %v5080 = vld [vmem:[#allocation3 + $0x94] sm:$0x1]
    %v5081 = vsel %vm5025, 0, %v5080
    %5082 = vst [vmem:[#allocation3 + $0x94] sm:$0x1] %v5081
    %v5083 = vld [vmem:[#allocation3 + $0x9c] sm:$0x1]
    %v5084 = vsel %vm5025, 0, %v5083
    %5085 = vst [vmem:[#allocation3 + $0x9c] sm:$0x1] %v5084
    %v5087 = vshrl.u32 %v4936, 16
    %v5089 = vrot.slane %v5087, 7
    %v5090 = vshll.u32 %v4936, 16
    %v5092 = vor.u32 %v5089, %v5090
    %v5093 = vrot.slane %v5089, 4
    %v5095 = vshrl.u32 %v4937, 16
    %v5097 = vrot.slane %v5095, 7
    %v5098 = vshll.u32 %v4937, 16
    %v5100 = vor.u32 %v5097, %v5098
    %v5101 = vrot.slane %v5097, 4
    %v5103 = vshrl.u32 %v4938, 16
    %v5105 = vrot.slane %v5103, 7
    %v5106 = vshll.u32 %v4938, 16
    %v5108 = vor.u32 %v5105, %v5106
    %v5109 = vrot.slane %v5105, 4
    %v5111 = vshrl.u32 %v4939, 16
    %v5113 = vrot.slane %v5111, 7
    %v5114 = vshll.u32 %v4939, 16
    %v5116 = vor.u32 %v5113, %v5114
    %v5117 = vrot.slane %v5113, 4
    %v5119 = vshrl.u32 %v4940, 16
    %v5121 = vrot.slane %v5119, 7
    %v5122 = vshll.u32 %v4940, 16
    %v5124 = vor.u32 %v5121, %v5122
    %v5125 = vrot.slane %v5121, 4
    %v5127 = vshrl.u32 %v4941, 16
    %v5129 = vrot.slane %v5127, 7
    %v5130 = vshll.u32 %v4941, 16
    %v5132 = vor.u32 %v5129, %v5130
    %v5133 = vrot.slane %v5129, 4
    %v5135 = vshrl.u32 %v4942, 16
    %v5137 = vrot.slane %v5135, 7
    %v5138 = vshll.u32 %v4942, 16
    %v5140 = vor.u32 %v5137, %v5138
    %v5141 = vrot.slane %v5137, 4
    %v5143 = vshrl.u32 %v4943, 16
    %v5145 = vrot.slane %v5143, 7
    %v5146 = vshll.u32 %v4943, 16
    %v5148 = vor.u32 %v5145, %v5146
    %v5149 = vrot.slane %v5145, 4
    %v5151 = vshrl.u32 %v4944, 16
    %v5153 = vrot.slane %v5151, 7
    %v5154 = vshll.u32 %v4944, 16
    %v5156 = vor.u32 %v5153, %v5154
    %v5157 = vrot.slane %v5153, 4
    %v5159 = vshrl.u32 %v4945, 16
    %v5161 = vrot.slane %v5159, 7
    %v5162 = vshll.u32 %v4945, 16
    %v5164 = vor.u32 %v5161, %v5162
    %v5165 = vrot.slane %v5161, 4
    %v5167 = vshrl.u32 %v4946, 16
    %v5169 = vrot.slane %v5167, 7
    %v5170 = vshll.u32 %v4946, 16
    %v5172 = vor.u32 %v5169, %v5170
    %v5173 = vrot.slane %v5169, 4
    %v5175 = vshrl.u32 %v4947, 16
    %v5177 = vrot.slane %v5175, 7
    %v5178 = vshll.u32 %v4947, 16
    %v5180 = vor.u32 %v5177, %v5178
    %v5181 = vrot.slane %v5177, 4
    %v5183 = vshrl.u32 %v4948, 16
    %v5185 = vrot.slane %v5183, 7
    %v5186 = vshll.u32 %v4948, 16
    %v5188 = vor.u32 %v5185, %v5186
    %v5189 = vrot.slane %v5185, 4
    %v5191 = vshrl.u32 %v4949, 16
    %v5193 = vrot.slane %v5191, 7
    %v5194 = vshll.u32 %v4949, 16
    %v5196 = vor.u32 %v5193, %v5194
    %v5197 = vrot.slane %v5193, 4
    %v5199 = vshrl.u32 %v4950, 16
    %v5201 = vrot.slane %v5199, 7
    %v5202 = vshll.u32 %v4950, 16
    %v5204 = vor.u32 %v5201, %v5202
    %v5205 = vrot.slane %v5201, 4
    %v5207 = vshrl.u32 %v4951, 16
    %v5209 = vrot.slane %v5207, 7
    %v5210 = vshll.u32 %v4951, 16
    %v5212 = vor.u32 %v5209, %v5210
    %v5213 = vrot.slane %v5209, 4
    %s5246 = scalar_lea.vmem [#allocation3], 8
    %vm5247 = vcmask 257024
    %vm5248 = vmand %vm5247, %vm1858
    %v5249 = vld [vmem:[%s5246] sm:$0xf]
    %v5250 = vsel %vm5248, %v5092, %v5249
    %5251 = vst [vmem:[%s5246] sm:$0xf] %v5250
    %v5252 = vld [vmem:[%s5246 + $0x4] sm:$0x1]
    %v5253 = vsel %vm4964, %v5093, %v5252
    %5254 = vst [vmem:[%s5246 + $0x4] sm:$0x1] %v5253
    %v5255 = vld [vmem:[%s5246 + $0x8] sm:$0xf]
    %v5256 = vsel %vm5248, %v5100, %v5255
    %5257 = vst [vmem:[%s5246 + $0x8] sm:$0xf] %v5256
    %v5258 = vld [vmem:[%s5246 + $0xc] sm:$0x1]
    %v5259 = vsel %vm4964, %v5101, %v5258
    %5260 = vst [vmem:[%s5246 + $0xc] sm:$0x1] %v5259
    %v5261 = vld [vmem:[%s5246 + $0x10] sm:$0xf]
    %v5262 = vsel %vm5248, %v5108, %v5261
    %5263 = vst [vmem:[%s5246 + $0x10] sm:$0xf] %v5262
    %v5264 = vld [vmem:[%s5246 + $0x14] sm:$0x1]
    %v5265 = vsel %vm4964, %v5109, %v5264
    %5266 = vst [vmem:[%s5246 + $0x14] sm:$0x1] %v5265
    %v5267 = vld [vmem:[%s5246 + $0x18] sm:$0xf]
    %v5268 = vsel %vm5248, %v5116, %v5267
    %5269 = vst [vmem:[%s5246 + $0x18] sm:$0xf] %v5268
    %v5270 = vld [vmem:[%s5246 + $0x1c] sm:$0x1]
    %v5271 = vsel %vm4964, %v5117, %v5270
    %5272 = vst [vmem:[%s5246 + $0x1c] sm:$0x1] %v5271
    %v5273 = vld [vmem:[%s5246 + $0x20] sm:$0xf]
    %v5274 = vsel %vm5248, %v5124, %v5273
    %5275 = vst [vmem:[%s5246 + $0x20] sm:$0xf] %v5274
    %v5276 = vld [vmem:[%s5246 + $0x24] sm:$0x1]
    %v5277 = vsel %vm4964, %v5125, %v5276
    %5278 = vst [vmem:[%s5246 + $0x24] sm:$0x1] %v5277
    %v5279 = vld [vmem:[%s5246 + $0x28] sm:$0xf]
    %v5280 = vsel %vm5248, %v5132, %v5279
    %5281 = vst [vmem:[%s5246 + $0x28] sm:$0xf] %v5280
    %v5282 = vld [vmem:[%s5246 + $0x2c] sm:$0x1]
    %v5283 = vsel %vm4964, %v5133, %v5282
    %5284 = vst [vmem:[%s5246 + $0x2c] sm:$0x1] %v5283
    %v5285 = vld [vmem:[%s5246 + $0x30] sm:$0xf]
    %v5286 = vsel %vm5248, %v5140, %v5285
    %5287 = vst [vmem:[%s5246 + $0x30] sm:$0xf] %v5286
    %v5288 = vld [vmem:[%s5246 + $0x34] sm:$0x1]
    %v5289 = vsel %vm4964, %v5141, %v5288
    %5290 = vst [vmem:[%s5246 + $0x34] sm:$0x1] %v5289
    %v5291 = vld [vmem:[%s5246 + $0x38] sm:$0xf]
    %v5292 = vsel %vm5248, %v5148, %v5291
    %5293 = vst [vmem:[%s5246 + $0x38] sm:$0xf] %v5292
    %v5294 = vld [vmem:[%s5246 + $0x3c] sm:$0x1]
    %v5295 = vsel %vm4964, %v5149, %v5294
    %5296 = vst [vmem:[%s5246 + $0x3c] sm:$0x1] %v5295
    %v5297 = vld [vmem:[%s5246 + $0x50] sm:$0xf]
    %v5298 = vsel %vm5248, %v5156, %v5297
    %5299 = vst [vmem:[%s5246 + $0x50] sm:$0xf] %v5298
    %v5300 = vld [vmem:[%s5246 + $0x54] sm:$0x1]
    %v5301 = vsel %vm4964, %v5157, %v5300
    %5302 = vst [vmem:[%s5246 + $0x54] sm:$0x1] %v5301
    %v5303 = vld [vmem:[%s5246 + $0x58] sm:$0xf]
    %v5304 = vsel %vm5248, %v5164, %v5303
    %5305 = vst [vmem:[%s5246 + $0x58] sm:$0xf] %v5304
    %v5306 = vld [vmem:[%s5246 + $0x5c] sm:$0x1]
    %v5307 = vsel %vm4964, %v5165, %v5306
    %5308 = vst [vmem:[%s5246 + $0x5c] sm:$0x1] %v5307
    %v5309 = vld [vmem:[%s5246 + $0x60] sm:$0xf]
    %v5310 = vsel %vm5248, %v5172, %v5309
    %5311 = vst [vmem:[%s5246 + $0x60] sm:$0xf] %v5310
    %v5312 = vld [vmem:[%s5246 + $0x64] sm:$0x1]
    %v5313 = vsel %vm4964, %v5173, %v5312
    %5314 = vst [vmem:[%s5246 + $0x64] sm:$0x1] %v5313
    %v5315 = vld [vmem:[%s5246 + $0x68] sm:$0xf]
    %v5316 = vsel %vm5248, %v5180, %v5315
    %5317 = vst [vmem:[%s5246 + $0x68] sm:$0xf] %v5316
    %v5318 = vld [vmem:[%s5246 + $0x6c] sm:$0x1]
    %v5319 = vsel %vm4964, %v5181, %v5318
    %5320 = vst [vmem:[%s5246 + $0x6c] sm:$0x1] %v5319
    %v5321 = vld [vmem:[%s5246 + $0x70] sm:$0xf]
    %v5322 = vsel %vm5248, %v5188, %v5321
    %5323 = vst [vmem:[%s5246 + $0x70] sm:$0xf] %v5322
    %v5324 = vld [vmem:[%s5246 + $0x74] sm:$0x1]
    %v5325 = vsel %vm4964, %v5189, %v5324
    %5326 = vst [vmem:[%s5246 + $0x74] sm:$0x1] %v5325
    %v5327 = vld [vmem:[%s5246 + $0x78] sm:$0xf]
    %v5328 = vsel %vm5248, %v5196, %v5327
    %5329 = vst [vmem:[%s5246 + $0x78] sm:$0xf] %v5328
    %v5330 = vld [vmem:[%s5246 + $0x7c] sm:$0x1]
    %v5331 = vsel %vm4964, %v5197, %v5330
    %5332 = vst [vmem:[%s5246 + $0x7c] sm:$0x1] %v5331
    %v5333 = vld [vmem:[%s5246 + $0x80] sm:$0xf]
    %v5334 = vsel %vm5248, %v5204, %v5333
    %5335 = vst [vmem:[%s5246 + $0x80] sm:$0xf] %v5334
    %v5336 = vld [vmem:[%s5246 + $0x84] sm:$0x1]
    %v5337 = vsel %vm4964, %v5205, %v5336
    %5338 = vst [vmem:[%s5246 + $0x84] sm:$0x1] %v5337
    %v5339 = vld [vmem:[%s5246 + $0x88] sm:$0xf]
    %v5340 = vsel %vm5248, %v5212, %v5339
    %5341 = vst [vmem:[%s5246 + $0x88] sm:$0xf] %v5340
    %v5342 = vld [vmem:[%s5246 + $0x8c] sm:$0x1]
    %v5343 = vsel %vm4964, %v5213, %v5342
    %5344 = vst [vmem:[%s5246 + $0x8c] sm:$0x1] %v5343
    %v5345 = vld [vmem:[#allocation3] sm:$0xf]
    %v5346 = vld [vmem:[#allocation3 + $0x8] sm:$0xf]
    %v5347 = vld [vmem:[#allocation3 + $0x10] sm:$0xf]
    %v5348 = vld [vmem:[#allocation3 + $0x18] sm:$0xf]
    %v5349 = vld [vmem:[#allocation3 + $0x20] sm:$0xf]
    %v5350 = vld [vmem:[#allocation3 + $0x28] sm:$0xf]
    %v5351 = vld [vmem:[#allocation3 + $0x30] sm:$0xf]
    %v5352 = vld [vmem:[#allocation3 + $0x38] sm:$0xf]
    %v5353 = vld [vmem:[#allocation3 + $0x50] sm:$0xf]
    %v5354 = vld [vmem:[#allocation3 + $0x58] sm:$0xf]
    %v5355 = vld [vmem:[#allocation3 + $0x60] sm:$0xf]
    %v5356 = vld [vmem:[#allocation3 + $0x68] sm:$0xf]
    %v5357 = vld [vmem:[#allocation3 + $0x70] sm:$0xf]
    %v5358 = vld [vmem:[#allocation3 + $0x78] sm:$0xf]
    %v5359 = vld [vmem:[#allocation3 + $0x80] sm:$0xf]
    %v5360 = vld [vmem:[#allocation3 + $0x88] sm:$0xf]
    %5361 = vst.msk [vmem:[#allocation5] sm:$0xf] %vm4952, %v5345
    %5362 = vst.msk [vmem:[#allocation5 + $0xc] sm:$0xf] %vm4952, %v5346
    %5363 = vst.msk [vmem:[#allocation5 + $0x18] sm:$0xf] %vm4952, %v5347
    %5364 = vst.msk [vmem:[#allocation5 + $0x24] sm:$0xf] %vm4952, %v5348
    %5365 = vst.msk [vmem:[#allocation5 + $0x30] sm:$0xf] %vm4952, %v5349
    %5366 = vst.msk [vmem:[#allocation5 + $0x3c] sm:$0xf] %vm4952, %v5350
    %5367 = vst.msk [vmem:[#allocation5 + $0x48] sm:$0xf] %vm4952, %v5351
    %5368 = vst.msk [vmem:[#allocation5 + $0x54] sm:$0xf] %vm4952, %v5352
    %5369 = vst.msk [vmem:[#allocation5 + $0x60] sm:$0xf] %vm4952, %v5353
    %5370 = vst.msk [vmem:[#allocation5 + $0x6c] sm:$0xf] %vm4952, %v5354
    %5371 = vst.msk [vmem:[#allocation5 + $0x78] sm:$0xf] %vm4952, %v5355
    %5372 = vst.msk [vmem:[#allocation5 + $0x84] sm:$0xf] %vm4952, %v5356
    %5373 = vst.msk [vmem:[#allocation5 + $0x90] sm:$0xf] %vm4952, %v5357
    %5374 = vst.msk [vmem:[#allocation5 + $0x9c] sm:$0xf] %vm4952, %v5358
    %5375 = vst.msk [vmem:[#allocation5 + $0xa8] sm:$0xf] %vm4952, %v5359
    %5376 = vst.msk [vmem:[#allocation5 + $0xb4] sm:$0xf] %vm4952, %v5360
    %v5377 = vld [vmem:[#allocation3] sm:$0xf]
    %v5378 = vld [vmem:[#allocation3 + $0x4] sm:$0x1]
    %v5379 = vld [vmem:[#allocation3 + $0x8] sm:$0xf]
    %v5380 = vld [vmem:[#allocation3 + $0xc] sm:$0x1]
    %v5381 = vld [vmem:[#allocation3 + $0x10] sm:$0xf]
    %v5382 = vld [vmem:[#allocation3 + $0x14] sm:$0x1]
    %v5383 = vld [vmem:[#allocation3 + $0x18] sm:$0xf]
    %v5384 = vld [vmem:[#allocation3 + $0x1c] sm:$0x1]
    %v5385 = vld [vmem:[#allocation3 + $0x20] sm:$0xf]
    %v5386 = vld [vmem:[#allocation3 + $0x24] sm:$0x1]
    %v5387 = vld [vmem:[#allocation3 + $0x28] sm:$0xf]
    %v5388 = vld [vmem:[#allocation3 + $0x2c] sm:$0x1]
    %v5389 = vld [vmem:[#allocation3 + $0x30] sm:$0xf]
    %v5390 = vld [vmem:[#allocation3 + $0x34] sm:$0x1]
    %v5391 = vld [vmem:[#allocation3 + $0x38] sm:$0xf]
    %v5392 = vld [vmem:[#allocation3 + $0x3c] sm:$0x1]
    %v5393 = vld [vmem:[#allocation3 + $0x50] sm:$0xf]
    %v5394 = vld [vmem:[#allocation3 + $0x54] sm:$0x1]
    %v5395 = vld [vmem:[#allocation3 + $0x58] sm:$0xf]
    %v5396 = vld [vmem:[#allocation3 + $0x5c] sm:$0x1]
    %v5397 = vld [vmem:[#allocation3 + $0x60] sm:$0xf]
    %v5398 = vld [vmem:[#allocation3 + $0x64] sm:$0x1]
    %v5399 = vld [vmem:[#allocation3 + $0x68] sm:$0xf]
    %v5400 = vld [vmem:[#allocation3 + $0x6c] sm:$0x1]
    %v5401 = vld [vmem:[#allocation3 + $0x70] sm:$0xf]
    %v5402 = vld [vmem:[#allocation3 + $0x74] sm:$0x1]
    %v5403 = vld [vmem:[#allocation3 + $0x78] sm:$0xf]
    %v5404 = vld [vmem:[#allocation3 + $0x7c] sm:$0x1]
    %v5405 = vld [vmem:[#allocation3 + $0x80] sm:$0xf]
    %v5406 = vld [vmem:[#allocation3 + $0x84] sm:$0x1]
    %v5407 = vld [vmem:[#allocation3 + $0x88] sm:$0xf]
    %v5408 = vld [vmem:[#allocation3 + $0x8c] sm:$0x1]
    %v5410 = vshrl.u32 %v5377, 16
    %v5412 = vrot.slane %v5410, 4
    %v5413 = vshll.u32 %v5377, 16
    %v5415 = vrot.slane %v5413, 5
    %v5416 = vor.u32 %v5412, %v5415
    %v5417 = vrot.slane %v5416, 4
    %v5419 = vshll.u32 %v5378, 16
    %v5421 = vrot.slane %v5419, 5
    %v5422 = vsel %vm2312, %v5417, %v5421
    %v5424 = vshrl.u32 %v5379, 16
    %v5426 = vrot.slane %v5424, 4
    %v5427 = vshll.u32 %v5379, 16
    %v5429 = vrot.slane %v5427, 5
    %v5430 = vor.u32 %v5426, %v5429
    %v5431 = vrot.slane %v5430, 4
    %v5433 = vshll.u32 %v5380, 16
    %v5435 = vrot.slane %v5433, 5
    %v5436 = vsel %vm2312, %v5431, %v5435
    %v5438 = vshrl.u32 %v5381, 16
    %v5440 = vrot.slane %v5438, 4
    %v5441 = vshll.u32 %v5381, 16
    %v5443 = vrot.slane %v5441, 5
    %v5444 = vor.u32 %v5440, %v5443
    %v5445 = vrot.slane %v5444, 4
    %v5447 = vshll.u32 %v5382, 16
    %v5449 = vrot.slane %v5447, 5
    %v5450 = vsel %vm2312, %v5445, %v5449
    %v5452 = vshrl.u32 %v5383, 16
    %v5454 = vrot.slane %v5452, 4
    %v5455 = vshll.u32 %v5383, 16
    %v5457 = vrot.slane %v5455, 5
    %v5458 = vor.u32 %v5454, %v5457
    %v5459 = vrot.slane %v5458, 4
    %v5461 = vshll.u32 %v5384, 16
    %v5463 = vrot.slane %v5461, 5
    %v5464 = vsel %vm2312, %v5459, %v5463
    %v5466 = vshrl.u32 %v5385, 16
    %v5468 = vrot.slane %v5466, 4
    %v5469 = vshll.u32 %v5385, 16
    %v5471 = vrot.slane %v5469, 5
    %v5472 = vor.u32 %v5468, %v5471
    %v5473 = vrot.slane %v5472, 4
    %v5475 = vshll.u32 %v5386, 16
    %v5477 = vrot.slane %v5475, 5
    %v5478 = vsel %vm2312, %v5473, %v5477
    %v5480 = vshrl.u32 %v5387, 16
    %v5482 = vrot.slane %v5480, 4
    %v5483 = vshll.u32 %v5387, 16
    %v5485 = vrot.slane %v5483, 5
    %v5486 = vor.u32 %v5482, %v5485
    %v5487 = vrot.slane %v5486, 4
    %v5489 = vshll.u32 %v5388, 16
    %v5491 = vrot.slane %v5489, 5
    %v5492 = vsel %vm2312, %v5487, %v5491
    %v5494 = vshrl.u32 %v5389, 16
    %v5496 = vrot.slane %v5494, 4
    %v5497 = vshll.u32 %v5389, 16
    %v5499 = vrot.slane %v5497, 5
    %v5500 = vor.u32 %v5496, %v5499
    %v5501 = vrot.slane %v5500, 4
    %v5503 = vshll.u32 %v5390, 16
    %v5505 = vrot.slane %v5503, 5
    %v5506 = vsel %vm2312, %v5501, %v5505
    %v5508 = vshrl.u32 %v5391, 16
    %v5510 = vrot.slane %v5508, 4
    %v5511 = vshll.u32 %v5391, 16
    %v5513 = vrot.slane %v5511, 5
    %v5514 = vor.u32 %v5510, %v5513
    %v5515 = vrot.slane %v5514, 4
    %v5517 = vshll.u32 %v5392, 16
    %v5519 = vrot.slane %v5517, 5
    %v5520 = vsel %vm2312, %v5515, %v5519
    %v5522 = vshrl.u32 %v5393, 16
    %v5524 = vrot.slane %v5522, 4
    %v5525 = vshll.u32 %v5393, 16
    %v5527 = vrot.slane %v5525, 5
    %v5528 = vor.u32 %v5524, %v5527
    %v5529 = vrot.slane %v5528, 4
    %v5531 = vshll.u32 %v5394, 16
    %v5533 = vrot.slane %v5531, 5
    %v5534 = vsel %vm2312, %v5529, %v5533
    %v5536 = vshrl.u32 %v5395, 16
    %v5538 = vrot.slane %v5536, 4
    %v5539 = vshll.u32 %v5395, 16
    %v5541 = vrot.slane %v5539, 5
    %v5542 = vor.u32 %v5538, %v5541
    %v5543 = vrot.slane %v5542, 4
    %v5545 = vshll.u32 %v5396, 16
    %v5547 = vrot.slane %v5545, 5
    %v5548 = vsel %vm2312, %v5543, %v5547
    %v5550 = vshrl.u32 %v5397, 16
    %v5552 = vrot.slane %v5550, 4
    %v5553 = vshll.u32 %v5397, 16
    %v5555 = vrot.slane %v5553, 5
    %v5556 = vor.u32 %v5552, %v5555
    %v5557 = vrot.slane %v5556, 4
    %v5559 = vshll.u32 %v5398, 16
    %v5561 = vrot.slane %v5559, 5
    %v5562 = vsel %vm2312, %v5557, %v5561
    %v5564 = vshrl.u32 %v5399, 16
    %v5566 = vrot.slane %v5564, 4
    %v5567 = vshll.u32 %v5399, 16
    %v5569 = vrot.slane %v5567, 5
    %v5570 = vor.u32 %v5566, %v5569
    %v5571 = vrot.slane %v5570, 4
    %v5573 = vshll.u32 %v5400, 16
    %v5575 = vrot.slane %v5573, 5
    %v5576 = vsel %vm2312, %v5571, %v5575
    %v5578 = vshrl.u32 %v5401, 16
    %v5580 = vrot.slane %v5578, 4
    %v5581 = vshll.u32 %v5401, 16
    %v5583 = vrot.slane %v5581, 5
    %v5584 = vor.u32 %v5580, %v5583
    %v5585 = vrot.slane %v5584, 4
    %v5587 = vshll.u32 %v5402, 16
    %v5589 = vrot.slane %v5587, 5
    %v5590 = vsel %vm2312, %v5585, %v5589
    %v5592 = vshrl.u32 %v5403, 16
    %v5594 = vrot.slane %v5592, 4
    %v5595 = vshll.u32 %v5403, 16
    %v5597 = vrot.slane %v5595, 5
    %v5598 = vor.u32 %v5594, %v5597
    %v5599 = vrot.slane %v5598, 4
    %v5601 = vshll.u32 %v5404, 16
    %v5603 = vrot.slane %v5601, 5
    %v5604 = vsel %vm2312, %v5599, %v5603
    %v5606 = vshrl.u32 %v5405, 16
    %v5608 = vrot.slane %v5606, 4
    %v5609 = vshll.u32 %v5405, 16
    %v5611 = vrot.slane %v5609, 5
    %v5612 = vor.u32 %v5608, %v5611
    %v5613 = vrot.slane %v5612, 4
    %v5615 = vshll.u32 %v5406, 16
    %v5617 = vrot.slane %v5615, 5
    %v5618 = vsel %vm2312, %v5613, %v5617
    %v5620 = vshrl.u32 %v5407, 16
    %v5622 = vrot.slane %v5620, 4
    %v5623 = vshll.u32 %v5407, 16
    %v5625 = vrot.slane %v5623, 5
    %v5626 = vor.u32 %v5622, %v5625
    %v5627 = vrot.slane %v5626, 4
    %v5629 = vshll.u32 %v5408, 16
    %v5631 = vrot.slane %v5629, 5
    %v5632 = vsel %vm2312, %v5627, %v5631
    %5633 = vrot.lane.b32.xlu0 %v5422, 32
    %v5634 = vpop.permute.xlu0 %5633
    %5635 = vrot.lane.b32.xlu0 %v5436, 32
    %v5636 = vpop.permute.xlu0 %5635
    %5637 = vrot.lane.b32.xlu0 %v5450, 32
    %v5638 = vpop.permute.xlu0 %5637
    %5639 = vrot.lane.b32.xlu0 %v5464, 32
    %v5640 = vpop.permute.xlu0 %5639
    %5641 = vrot.lane.b32.xlu0 %v5478, 32
    %v5642 = vpop.permute.xlu0 %5641
    %5643 = vrot.lane.b32.xlu0 %v5492, 32
    %v5644 = vpop.permute.xlu0 %5643
    %5645 = vrot.lane.b32.xlu0 %v5506, 32
    %v5646 = vpop.permute.xlu0 %5645
    %5647 = vrot.lane.b32.xlu0 %v5520, 32
    %v5648 = vpop.permute.xlu0 %5647
    %5649 = vrot.lane.b32.xlu0 %v5534, 32
    %v5650 = vpop.permute.xlu0 %5649
    %5651 = vrot.lane.b32.xlu0 %v5548, 32
    %v5652 = vpop.permute.xlu0 %5651
    %5653 = vrot.lane.b32.xlu0 %v5562, 32
    %v5654 = vpop.permute.xlu0 %5653
    %5655 = vrot.lane.b32.xlu0 %v5576, 32
    %v5656 = vpop.permute.xlu0 %5655
    %5657 = vrot.lane.b32.xlu0 %v5590, 32
    %v5658 = vpop.permute.xlu0 %5657
    %5659 = vrot.lane.b32.xlu0 %v5604, 32
    %v5660 = vpop.permute.xlu0 %5659
    %5661 = vrot.lane.b32.xlu0 %v5618, 32
    %v5662 = vpop.permute.xlu0 %5661
    %5663 = vrot.lane.b32.xlu0 %v5632, 32
    %v5664 = vpop.permute.xlu0 %5663
    %vm5681 = vcmask 519424
    %5682 = vst.msk [vmem:[#allocation5] sm:$0xf] %vm5681, %v5634
    %5683 = vst.msk [vmem:[#allocation5 + $0xc] sm:$0xf] %vm5681, %v5636
    %5684 = vst.msk [vmem:[#allocation5 + $0x18] sm:$0xf] %vm5681, %v5638
    %5685 = vst.msk [vmem:[#allocation5 + $0x24] sm:$0xf] %vm5681, %v5640
    %5686 = vst.msk [vmem:[#allocation5 + $0x30] sm:$0xf] %vm5681, %v5642
    %5687 = vst.msk [vmem:[#allocation5 + $0x3c] sm:$0xf] %vm5681, %v5644
    %5688 = vst.msk [vmem:[#allocation5 + $0x48] sm:$0xf] %vm5681, %v5646
    %5689 = vst.msk [vmem:[#allocation5 + $0x54] sm:$0xf] %vm5681, %v5648
    %5690 = vst.msk [vmem:[#allocation5 + $0x60] sm:$0xf] %vm5681, %v5650
    %5691 = vst.msk [vmem:[#allocation5 + $0x6c] sm:$0xf] %vm5681, %v5652
    %5692 = vst.msk [vmem:[#allocation5 + $0x78] sm:$0xf] %vm5681, %v5654
    %5693 = vst.msk [vmem:[#allocation5 + $0x84] sm:$0xf] %vm5681, %v5656
    %5694 = vst.msk [vmem:[#allocation5 + $0x90] sm:$0xf] %vm5681, %v5658
    %5695 = vst.msk [vmem:[#allocation5 + $0x9c] sm:$0xf] %vm5681, %v5660
    %5696 = vst.msk [vmem:[#allocation5 + $0xa8] sm:$0xf] %vm5681, %v5662
    %5697 = vst.msk [vmem:[#allocation5 + $0xb4] sm:$0xf] %vm5681, %v5664
    %v5698 = vld [vmem:[#allocation3] sm:$0xe]
    %v5699 = vld [vmem:[#allocation3 + $0x4] sm:$0x1]
    %v5700 = vld [vmem:[#allocation3 + $0x8] sm:$0xe]
    %v5701 = vld [vmem:[#allocation3 + $0xc] sm:$0x1]
    %v5702 = vld [vmem:[#allocation3 + $0x10] sm:$0xe]
    %v5703 = vld [vmem:[#allocation3 + $0x14] sm:$0x1]
    %v5704 = vld [vmem:[#allocation3 + $0x18] sm:$0xe]
    %v5705 = vld [vmem:[#allocation3 + $0x1c] sm:$0x1]
    %v5706 = vld [vmem:[#allocation3 + $0x20] sm:$0xe]
    %v5707 = vld [vmem:[#allocation3 + $0x24] sm:$0x1]
    %v5708 = vld [vmem:[#allocation3 + $0x28] sm:$0xe]
    %v5709 = vld [vmem:[#allocation3 + $0x2c] sm:$0x1]
    %v5710 = vld [vmem:[#allocation3 + $0x30] sm:$0xe]
    %v5711 = vld [vmem:[#allocation3 + $0x34] sm:$0x1]
    %v5712 = vld [vmem:[#allocation3 + $0x38] sm:$0xe]
    %v5713 = vld [vmem:[#allocation3 + $0x3c] sm:$0x1]
    %v5714 = vld [vmem:[#allocation3 + $0x50] sm:$0xe]
    %v5715 = vld [vmem:[#allocation3 + $0x54] sm:$0x1]
    %v5716 = vld [vmem:[#allocation3 + $0x58] sm:$0xe]
    %v5717 = vld [vmem:[#allocation3 + $0x5c] sm:$0x1]
    %v5718 = vld [vmem:[#allocation3 + $0x60] sm:$0xe]
    %v5719 = vld [vmem:[#allocation3 + $0x64] sm:$0x1]
    %v5720 = vld [vmem:[#allocation3 + $0x68] sm:$0xe]
    %v5721 = vld [vmem:[#allocation3 + $0x6c] sm:$0x1]
    %v5722 = vld [vmem:[#allocation3 + $0x70] sm:$0xe]
    %v5723 = vld [vmem:[#allocation3 + $0x74] sm:$0x1]
    %v5724 = vld [vmem:[#allocation3 + $0x78] sm:$0xe]
    %v5725 = vld [vmem:[#allocation3 + $0x7c] sm:$0x1]
    %v5726 = vld [vmem:[#allocation3 + $0x80] sm:$0xe]
    %v5727 = vld [vmem:[#allocation3 + $0x84] sm:$0x1]
    %v5728 = vld [vmem:[#allocation3 + $0x88] sm:$0xe]
    %v5729 = vld [vmem:[#allocation3 + $0x8c] sm:$0x1]
    %vm5762 = vcmask 1042432
    %vm5763 = vcmask 1046532
    %vm5764 = vmor %vm5762, %vm5763
    %v5765 = vrot.slane %v5698, 5
    %v5766 = vrot.slane %v5765, 4
    %v5767 = vrot.slane %v5699, 5
    %v5768 = vsel %vm5764, %v5766, %v5767
    %v5769 = vrot.slane %v5700, 5
    %v5770 = vrot.slane %v5769, 4
    %v5771 = vrot.slane %v5701, 5
    %v5772 = vsel %vm5764, %v5770, %v5771
    %v5773 = vrot.slane %v5702, 5
    %v5774 = vrot.slane %v5773, 4
    %v5775 = vrot.slane %v5703, 5
    %v5776 = vsel %vm5764, %v5774, %v5775
    %v5777 = vrot.slane %v5704, 5
    %v5778 = vrot.slane %v5777, 4
    %v5779 = vrot.slane %v5705, 5
    %v5780 = vsel %vm5764, %v5778, %v5779
    %v5781 = vrot.slane %v5706, 5
    %v5782 = vrot.slane %v5781, 4
    %v5783 = vrot.slane %v5707, 5
    %v5784 = vsel %vm5764, %v5782, %v5783
    %v5785 = vrot.slane %v5708, 5
    %v5786 = vrot.slane %v5785, 4
    %v5787 = vrot.slane %v5709, 5
    %v5788 = vsel %vm5764, %v5786, %v5787
    %v5789 = vrot.slane %v5710, 5
    %v5790 = vrot.slane %v5789, 4
    %v5791 = vrot.slane %v5711, 5
    %v5792 = vsel %vm5764, %v5790, %v5791
    %v5793 = vrot.slane %v5712, 5
    %v5794 = vrot.slane %v5793, 4
    %v5795 = vrot.slane %v5713, 5
    %v5796 = vsel %vm5764, %v5794, %v5795
    %v5797 = vrot.slane %v5714, 5
    %v5798 = vrot.slane %v5797, 4
    %v5799 = vrot.slane %v5715, 5
    %v5800 = vsel %vm5764, %v5798, %v5799
    %v5801 = vrot.slane %v5716, 5
    %v5802 = vrot.slane %v5801, 4
    %v5803 = vrot.slane %v5717, 5
    %v5804 = vsel %vm5764, %v5802, %v5803
    %v5805 = vrot.slane %v5718, 5
    %v5806 = vrot.slane %v5805, 4
    %v5807 = vrot.slane %v5719, 5
    %v5808 = vsel %vm5764, %v5806, %v5807
    %v5809 = vrot.slane %v5720, 5
    %v5810 = vrot.slane %v5809, 4
    %v5811 = vrot.slane %v5721, 5
    %v5812 = vsel %vm5764, %v5810, %v5811
    %v5813 = vrot.slane %v5722, 5
    %v5814 = vrot.slane %v5813, 4
    %v5815 = vrot.slane %v5723, 5
    %v5816 = vsel %vm5764, %v5814, %v5815
    %v5817 = vrot.slane %v5724, 5
    %v5818 = vrot.slane %v5817, 4
    %v5819 = vrot.slane %v5725, 5
    %v5820 = vsel %vm5764, %v5818, %v5819
    %v5821 = vrot.slane %v5726, 5
    %v5822 = vrot.slane %v5821, 4
    %v5823 = vrot.slane %v5727, 5
    %v5824 = vsel %vm5764, %v5822, %v5823
    %v5825 = vrot.slane %v5728, 5
    %v5826 = vrot.slane %v5825, 4
    %v5827 = vrot.slane %v5729, 5
    %v5828 = vsel %vm5764, %v5826, %v5827
    %5829 = vrot.lane.b32.xlu0 %v5768, 64
    %v5830 = vpop.permute.xlu0 %5829
    %5831 = vrot.lane.b32.xlu0 %v5772, 64
    %v5832 = vpop.permute.xlu0 %5831
    %5833 = vrot.lane.b32.xlu0 %v5776, 64
    %v5834 = vpop.permute.xlu0 %5833
    %5835 = vrot.lane.b32.xlu0 %v5780, 64
    %v5836 = vpop.permute.xlu0 %5835
    %5837 = vrot.lane.b32.xlu0 %v5784, 64
    %v5838 = vpop.permute.xlu0 %5837
    %5839 = vrot.lane.b32.xlu0 %v5788, 64
    %v5840 = vpop.permute.xlu0 %5839
    %5841 = vrot.lane.b32.xlu0 %v5792, 64
    %v5842 = vpop.permute.xlu0 %5841
    %5843 = vrot.lane.b32.xlu0 %v5796, 64
    %v5844 = vpop.permute.xlu0 %5843
    %5845 = vrot.lane.b32.xlu0 %v5800, 64
    %v5846 = vpop.permute.xlu0 %5845
    %5847 = vrot.lane.b32.xlu0 %v5804, 64
    %v5848 = vpop.permute.xlu0 %5847
    %5849 = vrot.lane.b32.xlu0 %v5808, 64
    %v5850 = vpop.permute.xlu0 %5849
    %5851 = vrot.lane.b32.xlu0 %v5812, 64
    %v5852 = vpop.permute.xlu0 %5851
    %5853 = vrot.lane.b32.xlu0 %v5816, 64
    %v5854 = vpop.permute.xlu0 %5853
    %5855 = vrot.lane.b32.xlu0 %v5820, 64
    %v5856 = vpop.permute.xlu0 %5855
    %5857 = vrot.lane.b32.xlu0 %v5824, 64
    %v5858 = vpop.permute.xlu0 %5857
    %5859 = vrot.lane.b32.xlu0 %v5828, 64
    %v5860 = vpop.permute.xlu0 %5859
    %vm5877 = vcmask 781824
    %5878 = vst.msk [vmem:[#allocation5] sm:$0xf] %vm5877, %v5830
    %5879 = vst.msk [vmem:[#allocation5 + $0xc] sm:$0xf] %vm5877, %v5832
    %5880 = vst.msk [vmem:[#allocation5 + $0x18] sm:$0xf] %vm5877, %v5834
    %5881 = vst.msk [vmem:[#allocation5 + $0x24] sm:$0xf] %vm5877, %v5836
    %5882 = vst.msk [vmem:[#allocation5 + $0x30] sm:$0xf] %vm5877, %v5838
    %5883 = vst.msk [vmem:[#allocation5 + $0x3c] sm:$0xf] %vm5877, %v5840
    %5884 = vst.msk [vmem:[#allocation5 + $0x48] sm:$0xf] %vm5877, %v5842
    %5885 = vst.msk [vmem:[#allocation5 + $0x54] sm:$0xf] %vm5877, %v5844
    %5886 = vst.msk [vmem:[#allocation5 + $0x60] sm:$0xf] %vm5877, %v5846
    %5887 = vst.msk [vmem:[#allocation5 + $0x6c] sm:$0xf] %vm5877, %v5848
    %5888 = vst.msk [vmem:[#allocation5 + $0x78] sm:$0xf] %vm5877, %v5850
    %5889 = vst.msk [vmem:[#allocation5 + $0x84] sm:$0xf] %vm5877, %v5852
    %5890 = vst.msk [vmem:[#allocation5 + $0x90] sm:$0xf] %vm5877, %v5854
    %5891 = vst.msk [vmem:[#allocation5 + $0x9c] sm:$0xf] %vm5877, %v5856
    %5892 = vst.msk [vmem:[#allocation5 + $0xa8] sm:$0xf] %vm5877, %v5858
    %5893 = vst.msk [vmem:[#allocation5 + $0xb4] sm:$0xf] %vm5877, %v5860
    %v5894 = vld [vmem:[%s5246] sm:$0xf]
    %v5895 = vld [vmem:[%s5246 + $0x8] sm:$0xf]
    %v5896 = vld [vmem:[%s5246 + $0x10] sm:$0xf]
    %v5897 = vld [vmem:[%s5246 + $0x18] sm:$0xf]
    %v5898 = vld [vmem:[%s5246 + $0x20] sm:$0xf]
    %v5899 = vld [vmem:[%s5246 + $0x28] sm:$0xf]
    %v5900 = vld [vmem:[%s5246 + $0x30] sm:$0xf]
    %v5901 = vld [vmem:[%s5246 + $0x38] sm:$0xf]
    %v5902 = vld [vmem:[%s5246 + $0x50] sm:$0xf]
    %v5903 = vld [vmem:[%s5246 + $0x58] sm:$0xf]
    %v5904 = vld [vmem:[%s5246 + $0x60] sm:$0xf]
    %v5905 = vld [vmem:[%s5246 + $0x68] sm:$0xf]
    %v5906 = vld [vmem:[%s5246 + $0x70] sm:$0xf]
    %v5907 = vld [vmem:[%s5246 + $0x78] sm:$0xf]
    %v5908 = vld [vmem:[%s5246 + $0x80] sm:$0xf]
    %v5909 = vld [vmem:[%s5246 + $0x88] sm:$0xf]
    %5926 = vrot.lane.b32.xlu0 %v5894, 96
    %v5927 = vpop.permute.xlu0 %5926
    %5928 = vrot.lane.b32.xlu0 %v5895, 96
    %v5929 = vpop.permute.xlu0 %5928
    %5930 = vrot.lane.b32.xlu0 %v5896, 96
    %v5931 = vpop.permute.xlu0 %5930
    %5932 = vrot.lane.b32.xlu0 %v5897, 96
    %v5933 = vpop.permute.xlu0 %5932
    %5934 = vrot.lane.b32.xlu0 %v5898, 96
    %v5935 = vpop.permute.xlu0 %5934
    %5936 = vrot.lane.b32.xlu0 %v5899, 96
    %v5937 = vpop.permute.xlu0 %5936
    %5938 = vrot.lane.b32.xlu0 %v5900, 96
    %v5939 = vpop.permute.xlu0 %5938
    %5940 = vrot.lane.b32.xlu0 %v5901, 96
    %v5941 = vpop.permute.xlu0 %5940
    %5942 = vrot.lane.b32.xlu0 %v5902, 96
    %v5943 = vpop.permute.xlu0 %5942
    %5944 = vrot.lane.b32.xlu0 %v5903, 96
    %v5945 = vpop.permute.xlu0 %5944
    %5946 = vrot.lane.b32.xlu0 %v5904, 96
    %v5947 = vpop.permute.xlu0 %5946
    %5948 = vrot.lane.b32.xlu0 %v5905, 96
    %v5949 = vpop.permute.xlu0 %5948
    %5950 = vrot.lane.b32.xlu0 %v5906, 96
    %v5951 = vpop.permute.xlu0 %5950
    %5952 = vrot.lane.b32.xlu0 %v5907, 96
    %v5953 = vpop.permute.xlu0 %5952
    %5954 = vrot.lane.b32.xlu0 %v5908, 96
    %v5955 = vpop.permute.xlu0 %5954
    %5956 = vrot.lane.b32.xlu0 %v5909, 96
    %v5957 = vpop.permute.xlu0 %5956
    %vm5974 = vcmask 1044224
    %5975 = vst.msk [vmem:[#allocation5] sm:$0xf] %vm5974, %v5927
    %5976 = vst.msk [vmem:[#allocation5 + $0xc] sm:$0xf] %vm5974, %v5929
    %5977 = vst.msk [vmem:[#allocation5 + $0x18] sm:$0xf] %vm5974, %v5931
    %5978 = vst.msk [vmem:[#allocation5 + $0x24] sm:$0xf] %vm5974, %v5933
    %5979 = vst.msk [vmem:[#allocation5 + $0x30] sm:$0xf] %vm5974, %v5935
    %5980 = vst.msk [vmem:[#allocation5 + $0x3c] sm:$0xf] %vm5974, %v5937
    %5981 = vst.msk [vmem:[#allocation5 + $0x48] sm:$0xf] %vm5974, %v5939
    %5982 = vst.msk [vmem:[#allocation5 + $0x54] sm:$0xf] %vm5974, %v5941
    %5983 = vst.msk [vmem:[#allocation5 + $0x60] sm:$0xf] %vm5974, %v5943
    %5984 = vst.msk [vmem:[#allocation5 + $0x6c] sm:$0xf] %vm5974, %v5945
    %5985 = vst.msk [vmem:[#allocation5 + $0x78] sm:$0xf] %vm5974, %v5947
    %5986 = vst.msk [vmem:[#allocation5 + $0x84] sm:$0xf] %vm5974, %v5949
    %5987 = vst.msk [vmem:[#allocation5 + $0x90] sm:$0xf] %vm5974, %v5951
    %5988 = vst.msk [vmem:[#allocation5 + $0x9c] sm:$0xf] %vm5974, %v5953
    %5989 = vst.msk [vmem:[#allocation5 + $0xa8] sm:$0xf] %vm5974, %v5955
    %5990 = vst.msk [vmem:[#allocation5 + $0xb4] sm:$0xf] %vm5974, %v5957
    %v5991 = vld [vmem:[%s5246] sm:$0xf]
    %v5992 = vld [vmem:[%s5246 + $0x4] sm:$0x1]
    %v5993 = vld [vmem:[%s5246 + $0x8] sm:$0xf]
    %v5994 = vld [vmem:[%s5246 + $0xc] sm:$0x1]
    %v5995 = vld [vmem:[%s5246 + $0x10] sm:$0xf]
    %v5996 = vld [vmem:[%s5246 + $0x14] sm:$0x1]
    %v5997 = vld [vmem:[%s5246 + $0x18] sm:$0xf]
    %v5998 = vld [vmem:[%s5246 + $0x1c] sm:$0x1]
    %v5999 = vld [vmem:[%s5246 + $0x20] sm:$0xf]
    %v6000 = vld [vmem:[%s5246 + $0x24] sm:$0x1]
    %v6001 = vld [vmem:[%s5246 + $0x28] sm:$0xf]
    %v6002 = vld [vmem:[%s5246 + $0x2c] sm:$0x1]
    %v6003 = vld [vmem:[%s5246 + $0x30] sm:$0xf]
    %v6004 = vld [vmem:[%s5246 + $0x34] sm:$0x1]
    %v6005 = vld [vmem:[%s5246 + $0x38] sm:$0xf]
    %v6006 = vld [vmem:[%s5246 + $0x3c] sm:$0x1]
    %v6007 = vld [vmem:[%s5246 + $0x50] sm:$0xf]
    %v6008 = vld [vmem:[%s5246 + $0x54] sm:$0x1]
    %v6009 = vld [vmem:[%s5246 + $0x58] sm:$0xf]
    %v6010 = vld [vmem:[%s5246 + $0x5c] sm:$0x1]
    %v6011 = vld [vmem:[%s5246 + $0x60] sm:$0xf]
    %v6012 = vld [vmem:[%s5246 + $0x64] sm:$0x1]
    %v6013 = vld [vmem:[%s5246 + $0x68] sm:$0xf]
    %v6014 = vld [vmem:[%s5246 + $0x6c] sm:$0x1]
    %v6015 = vld [vmem:[%s5246 + $0x70] sm:$0xf]
    %v6016 = vld [vmem:[%s5246 + $0x74] sm:$0x1]
    %v6017 = vld [vmem:[%s5246 + $0x78] sm:$0xf]
    %v6018 = vld [vmem:[%s5246 + $0x7c] sm:$0x1]
    %v6019 = vld [vmem:[%s5246 + $0x80] sm:$0xf]
    %v6020 = vld [vmem:[%s5246 + $0x84] sm:$0x1]
    %v6021 = vld [vmem:[%s5246 + $0x88] sm:$0xf]
    %v6022 = vld [vmem:[%s5246 + $0x8c] sm:$0x1]
    %v6024 = vshrl.u32 %v5991, 16
    %v6026 = vrot.slane %v6024, 4
    %v6027 = vshll.u32 %v5991, 16
    %v6029 = vrot.slane %v6027, 5
    %v6030 = vor.u32 %v6026, %v6029
    %v6031 = vrot.slane %v6030, 4
    %v6033 = vshll.u32 %v5992, 16
    %v6035 = vrot.slane %v6033, 5
    %v6036 = vsel %vm2312, %v6031, %v6035
    %v6038 = vshrl.u32 %v5993, 16
    %v6040 = vrot.slane %v6038, 4
    %v6041 = vshll.u32 %v5993, 16
    %v6043 = vrot.slane %v6041, 5
    %v6044 = vor.u32 %v6040, %v6043
    %v6045 = vrot.slane %v6044, 4
    %v6047 = vshll.u32 %v5994, 16
    %v6049 = vrot.slane %v6047, 5
    %v6050 = vsel %vm2312, %v6045, %v6049
    %v6052 = vshrl.u32 %v5995, 16
    %v6054 = vrot.slane %v6052, 4
    %v6055 = vshll.u32 %v5995, 16
    %v6057 = vrot.slane %v6055, 5
    %v6058 = vor.u32 %v6054, %v6057
    %v6059 = vrot.slane %v6058, 4
    %v6061 = vshll.u32 %v5996, 16
    %v6063 = vrot.slane %v6061, 5
    %v6064 = vsel %vm2312, %v6059, %v6063
    %v6066 = vshrl.u32 %v5997, 16
    %v6068 = vrot.slane %v6066, 4
    %v6069 = vshll.u32 %v5997, 16
    %v6071 = vrot.slane %v6069, 5
    %v6072 = vor.u32 %v6068, %v6071
    %v6073 = vrot.slane %v6072, 4
    %v6075 = vshll.u32 %v5998, 16
    %v6077 = vrot.slane %v6075, 5
    %v6078 = vsel %vm2312, %v6073, %v6077
    %v6080 = vshrl.u32 %v5999, 16
    %v6082 = vrot.slane %v6080, 4
    %v6083 = vshll.u32 %v5999, 16
    %v6085 = vrot.slane %v6083, 5
    %v6086 = vor.u32 %v6082, %v6085
    %v6087 = vrot.slane %v6086, 4
    %v6089 = vshll.u32 %v6000, 16
    %v6091 = vrot.slane %v6089, 5
    %v6092 = vsel %vm2312, %v6087, %v6091
    %v6094 = vshrl.u32 %v6001, 16
    %v6096 = vrot.slane %v6094, 4
    %v6097 = vshll.u32 %v6001, 16
    %v6099 = vrot.slane %v6097, 5
    %v6100 = vor.u32 %v6096, %v6099
    %v6101 = vrot.slane %v6100, 4
    %v6103 = vshll.u32 %v6002, 16
    %v6105 = vrot.slane %v6103, 5
    %v6106 = vsel %vm2312, %v6101, %v6105
    %v6108 = vshrl.u32 %v6003, 16
    %v6110 = vrot.slane %v6108, 4
    %v6111 = vshll.u32 %v6003, 16
    %v6113 = vrot.slane %v6111, 5
    %v6114 = vor.u32 %v6110, %v6113
    %v6115 = vrot.slane %v6114, 4
    %v6117 = vshll.u32 %v6004, 16
    %v6119 = vrot.slane %v6117, 5
    %v6120 = vsel %vm2312, %v6115, %v6119
    %v6122 = vshrl.u32 %v6005, 16
    %v6124 = vrot.slane %v6122, 4
    %v6125 = vshll.u32 %v6005, 16
    %v6127 = vrot.slane %v6125, 5
    %v6128 = vor.u32 %v6124, %v6127
    %v6129 = vrot.slane %v6128, 4
    %v6131 = vshll.u32 %v6006, 16
    %v6133 = vrot.slane %v6131, 5
    %v6134 = vsel %vm2312, %v6129, %v6133
    %v6136 = vshrl.u32 %v6007, 16
    %v6138 = vrot.slane %v6136, 4
    %v6139 = vshll.u32 %v6007, 16
    %v6141 = vrot.slane %v6139, 5
    %v6142 = vor.u32 %v6138, %v6141
    %v6143 = vrot.slane %v6142, 4
    %v6145 = vshll.u32 %v6008, 16
    %v6147 = vrot.slane %v6145, 5
    %v6148 = vsel %vm2312, %v6143, %v6147
    %v6150 = vshrl.u32 %v6009, 16
    %v6152 = vrot.slane %v6150, 4
    %v6153 = vshll.u32 %v6009, 16
    %v6155 = vrot.slane %v6153, 5
    %v6156 = vor.u32 %v6152, %v6155
    %v6157 = vrot.slane %v6156, 4
    %v6159 = vshll.u32 %v6010, 16
    %v6161 = vrot.slane %v6159, 5
    %v6162 = vsel %vm2312, %v6157, %v6161
    %v6164 = vshrl.u32 %v6011, 16
    %v6166 = vrot.slane %v6164, 4
    %v6167 = vshll.u32 %v6011, 16
    %v6169 = vrot.slane %v6167, 5
    %v6170 = vor.u32 %v6166, %v6169
    %v6171 = vrot.slane %v6170, 4
    %v6173 = vshll.u32 %v6012, 16
    %v6175 = vrot.slane %v6173, 5
    %v6176 = vsel %vm2312, %v6171, %v6175
    %v6178 = vshrl.u32 %v6013, 16
    %v6180 = vrot.slane %v6178, 4
    %v6181 = vshll.u32 %v6013, 16
    %v6183 = vrot.slane %v6181, 5
    %v6184 = vor.u32 %v6180, %v6183
    %v6185 = vrot.slane %v6184, 4
    %v6187 = vshll.u32 %v6014, 16
    %v6189 = vrot.slane %v6187, 5
    %v6190 = vsel %vm2312, %v6185, %v6189
    %v6192 = vshrl.u32 %v6015, 16
    %v6194 = vrot.slane %v6192, 4
    %v6195 = vshll.u32 %v6015, 16
    %v6197 = vrot.slane %v6195, 5
    %v6198 = vor.u32 %v6194, %v6197
    %v6199 = vrot.slane %v6198, 4
    %v6201 = vshll.u32 %v6016, 16
    %v6203 = vrot.slane %v6201, 5
    %v6204 = vsel %vm2312, %v6199, %v6203
    %v6206 = vshrl.u32 %v6017, 16
    %v6208 = vrot.slane %v6206, 4
    %v6209 = vshll.u32 %v6017, 16
    %v6211 = vrot.slane %v6209, 5
    %v6212 = vor.u32 %v6208, %v6211
    %v6213 = vrot.slane %v6212, 4
    %v6215 = vshll.u32 %v6018, 16
    %v6217 = vrot.slane %v6215, 5
    %v6218 = vsel %vm2312, %v6213, %v6217
    %v6220 = vshrl.u32 %v6019, 16
    %v6222 = vrot.slane %v6220, 4
    %v6223 = vshll.u32 %v6019, 16
    %v6225 = vrot.slane %v6223, 5
    %v6226 = vor.u32 %v6222, %v6225
    %v6227 = vrot.slane %v6226, 4
    %v6229 = vshll.u32 %v6020, 16
    %v6231 = vrot.slane %v6229, 5
    %v6232 = vsel %vm2312, %v6227, %v6231
    %v6234 = vshrl.u32 %v6021, 16
    %v6236 = vrot.slane %v6234, 4
    %v6237 = vshll.u32 %v6021, 16
    %v6239 = vrot.slane %v6237, 5
    %v6240 = vor.u32 %v6236, %v6239
    %v6241 = vrot.slane %v6240, 4
    %v6243 = vshll.u32 %v6022, 16
    %v6245 = vrot.slane %v6243, 5
    %v6246 = vsel %vm2312, %v6241, %v6245
    %6263 = vst.msk [vmem:[#allocation5 + $0x4] sm:$0xf] %vm4952, %v6036
    %6264 = vst.msk [vmem:[#allocation5 + $0x10] sm:$0xf] %vm4952, %v6050
    %6265 = vst.msk [vmem:[#allocation5 + $0x1c] sm:$0xf] %vm4952, %v6064
    %6266 = vst.msk [vmem:[#allocation5 + $0x28] sm:$0xf] %vm4952, %v6078
    %6267 = vst.msk [vmem:[#allocation5 + $0x34] sm:$0xf] %vm4952, %v6092
    %6268 = vst.msk [vmem:[#allocation5 + $0x40] sm:$0xf] %vm4952, %v6106
    %6269 = vst.msk [vmem:[#allocation5 + $0x4c] sm:$0xf] %vm4952, %v6120
    %6270 = vst.msk [vmem:[#allocation5 + $0x58] sm:$0xf] %vm4952, %v6134
    %6271 = vst.msk [vmem:[#allocation5 + $0x64] sm:$0xf] %vm4952, %v6148
    %6272 = vst.msk [vmem:[#allocation5 + $0x70] sm:$0xf] %vm4952, %v6162
    %6273 = vst.msk [vmem:[#allocation5 + $0x7c] sm:$0xf] %vm4952, %v6176
    %6274 = vst.msk [vmem:[#allocation5 + $0x88] sm:$0xf] %vm4952, %v6190
    %6275 = vst.msk [vmem:[#allocation5 + $0x94] sm:$0xf] %vm4952, %v6204
    %6276 = vst.msk [vmem:[#allocation5 + $0xa0] sm:$0xf] %vm4952, %v6218
    %6277 = vst.msk [vmem:[#allocation5 + $0xac] sm:$0xf] %vm4952, %v6232
    %6278 = vst.msk [vmem:[#allocation5 + $0xb8] sm:$0xf] %vm4952, %v6246
    %v6279 = vld [vmem:[%s5246] sm:$0xe]
    %v6280 = vld [vmem:[%s5246 + $0x4] sm:$0x1]
    %v6281 = vld [vmem:[%s5246 + $0x8] sm:$0xe]
    %v6282 = vld [vmem:[%s5246 + $0xc] sm:$0x1]
    %v6283 = vld [vmem:[%s5246 + $0x10] sm:$0xe]
    %v6284 = vld [vmem:[%s5246 + $0x14] sm:$0x1]
    %v6285 = vld [vmem:[%s5246 + $0x18] sm:$0xe]
    %v6286 = vld [vmem:[%s5246 + $0x1c] sm:$0x1]
    %v6287 = vld [vmem:[%s5246 + $0x20] sm:$0xe]
    %v6288 = vld [vmem:[%s5246 + $0x24] sm:$0x1]
    %v6289 = vld [vmem:[%s5246 + $0x28] sm:$0xe]
    %v6290 = vld [vmem:[%s5246 + $0x2c] sm:$0x1]
    %v6291 = vld [vmem:[%s5246 + $0x30] sm:$0xe]
    %v6292 = vld [vmem:[%s5246 + $0x34] sm:$0x1]
    %v6293 = vld [vmem:[%s5246 + $0x38] sm:$0xe]
    %v6294 = vld [vmem:[%s5246 + $0x3c] sm:$0x1]
    %v6295 = vld [vmem:[%s5246 + $0x50] sm:$0xe]
    %v6296 = vld [vmem:[%s5246 + $0x54] sm:$0x1]
    %v6297 = vld [vmem:[%s5246 + $0x58] sm:$0xe]
    %v6298 = vld [vmem:[%s5246 + $0x5c] sm:$0x1]
    %v6299 = vld [vmem:[%s5246 + $0x60] sm:$0xe]
    %v6300 = vld [vmem:[%s5246 + $0x64] sm:$0x1]
    %v6301 = vld [vmem:[%s5246 + $0x68] sm:$0xe]
    %v6302 = vld [vmem:[%s5246 + $0x6c] sm:$0x1]
    %v6303 = vld [vmem:[%s5246 + $0x70] sm:$0xe]
    %v6304 = vld [vmem:[%s5246 + $0x74] sm:$0x1]
    %v6305 = vld [vmem:[%s5246 + $0x78] sm:$0xe]
    %v6306 = vld [vmem:[%s5246 + $0x7c] sm:$0x1]
    %v6307 = vld [vmem:[%s5246 + $0x80] sm:$0xe]
    %v6308 = vld [vmem:[%s5246 + $0x84] sm:$0x1]
    %v6309 = vld [vmem:[%s5246 + $0x88] sm:$0xe]
    %v6310 = vld [vmem:[%s5246 + $0x8c] sm:$0x1]
    %v6343 = vrot.slane %v6279, 5
    %v6344 = vrot.slane %v6343, 4
    %v6345 = vrot.slane %v6280, 5
    %v6346 = vsel %vm5764, %v6344, %v6345
    %v6347 = vrot.slane %v6281, 5
    %v6348 = vrot.slane %v6347, 4
    %v6349 = vrot.slane %v6282, 5
    %v6350 = vsel %vm5764, %v6348, %v6349
    %v6351 = vrot.slane %v6283, 5
    %v6352 = vrot.slane %v6351, 4
    %v6353 = vrot.slane %v6284, 5
    %v6354 = vsel %vm5764, %v6352, %v6353
    %v6355 = vrot.slane %v6285, 5
    %v6356 = vrot.slane %v6355, 4
    %v6357 = vrot.slane %v6286, 5
    %v6358 = vsel %vm5764, %v6356, %v6357
    %v6359 = vrot.slane %v6287, 5
    %v6360 = vrot.slane %v6359, 4
    %v6361 = vrot.slane %v6288, 5
    %v6362 = vsel %vm5764, %v6360, %v6361
    %v6363 = vrot.slane %v6289, 5
    %v6364 = vrot.slane %v6363, 4
    %v6365 = vrot.slane %v6290, 5
    %v6366 = vsel %vm5764, %v6364, %v6365
    %v6367 = vrot.slane %v6291, 5
    %v6368 = vrot.slane %v6367, 4
    %v6369 = vrot.slane %v6292, 5
    %v6370 = vsel %vm5764, %v6368, %v6369
    %v6371 = vrot.slane %v6293, 5
    %v6372 = vrot.slane %v6371, 4
    %v6373 = vrot.slane %v6294, 5
    %v6374 = vsel %vm5764, %v6372, %v6373
    %v6375 = vrot.slane %v6295, 5
    %v6376 = vrot.slane %v6375, 4
    %v6377 = vrot.slane %v6296, 5
    %v6378 = vsel %vm5764, %v6376, %v6377
    %v6379 = vrot.slane %v6297, 5
    %v6380 = vrot.slane %v6379, 4
    %v6381 = vrot.slane %v6298, 5
    %v6382 = vsel %vm5764, %v6380, %v6381
    %v6383 = vrot.slane %v6299, 5
    %v6384 = vrot.slane %v6383, 4
    %v6385 = vrot.slane %v6300, 5
    %v6386 = vsel %vm5764, %v6384, %v6385
    %v6387 = vrot.slane %v6301, 5
    %v6388 = vrot.slane %v6387, 4
    %v6389 = vrot.slane %v6302, 5
    %v6390 = vsel %vm5764, %v6388, %v6389
    %v6391 = vrot.slane %v6303, 5
    %v6392 = vrot.slane %v6391, 4
    %v6393 = vrot.slane %v6304, 5
    %v6394 = vsel %vm5764, %v6392, %v6393
    %v6395 = vrot.slane %v6305, 5
    %v6396 = vrot.slane %v6395, 4
    %v6397 = vrot.slane %v6306, 5
    %v6398 = vsel %vm5764, %v6396, %v6397
    %v6399 = vrot.slane %v6307, 5
    %v6400 = vrot.slane %v6399, 4
    %v6401 = vrot.slane %v6308, 5
    %v6402 = vsel %vm5764, %v6400, %v6401
    %v6403 = vrot.slane %v6309, 5
    %v6404 = vrot.slane %v6403, 4
    %v6405 = vrot.slane %v6310, 5
    %v6406 = vsel %vm5764, %v6404, %v6405
    %6407 = vrot.lane.b32.xlu0 %v6346, 32
    %v6408 = vpop.permute.xlu0 %6407
    %6409 = vrot.lane.b32.xlu0 %v6350, 32
    %v6410 = vpop.permute.xlu0 %6409
    %6411 = vrot.lane.b32.xlu0 %v6354, 32
    %v6412 = vpop.permute.xlu0 %6411
    %6413 = vrot.lane.b32.xlu0 %v6358, 32
    %v6414 = vpop.permute.xlu0 %6413
    %6415 = vrot.lane.b32.xlu0 %v6362, 32
    %v6416 = vpop.permute.xlu0 %6415
    %6417 = vrot.lane.b32.xlu0 %v6366, 32
    %v6418 = vpop.permute.xlu0 %6417
    %6419 = vrot.lane.b32.xlu0 %v6370, 32
    %v6420 = vpop.permute.xlu0 %6419
    %6421 = vrot.lane.b32.xlu0 %v6374, 32
    %v6422 = vpop.permute.xlu0 %6421
    %6423 = vrot.lane.b32.xlu0 %v6378, 32
    %v6424 = vpop.permute.xlu0 %6423
    %6425 = vrot.lane.b32.xlu0 %v6382, 32
    %v6426 = vpop.permute.xlu0 %6425
    %6427 = vrot.lane.b32.xlu0 %v6386, 32
    %v6428 = vpop.permute.xlu0 %6427
    %6429 = vrot.lane.b32.xlu0 %v6390, 32
    %v6430 = vpop.permute.xlu0 %6429
    %6431 = vrot.lane.b32.xlu0 %v6394, 32
    %v6432 = vpop.permute.xlu0 %6431
    %6433 = vrot.lane.b32.xlu0 %v6398, 32
    %v6434 = vpop.permute.xlu0 %6433
    %6435 = vrot.lane.b32.xlu0 %v6402, 32
    %v6436 = vpop.permute.xlu0 %6435
    %6437 = vrot.lane.b32.xlu0 %v6406, 32
    %v6438 = vpop.permute.xlu0 %6437
    %6455 = vst.msk [vmem:[#allocation5 + $0x4] sm:$0xf] %vm5681, %v6408
    %6456 = vst.msk [vmem:[#allocation5 + $0x10] sm:$0xf] %vm5681, %v6410
    %6457 = vst.msk [vmem:[#allocation5 + $0x1c] sm:$0xf] %vm5681, %v6412
    %6458 = vst.msk [vmem:[#allocation5 + $0x28] sm:$0xf] %vm5681, %v6414
    %6459 = vst.msk [vmem:[#allocation5 + $0x34] sm:$0xf] %vm5681, %v6416
    %6460 = vst.msk [vmem:[#allocation5 + $0x40] sm:$0xf] %vm5681, %v6418
    %6461 = vst.msk [vmem:[#allocation5 + $0x4c] sm:$0xf] %vm5681, %v6420
    %6462 = vst.msk [vmem:[#allocation5 + $0x58] sm:$0xf] %vm5681, %v6422
    %6463 = vst.msk [vmem:[#allocation5 + $0x64] sm:$0xf] %vm5681, %v6424
    %6464 = vst.msk [vmem:[#allocation5 + $0x70] sm:$0xf] %vm5681, %v6426
    %6465 = vst.msk [vmem:[#allocation5 + $0x7c] sm:$0xf] %vm5681, %v6428
    %6466 = vst.msk [vmem:[#allocation5 + $0x88] sm:$0xf] %vm5681, %v6430
    %6467 = vst.msk [vmem:[#allocation5 + $0x94] sm:$0xf] %vm5681, %v6432
    %6468 = vst.msk [vmem:[#allocation5 + $0xa0] sm:$0xf] %vm5681, %v6434
    %6469 = vst.msk [vmem:[#allocation5 + $0xac] sm:$0xf] %vm5681, %v6436
    %6470 = vst.msk [vmem:[#allocation5 + $0xb8] sm:$0xf] %vm5681, %v6438
    %s6471 = scalar_lea.vmem [#allocation3], 16
    %v6472 = vld [vmem:[%s6471] sm:$0xf]
    %v6473 = vld [vmem:[%s6471 + $0x8] sm:$0xf]
    %v6474 = vld [vmem:[%s6471 + $0x10] sm:$0xf]
    %v6475 = vld [vmem:[%s6471 + $0x18] sm:$0xf]
    %v6476 = vld [vmem:[%s6471 + $0x20] sm:$0xf]
    %v6477 = vld [vmem:[%s6471 + $0x28] sm:$0xf]
    %v6478 = vld [vmem:[%s6471 + $0x30] sm:$0xf]
    %v6479 = vld [vmem:[%s6471 + $0x38] sm:$0xf]
    %v6480 = vld [vmem:[%s6471 + $0x50] sm:$0xf]
    %v6481 = vld [vmem:[%s6471 + $0x58] sm:$0xf]
    %v6482 = vld [vmem:[%s6471 + $0x60] sm:$0xf]
    %v6483 = vld [vmem:[%s6471 + $0x68] sm:$0xf]
    %v6484 = vld [vmem:[%s6471 + $0x70] sm:$0xf]
    %v6485 = vld [vmem:[%s6471 + $0x78] sm:$0xf]
    %v6486 = vld [vmem:[%s6471 + $0x80] sm:$0xf]
    %v6487 = vld [vmem:[%s6471 + $0x88] sm:$0xf]
    %6504 = vrot.lane.b32.xlu0 %v6472, 64
    %v6505 = vpop.permute.xlu0 %6504
    %6506 = vrot.lane.b32.xlu0 %v6473, 64
    %v6507 = vpop.permute.xlu0 %6506
    %6508 = vrot.lane.b32.xlu0 %v6474, 64
    %v6509 = vpop.permute.xlu0 %6508
    %6510 = vrot.lane.b32.xlu0 %v6475, 64
    %v6511 = vpop.permute.xlu0 %6510
    %6512 = vrot.lane.b32.xlu0 %v6476, 64
    %v6513 = vpop.permute.xlu0 %6512
    %6514 = vrot.lane.b32.xlu0 %v6477, 64
    %v6515 = vpop.permute.xlu0 %6514
    %6516 = vrot.lane.b32.xlu0 %v6478, 64
    %v6517 = vpop.permute.xlu0 %6516
    %6518 = vrot.lane.b32.xlu0 %v6479, 64
    %v6519 = vpop.permute.xlu0 %6518
    %6520 = vrot.lane.b32.xlu0 %v6480, 64
    %v6521 = vpop.permute.xlu0 %6520
    %6522 = vrot.lane.b32.xlu0 %v6481, 64
    %v6523 = vpop.permute.xlu0 %6522
    %6524 = vrot.lane.b32.xlu0 %v6482, 64
    %v6525 = vpop.permute.xlu0 %6524
    %6526 = vrot.lane.b32.xlu0 %v6483, 64
    %v6527 = vpop.permute.xlu0 %6526
    %6528 = vrot.lane.b32.xlu0 %v6484, 64
    %v6529 = vpop.permute.xlu0 %6528
    %6530 = vrot.lane.b32.xlu0 %v6485, 64
    %v6531 = vpop.permute.xlu0 %6530
    %6532 = vrot.lane.b32.xlu0 %v6486, 64
    %v6533 = vpop.permute.xlu0 %6532
    %6534 = vrot.lane.b32.xlu0 %v6487, 64
    %v6535 = vpop.permute.xlu0 %6534
    %6552 = vst.msk [vmem:[#allocation5 + $0x4] sm:$0xf] %vm5877, %v6505
    %6553 = vst.msk [vmem:[#allocation5 + $0x10] sm:$0xf] %vm5877, %v6507
    %6554 = vst.msk [vmem:[#allocation5 + $0x1c] sm:$0xf] %vm5877, %v6509
    %6555 = vst.msk [vmem:[#allocation5 + $0x28] sm:$0xf] %vm5877, %v6511
    %6556 = vst.msk [vmem:[#allocation5 + $0x34] sm:$0xf] %vm5877, %v6513
    %6557 = vst.msk [vmem:[#allocation5 + $0x40] sm:$0xf] %vm5877, %v6515
    %6558 = vst.msk [vmem:[#allocation5 + $0x4c] sm:$0xf] %vm5877, %v6517
    %6559 = vst.msk [vmem:[#allocation5 + $0x58] sm:$0xf] %vm5877, %v6519
    %6560 = vst.msk [vmem:[#allocation5 + $0x64] sm:$0xf] %vm5877, %v6521
    %6561 = vst.msk [vmem:[#allocation5 + $0x70] sm:$0xf] %vm5877, %v6523
    %6562 = vst.msk [vmem:[#allocation5 + $0x7c] sm:$0xf] %vm5877, %v6525
    %6563 = vst.msk [vmem:[#allocation5 + $0x88] sm:$0xf] %vm5877, %v6527
    %6564 = vst.msk [vmem:[#allocation5 + $0x94] sm:$0xf] %vm5877, %v6529
    %6565 = vst.msk [vmem:[#allocation5 + $0xa0] sm:$0xf] %vm5877, %v6531
    %6566 = vst.msk [vmem:[#allocation5 + $0xac] sm:$0xf] %vm5877, %v6533
    %6567 = vst.msk [vmem:[#allocation5 + $0xb8] sm:$0xf] %vm5877, %v6535
    %v6568 = vld [vmem:[%s6471] sm:$0xf]
    %v6569 = vld [vmem:[%s6471 + $0x4] sm:$0x1]
    %v6570 = vld [vmem:[%s6471 + $0x8] sm:$0xf]
    %v6571 = vld [vmem:[%s6471 + $0xc] sm:$0x1]
    %v6572 = vld [vmem:[%s6471 + $0x10] sm:$0xf]
    %v6573 = vld [vmem:[%s6471 + $0x14] sm:$0x1]
    %v6574 = vld [vmem:[%s6471 + $0x18] sm:$0xf]
    %v6575 = vld [vmem:[%s6471 + $0x1c] sm:$0x1]
    %v6576 = vld [vmem:[%s6471 + $0x20] sm:$0xf]
    %v6577 = vld [vmem:[%s6471 + $0x24] sm:$0x1]
    %v6578 = vld [vmem:[%s6471 + $0x28] sm:$0xf]
    %v6579 = vld [vmem:[%s6471 + $0x2c] sm:$0x1]
    %v6580 = vld [vmem:[%s6471 + $0x30] sm:$0xf]
    %v6581 = vld [vmem:[%s6471 + $0x34] sm:$0x1]
    %v6582 = vld [vmem:[%s6471 + $0x38] sm:$0xf]
    %v6583 = vld [vmem:[%s6471 + $0x3c] sm:$0x1]
    %v6584 = vld [vmem:[%s6471 + $0x50] sm:$0xf]
    %v6585 = vld [vmem:[%s6471 + $0x54] sm:$0x1]
    %v6586 = vld [vmem:[%s6471 + $0x58] sm:$0xf]
    %v6587 = vld [vmem:[%s6471 + $0x5c] sm:$0x1]
    %v6588 = vld [vmem:[%s6471 + $0x60] sm:$0xf]
    %v6589 = vld [vmem:[%s6471 + $0x64] sm:$0x1]
    %v6590 = vld [vmem:[%s6471 + $0x68] sm:$0xf]
    %v6591 = vld [vmem:[%s6471 + $0x6c] sm:$0x1]
    %v6592 = vld [vmem:[%s6471 + $0x70] sm:$0xf]
    %v6593 = vld [vmem:[%s6471 + $0x74] sm:$0x1]
    %v6594 = vld [vmem:[%s6471 + $0x78] sm:$0xf]
    %v6595 = vld [vmem:[%s6471 + $0x7c] sm:$0x1]
    %v6596 = vld [vmem:[%s6471 + $0x80] sm:$0xf]
    %v6597 = vld [vmem:[%s6471 + $0x84] sm:$0x1]
    %v6598 = vld [vmem:[%s6471 + $0x88] sm:$0xf]
    %v6599 = vld [vmem:[%s6471 + $0x8c] sm:$0x1]
    %v6601 = vshrl.u32 %v6568, 16
    %v6603 = vrot.slane %v6601, 4
    %v6604 = vshll.u32 %v6568, 16
    %v6606 = vrot.slane %v6604, 5
    %v6607 = vor.u32 %v6603, %v6606
    %v6608 = vrot.slane %v6607, 4
    %v6610 = vshll.u32 %v6569, 16
    %v6612 = vrot.slane %v6610, 5
    %v6613 = vsel %vm2312, %v6608, %v6612
    %v6615 = vshrl.u32 %v6570, 16
    %v6617 = vrot.slane %v6615, 4
    %v6618 = vshll.u32 %v6570, 16
    %v6620 = vrot.slane %v6618, 5
    %v6621 = vor.u32 %v6617, %v6620
    %v6622 = vrot.slane %v6621, 4
    %v6624 = vshll.u32 %v6571, 16
    %v6626 = vrot.slane %v6624, 5
    %v6627 = vsel %vm2312, %v6622, %v6626
    %v6629 = vshrl.u32 %v6572, 16
    %v6631 = vrot.slane %v6629, 4
    %v6632 = vshll.u32 %v6572, 16
    %v6634 = vrot.slane %v6632, 5
    %v6635 = vor.u32 %v6631, %v6634
    %v6636 = vrot.slane %v6635, 4
    %v6638 = vshll.u32 %v6573, 16
    %v6640 = vrot.slane %v6638, 5
    %v6641 = vsel %vm2312, %v6636, %v6640
    %v6643 = vshrl.u32 %v6574, 16
    %v6645 = vrot.slane %v6643, 4
    %v6646 = vshll.u32 %v6574, 16
    %v6648 = vrot.slane %v6646, 5
    %v6649 = vor.u32 %v6645, %v6648
    %v6650 = vrot.slane %v6649, 4
    %v6652 = vshll.u32 %v6575, 16
    %v6654 = vrot.slane %v6652, 5
    %v6655 = vsel %vm2312, %v6650, %v6654
    %v6657 = vshrl.u32 %v6576, 16
    %v6659 = vrot.slane %v6657, 4
    %v6660 = vshll.u32 %v6576, 16
    %v6662 = vrot.slane %v6660, 5
    %v6663 = vor.u32 %v6659, %v6662
    %v6664 = vrot.slane %v6663, 4
    %v6666 = vshll.u32 %v6577, 16
    %v6668 = vrot.slane %v6666, 5
    %v6669 = vsel %vm2312, %v6664, %v6668
    %v6671 = vshrl.u32 %v6578, 16
    %v6673 = vrot.slane %v6671, 4
    %v6674 = vshll.u32 %v6578, 16
    %v6676 = vrot.slane %v6674, 5
    %v6677 = vor.u32 %v6673, %v6676
    %v6678 = vrot.slane %v6677, 4
    %v6680 = vshll.u32 %v6579, 16
    %v6682 = vrot.slane %v6680, 5
    %v6683 = vsel %vm2312, %v6678, %v6682
    %v6685 = vshrl.u32 %v6580, 16
    %v6687 = vrot.slane %v6685, 4
    %v6688 = vshll.u32 %v6580, 16
    %v6690 = vrot.slane %v6688, 5
    %v6691 = vor.u32 %v6687, %v6690
    %v6692 = vrot.slane %v6691, 4
    %v6694 = vshll.u32 %v6581, 16
    %v6696 = vrot.slane %v6694, 5
    %v6697 = vsel %vm2312, %v6692, %v6696
    %v6699 = vshrl.u32 %v6582, 16
    %v6701 = vrot.slane %v6699, 4
    %v6702 = vshll.u32 %v6582, 16
    %v6704 = vrot.slane %v6702, 5
    %v6705 = vor.u32 %v6701, %v6704
    %v6706 = vrot.slane %v6705, 4
    %v6708 = vshll.u32 %v6583, 16
    %v6710 = vrot.slane %v6708, 5
    %v6711 = vsel %vm2312, %v6706, %v6710
    %v6713 = vshrl.u32 %v6584, 16
    %v6715 = vrot.slane %v6713, 4
    %v6716 = vshll.u32 %v6584, 16
    %v6718 = vrot.slane %v6716, 5
    %v6719 = vor.u32 %v6715, %v6718
    %v6720 = vrot.slane %v6719, 4
    %v6722 = vshll.u32 %v6585, 16
    %v6724 = vrot.slane %v6722, 5
    %v6725 = vsel %vm2312, %v6720, %v6724
    %v6727 = vshrl.u32 %v6586, 16
    %v6729 = vrot.slane %v6727, 4
    %v6730 = vshll.u32 %v6586, 16
    %v6732 = vrot.slane %v6730, 5
    %v6733 = vor.u32 %v6729, %v6732
    %v6734 = vrot.slane %v6733, 4
    %v6736 = vshll.u32 %v6587, 16
    %v6738 = vrot.slane %v6736, 5
    %v6739 = vsel %vm2312, %v6734, %v6738
    %v6741 = vshrl.u32 %v6588, 16
    %v6743 = vrot.slane %v6741, 4
    %v6744 = vshll.u32 %v6588, 16
    %v6746 = vrot.slane %v6744, 5
    %v6747 = vor.u32 %v6743, %v6746
    %v6748 = vrot.slane %v6747, 4
    %v6750 = vshll.u32 %v6589, 16
    %v6752 = vrot.slane %v6750, 5
    %v6753 = vsel %vm2312, %v6748, %v6752
    %v6755 = vshrl.u32 %v6590, 16
    %v6757 = vrot.slane %v6755, 4
    %v6758 = vshll.u32 %v6590, 16
    %v6760 = vrot.slane %v6758, 5
    %v6761 = vor.u32 %v6757, %v6760
    %v6762 = vrot.slane %v6761, 4
    %v6764 = vshll.u32 %v6591, 16
    %v6766 = vrot.slane %v6764, 5
    %v6767 = vsel %vm2312, %v6762, %v6766
    %v6769 = vshrl.u32 %v6592, 16
    %v6771 = vrot.slane %v6769, 4
    %v6772 = vshll.u32 %v6592, 16
    %v6774 = vrot.slane %v6772, 5
    %v6775 = vor.u32 %v6771, %v6774
    %v6776 = vrot.slane %v6775, 4
    %v6778 = vshll.u32 %v6593, 16
    %v6780 = vrot.slane %v6778, 5
    %v6781 = vsel %vm2312, %v6776, %v6780
    %v6783 = vshrl.u32 %v6594, 16
    %v6785 = vrot.slane %v6783, 4
    %v6786 = vshll.u32 %v6594, 16
    %v6788 = vrot.slane %v6786, 5
    %v6789 = vor.u32 %v6785, %v6788
    %v6790 = vrot.slane %v6789, 4
    %v6792 = vshll.u32 %v6595, 16
    %v6794 = vrot.slane %v6792, 5
    %v6795 = vsel %vm2312, %v6790, %v6794
    %v6797 = vshrl.u32 %v6596, 16
    %v6799 = vrot.slane %v6797, 4
    %v6800 = vshll.u32 %v6596, 16
    %v6802 = vrot.slane %v6800, 5
    %v6803 = vor.u32 %v6799, %v6802
    %v6804 = vrot.slane %v6803, 4
    %v6806 = vshll.u32 %v6597, 16
    %v6808 = vrot.slane %v6806, 5
    %v6809 = vsel %vm2312, %v6804, %v6808
    %v6811 = vshrl.u32 %v6598, 16
    %v6813 = vrot.slane %v6811, 4
    %v6814 = vshll.u32 %v6598, 16
    %v6816 = vrot.slane %v6814, 5
    %v6817 = vor.u32 %v6813, %v6816
    %v6818 = vrot.slane %v6817, 4
    %v6820 = vshll.u32 %v6599, 16
    %v6822 = vrot.slane %v6820, 5
    %v6823 = vsel %vm2312, %v6818, %v6822
    %6824 = vrot.lane.b32.xlu0 %v6613, 96
    %v6825 = vpop.permute.xlu0 %6824
    %6826 = vrot.lane.b32.xlu0 %v6627, 96
    %v6827 = vpop.permute.xlu0 %6826
    %6828 = vrot.lane.b32.xlu0 %v6641, 96
    %v6829 = vpop.permute.xlu0 %6828
    %6830 = vrot.lane.b32.xlu0 %v6655, 96
    %v6831 = vpop.permute.xlu0 %6830
    %6832 = vrot.lane.b32.xlu0 %v6669, 96
    %v6833 = vpop.permute.xlu0 %6832
    %6834 = vrot.lane.b32.xlu0 %v6683, 96
    %v6835 = vpop.permute.xlu0 %6834
    %6836 = vrot.lane.b32.xlu0 %v6697, 96
    %v6837 = vpop.permute.xlu0 %6836
    %6838 = vrot.lane.b32.xlu0 %v6711, 96
    %v6839 = vpop.permute.xlu0 %6838
    %6840 = vrot.lane.b32.xlu0 %v6725, 96
    %v6841 = vpop.permute.xlu0 %6840
    %6842 = vrot.lane.b32.xlu0 %v6739, 96
    %v6843 = vpop.permute.xlu0 %6842
    %6844 = vrot.lane.b32.xlu0 %v6753, 96
    %v6845 = vpop.permute.xlu0 %6844
    %6846 = vrot.lane.b32.xlu0 %v6767, 96
    %v6847 = vpop.permute.xlu0 %6846
    %6848 = vrot.lane.b32.xlu0 %v6781, 96
    %v6849 = vpop.permute.xlu0 %6848
    %6850 = vrot.lane.b32.xlu0 %v6795, 96
    %v6851 = vpop.permute.xlu0 %6850
    %6852 = vrot.lane.b32.xlu0 %v6809, 96
    %v6853 = vpop.permute.xlu0 %6852
    %6854 = vrot.lane.b32.xlu0 %v6823, 96
    %v6855 = vpop.permute.xlu0 %6854
    %6872 = vst.msk [vmem:[#allocation5 + $0x4] sm:$0xf] %vm5974, %v6825
    %6873 = vst.msk [vmem:[#allocation5 + $0x10] sm:$0xf] %vm5974, %v6827
    %6874 = vst.msk [vmem:[#allocation5 + $0x1c] sm:$0xf] %vm5974, %v6829
    %6875 = vst.msk [vmem:[#allocation5 + $0x28] sm:$0xf] %vm5974, %v6831
    %6876 = vst.msk [vmem:[#allocation5 + $0x34] sm:$0xf] %vm5974, %v6833
    %6877 = vst.msk [vmem:[#allocation5 + $0x40] sm:$0xf] %vm5974, %v6835
    %6878 = vst.msk [vmem:[#allocation5 + $0x4c] sm:$0xf] %vm5974, %v6837
    %6879 = vst.msk [vmem:[#allocation5 + $0x58] sm:$0xf] %vm5974, %v6839
    %6880 = vst.msk [vmem:[#allocation5 + $0x64] sm:$0xf] %vm5974, %v6841
    %6881 = vst.msk [vmem:[#allocation5 + $0x70] sm:$0xf] %vm5974, %v6843
    %6882 = vst.msk [vmem:[#allocation5 + $0x7c] sm:$0xf] %vm5974, %v6845
    %6883 = vst.msk [vmem:[#allocation5 + $0x88] sm:$0xf] %vm5974, %v6847
    %6884 = vst.msk [vmem:[#allocation5 + $0x94] sm:$0xf] %vm5974, %v6849
    %6885 = vst.msk [vmem:[#allocation5 + $0xa0] sm:$0xf] %vm5974, %v6851
    %6886 = vst.msk [vmem:[#allocation5 + $0xac] sm:$0xf] %vm5974, %v6853
    %6887 = vst.msk [vmem:[#allocation5 + $0xb8] sm:$0xf] %vm5974, %v6855
    %v6888 = vld [vmem:[%s6471] sm:$0xe]
    %v6889 = vld [vmem:[%s6471 + $0x4] sm:$0x1]
    %v6890 = vld [vmem:[%s6471 + $0x8] sm:$0xe]
    %v6891 = vld [vmem:[%s6471 + $0xc] sm:$0x1]
    %v6892 = vld [vmem:[%s6471 + $0x10] sm:$0xe]
    %v6893 = vld [vmem:[%s6471 + $0x14] sm:$0x1]
    %v6894 = vld [vmem:[%s6471 + $0x18] sm:$0xe]
    %v6895 = vld [vmem:[%s6471 + $0x1c] sm:$0x1]
    %v6896 = vld [vmem:[%s6471 + $0x20] sm:$0xe]
    %v6897 = vld [vmem:[%s6471 + $0x24] sm:$0x1]
    %v6898 = vld [vmem:[%s6471 + $0x28] sm:$0xe]
    %v6899 = vld [vmem:[%s6471 + $0x2c] sm:$0x1]
    %v6900 = vld [vmem:[%s6471 + $0x30] sm:$0xe]
    %v6901 = vld [vmem:[%s6471 + $0x34] sm:$0x1]
    %v6902 = vld [vmem:[%s6471 + $0x38] sm:$0xe]
    %v6903 = vld [vmem:[%s6471 + $0x3c] sm:$0x1]
    %v6904 = vld [vmem:[%s6471 + $0x50] sm:$0xe]
    %v6905 = vld [vmem:[%s6471 + $0x54] sm:$0x1]
    %v6906 = vld [vmem:[%s6471 + $0x58] sm:$0xe]
    %v6907 = vld [vmem:[%s6471 + $0x5c] sm:$0x1]
    %v6908 = vld [vmem:[%s6471 + $0x60] sm:$0xe]
    %v6909 = vld [vmem:[%s6471 + $0x64] sm:$0x1]
    %v6910 = vld [vmem:[%s6471 + $0x68] sm:$0xe]
    %v6911 = vld [vmem:[%s6471 + $0x6c] sm:$0x1]
    %v6912 = vld [vmem:[%s6471 + $0x70] sm:$0xe]
    %v6913 = vld [vmem:[%s6471 + $0x74] sm:$0x1]
    %v6914 = vld [vmem:[%s6471 + $0x78] sm:$0xe]
    %v6915 = vld [vmem:[%s6471 + $0x7c] sm:$0x1]
    %v6916 = vld [vmem:[%s6471 + $0x80] sm:$0xe]
    %v6917 = vld [vmem:[%s6471 + $0x84] sm:$0x1]
    %v6918 = vld [vmem:[%s6471 + $0x88] sm:$0xe]
    %v6919 = vld [vmem:[%s6471 + $0x8c] sm:$0x1]
    %v6952 = vrot.slane %v6888, 5
    %v6953 = vrot.slane %v6952, 4
    %v6954 = vrot.slane %v6889, 5
    %v6955 = vsel %vm5764, %v6953, %v6954
    %v6956 = vrot.slane %v6890, 5
    %v6957 = vrot.slane %v6956, 4
    %v6958 = vrot.slane %v6891, 5
    %v6959 = vsel %vm5764, %v6957, %v6958
    %v6960 = vrot.slane %v6892, 5
    %v6961 = vrot.slane %v6960, 4
    %v6962 = vrot.slane %v6893, 5
    %v6963 = vsel %vm5764, %v6961, %v6962
    %v6964 = vrot.slane %v6894, 5
    %v6965 = vrot.slane %v6964, 4
    %v6966 = vrot.slane %v6895, 5
    %v6967 = vsel %vm5764, %v6965, %v6966
    %v6968 = vrot.slane %v6896, 5
    %v6969 = vrot.slane %v6968, 4
    %v6970 = vrot.slane %v6897, 5
    %v6971 = vsel %vm5764, %v6969, %v6970
    %v6972 = vrot.slane %v6898, 5
    %v6973 = vrot.slane %v6972, 4
    %v6974 = vrot.slane %v6899, 5
    %v6975 = vsel %vm5764, %v6973, %v6974
    %v6976 = vrot.slane %v6900, 5
    %v6977 = vrot.slane %v6976, 4
    %v6978 = vrot.slane %v6901, 5
    %v6979 = vsel %vm5764, %v6977, %v6978
    %v6980 = vrot.slane %v6902, 5
    %v6981 = vrot.slane %v6980, 4
    %v6982 = vrot.slane %v6903, 5
    %v6983 = vsel %vm5764, %v6981, %v6982
    %v6984 = vrot.slane %v6904, 5
    %v6985 = vrot.slane %v6984, 4
    %v6986 = vrot.slane %v6905, 5
    %v6987 = vsel %vm5764, %v6985, %v6986
    %v6988 = vrot.slane %v6906, 5
    %v6989 = vrot.slane %v6988, 4
    %v6990 = vrot.slane %v6907, 5
    %v6991 = vsel %vm5764, %v6989, %v6990
    %v6992 = vrot.slane %v6908, 5
    %v6993 = vrot.slane %v6992, 4
    %v6994 = vrot.slane %v6909, 5
    %v6995 = vsel %vm5764, %v6993, %v6994
    %v6996 = vrot.slane %v6910, 5
    %v6997 = vrot.slane %v6996, 4
    %v6998 = vrot.slane %v6911, 5
    %v6999 = vsel %vm5764, %v6997, %v6998
    %v7000 = vrot.slane %v6912, 5
    %v7001 = vrot.slane %v7000, 4
    %v7002 = vrot.slane %v6913, 5
    %v7003 = vsel %vm5764, %v7001, %v7002
    %v7004 = vrot.slane %v6914, 5
    %v7005 = vrot.slane %v7004, 4
    %v7006 = vrot.slane %v6915, 5
    %v7007 = vsel %vm5764, %v7005, %v7006
    %v7008 = vrot.slane %v6916, 5
    %v7009 = vrot.slane %v7008, 4
    %v7010 = vrot.slane %v6917, 5
    %v7011 = vsel %vm5764, %v7009, %v7010
    %v7012 = vrot.slane %v6918, 5
    %v7013 = vrot.slane %v7012, 4
    %v7014 = vrot.slane %v6919, 5
    %v7015 = vsel %vm5764, %v7013, %v7014
    %7032 = vst.msk [vmem:[#allocation5 + $0x8] sm:$0xf] %vm4952, %v6955
    %7033 = vst.msk [vmem:[#allocation5 + $0x14] sm:$0xf] %vm4952, %v6959
    %7034 = vst.msk [vmem:[#allocation5 + $0x20] sm:$0xf] %vm4952, %v6963
    %7035 = vst.msk [vmem:[#allocation5 + $0x2c] sm:$0xf] %vm4952, %v6967
    %7036 = vst.msk [vmem:[#allocation5 + $0x38] sm:$0xf] %vm4952, %v6971
    %7037 = vst.msk [vmem:[#allocation5 + $0x44] sm:$0xf] %vm4952, %v6975
    %7038 = vst.msk [vmem:[#allocation5 + $0x50] sm:$0xf] %vm4952, %v6979
    %7039 = vst.msk [vmem:[#allocation5 + $0x5c] sm:$0xf] %vm4952, %v6983
    %7040 = vst.msk [vmem:[#allocation5 + $0x68] sm:$0xf] %vm4952, %v6987
    %7041 = vst.msk [vmem:[#allocation5 + $0x74] sm:$0xf] %vm4952, %v6991
    %7042 = vst.msk [vmem:[#allocation5 + $0x80] sm:$0xf] %vm4952, %v6995
    %7043 = vst.msk [vmem:[#allocation5 + $0x8c] sm:$0xf] %vm4952, %v6999
    %7044 = vst.msk [vmem:[#allocation5 + $0x98] sm:$0xf] %vm4952, %v7003
    %7045 = vst.msk [vmem:[#allocation5 + $0xa4] sm:$0xf] %vm4952, %v7007
    %7046 = vst.msk [vmem:[#allocation5 + $0xb0] sm:$0xf] %vm4952, %v7011
    %7047 = vst.msk [vmem:[#allocation5 + $0xbc] sm:$0xf] %vm4952, %v7015
    %v7048 = vld [vmem:[#allocation5] sm:$0xff]
    %v7049 = vld [vmem:[#allocation5 + $0x8] sm:$0xf]
    %v7050 = vld [vmem:[#allocation5 + $0xc] sm:$0xff]
    %v7051 = vld [vmem:[#allocation5 + $0x14] sm:$0xf]
    %v7052 = vld [vmem:[#allocation5 + $0x18] sm:$0xff]
    %v7053 = vld [vmem:[#allocation5 + $0x20] sm:$0xf]
    %v7054 = vld [vmem:[#allocation5 + $0x24] sm:$0xff]
    %v7055 = vld [vmem:[#allocation5 + $0x2c] sm:$0xf]
    %v7056 = vld [vmem:[#allocation5 + $0x30] sm:$0xff]
    %v7057 = vld [vmem:[#allocation5 + $0x38] sm:$0xf]
    %v7058 = vld [vmem:[#allocation5 + $0x3c] sm:$0xff]
    %v7059 = vld [vmem:[#allocation5 + $0x44] sm:$0xf]
    %v7060 = vld [vmem:[#allocation5 + $0x48] sm:$0xff]
    %v7061 = vld [vmem:[#allocation5 + $0x50] sm:$0xf]
    %v7062 = vld [vmem:[#allocation5 + $0x54] sm:$0xff]
    %v7063 = vld [vmem:[#allocation5 + $0x5c] sm:$0xf]
    %v7064 = vld [vmem:[#allocation5 + $0x60] sm:$0xff]
    %v7065 = vld [vmem:[#allocation5 + $0x68] sm:$0xf]
    %v7066 = vld [vmem:[#allocation5 + $0x6c] sm:$0xff]
    %v7067 = vld [vmem:[#allocation5 + $0x74] sm:$0xf]
    %v7068 = vld [vmem:[#allocation5 + $0x78] sm:$0xff]
    %v7069 = vld [vmem:[#allocation5 + $0x80] sm:$0xf]
    %v7070 = vld [vmem:[#allocation5 + $0x84] sm:$0xff]
    %v7071 = vld [vmem:[#allocation5 + $0x8c] sm:$0xf]
    %v7072 = vld [vmem:[#allocation5 + $0x90] sm:$0xff]
    %v7073 = vld [vmem:[#allocation5 + $0x98] sm:$0xf]
    %v7074 = vld [vmem:[#allocation5 + $0x9c] sm:$0xff]
    %v7075 = vld [vmem:[#allocation5 + $0xa4] sm:$0xf]
    %v7076 = vld [vmem:[#allocation5 + $0xa8] sm:$0xff]
    %v7077 = vld [vmem:[#allocation5 + $0xb0] sm:$0xf]
    %v7078 = vld [vmem:[#allocation5 + $0xb4] sm:$0xff]
    %v7079 = vld [vmem:[#allocation5 + $0xbc] sm:$0xf]
    %v7080 = vld [vmem:[%s6] sm:$0xf]
    %v7081 = vld [vmem:[%s6 + $0x4] sm:$0xf]
    %v7082 = vld [vmem:[%s6 + $0x8] sm:$0xf]
    %v7083 = vld [vmem:[%s6 + $0xc] sm:$0xf]
    %v7084 = vld [vmem:[%s6 + $0x10] sm:$0xf]
    %v7085 = vld [vmem:[%s6 + $0x14] sm:$0xf]
    %v7086 = vld [vmem:[%s6 + $0x18] sm:$0xf]
    %v7087 = vld [vmem:[%s6 + $0x1c] sm:$0xf]
    %v7088 = vld [vmem:[%s6 + $0x20] sm:$0xf]
    %v7089 = vld [vmem:[%s6 + $0x24] sm:$0xf]
    %v7090 = vld [vmem:[%s6 + $0x28] sm:$0xf]
    %v7091 = vld [vmem:[%s6 + $0x2c] sm:$0xf]
    %v7092 = vld [vmem:[%s6 + $0x30] sm:$0xf]
    %v7093 = vld [vmem:[%s6 + $0x34] sm:$0xf]
    %v7094 = vld [vmem:[%s6 + $0x38] sm:$0xf]
    %v7095 = vld [vmem:[%s6 + $0x3c] sm:$0xf]
    %v7096 = vld [vmem:[%s6 + $0x40] sm:$0xf]
    %v7097 = vld [vmem:[%s6 + $0x44] sm:$0xf]
    %v7098 = vld [vmem:[%s6 + $0x48] sm:$0xf]
    %v7099 = vld [vmem:[%s6 + $0x4c] sm:$0xf]
    %v7100 = vld [vmem:[%s6 + $0x50] sm:$0xf]
    %v7101 = vld [vmem:[%s6 + $0x54] sm:$0xf]
    %v7102 = vld [vmem:[%s6 + $0x58] sm:$0xf]
    %v7103 = vld [vmem:[%s6 + $0x5c] sm:$0xf]
    %v7104 = vld [vmem:[%s6 + $0x60] sm:$0xf]
    %v7105 = vld [vmem:[%s6 + $0x64] sm:$0xf]
    %v7106 = vld [vmem:[%s6 + $0x68] sm:$0xf]
    %v7107 = vld [vmem:[%s6 + $0x6c] sm:$0xf]
    %v7108 = vld [vmem:[%s6 + $0x70] sm:$0xf]
    %v7109 = vld [vmem:[%s6 + $0x74] sm:$0xf]
    %v7110 = vld [vmem:[%s6 + $0x78] sm:$0xf]
    %v7111 = vld [vmem:[%s6 + $0x7c] sm:$0xf]
    %v7112 = vld [vmem:[%s6 + $0x80] sm:$0xf]
    %v7113 = vld [vmem:[%s6 + $0x84] sm:$0xf]
    %v7114 = vld [vmem:[%s6 + $0x88] sm:$0xf]
    %v7115 = vld [vmem:[%s6 + $0x8c] sm:$0xf]
    %v7148 = vunpack.c.l.b16 %v7048
    %v7149 = vunpack.c.h.b16 %v7048
    %v7150 = vunpack.c.l.b16 %v7049
    %v7151 = vunpack.c.l.b16 %v7050
    %v7152 = vunpack.c.h.b16 %v7050
    %v7153 = vunpack.c.l.b16 %v7051
    %v7154 = vunpack.c.l.b16 %v7052
    %v7155 = vunpack.c.h.b16 %v7052
    %v7156 = vunpack.c.l.b16 %v7053
    %v7157 = vunpack.c.l.b16 %v7054
    %v7158 = vunpack.c.h.b16 %v7054
    %v7159 = vunpack.c.l.b16 %v7055
    %v7160 = vunpack.c.l.b16 %v7056
    %v7161 = vunpack.c.h.b16 %v7056
    %v7162 = vunpack.c.l.b16 %v7057
    %v7163 = vunpack.c.l.b16 %v7058
    %v7164 = vunpack.c.h.b16 %v7058
    %v7165 = vunpack.c.l.b16 %v7059
    %v7166 = vunpack.c.l.b16 %v7060
    %v7167 = vunpack.c.h.b16 %v7060
    %v7168 = vunpack.c.l.b16 %v7061
    %v7169 = vunpack.c.l.b16 %v7062
    %v7170 = vunpack.c.h.b16 %v7062
    %v7171 = vunpack.c.l.b16 %v7063
    %v7172 = vunpack.c.l.b16 %v7064
    %v7173 = vunpack.c.h.b16 %v7064
    %v7174 = vunpack.c.l.b16 %v7065
    %v7175 = vunpack.c.l.b16 %v7066
    %v7176 = vunpack.c.h.b16 %v7066
    %v7177 = vunpack.c.l.b16 %v7067
    %v7178 = vunpack.c.l.b16 %v7068
    %v7179 = vunpack.c.h.b16 %v7068
    %v7180 = vunpack.c.l.b16 %v7069
    %v7181 = vunpack.c.l.b16 %v7070
    %v7182 = vunpack.c.h.b16 %v7070
    %v7183 = vunpack.c.l.b16 %v7071
    %v7184 = vunpack.c.l.b16 %v7072
    %v7185 = vunpack.c.h.b16 %v7072
    %v7186 = vunpack.c.l.b16 %v7073
    %v7187 = vunpack.c.l.b16 %v7074
    %v7188 = vunpack.c.h.b16 %v7074
    %v7189 = vunpack.c.l.b16 %v7075
    %v7190 = vunpack.c.l.b16 %v7076
    %v7191 = vunpack.c.h.b16 %v7076
    %v7192 = vunpack.c.l.b16 %v7077
    %v7193 = vunpack.c.l.b16 %v7078
    %v7194 = vunpack.c.h.b16 %v7078
    %v7195 = vunpack.c.l.b16 %v7079
    %v7196 = vpack.c.b16 %v7151, %v7148
    %v7197 = vpack.c.b16 %v7152, %v7149
    %v7198 = vpack.c.b16 %v7153, %v7150
    %v7199 = vpack.c.b16 %v7157, %v7154
    %v7200 = vpack.c.b16 %v7158, %v7155
    %v7201 = vpack.c.b16 %v7159, %v7156
    %v7202 = vpack.c.b16 %v7163, %v7160
    %v7203 = vpack.c.b16 %v7164, %v7161
    %v7204 = vpack.c.b16 %v7165, %v7162
    %v7205 = vpack.c.b16 %v7169, %v7166
    %v7206 = vpack.c.b16 %v7170, %v7167
    %v7207 = vpack.c.b16 %v7171, %v7168
    %v7208 = vpack.c.b16 %v7175, %v7172
    %v7209 = vpack.c.b16 %v7176, %v7173
    %v7210 = vpack.c.b16 %v7177, %v7174
    %v7211 = vpack.c.b16 %v7181, %v7178
    %v7212 = vpack.c.b16 %v7182, %v7179
    %v7213 = vpack.c.b16 %v7183, %v7180
    %v7214 = vpack.c.b16 %v7187, %v7184
    %v7215 = vpack.c.b16 %v7188, %v7185
    %v7216 = vpack.c.b16 %v7189, %v7186
    %v7217 = vpack.c.b16 %v7193, %v7190
    %v7218 = vpack.c.b16 %v7194, %v7191
    %v7219 = vpack.c.b16 %v7195, %v7192
    %v7272 = vunpack.c.l.b16 %v7080
    %v7273 = vunpack.c.l.b16 %v7081
    %v7274 = vunpack.c.l.b16 %v7082
    %v7275 = vunpack.c.l.b16 %v7083
    %v7276 = vunpack.c.l.b16 %v7084
    %v7277 = vunpack.c.l.b16 %v7085
    %v7278 = vunpack.c.l.b16 %v7086
    %v7279 = vunpack.c.l.b16 %v7087
    %v7280 = vunpack.c.l.b16 %v7088
    %v7281 = vunpack.c.l.b16 %v7089
    %v7282 = vunpack.c.l.b16 %v7090
    %v7283 = vunpack.c.l.b16 %v7091
    %v7284 = vunpack.c.l.b16 %v7092
    %v7285 = vunpack.c.l.b16 %v7093
    %v7286 = vunpack.c.l.b16 %v7094
    %v7287 = vunpack.c.l.b16 %v7095
    %v7288 = vunpack.c.l.b16 %v7096
    %v7289 = vunpack.c.l.b16 %v7097
    %v7290 = vunpack.c.l.b16 %v7098
    %v7291 = vunpack.c.l.b16 %v7099
    %v7292 = vunpack.c.l.b16 %v7100
    %v7293 = vunpack.c.l.b16 %v7101
    %v7294 = vunpack.c.l.b16 %v7102
    %v7295 = vunpack.c.l.b16 %v7103
    %v7296 = vunpack.c.l.b16 %v7104
    %v7297 = vunpack.c.l.b16 %v7105
    %v7298 = vunpack.c.l.b16 %v7106
    %v7299 = vunpack.c.l.b16 %v7107
    %v7300 = vunpack.c.l.b16 %v7108
    %v7301 = vunpack.c.l.b16 %v7109
    %v7302 = vunpack.c.l.b16 %v7110
    %v7303 = vunpack.c.l.b16 %v7111
    %v7304 = vunpack.c.l.b16 %v7112
    %v7305 = vunpack.c.l.b16 %v7113
    %v7306 = vunpack.c.l.b16 %v7114
    %v7307 = vunpack.c.l.b16 %v7115
    %v7308 = vpack.c.b16 %v7273, %v7272
    %v7309 = vpack.c.b16 %v7275, %v7274
    %v7310 = vpack.c.b16 %v7277, %v7276
    %v7311 = vpack.c.b16 %v7279, %v7278
    %v7312 = vpack.c.b16 %v7281, %v7280
    %v7313 = vpack.c.b16 %v7283, %v7282
    %v7314 = vpack.c.b16 %v7285, %v7284
    %v7315 = vpack.c.b16 %v7287, %v7286
    %v7316 = vpack.c.b16 %v7289, %v7288
    %v7317 = vpack.c.b16 %v7291, %v7290
    %v7318 = vpack.c.b16 %v7293, %v7292
    %v7319 = vpack.c.b16 %v7295, %v7294
    %v7320 = vpack.c.b16 %v7297, %v7296
    %v7321 = vpack.c.b16 %v7299, %v7298
    %v7322 = vpack.c.b16 %v7301, %v7300
    %v7323 = vpack.c.b16 %v7303, %v7302
    %v7324 = vpack.c.b16 %v7305, %v7304
    %v7325 = vpack.c.b16 %v7307, %v7306
    %v7345 = vsel %vm4716, %v7198, 0
    %v7348 = vsel %vm4716, %v7201, 0
    %v7351 = vsel %vm4716, %v7204, 0
    %v7354 = vsel %vm4716, %v7207, 0
    %v7357 = vsel %vm4716, %v7210, 0
    %v7360 = vsel %vm4716, %v7213, 0
    %v7363 = vsel %vm4716, %v7216, 0
    %v7366 = vsel %vm4716, %v7219, 0
    %7368 = vmatprep.subr.bf16.mxu0 0
    %7369 = vmatpush1.bf16.msra.mxu0 %v7308
    %7370 = vmatprep.subr.bf16.mxu0 0
    %7371 = vmatpush1.bf16.msra.mxu0 %v7309
    %7372 = vmatprep.subr.bf16.mxu0 0
    %7373 = vmatpush1.bf16.msra.mxu0 %v7310
    %7374 = vmatprep.subr.bf16.mxu0 0
    %7375 = vmatpush1.bf16.msra.mxu0 %v7311
    %7376 = vmatprep.subr.bf16.mxu0 0
    %7377 = vmatpush1.bf16.msra.mxu0 %v7312
    %7378 = vmatprep.subr.bf16.mxu0 0
    %7379 = vmatpush1.bf16.msra.mxu0 %v7313
    %7380 = vmatprep.subr.bf16.mxu0 0
    %7381 = vmatpush1.bf16.msra.mxu0 %v7314
    %7382 = vmatprep.subr.bf16.mxu0 0
    %7383 = vmatpush1.bf16.msra.mxu0 %v7315
    %7384 = vmatprep.subr.bf16.mxu0 0
    %7385 = vmatpush1.bf16.msra.mxu0 %v7316
    %7386 = vmatprep.subr.bf16.mxu0 0
    %7387 = vmatpush1.bf16.msra.mxu0 %v7317
    %7388 = vmatprep.subr.bf16.mxu0 0
    %7389 = vmatpush1.bf16.msra.mxu0 %v7318
    %7390 = vmatprep.subr.bf16.mxu0 0
    %7391 = vmatpush1.bf16.msra.mxu0 %v7319
    %7392 = vmatprep.subr.bf16.mxu0 0
    %7393 = vmatpush1.bf16.msra.mxu0 %v7320
    %7394 = vmatprep.subr.bf16.mxu0 0
    %7395 = vmatpush1.bf16.msra.mxu0 %v7321
    %7396 = vmatprep.subr.bf16.mxu0 0
    %7397 = vmatpush1.bf16.msra.mxu0 %v7322
    %7398 = vmatprep.subr.bf16.mxu0 0
    %7399 = vmatpush1.bf16.msra.mxu0 %v7323
    %7400 = vmatprep.mubr.bf16.mxu0 %v7197
    %7401 = vmatmul.mubr.bf16.gmra.mrb[0].mxu0 %v7196
    %v7402 = vpop.f32.mrb[0].mxu0
    %v7403 = vadd.f32 0.0, %v7402
    %v7404 = vpop.f32.mrb[0].mxu0
    %v7405 = vpop.f32.mrb[0].mxu0
    %v7406 = vadd.f32 0.0, %v7405
    %v7407 = vpop.f32.mrb[0].mxu0
    %7408 = vmatprep.mubr.bf16.mxu0 %v7200
    %7409 = vmatmul.mubr.bf16.gmra.mrb[0].mxu0 %v7199
    %v7410 = vpop.f32.mrb[0].mxu0
    %v7411 = vadd.f32 0.0, %v7410
    %v7412 = vpop.f32.mrb[0].mxu0
    %v7413 = vpop.f32.mrb[0].mxu0
    %v7414 = vadd.f32 0.0, %v7413
    %v7415 = vpop.f32.mrb[0].mxu0
    %7416 = vmatprep.mubr.bf16.mxu0 %v7203
    %7417 = vmatmul.mubr.bf16.gmra.mrb[0].mxu0 %v7202
    %v7418 = vpop.f32.mrb[0].mxu0
    %v7419 = vadd.f32 0.0, %v7418
    %v7420 = vpop.f32.mrb[0].mxu0
    %v7421 = vpop.f32.mrb[0].mxu0
    %v7422 = vadd.f32 0.0, %v7421
    %v7423 = vpop.f32.mrb[0].mxu0
    %7424 = vmatprep.mubr.bf16.mxu0 %v7206
    %7425 = vmatmul.mubr.bf16.gmra.mrb[0].mxu0 %v7205
    %v7426 = vpop.f32.mrb[0].mxu0
    %v7427 = vadd.f32 0.0, %v7426
    %v7428 = vpop.f32.mrb[0].mxu0
    %v7429 = vpop.f32.mrb[0].mxu0
    %v7430 = vadd.f32 0.0, %v7429
    %v7431 = vpop.f32.mrb[0].mxu0
    %7432 = vmatprep.mubr.bf16.mxu0 %v7209
    %7433 = vmatmul.mubr.bf16.gmra.mrb[0].mxu0 %v7208
    %v7434 = vpop.f32.mrb[0].mxu0
    %v7435 = vadd.f32 0.0, %v7434
    %v7436 = vpop.f32.mrb[0].mxu0
    %v7437 = vpop.f32.mrb[0].mxu0
    %v7438 = vadd.f32 0.0, %v7437
    %v7439 = vpop.f32.mrb[0].mxu0
    %7440 = vmatprep.mubr.bf16.mxu0 %v7212
    %7441 = vmatmul.mubr.bf16.gmra.mrb[0].mxu0 %v7211
    %v7442 = vpop.f32.mrb[0].mxu0
    %v7443 = vadd.f32 0.0, %v7442
    %v7444 = vpop.f32.mrb[0].mxu0
    %v7445 = vpop.f32.mrb[0].mxu0
    %v7446 = vadd.f32 0.0, %v7445
    %v7447 = vpop.f32.mrb[0].mxu0
    %7448 = vmatprep.mubr.bf16.mxu0 %v7215
    %7449 = vmatmul.mubr.bf16.gmra.mrb[0].mxu0 %v7214
    %v7450 = vpop.f32.mrb[0].mxu0
    %v7451 = vadd.f32 0.0, %v7450
    %v7452 = vpop.f32.mrb[0].mxu0
    %v7453 = vpop.f32.mrb[0].mxu0
    %v7454 = vadd.f32 0.0, %v7453
    %v7455 = vpop.f32.mrb[0].mxu0
    %7456 = vmatprep.mubr.bf16.mxu0 %v7218
    %7457 = vmatmul.mubr.bf16.gmra.mrb[0].mxu0 %v7217
    %v7458 = vpop.f32.mrb[0].mxu0
    %v7459 = vadd.f32 0.0, %v7458
    %v7460 = vpop.f32.mrb[0].mxu0
    %v7461 = vpop.f32.mrb[0].mxu0
    %v7462 = vadd.f32 0.0, %v7461
    %v7463 = vpop.f32.mrb[0].mxu0
    %7464 = vdwg.mxu0
    %7465 = vmatprep.subr.bf16.mxu0 0
    %7466 = vmatpush1.bf16.msra.mxu0 %v7324
    %7467 = vmatprep.subr.bf16.mxu0 0
    %7468 = vmatpush1.bf16.msra.mxu0 %v7325
    %7469 = vmatprep.subr.bf16.mxu0 0
    %7470 = vmatpush1.bf16.msra.mxu0 0
    %7471 = vmatprep.subr.bf16.mxu0 0
    %7472 = vmatpush1.bf16.msra.mxu0 0
    %7473 = vmatprep.subr.bf16.mxu0 0
    %7474 = vmatpush1.bf16.msra.mxu0 0
    %7475 = vmatprep.subr.bf16.mxu0 0
    %7476 = vmatpush1.bf16.msra.mxu0 0
    %7477 = vmatprep.subr.bf16.mxu0 0
    %7478 = vmatpush1.bf16.msra.mxu0 0
    %7479 = vmatprep.subr.bf16.mxu0 0
    %7480 = vmatpush1.bf16.msra.mxu0 0
    %7481 = vmatprep.subr.bf16.mxu0 0
    %7482 = vmatpush1.bf16.msra.mxu0 0
    %7483 = vmatprep.subr.bf16.mxu0 0
    %7484 = vmatpush1.bf16.msra.mxu0 0
    %7485 = vmatprep.subr.bf16.mxu0 0
    %7486 = vmatpush1.bf16.msra.mxu0 0
    %7487 = vmatprep.subr.bf16.mxu0 0
    %7488 = vmatpush1.bf16.msra.mxu0 0
    %7489 = vmatprep.subr.bf16.mxu0 0
    %7490 = vmatpush1.bf16.msra.mxu0 0
    %7491 = vmatprep.subr.bf16.mxu0 0
    %7492 = vmatpush1.bf16.msra.mxu0 0
    %7493 = vmatprep.subr.bf16.mxu0 0
    %7494 = vmatpush1.bf16.msra.mxu0 0
    %7495 = vmatprep.subr.bf16.mxu0 0
    %7496 = vmatpush1.bf16.msra.mxu0 0
    %7497 = vmatprep.mubr.bf16.mxu0 0
    %7498 = vmatmul.mubr.bf16.gmra.mrb[0].mxu0 %v7345
    %v7499 = vpop.f32.mrb[0].mxu0
    %v7500 = vadd.f32 %v7403, %v7499
    %v7501 = vpop.f32.mrb[0].mxu0
    %v7502 = vpop.f32.mrb[0].mxu0
    %v7503 = vadd.f32 %v7406, %v7502
    %v7504 = vpop.f32.mrb[0].mxu0
    %7505 = vmatprep.mubr.bf16.mxu0 0
    %7506 = vmatmul.mubr.bf16.gmra.mrb[0].mxu0 %v7348
    %v7507 = vpop.f32.mrb[0].mxu0
    %v7508 = vadd.f32 %v7411, %v7507
    %v7509 = vpop.f32.mrb[0].mxu0
    %v7510 = vpop.f32.mrb[0].mxu0
    %v7511 = vadd.f32 %v7414, %v7510
    %v7512 = vpop.f32.mrb[0].mxu0
    %7513 = vmatprep.mubr.bf16.mxu0 0
    %7514 = vmatmul.mubr.bf16.gmra.mrb[0].mxu0 %v7351
    %v7515 = vpop.f32.mrb[0].mxu0
    %v7516 = vadd.f32 %v7419, %v7515
    %v7517 = vpop.f32.mrb[0].mxu0
    %v7518 = vpop.f32.mrb[0].mxu0
    %v7519 = vadd.f32 %v7422, %v7518
    %v7520 = vpop.f32.mrb[0].mxu0
    %7521 = vmatprep.mubr.bf16.mxu0 0
    %7522 = vmatmul.mubr.bf16.gmra.mrb[0].mxu0 %v7354
    %v7523 = vpop.f32.mrb[0].mxu0
    %v7524 = vadd.f32 %v7427, %v7523
    %v7525 = vpop.f32.mrb[0].mxu0
    %v7526 = vpop.f32.mrb[0].mxu0
    %v7527 = vadd.f32 %v7430, %v7526
    %v7528 = vpop.f32.mrb[0].mxu0
    %7529 = vmatprep.mubr.bf16.mxu0 0
    %7530 = vmatmul.mubr.bf16.gmra.mrb[0].mxu0 %v7357
    %v7531 = vpop.f32.mrb[0].mxu0
    %v7532 = vadd.f32 %v7435, %v7531
    %v7533 = vpop.f32.mrb[0].mxu0
    %v7534 = vpop.f32.mrb[0].mxu0
    %v7535 = vadd.f32 %v7438, %v7534
    %v7536 = vpop.f32.mrb[0].mxu0
    %7537 = vmatprep.mubr.bf16.mxu0 0
    %7538 = vmatmul.mubr.bf16.gmra.mrb[0].mxu0 %v7360
    %v7539 = vpop.f32.mrb[0].mxu0
    %v7540 = vadd.f32 %v7443, %v7539
    %v7541 = vpop.f32.mrb[0].mxu0
    %v7542 = vpop.f32.mrb[0].mxu0
    %v7543 = vadd.f32 %v7446, %v7542
    %v7544 = vpop.f32.mrb[0].mxu0
    %7545 = vmatprep.mubr.bf16.mxu0 0
    %7546 = vmatmul.mubr.bf16.gmra.mrb[0].mxu0 %v7363
    %v7547 = vpop.f32.mrb[0].mxu0
    %v7548 = vadd.f32 %v7451, %v7547
    %v7549 = vpop.f32.mrb[0].mxu0
    %v7550 = vpop.f32.mrb[0].mxu0
    %v7551 = vadd.f32 %v7454, %v7550
    %v7552 = vpop.f32.mrb[0].mxu0
    %7553 = vmatprep.mubr.bf16.mxu0 0
    %7554 = vmatmul.mubr.bf16.gmra.mrb[0].mxu0 %v7366
    %v7555 = vpop.f32.mrb[0].mxu0
    %v7556 = vadd.f32 %v7459, %v7555
    %v7557 = vpop.f32.mrb[0].mxu0
    %v7558 = vpop.f32.mrb[0].mxu0
    %v7559 = vadd.f32 %v7462, %v7558
    %v7560 = vpop.f32.mrb[0].mxu0
    %7561 = vdwg.mxu0
    %v7562 = vsel %vm4716, %v7500, 0.0
    %v7563 = vsel %vm4716, %v7503, 0.0
    %v7564 = vadd.f32 %v7562, %v7563
    %v7565 = vsel %vm4716, %v7508, 0.0
    %v7566 = vadd.f32 %v7564, %v7565
    %v7567 = vsel %vm4716, %v7511, 0.0
    %v7568 = vadd.f32 %v7566, %v7567
    %v7569 = vsel %vm4716, %v7516, 0.0
    %v7570 = vadd.f32 %v7568, %v7569
    %v7571 = vsel %vm4716, %v7519, 0.0
    %v7572 = vadd.f32 %v7570, %v7571
    %v7573 = vsel %vm4716, %v7524, 0.0
    %v7574 = vadd.f32 %v7572, %v7573
    %v7575 = vsel %vm4716, %v7527, 0.0
    %v7576 = vadd.f32 %v7574, %v7575
    %v7577 = vrot.slane %v7576, 4
    %v7578 = vadd.f32 %v7576, %v7577
    %v7579 = vrot.slane %v7578, 2
    %v7580 = vadd.f32 %v7578, %v7579
    %v7581 = vrot.slane %v7580, 1
    %v7582 = vadd.f32 %v7580, %v7581
    %v7583 = vsel %vm4716, %v7532, 0.0
    %v7584 = vsel %vm4716, %v7535, 0.0
    %v7585 = vadd.f32 %v7583, %v7584
    %v7586 = vsel %vm4716, %v7540, 0.0
    %v7587 = vadd.f32 %v7585, %v7586
    %v7588 = vsel %vm4716, %v7543, 0.0
    %v7589 = vadd.f32 %v7587, %v7588
    %v7590 = vsel %vm4716, %v7548, 0.0
    %v7591 = vadd.f32 %v7589, %v7590
    %v7592 = vsel %vm4716, %v7551, 0.0
    %v7593 = vadd.f32 %v7591, %v7592
    %v7594 = vsel %vm4716, %v7556, 0.0
    %v7595 = vadd.f32 %v7593, %v7594
    %v7596 = vsel %vm4716, %v7559, 0.0
    %v7597 = vadd.f32 %v7595, %v7596
    %v7598 = vrot.slane %v7597, 4
    %v7599 = vadd.f32 %v7597, %v7598
    %v7600 = vrot.slane %v7599, 2
    %v7601 = vadd.f32 %v7599, %v7600
    %v7602 = vrot.slane %v7601, 1
    %v7603 = vadd.f32 %v7601, %v7602
    %v7604 = vmul.f32 %v7582, 0.015625
    %v7605 = vmul.f32 %v7603, 0.015625
    %v7606 = vld [vmem:[%s7] sm:$0xff]
    %v7607 = vld [vmem:[%s7 + $0x8] sm:$0xff]
    %v7608 = vld [vmem:[%s7 + $0x10] sm:$0xff]
    %v7609 = vld [vmem:[%s7 + $0x18] sm:$0xff]
    %v7610 = vld [vmem:[%s8] sm:$0x1]
    %v7612 = vlaneseq
    %v7613 = vshrl.u32 %v7612, 7
    %v7614 = vsub.s32 0, %v7613
    %v7615 = vrot.slane %v7610, %v7614
    %vm7619 = vcmask 1041409
    %v7620 = vsel %vm7619, %v7605, %v7604
    %v7621 = vsel %vm4716, %v7620, 0
    %7623 = vmatprep.subr.mxu0 0.0
    %7624 = vmatpush1.msra.mxu0 %v7606
    %7625 = vmatprep.subr.mxu0 0.0
    %7626 = vmatpush1.msra.mxu0 %v7607
    %7627 = vmatprep.subr.mxu0 0.0
    %7628 = vmatpush1.msra.mxu0 %v7608
    %7629 = vmatprep.subr.mxu0 0.0
    %7630 = vmatpush1.msra.mxu0 %v7609
    %7631 = vmatprep.subr.mxu0 0.0
    %7632 = vmatpush1.msra.mxu0 0.0
    %7633 = vmatprep.subr.mxu0 0.0
    %7634 = vmatpush1.msra.mxu0 0.0
    %7635 = vmatprep.subr.mxu0 0.0
    %7636 = vmatpush1.msra.mxu0 0.0
    %7637 = vmatprep.subr.mxu0 0.0
    %7638 = vmatpush1.msra.mxu0 0.0
    %7639 = vmatprep.subr.mxu0 0.0
    %7640 = vmatpush1.msra.mxu0 0.0
    %7641 = vmatprep.subr.mxu0 0.0
    %7642 = vmatpush1.msra.mxu0 0.0
    %7643 = vmatprep.subr.mxu0 0.0
    %7644 = vmatpush1.msra.mxu0 0.0
    %7645 = vmatprep.subr.mxu0 0.0
    %7646 = vmatpush1.msra.mxu0 0.0
    %7647 = vmatprep.subr.mxu0 0.0
    %7648 = vmatpush1.msra.mxu0 0.0
    %7649 = vmatprep.subr.mxu0 0.0
    %7650 = vmatpush1.msra.mxu0 0.0
    %7651 = vmatprep.subr.mxu0 0.0
    %7652 = vmatpush1.msra.mxu0 0.0
    %7653 = vmatprep.subr.mxu0 0.0
    %7654 = vmatpush1.msra.mxu0 0.0
    %7655 = vmatprep.subr.mxu0 0.0
    %7656 = vmatpush1.msra.mxu0 0.0
    %7657 = vmatprep.subr.mxu0 0.0
    %7658 = vmatpush1.msra.mxu0 0.0
    %7659 = vmatprep.subr.mxu0 0.0
    %7660 = vmatpush1.msra.mxu0 0.0
    %7661 = vmatprep.subr.mxu0 0.0
    %7662 = vmatpush1.msra.mxu0 0.0
    %7663 = vmatprep.subr.mxu0 0.0
    %7664 = vmatpush1.msra.mxu0 0.0
    %7665 = vmatprep.subr.mxu0 0.0
    %7666 = vmatpush1.msra.mxu0 0.0
    %7667 = vmatprep.subr.mxu0 0.0
    %7668 = vmatpush1.msra.mxu0 0.0
    %7669 = vmatprep.subr.mxu0 0.0
    %7670 = vmatpush1.msra.mxu0 0.0
    %7671 = vmatprep.subr.mxu0 0.0
    %7672 = vmatpush1.msra.mxu0 0.0
    %7673 = vmatprep.subr.mxu0 0.0
    %7674 = vmatpush1.msra.mxu0 0.0
    %7675 = vmatprep.subr.mxu0 0.0
    %7676 = vmatpush1.msra.mxu0 0.0
    %7677 = vmatprep.subr.mxu0 0.0
    %7678 = vmatpush1.msra.mxu0 0.0
    %7679 = vmatprep.subr.mxu0 0.0
    %7680 = vmatpush1.msra.mxu0 0.0
    %7681 = vmatprep.subr.mxu0 0.0
    %7682 = vmatpush1.msra.mxu0 0.0
    %7683 = vmatprep.subr.mxu0 0.0
    %7684 = vmatpush1.msra.mxu0 0.0
    %7685 = vmatprep.subr.mxu0 0.0
    %7686 = vmatpush1.msra.mxu0 0.0
    %7687 = vmatprep.mubr.f32.mxu0 0.0
    %7688 = vmatmul.mubr.f32.gmra.mrb[0].mxu0 %v7621
    %v7689 = vpop.f32.mrb[0].mxu0
    %v7690 = vadd.f32 %v7615, %v7689
    %v7691 = vpop.f32.mrb[0].mxu0
    %7692 = vdwg.mxu0
    %v7693 = vmax.f32 %v7690, 0.0
    %v7694 = vld [vmem:[%s9] sm:$0x3]
    %v7695 = vld [vmem:[%s10] sm:$0x1]
    %v7697 = vlaneseq
    %v7698 = vshrl.u32 %v7697, 7
    %v7699 = vsub.s32 0, %v7698
    %v7700 = vrot.slane %v7695, %v7699
    %vm7702 = vcmask 15360
    %v7704 = vsel %vm7702, %v7693, 0
    %vm7706 = vcmask 1041408
    %v7708 = vsel %vm7706, %v7694, 0
    %7710 = vmatprep.subr.mxu0 0.0
    %7711 = vmatpush1.msra.mxu0 %v7708
    %7712 = vmatprep.subr.mxu0 0.0
    %7713 = vmatpush1.msra.mxu0 0.0
    %7714 = vmatprep.subr.mxu0 0.0
    %7715 = vmatpush1.msra.mxu0 0.0
    %7716 = vmatprep.subr.mxu0 0.0
    %7717 = vmatpush1.msra.mxu0 0.0
    %7718 = vmatprep.subr.mxu0 0.0
    %7719 = vmatpush1.msra.mxu0 0.0
    %7720 = vmatprep.subr.mxu0 0.0
    %7721 = vmatpush1.msra.mxu0 0.0
    %7722 = vmatprep.subr.mxu0 0.0
    %7723 = vmatpush1.msra.mxu0 0.0
    %7724 = vmatprep.subr.mxu0 0.0
    %7725 = vmatpush1.msra.mxu0 0.0
    %7726 = vmatprep.subr.mxu0 0.0
    %7727 = vmatpush1.msra.mxu0 0.0
    %7728 = vmatprep.subr.mxu0 0.0
    %7729 = vmatpush1.msra.mxu0 0.0
    %7730 = vmatprep.subr.mxu0 0.0
    %7731 = vmatpush1.msra.mxu0 0.0
    %7732 = vmatprep.subr.mxu0 0.0
    %7733 = vmatpush1.msra.mxu0 0.0
    %7734 = vmatprep.subr.mxu0 0.0
    %7735 = vmatpush1.msra.mxu0 0.0
    %7736 = vmatprep.subr.mxu0 0.0
    %7737 = vmatpush1.msra.mxu0 0.0
    %7738 = vmatprep.subr.mxu0 0.0
    %7739 = vmatpush1.msra.mxu0 0.0
    %7740 = vmatprep.subr.mxu0 0.0
    %7741 = vmatpush1.msra.mxu0 0.0
    %7742 = vmatprep.subr.mxu0 0.0
    %7743 = vmatpush1.msra.mxu0 0.0
    %7744 = vmatprep.subr.mxu0 0.0
    %7745 = vmatpush1.msra.mxu0 0.0
    %7746 = vmatprep.subr.mxu0 0.0
    %7747 = vmatpush1.msra.mxu0 0.0
    %7748 = vmatprep.subr.mxu0 0.0
    %7749 = vmatpush1.msra.mxu0 0.0
    %7750 = vmatprep.subr.mxu0 0.0
    %7751 = vmatpush1.msra.mxu0 0.0
    %7752 = vmatprep.subr.mxu0 0.0
    %7753 = vmatpush1.msra.mxu0 0.0
    %7754 = vmatprep.subr.mxu0 0.0
    %7755 = vmatpush1.msra.mxu0 0.0
    %7756 = vmatprep.subr.mxu0 0.0
    %7757 = vmatpush1.msra.mxu0 0.0
    %7758 = vmatprep.subr.mxu0 0.0
    %7759 = vmatpush1.msra.mxu0 0.0
    %7760 = vmatprep.subr.mxu0 0.0
    %7761 = vmatpush1.msra.mxu0 0.0
    %7762 = vmatprep.subr.mxu0 0.0
    %7763 = vmatpush1.msra.mxu0 0.0
    %7764 = vmatprep.subr.mxu0 0.0
    %7765 = vmatpush1.msra.mxu0 0.0
    %7766 = vmatprep.subr.mxu0 0.0
    %7767 = vmatpush1.msra.mxu0 0.0
    %7768 = vmatprep.subr.mxu0 0.0
    %7769 = vmatpush1.msra.mxu0 0.0
    %7770 = vmatprep.subr.mxu0 0.0
    %7771 = vmatpush1.msra.mxu0 0.0
    %7772 = vmatprep.subr.mxu0 0.0
    %7773 = vmatpush1.msra.mxu0 0.0
    %7774 = vmatprep.mubr.f32.mxu0 0.0
    %7775 = vmatmul.mubr.f32.gmra.mrb[0].mxu0 %v7704
    %v7776 = vpop.f32.mrb[0].mxu0
    %v7777 = vadd.f32 %v7700, %v7776
    %v7778 = vpop.f32.mrb[0].mxu0
    %7779 = vdwg.mxu0
    %v7780 = vsub.f32 0.0, %v7777
    %v7781 = vmul.f32 %v7780, 1.442695
    %v7782 = vpow.pop %v7781
    %v7783 = vadd.f32 %v7782, 1.0
    %v7784 = vrcp.pop %v7783
    %v7785 = vmul.f32 1.0, %v7784
    %v7788 = vunpack.c.l.s4 1966171168
    %v7789 = vunpack.c.0.s8 %v7788
    %v7790 = vlaneseq
    %v7791 = vshrl.u32 %v7790, 7
    %v7792 = vsub.s32 %v7789, %v7791
    %v7793 = vrot.slane %v7785, %v7792
    %v7794 = vcombine.high %v7793, %v7793
    %v7796 = vunpack.c.l.s4 1966171168
    %v7797 = vunpack.c.0.s8 %v7796
    %v7798 = vlaneseq
    %v7799 = vshrl.u32 %v7798, 7
    %v7800 = vsub.s32 %v7797, %v7799
    %v7801 = vrot.slane %v7793, %v7800
    %v7803 = vunpack.c.l.s4 1966171168
    %v7804 = vunpack.c.0.s8 %v7803
    %v7805 = vlaneseq
    %v7806 = vshrl.u32 %v7805, 7
    %v7807 = vsub.s32 %v7804, %v7806
    %v7808 = vrot.slane %v7794, %v7807
    %v7809 = vlaneseq
    %v7810 = vshrl.u32 %v7809, 7
    %v7811 = vsub.s32 0, %v7810
    %v7812 = vrot.slane %v7801, %v7811
    %v7813 = vlaneseq
    %v7814 = vshrl.u32 %v7813, 7
    %v7815 = vsub.s32 0, %v7814
    %v7816 = vrot.slane %v7808, %v7815
    %v7819 = vmul.f32 %v7500, %v7812
    %v7820 = vmul.f32 %v7503, %v7812
    %v7821 = vmul.f32 %v7508, %v7812
    %v7822 = vmul.f32 %v7511, %v7812
    %v7823 = vmul.f32 %v7516, %v7812
    %v7824 = vmul.f32 %v7519, %v7812
    %v7825 = vmul.f32 %v7524, %v7812
    %v7826 = vmul.f32 %v7527, %v7812
    %v7827 = vmul.f32 %v7532, %v7816
    %v7828 = vmul.f32 %v7535, %v7816
    %v7829 = vmul.f32 %v7540, %v7816
    %v7830 = vmul.f32 %v7543, %v7816
    %v7831 = vmul.f32 %v7548, %v7816
    %v7832 = vmul.f32 %v7551, %v7816
    %v7833 = vmul.f32 %v7556, %v7816
    %v7834 = vmul.f32 %v7559, %v7816
    %v7835 = vld [vmem:[#allocation6] sm:$0xff]
    %v7836 = vld [vmem:[#allocation6 + $0x8] sm:$0xff]
    %v7837 = vld [vmem:[#allocation6 + $0x10] sm:$0xff]
    %v7838 = vld [vmem:[#allocation6 + $0x18] sm:$0xff]
    %v7839 = vld [vmem:[#allocation6 + $0x20] sm:$0xff]
    %v7840 = vld [vmem:[#allocation6 + $0x28] sm:$0xff]
    %v7841 = vld [vmem:[#allocation6 + $0x30] sm:$0xff]
    %v7842 = vld [vmem:[#allocation6 + $0x38] sm:$0xff]
    %v7843 = vld [vmem:[#allocation6 + $0x40] sm:$0xff]
    %v7844 = vld [vmem:[#allocation6 + $0x48] sm:$0xff]
    %v7845 = vld [vmem:[#allocation6 + $0x50] sm:$0xff]
    %v7846 = vld [vmem:[#allocation6 + $0x58] sm:$0xff]
    %v7847 = vld [vmem:[#allocation6 + $0x60] sm:$0xff]
    %v7848 = vld [vmem:[#allocation6 + $0x68] sm:$0xff]
    %v7849 = vld [vmem:[#allocation6 + $0x70] sm:$0xff]
    %v7850 = vld [vmem:[#allocation6 + $0x78] sm:$0xff]
    %v7851 = vadd.f32 %v7819, %v7835
    %v7852 = vadd.f32 %v7820, %v7836
    %v7853 = vadd.f32 %v7821, %v7837
    %v7854 = vadd.f32 %v7822, %v7838
    %v7855 = vadd.f32 %v7823, %v7839
    %v7856 = vadd.f32 %v7824, %v7840
    %v7857 = vadd.f32 %v7825, %v7841
    %v7858 = vadd.f32 %v7826, %v7842
    %v7859 = vadd.f32 %v7827, %v7843
    %v7860 = vadd.f32 %v7828, %v7844
    %v7861 = vadd.f32 %v7829, %v7845
    %v7862 = vadd.f32 %v7830, %v7846
    %v7863 = vadd.f32 %v7831, %v7847
    %v7864 = vadd.f32 %v7832, %v7848
    %v7865 = vadd.f32 %v7833, %v7849
    %v7866 = vadd.f32 %v7834, %v7850
    %7867 = vst.msk [vmem:[#allocation6] sm:$0xff] %vm4716, %v7851
    %7868 = vst.msk [vmem:[#allocation6 + $0x8] sm:$0xff] %vm4716, %v7852
    %7869 = vst.msk [vmem:[#allocation6 + $0x10] sm:$0xff] %vm4716, %v7853
    %7870 = vst.msk [vmem:[#allocation6 + $0x18] sm:$0xff] %vm4716, %v7854
    %7871 = vst.msk [vmem:[#allocation6 + $0x20] sm:$0xff] %vm4716, %v7855
    %7872 = vst.msk [vmem:[#allocation6 + $0x28] sm:$0xff] %vm4716, %v7856
    %7873 = vst.msk [vmem:[#allocation6 + $0x30] sm:$0xff] %vm4716, %v7857
    %7874 = vst.msk [vmem:[#allocation6 + $0x38] sm:$0xff] %vm4716, %v7858
    %7875 = vst.msk [vmem:[#allocation6 + $0x40] sm:$0xff] %vm4716, %v7859
    %7876 = vst.msk [vmem:[#allocation6 + $0x48] sm:$0xff] %vm4716, %v7860
    %7877 = vst.msk [vmem:[#allocation6 + $0x50] sm:$0xff] %vm4716, %v7861
    %7878 = vst.msk [vmem:[#allocation6 + $0x58] sm:$0xff] %vm4716, %v7862
    %7879 = vst.msk [vmem:[#allocation6 + $0x60] sm:$0xff] %vm4716, %v7863
    %7880 = vst.msk [vmem:[#allocation6 + $0x68] sm:$0xff] %vm4716, %v7864
    %7881 = vst.msk [vmem:[#allocation6 + $0x70] sm:$0xff] %vm4716, %v7865
    %7882 = vst.msk [vmem:[#allocation6 + $0x78] sm:$0xff] %vm4716, %v7866
    // Predicated region
    $region46: #{preact_block_forward.1} parent=1 // pred_check
      _
    $region47: #{preact_block_forward.1} parent=1 // pred_check_branch
      %7884 = sbr.rel (0) target = $region49
    $region48: #{preact_block_forward.1} parent=1 // pred_region
      %s7886 = ssub.s32 2048, 2048
      %7887 = vsyncadd [#allocation7], %s7886
      %s7888 = sshll.u32 [#allocation6], 4
      %s7889 = int_to_ptr.vmem [resolvable:$true] %s7888
      %7894 = dma.vmem_to_hbm [thread:$0]  %s7889, 2048, %s11, [#allocation7], 128, 128, 8
    $region49: #{preact_block_forward.1} parent=1 // pred_fallthru
      _
    // Predicated region
    $region50: #{preact_block_forward.1} parent=1 // pred_check
      _
    $region51: #{preact_block_forward.1} parent=1 // pred_check_branch
      %7896 = sbr.rel (0) target = $region53
    $region52: #{preact_block_forward.1} parent=1 // pred_region
      %7897 = dma.done [#allocation7], 2048
    $region53: #{preact_block_forward.1} parent=1 // pred_fallthru
      _
    %7898 = vsyncpa [#allocation7], 1

</llo_original>
